<compile_context>
chip_gen: v5e
topology: v5e:2x2
jax: 0.10.0
libtpu: 0.0.40
codegen_flags: <defaults>
</compile_context>

<pallas_src>
import jax
import jax.numpy as jnp
from jax.experimental import pallas as pl
from jax.experimental.pallas import tpu as pltpu

N_OBJECTS = 8            # forced by: 2 * N_OBJECTS * 8 == 128 (fc_layers input)
ROI_OUT = 2              # TorchROIPooling(output_size=2)
ROI_CH = 64              # 64 * 2*2*2 = 512 = GATConv(512, .) in_channels
K3 = ROI_OUT ** 3
GAT_DIMS = [(512, 256), (256, 128), (128, 64), (64, 16), (16, 8)]
GNN_OUT = GAT_DIMS[-1][1]
BASE_HID = 32
HEAD_OUT = 64
NEG = -1e30              # additive "outside-bin" mask value (every bin has >=1 voxel)


# ----------------------------------------------------------------------------
# The fused Pallas kernel: one grid step == one image, everything in VMEM.
# ----------------------------------------------------------------------------
def _fused_scene_graph_kernel(
    x_ref, mask_ref,
    bw1_ref, bb1_ref, bw2_ref, bb2_ref,          # baseline backbone
    rw_ref, rb_ref,                              # ROI 1x1x1 conv
    g1w_ref, g1s_ref, g1d_ref, g1b_ref,          # GATConv(512, 256)
    g2w_ref, g2s_ref, g2d_ref, g2b_ref,          # GATConv(256, 128)
    g3w_ref, g3s_ref, g3d_ref, g3b_ref,          # GATConv(128, 64)
    g4w_ref, g4s_ref, g4d_ref, g4b_ref,          # GATConv(64, 16)
    g5w_ref, g5s_ref, g5d_ref, g5b_ref,          # GATConv(16, 8)
    hwc_ref, hwg_ref, hwb_ref,                   # head Linear(128, 64) split halves
    o_ref,
):
    xT = x_ref[0]                                          # (Cin, S), S on lanes

    # --- BaselineModel (synthetic): pointwise conv -> ReLU -> mean pool -> Linear
    base_h = jnp.dot(bw1_ref[...], xT,
                     preferred_element_type=jnp.float32) + bb1_ref[...]
    base_h = jnp.maximum(base_h, 0.0)                      # (32, S)
    pooled = jnp.mean(base_h, axis=1, keepdims=True)       # (32, 1)
    conv_x = jnp.dot(jnp.transpose(pooled), bw2_ref[...],
                     preferred_element_type=jnp.float32) + bb2_ref[...]   # (1, 64)

    # --- roi_model.conv_layers (synthetic 1x1x1 conv + ReLU), lane-dense (C, S)
    featT = jnp.dot(rw_ref[...], xT,
                    preferred_element_type=jnp.float32) + rb_ref[...]
    featT = jnp.maximum(featT, 0.0)                        # (ROI_CH, S)

    # --- 3D ROI max-pool fused with the GAT layer-1 linear ----------------------
    # For every bin k3=(kd,kh,kw): pooled[n, c] = max_{s in bin(n,k3)} featT[c, s],
    # via the additive (0 / -1e30) mask.  Each pooled (N, ROI_CH) block is consumed
    # immediately by the matching ROI_CH-row block of the GAT-1 weight, so the
    # (N, 512) node-feature matrix never leaves VMEM (never even materializes).
    h = jnp.zeros((N_OBJECTS, GAT_DIMS[0][1]), jnp.float32)
    for k3 in range(K3):
        m = mask_ref[0, k3]                                # (N, S)
        t = featT[None, :, :] + m[:, None, :]              # (N, ROI_CH, S)
        pooled_k3 = jnp.max(t, axis=2)                     # (N, ROI_CH)
        w_blk = g1w_ref[k3 * ROI_CH:(k3 + 1) * ROI_CH, :]  # (ROI_CH, 256)
        h = h + jnp.dot(pooled_k3, w_blk, preferred_element_type=jnp.float32)

    # --- dense single-head GATConv over the fully connected per-image graph -----
    # att_src/att_dst are stored as (fout, 1) columns so the score projections
    # ride the MXU (idle otherwise here) instead of VPU-mul + XLU lane-reduce.
    def gat_attention(hm, s_col, d_col, bias):
        e_src = jnp.dot(hm, s_col, preferred_element_type=jnp.float32)   # (N, 1)
        e_dst = jnp.dot(hm, d_col, preferred_element_type=jnp.float32)   # (N, 1)
        z = e_dst + jnp.transpose(e_src)                     # (N, N): z[i, j]
        z = jnp.where(z > 0.0, z, 0.2 * z)                   # LeakyReLU(0.2)
        z = z - jnp.max(z, axis=1, keepdims=True)
        p = jnp.exp(z)
        inv = pl.reciprocal(jnp.sum(p, axis=1, keepdims=True), approx=True)
        return jnp.dot(p * inv, hm, preferred_element_type=jnp.float32) + bias

    g = gat_attention(h, g1s_ref[...], g1d_ref[...], g1b_ref[...])        # (N, 256)
    for w_ref, s_ref, d_ref, b_ref in (
        (g2w_ref, g2s_ref, g2d_ref, g2b_ref),
        (g3w_ref, g3s_ref, g3d_ref, g3b_ref),
        (g4w_ref, g4s_ref, g4d_ref, g4b_ref),
        (g5w_ref, g5s_ref, g5d_ref, g5b_ref),
    ):
        # reference chains GATConv layers with no nonlinearity in between
        hm = jnp.dot(g, w_ref[...], preferred_element_type=jnp.float32)
        g = gat_attention(hm, s_ref[...], d_ref[...], b_ref[...])
    # g: (N, 8); row-major (n, c) flattening matches gnn_x.view(b, -1)

    # --- head: Linear(128, 64) on [conv_x | flatten(g)], then F.normalize(p=2) ---
    out = jnp.dot(conv_x, hwc_ref[...],
                  preferred_element_type=jnp.float32) + hwb_ref[...]       # (1, 64)
    for n in range(N_OBJECTS):                              # 8 tiny static MXU dots
        out = out + jnp.dot(g[n:n + 1, :],
                            hwg_ref[n * GNN_OUT:(n + 1) * GNN_OUT, :],
                            preferred_element_type=jnp.float32)
    ss = jnp.sum(out * out, axis=1, keepdims=True)
    o_ref[0] = out * jax.lax.rsqrt(jnp.maximum(ss, 1e-24))   # eps matches 1e-12 norm


# ----------------------------------------------------------------------------
# Tiny plain-JAX helper: additive ROI bin masks (no channel dim, no feature
# broadcast) -- (B, K^3, N, S) f32, 0 inside the bin, -1e30 outside.
# ----------------------------------------------------------------------------
def build_roi_bin_masks(proposals, depth, height, width):
    b, n, _ = proposals.shape
    k = ROI_OUT

    def axis_bins(lo, hi, size):
        lo_px = lo * size
        hi_px = hi * size
        ks = jnp.arange(k, dtype=jnp.float32)
        bin_lo = lo_px[..., None] + (hi_px - lo_px)[..., None] * ks / k
        bin_hi = lo_px[..., None] + (hi_px - lo_px)[..., None] * (ks + 1.0) / k
        start = jnp.clip(jnp.floor(bin_lo), 0.0, size - 1.0)
        end = jnp.clip(jnp.ceil(bin_hi), start + 1.0, float(size))
        idx = jnp.arange(size, dtype=jnp.float32)
        return (idx >= start[..., None]) & (idx < end[..., None])   # (B, N, K, size)

    # proposal layout (x1,y1,z1,x2,y2,z2); x -> W, y -> H, z -> D.
    mw = axis_bins(proposals[..., 0], proposals[..., 3], width)
    mh = axis_bins(proposals[..., 1], proposals[..., 4], height)
    md = axis_bins(proposals[..., 2], proposals[..., 5], depth)
    m = (md[:, :, :, None, None, :, None, None]
         & mh[:, :, None, :, None, None, :, None]
         & mw[:, :, None, None, :, None, None, :])        # (B, N, Kd, Kh, Kw, D, H, W)
    m = m.reshape(b, n, k ** 3, depth * height * width)
    add = jnp.where(m, 0.0, NEG).astype(jnp.float32)
    return jnp.transpose(add, (0, 2, 1, 3))                # (B, K^3, N, S)


# ----------------------------------------------------------------------------
# Forward pass wrapper
# ----------------------------------------------------------------------------
def scene_graph_forward(x_ncdhw, proposals, params):
    B, Cin, D, H, W = x_ncdhw.shape
    S = D * H * W
    # NCDHW is already channels-first: free reshape to the (Cin, S) layout the
    # kernel wants (S on the lane axis -> lane-dense loads/stores).
    x_cs = x_ncdhw.reshape(B, Cin, S)
    masks = build_roi_bin_masks(proposals, D, H, W)        # (B, K3, N, S)

    weights = (params["baseline"] + params["roi_conv"]
               + tuple(w for layer in params["gat"] for w in layer)
               + params["head"])

    # TODO(synk): for realistic volumes (large S) the conv/baseline stage needs an
    # S-tiled grid axis; at S=512 whole-volume per-image blocks fit VMEM on v5e-v7x.
    out = pl.pallas_call(
        _fused_scene_graph_kernel,
        out_shape=jax.ShapeDtypeStruct((B, 1, HEAD_OUT), jnp.float32),
        grid=(B,),
        in_specs=[
            pl.BlockSpec((1, Cin, S), lambda i: (i, 0, 0)),
            pl.BlockSpec((1, K3, N_OBJECTS, S), lambda i: (i, 0, 0, 0)),
        ] + [pl.BlockSpec(w.shape, lambda i: (0, 0)) for w in weights],
        out_specs=pl.BlockSpec((1, 1, HEAD_OUT), lambda i: (i, 0, 0)),
        compiler_params=pltpu.CompilerParams(dimension_semantics=("parallel",)),
    )(x_cs, masks, *weights)
    return out[:, 0, :]                                    # (B, 64)


# ----------------------------------------------------------------------------
# Deterministic parameter init (weights stored in the layouts the kernel uses)
# ----------------------------------------------------------------------------
def init_params(key, cin):
    def nrm(k, shape, fan_in):
        return jax.random.normal(k, shape, jnp.float32) / jnp.sqrt(float(fan_in))

    keys = jax.random.split(key, 10)
    baseline = (
        nrm(keys[0], (BASE_HID, cin), cin),                           # (Cout, Cin)
        0.01 * jax.random.normal(keys[1], (BASE_HID, 1), jnp.float32),
        nrm(keys[2], (BASE_HID, HEAD_OUT), BASE_HID),
        0.01 * jax.random.normal(keys[3], (1, HEAD_OUT), jnp.float32),
    )
    roi_conv = (
        nrm(keys[4], (ROI_CH, cin), cin),                             # (Cout, Cin)
        0.01 * jax.random.normal(keys[5], (ROI_CH, 1), jnp.float32),
    )
    # Head Linear(128, 64) split into the conv half and the gnn half of its rows.
    head = (
        nrm(keys[6], (HEAD_OUT, HEAD_OUT), 2 * HEAD_OUT),
        nrm(keys[7], (N_OBJECTS * GNN_OUT, HEAD_OUT), 2 * HEAD_OUT),
        0.01 * jax.random.normal(keys[8], (1, HEAD_OUT), jnp.float32),
    )
    gat = []
    for k, (fin, fout) in zip(jax.random.split(keys[9], len(GAT_DIMS)), GAT_DIMS):
        ks = jax.random.split(k, 4)
        gat.append((
            nrm(ks[0], (fin, fout), fin),    # layer-1 rows ordered (kd, kh, kw, c)
            nrm(ks[1], (fout, 1), fout),     # att_src as MXU column
            nrm(ks[2], (fout, 1), fout),     # att_dst as MXU column
            0.01 * jax.random.normal(ks[3], (1, fout), jnp.float32),
        ))
    return {"baseline": baseline, "roi_conv": roi_conv, "gat": gat, "head": head}


if __name__ == "__main__":
    key = jax.random.PRNGKey(0)
    k_x, k_p1, k_p2, k_w = jax.random.split(key, 4)

    B, Cin, D, H, W = 2, 4, 8, 8, 8
    x = jax.random.normal(k_x, (B, Cin, D, H, W), jnp.float32)        # NCDHW

    # proposals: (B, N_OBJECTS, 6) normalized 3D boxes (x1, y1, z1, x2, y2, z2)
    lo = jax.random.uniform(k_p1, (B, N_OBJECTS, 3), minval=0.0, maxval=0.5)
    ext = jax.random.uniform(k_p2, (B, N_OBJECTS, 3), minval=0.25, maxval=0.5)
    proposals = jnp.concatenate([lo, lo + ext], axis=-1).astype(jnp.float32)

    params = init_params(k_w, Cin)

    fwd = jax.jit(scene_graph_forward)
    out = fwd(x, proposals, params)
    jax.block_until_ready(out)

    assert out.shape == (B, HEAD_OUT), out.shape
    assert bool(jnp.all(jnp.isfinite(out)))
    # rows are L2-normalized (F.normalize(p=2, dim=1))
    assert bool(jnp.allclose(jnp.linalg.norm(out, axis=1), 1.0, atol=1e-4))
    print("KERNEL_OK")
</pallas_src>

<mosaic_0001>
module attributes {stable_mosaic.version = 11 : i64} {
  func.func @_fused_scene_graph_kernel(%arg0: i32, %arg1: memref<1x4x512xf32, #tpu.memory_space<vmem>>, %arg2: memref<1x8x8x512xf32, #tpu.memory_space<vmem>>, %arg3: memref<32x4xf32, #tpu.memory_space<vmem>>, %arg4: memref<32x1xf32, #tpu.memory_space<vmem>>, %arg5: memref<32x64xf32, #tpu.memory_space<vmem>>, %arg6: memref<1x64xf32, #tpu.memory_space<vmem>>, %arg7: memref<64x4xf32, #tpu.memory_space<vmem>>, %arg8: memref<64x1xf32, #tpu.memory_space<vmem>>, %arg9: memref<512x256xf32, #tpu.memory_space<vmem>>, %arg10: memref<256x1xf32, #tpu.memory_space<vmem>>, %arg11: memref<256x1xf32, #tpu.memory_space<vmem>>, %arg12: memref<1x256xf32, #tpu.memory_space<vmem>>, %arg13: memref<256x128xf32, #tpu.memory_space<vmem>>, %arg14: memref<128x1xf32, #tpu.memory_space<vmem>>, %arg15: memref<128x1xf32, #tpu.memory_space<vmem>>, %arg16: memref<1x128xf32, #tpu.memory_space<vmem>>, %arg17: memref<128x64xf32, #tpu.memory_space<vmem>>, %arg18: memref<64x1xf32, #tpu.memory_space<vmem>>, %arg19: memref<64x1xf32, #tpu.memory_space<vmem>>, %arg20: memref<1x64xf32, #tpu.memory_space<vmem>>, %arg21: memref<64x16xf32, #tpu.memory_space<vmem>>, %arg22: memref<16x1xf32, #tpu.memory_space<vmem>>, %arg23: memref<16x1xf32, #tpu.memory_space<vmem>>, %arg24: memref<1x16xf32, #tpu.memory_space<vmem>>, %arg25: memref<16x8xf32, #tpu.memory_space<vmem>>, %arg26: memref<8x1xf32, #tpu.memory_space<vmem>>, %arg27: memref<8x1xf32, #tpu.memory_space<vmem>>, %arg28: memref<1x8xf32, #tpu.memory_space<vmem>>, %arg29: memref<64x64xf32, #tpu.memory_space<vmem>>, %arg30: memref<64x64xf32, #tpu.memory_space<vmem>>, %arg31: memref<1x64xf32, #tpu.memory_space<vmem>>, %arg32: memref<1x1x64xf32, #tpu.memory_space<vmem>>) attributes {dimension_semantics = [#tpu.dimension_semantics<parallel>], iteration_bounds = array<i64: 2>, scalar_prefetch = 0 : i64, scratch_operands = 0 : i64, tpu.core_type = #tpu.core_type<tc>, window_params = [{transform_indices = @transform_0, window_bounds = array<i64: 1, 4, 512>}, {transform_indices = @transform_1, window_bounds = array<i64: 1, 8, 8, 512>}, {pipeline_mode = #tpu.pipeline_mode<synchronous>, transform_indices = @transform_2, window_bounds = array<i64: 32, 4>}, {pipeline_mode = #tpu.pipeline_mode<synchronous>, transform_indices = @transform_3, window_bounds = array<i64: 32, 1>}, {pipeline_mode = #tpu.pipeline_mode<synchronous>, transform_indices = @transform_4, window_bounds = array<i64: 32, 64>}, {pipeline_mode = #tpu.pipeline_mode<synchronous>, transform_indices = @transform_5, window_bounds = array<i64: 1, 64>}, {pipeline_mode = #tpu.pipeline_mode<synchronous>, transform_indices = @transform_6, window_bounds = array<i64: 64, 4>}, {pipeline_mode = #tpu.pipeline_mode<synchronous>, transform_indices = @transform_7, window_bounds = array<i64: 64, 1>}, {pipeline_mode = #tpu.pipeline_mode<synchronous>, transform_indices = @transform_8, window_bounds = array<i64: 512, 256>}, {pipeline_mode = #tpu.pipeline_mode<synchronous>, transform_indices = @transform_9, window_bounds = array<i64: 256, 1>}, {pipeline_mode = #tpu.pipeline_mode<synchronous>, transform_indices = @transform_10, window_bounds = array<i64: 256, 1>}, {pipeline_mode = #tpu.pipeline_mode<synchronous>, transform_indices = @transform_11, window_bounds = array<i64: 1, 256>}, {pipeline_mode = #tpu.pipeline_mode<synchronous>, transform_indices = @transform_12, window_bounds = array<i64: 256, 128>}, {pipeline_mode = #tpu.pipeline_mode<synchronous>, transform_indices = @transform_13, window_bounds = array<i64: 128, 1>}, {pipeline_mode = #tpu.pipeline_mode<synchronous>, transform_indices = @transform_14, window_bounds = array<i64: 128, 1>}, {pipeline_mode = #tpu.pipeline_mode<synchronous>, transform_indices = @transform_15, window_bounds = array<i64: 1, 128>}, {pipeline_mode = #tpu.pipeline_mode<synchronous>, transform_indices = @transform_16, window_bounds = array<i64: 128, 64>}, {pipeline_mode = #tpu.pipeline_mode<synchronous>, transform_indices = @transform_17, window_bounds = array<i64: 64, 1>}, {pipeline_mode = #tpu.pipeline_mode<synchronous>, transform_indices = @transform_18, window_bounds = array<i64: 64, 1>}, {pipeline_mode = #tpu.pipeline_mode<synchronous>, transform_indices = @transform_19, window_bounds = array<i64: 1, 64>}, {pipeline_mode = #tpu.pipeline_mode<synchronous>, transform_indices = @transform_20, window_bounds = array<i64: 64, 16>}, {pipeline_mode = #tpu.pipeline_mode<synchronous>, transform_indices = @transform_21, window_bounds = array<i64: 16, 1>}, {pipeline_mode = #tpu.pipeline_mode<synchronous>, transform_indices = @transform_22, window_bounds = array<i64: 16, 1>}, {pipeline_mode = #tpu.pipeline_mode<synchronous>, transform_indices = @transform_23, window_bounds = array<i64: 1, 16>}, {pipeline_mode = #tpu.pipeline_mode<synchronous>, transform_indices = @transform_24, window_bounds = array<i64: 16, 8>}, {pipeline_mode = #tpu.pipeline_mode<synchronous>, transform_indices = @transform_25, window_bounds = array<i64: 8, 1>}, {pipeline_mode = #tpu.pipeline_mode<synchronous>, transform_indices = @transform_26, window_bounds = array<i64: 8, 1>}, {pipeline_mode = #tpu.pipeline_mode<synchronous>, transform_indices = @transform_27, window_bounds = array<i64: 1, 8>}, {pipeline_mode = #tpu.pipeline_mode<synchronous>, transform_indices = @transform_28, window_bounds = array<i64: 64, 64>}, {pipeline_mode = #tpu.pipeline_mode<synchronous>, transform_indices = @transform_29, window_bounds = array<i64: 64, 64>}, {pipeline_mode = #tpu.pipeline_mode<synchronous>, transform_indices = @transform_30, window_bounds = array<i64: 1, 64>}, {transform_indices = @transform_31, window_bounds = array<i64: 1, 1, 64>}]} {
    %c0 = arith.constant 0 : index
    %c0_0 = arith.constant 0 : index
    %c0_1 = arith.constant 0 : index
    %0 = vector.load %arg1[%c0, %c0_0, %c0_1] : memref<1x4x512xf32, #tpu.memory_space<vmem>>, vector<1x4x512xf32>
    %1 = vector.shape_cast %0 : vector<1x4x512xf32> to vector<4x512xf32>
    %c0_2 = arith.constant 0 : index
    %c0_3 = arith.constant 0 : index
    %2 = vector.load %arg3[%c0_2, %c0_3] : memref<32x4xf32, #tpu.memory_space<vmem>>, vector<32x4xf32>
    %cst = arith.constant dense<0.000000e+00> : vector<32x512xf32>
    %3 = tpu.matmul %2, %1, %cst {dimension_numbers = #tpu.dot_dimension_numbers<[1], [0], [0], [1], [0, 0, 1, 1], [], []>} : vector<32x4xf32>, vector<4x512xf32>, vector<32x512xf32> -> vector<32x512xf32>
    %c0_4 = arith.constant 0 : index
    %c0_5 = arith.constant 0 : index
    %4 = vector.load %arg4[%c0_4, %c0_5] : memref<32x1xf32, #tpu.memory_space<vmem>>, vector<32x1xf32>
    %5 = vector.broadcast %4 : vector<32x1xf32> to vector<32x512xf32>
    %6 = arith.addf %3, %5 : vector<32x512xf32>
    %cst_6 = arith.constant 0.000000e+00 : f32
    %7 = vector.broadcast %cst_6 : f32 to vector<32x512xf32>
    %8 = arith.maximumf %6, %7 : vector<32x512xf32>
    %cst_7 = arith.constant dense<0.000000e+00> : vector<32xf32>
    %9 = vector.multi_reduction <add>, %8, %cst_7 [1] : vector<32x512xf32> to vector<32xf32>
    %10 = vector.shape_cast %9 : vector<32xf32> to vector<32x1xf32>
    %cst_8 = arith.constant 5.120000e+02 : f32
    %11 = vector.broadcast %cst_8 : f32 to vector<32x1xf32>
    %12 = arith.divf %10, %11 : vector<32x1xf32>
    %13 = tpu.transpose %12, [1, 0] : vector<32x1xf32> -> vector<1x32xf32>
    %c0_9 = arith.constant 0 : index
    %c0_10 = arith.constant 0 : index
    %14 = vector.load %arg5[%c0_9, %c0_10] : memref<32x64xf32, #tpu.memory_space<vmem>>, vector<32x64xf32>
    %cst_11 = arith.constant dense<0.000000e+00> : vector<1x64xf32>
    %15 = tpu.matmul %13, %14, %cst_11 {dimension_numbers = #tpu.dot_dimension_numbers<[1], [0], [0], [1], [0, 0, 1, 1], [], []>} : vector<1x32xf32>, vector<32x64xf32>, vector<1x64xf32> -> vector<1x64xf32>
    %c0_12 = arith.constant 0 : index
    %c0_13 = arith.constant 0 : index
    %16 = vector.load %arg6[%c0_12, %c0_13] : memref<1x64xf32, #tpu.memory_space<vmem>>, vector<1x64xf32>
    %17 = arith.addf %15, %16 : vector<1x64xf32>
    %c0_14 = arith.constant 0 : index
    %c0_15 = arith.constant 0 : index
    %18 = vector.load %arg7[%c0_14, %c0_15] : memref<64x4xf32, #tpu.memory_space<vmem>>, vector<64x4xf32>
    %cst_16 = arith.constant dense<0.000000e+00> : vector<64x512xf32>
    %19 = tpu.matmul %18, %1, %cst_16 {dimension_numbers = #tpu.dot_dimension_numbers<[1], [0], [0], [1], [0, 0, 1, 1], [], []>} : vector<64x4xf32>, vector<4x512xf32>, vector<64x512xf32> -> vector<64x512xf32>
    %c0_17 = arith.constant 0 : index
    %c0_18 = arith.constant 0 : index
    %20 = vector.load %arg8[%c0_17, %c0_18] : memref<64x1xf32, #tpu.memory_space<vmem>>, vector<64x1xf32>
    %21 = vector.broadcast %20 : vector<64x1xf32> to vector<64x512xf32>
    %22 = arith.addf %19, %21 : vector<64x512xf32>
    %cst_19 = arith.constant 0.000000e+00 : f32
    %23 = vector.broadcast %cst_19 : f32 to vector<64x512xf32>
    %24 = arith.maximumf %22, %23 : vector<64x512xf32>
    %cst_20 = arith.constant 0.000000e+00 : f32
    %25 = vector.broadcast %cst_20 : f32 to vector<8x256xf32>
    %c0_21 = arith.constant 0 : index
    %c0_22 = arith.constant 0 : index
    %c0_23 = arith.constant 0 : index
    %c0_24 = arith.constant 0 : index
    %26 = vector.load %arg2[%c0_21, %c0_22, %c0_23, %c0_24] : memref<1x8x8x512xf32, #tpu.memory_space<vmem>>, vector<1x1x8x512xf32>
    %27 = vector.shape_cast %26 : vector<1x1x8x512xf32> to vector<8x512xf32>
    %28 = vector.shape_cast %24 : vector<64x512xf32> to vector<1x64x512xf32>
    %29 = vector.shape_cast %27 : vector<8x512xf32> to vector<8x1x512xf32>
    %30 = vector.broadcast %28 : vector<1x64x512xf32> to vector<8x64x512xf32>
    %31 = vector.broadcast %29 : vector<8x1x512xf32> to vector<8x64x512xf32>
    %32 = arith.addf %30, %31 : vector<8x64x512xf32>
    %cst_25 = arith.constant dense<0xFF800000> : vector<8x64xf32>
    %33 = vector.multi_reduction <maximumf>, %32, %cst_25 [2] : vector<8x64x512xf32> to vector<8x64xf32>
    %c0_26 = arith.constant 0 : index
    %c0_27 = arith.constant 0 : index
    %34 = vector.load %arg9[%c0_26, %c0_27] : memref<512x256xf32, #tpu.memory_space<vmem>>, vector<64x256xf32>
    %cst_28 = arith.constant dense<0.000000e+00> : vector<8x256xf32>
    %35 = tpu.matmul %33, %34, %cst_28 {dimension_numbers = #tpu.dot_dimension_numbers<[1], [0], [0], [1], [0, 0, 1, 1], [], []>} : vector<8x64xf32>, vector<64x256xf32>, vector<8x256xf32> -> vector<8x256xf32>
    %36 = arith.addf %25, %35 : vector<8x256xf32>
    %c0_29 = arith.constant 0 : index
    %c1 = arith.constant 1 : index
    %c0_30 = arith.constant 0 : index
    %c0_31 = arith.constant 0 : index
    %37 = vector.load %arg2[%c0_29, %c1, %c0_30, %c0_31] : memref<1x8x8x512xf32, #tpu.memory_space<vmem>>, vector<1x1x8x512xf32>
    %38 = vector.shape_cast %37 : vector<1x1x8x512xf32> to vector<8x512xf32>
    %39 = vector.shape_cast %24 : vector<64x512xf32> to vector<1x64x512xf32>
    %40 = vector.shape_cast %38 : vector<8x512xf32> to vector<8x1x512xf32>
    %41 = vector.broadcast %39 : vector<1x64x512xf32> to vector<8x64x512xf32>
    %42 = vector.broadcast %40 : vector<8x1x512xf32> to vector<8x64x512xf32>
    %43 = arith.addf %41, %42 : vector<8x64x512xf32>
    %cst_32 = arith.constant dense<0xFF800000> : vector<8x64xf32>
    %44 = vector.multi_reduction <maximumf>, %43, %cst_32 [2] : vector<8x64x512xf32> to vector<8x64xf32>
    %c64 = arith.constant 64 : index
    %c0_33 = arith.constant 0 : index
    %45 = vector.load %arg9[%c64, %c0_33] : memref<512x256xf32, #tpu.memory_space<vmem>>, vector<64x256xf32>
    %cst_34 = arith.constant dense<0.000000e+00> : vector<8x256xf32>
    %46 = tpu.matmul %44, %45, %cst_34 {dimension_numbers = #tpu.dot_dimension_numbers<[1], [0], [0], [1], [0, 0, 1, 1], [], []>} : vector<8x64xf32>, vector<64x256xf32>, vector<8x256xf32> -> vector<8x256xf32>
    %47 = arith.addf %36, %46 : vector<8x256xf32>
    %c0_35 = arith.constant 0 : index
    %c2 = arith.constant 2 : index
    %c0_36 = arith.constant 0 : index
    %c0_37 = arith.constant 0 : index
    %48 = vector.load %arg2[%c0_35, %c2, %c0_36, %c0_37] : memref<1x8x8x512xf32, #tpu.memory_space<vmem>>, vector<1x1x8x512xf32>
    %49 = vector.shape_cast %48 : vector<1x1x8x512xf32> to vector<8x512xf32>
    %50 = vector.shape_cast %24 : vector<64x512xf32> to vector<1x64x512xf32>
    %51 = vector.shape_cast %49 : vector<8x512xf32> to vector<8x1x512xf32>
    %52 = vector.broadcast %50 : vector<1x64x512xf32> to vector<8x64x512xf32>
    %53 = vector.broadcast %51 : vector<8x1x512xf32> to vector<8x64x512xf32>
    %54 = arith.addf %52, %53 : vector<8x64x512xf32>
    %cst_38 = arith.constant dense<0xFF800000> : vector<8x64xf32>
    %55 = vector.multi_reduction <maximumf>, %54, %cst_38 [2] : vector<8x64x512xf32> to vector<8x64xf32>
    %c128 = arith.constant 128 : index
    %c0_39 = arith.constant 0 : index
    %56 = vector.load %arg9[%c128, %c0_39] : memref<512x256xf32, #tpu.memory_space<vmem>>, vector<64x256xf32>
    %cst_40 = arith.constant dense<0.000000e+00> : vector<8x256xf32>
    %57 = tpu.matmul %55, %56, %cst_40 {dimension_numbers = #tpu.dot_dimension_numbers<[1], [0], [0], [1], [0, 0, 1, 1], [], []>} : vector<8x64xf32>, vector<64x256xf32>, vector<8x256xf32> -> vector<8x256xf32>
    %58 = arith.addf %47, %57 : vector<8x256xf32>
    %c0_41 = arith.constant 0 : index
    %c3 = arith.constant 3 : index
    %c0_42 = arith.constant 0 : index
    %c0_43 = arith.constant 0 : index
    %59 = vector.load %arg2[%c0_41, %c3, %c0_42, %c0_43] : memref<1x8x8x512xf32, #tpu.memory_space<vmem>>, vector<1x1x8x512xf32>
    %60 = vector.shape_cast %59 : vector<1x1x8x512xf32> to vector<8x512xf32>
    %61 = vector.shape_cast %24 : vector<64x512xf32> to vector<1x64x512xf32>
    %62 = vector.shape_cast %60 : vector<8x512xf32> to vector<8x1x512xf32>
    %63 = vector.broadcast %61 : vector<1x64x512xf32> to vector<8x64x512xf32>
    %64 = vector.broadcast %62 : vector<8x1x512xf32> to vector<8x64x512xf32>
    %65 = arith.addf %63, %64 : vector<8x64x512xf32>
    %cst_44 = arith.constant dense<0xFF800000> : vector<8x64xf32>
    %66 = vector.multi_reduction <maximumf>, %65, %cst_44 [2] : vector<8x64x512xf32> to vector<8x64xf32>
    %c192 = arith.constant 192 : index
    %c0_45 = arith.constant 0 : index
    %67 = vector.load %arg9[%c192, %c0_45] : memref<512x256xf32, #tpu.memory_space<vmem>>, vector<64x256xf32>
    %cst_46 = arith.constant dense<0.000000e+00> : vector<8x256xf32>
    %68 = tpu.matmul %66, %67, %cst_46 {dimension_numbers = #tpu.dot_dimension_numbers<[1], [0], [0], [1], [0, 0, 1, 1], [], []>} : vector<8x64xf32>, vector<64x256xf32>, vector<8x256xf32> -> vector<8x256xf32>
    %69 = arith.addf %58, %68 : vector<8x256xf32>
    %c0_47 = arith.constant 0 : index
    %c4 = arith.constant 4 : index
    %c0_48 = arith.constant 0 : index
    %c0_49 = arith.constant 0 : index
    %70 = vector.load %arg2[%c0_47, %c4, %c0_48, %c0_49] : memref<1x8x8x512xf32, #tpu.memory_space<vmem>>, vector<1x1x8x512xf32>
    %71 = vector.shape_cast %70 : vector<1x1x8x512xf32> to vector<8x512xf32>
    %72 = vector.shape_cast %24 : vector<64x512xf32> to vector<1x64x512xf32>
    %73 = vector.shape_cast %71 : vector<8x512xf32> to vector<8x1x512xf32>
    %74 = vector.broadcast %72 : vector<1x64x512xf32> to vector<8x64x512xf32>
    %75 = vector.broadcast %73 : vector<8x1x512xf32> to vector<8x64x512xf32>
    %76 = arith.addf %74, %75 : vector<8x64x512xf32>
    %cst_50 = arith.constant dense<0xFF800000> : vector<8x64xf32>
    %77 = vector.multi_reduction <maximumf>, %76, %cst_50 [2] : vector<8x64x512xf32> to vector<8x64xf32>
    %c256 = arith.constant 256 : index
    %c0_51 = arith.constant 0 : index
    %78 = vector.load %arg9[%c256, %c0_51] : memref<512x256xf32, #tpu.memory_space<vmem>>, vector<64x256xf32>
    %cst_52 = arith.constant dense<0.000000e+00> : vector<8x256xf32>
    %79 = tpu.matmul %77, %78, %cst_52 {dimension_numbers = #tpu.dot_dimension_numbers<[1], [0], [0], [1], [0, 0, 1, 1], [], []>} : vector<8x64xf32>, vector<64x256xf32>, vector<8x256xf32> -> vector<8x256xf32>
    %80 = arith.addf %69, %79 : vector<8x256xf32>
    %c0_53 = arith.constant 0 : index
    %c5 = arith.constant 5 : index
    %c0_54 = arith.constant 0 : index
    %c0_55 = arith.constant 0 : index
    %81 = vector.load %arg2[%c0_53, %c5, %c0_54, %c0_55] : memref<1x8x8x512xf32, #tpu.memory_space<vmem>>, vector<1x1x8x512xf32>
    %82 = vector.shape_cast %81 : vector<1x1x8x512xf32> to vector<8x512xf32>
    %83 = vector.shape_cast %24 : vector<64x512xf32> to vector<1x64x512xf32>
    %84 = vector.shape_cast %82 : vector<8x512xf32> to vector<8x1x512xf32>
    %85 = vector.broadcast %83 : vector<1x64x512xf32> to vector<8x64x512xf32>
    %86 = vector.broadcast %84 : vector<8x1x512xf32> to vector<8x64x512xf32>
    %87 = arith.addf %85, %86 : vector<8x64x512xf32>
    %cst_56 = arith.constant dense<0xFF800000> : vector<8x64xf32>
    %88 = vector.multi_reduction <maximumf>, %87, %cst_56 [2] : vector<8x64x512xf32> to vector<8x64xf32>
    %c320 = arith.constant 320 : index
    %c0_57 = arith.constant 0 : index
    %89 = vector.load %arg9[%c320, %c0_57] : memref<512x256xf32, #tpu.memory_space<vmem>>, vector<64x256xf32>
    %cst_58 = arith.constant dense<0.000000e+00> : vector<8x256xf32>
    %90 = tpu.matmul %88, %89, %cst_58 {dimension_numbers = #tpu.dot_dimension_numbers<[1], [0], [0], [1], [0, 0, 1, 1], [], []>} : vector<8x64xf32>, vector<64x256xf32>, vector<8x256xf32> -> vector<8x256xf32>
    %91 = arith.addf %80, %90 : vector<8x256xf32>
    %c0_59 = arith.constant 0 : index
    %c6 = arith.constant 6 : index
    %c0_60 = arith.constant 0 : index
    %c0_61 = arith.constant 0 : index
    %92 = vector.load %arg2[%c0_59, %c6, %c0_60, %c0_61] : memref<1x8x8x512xf32, #tpu.memory_space<vmem>>, vector<1x1x8x512xf32>
    %93 = vector.shape_cast %92 : vector<1x1x8x512xf32> to vector<8x512xf32>
    %94 = vector.shape_cast %24 : vector<64x512xf32> to vector<1x64x512xf32>
    %95 = vector.shape_cast %93 : vector<8x512xf32> to vector<8x1x512xf32>
    %96 = vector.broadcast %94 : vector<1x64x512xf32> to vector<8x64x512xf32>
    %97 = vector.broadcast %95 : vector<8x1x512xf32> to vector<8x64x512xf32>
    %98 = arith.addf %96, %97 : vector<8x64x512xf32>
    %cst_62 = arith.constant dense<0xFF800000> : vector<8x64xf32>
    %99 = vector.multi_reduction <maximumf>, %98, %cst_62 [2] : vector<8x64x512xf32> to vector<8x64xf32>
    %c384 = arith.constant 384 : index
    %c0_63 = arith.constant 0 : index
    %100 = vector.load %arg9[%c384, %c0_63] : memref<512x256xf32, #tpu.memory_space<vmem>>, vector<64x256xf32>
    %cst_64 = arith.constant dense<0.000000e+00> : vector<8x256xf32>
    %101 = tpu.matmul %99, %100, %cst_64 {dimension_numbers = #tpu.dot_dimension_numbers<[1], [0], [0], [1], [0, 0, 1, 1], [], []>} : vector<8x64xf32>, vector<64x256xf32>, vector<8x256xf32> -> vector<8x256xf32>
    %102 = arith.addf %91, %101 : vector<8x256xf32>
    %c0_65 = arith.constant 0 : index
    %c7 = arith.constant 7 : index
    %c0_66 = arith.constant 0 : index
    %c0_67 = arith.constant 0 : index
    %103 = vector.load %arg2[%c0_65, %c7, %c0_66, %c0_67] : memref<1x8x8x512xf32, #tpu.memory_space<vmem>>, vector<1x1x8x512xf32>
    %104 = vector.shape_cast %103 : vector<1x1x8x512xf32> to vector<8x512xf32>
    %105 = vector.shape_cast %24 : vector<64x512xf32> to vector<1x64x512xf32>
    %106 = vector.shape_cast %104 : vector<8x512xf32> to vector<8x1x512xf32>
    %107 = vector.broadcast %105 : vector<1x64x512xf32> to vector<8x64x512xf32>
    %108 = vector.broadcast %106 : vector<8x1x512xf32> to vector<8x64x512xf32>
    %109 = arith.addf %107, %108 : vector<8x64x512xf32>
    %cst_68 = arith.constant dense<0xFF800000> : vector<8x64xf32>
    %110 = vector.multi_reduction <maximumf>, %109, %cst_68 [2] : vector<8x64x512xf32> to vector<8x64xf32>
    %c448 = arith.constant 448 : index
    %c0_69 = arith.constant 0 : index
    %111 = vector.load %arg9[%c448, %c0_69] : memref<512x256xf32, #tpu.memory_space<vmem>>, vector<64x256xf32>
    %cst_70 = arith.constant dense<0.000000e+00> : vector<8x256xf32>
    %112 = tpu.matmul %110, %111, %cst_70 {dimension_numbers = #tpu.dot_dimension_numbers<[1], [0], [0], [1], [0, 0, 1, 1], [], []>} : vector<8x64xf32>, vector<64x256xf32>, vector<8x256xf32> -> vector<8x256xf32>
    %113 = arith.addf %102, %112 : vector<8x256xf32>
    %c0_71 = arith.constant 0 : index
    %c0_72 = arith.constant 0 : index
    %114 = vector.load %arg10[%c0_71, %c0_72] : memref<256x1xf32, #tpu.memory_space<vmem>>, vector<256x1xf32>
    %c0_73 = arith.constant 0 : index
    %c0_74 = arith.constant 0 : index
    %115 = vector.load %arg11[%c0_73, %c0_74] : memref<256x1xf32, #tpu.memory_space<vmem>>, vector<256x1xf32>
    %c0_75 = arith.constant 0 : index
    %c0_76 = arith.constant 0 : index
    %116 = vector.load %arg12[%c0_75, %c0_76] : memref<1x256xf32, #tpu.memory_space<vmem>>, vector<1x256xf32>
    %cst_77 = arith.constant dense<0.000000e+00> : vector<8x1xf32>
    %117 = tpu.matmul %113, %114, %cst_77 {dimension_numbers = #tpu.dot_dimension_numbers<[1], [0], [0], [1], [0, 0, 1, 1], [], []>} : vector<8x256xf32>, vector<256x1xf32>, vector<8x1xf32> -> vector<8x1xf32>
    %cst_78 = arith.constant dense<0.000000e+00> : vector<8x1xf32>
    %118 = tpu.matmul %113, %115, %cst_78 {dimension_numbers = #tpu.dot_dimension_numbers<[1], [0], [0], [1], [0, 0, 1, 1], [], []>} : vector<8x256xf32>, vector<256x1xf32>, vector<8x1xf32> -> vector<8x1xf32>
    %119 = tpu.transpose %117, [1, 0] : vector<8x1xf32> -> vector<1x8xf32>
    %120 = vector.broadcast %118 : vector<8x1xf32> to vector<8x8xf32>
    %121 = vector.broadcast %119 : vector<1x8xf32> to vector<8x8xf32>
    %122 = arith.addf %120, %121 : vector<8x8xf32>
    %cst_79 = arith.constant 0.000000e+00 : f32
    %123 = vector.broadcast %cst_79 : f32 to vector<8x8xf32>
    %124 = arith.cmpf ogt, %122, %123 : vector<8x8xf32>
    %cst_80 = arith.constant 2.000000e-01 : f32
    %125 = vector.broadcast %cst_80 : f32 to vector<8x8xf32>
    %126 = arith.mulf %125, %122 : vector<8x8xf32>
    %127 = arith.select %124, %122, %126 : vector<8x8xi1>, vector<8x8xf32>
    %cst_81 = arith.constant dense<0xFF800000> : vector<8xf32>
    %128 = vector.multi_reduction <maximumf>, %127, %cst_81 [1] : vector<8x8xf32> to vector<8xf32>
    %129 = vector.shape_cast %128 : vector<8xf32> to vector<8x1xf32>
    %130 = vector.broadcast %129 : vector<8x1xf32> to vector<8x8xf32>
    %131 = arith.subf %127, %130 : vector<8x8xf32>
    %132 = math.exp %131 : vector<8x8xf32>
    %cst_82 = arith.constant dense<0.000000e+00> : vector<8xf32>
    %133 = vector.multi_reduction <add>, %132, %cst_82 [1] : vector<8x8xf32> to vector<8xf32>
    %134 = vector.shape_cast %133 : vector<8xf32> to vector<8x1xf32>
    %135 = tpu.reciprocal %134 {approx = true} : vector<8x1xf32> -> vector<8x1xf32>
    %136 = vector.broadcast %135 : vector<8x1xf32> to vector<8x8xf32>
    %137 = arith.mulf %132, %136 : vector<8x8xf32>
    %cst_83 = arith.constant dense<0.000000e+00> : vector<8x256xf32>
    %138 = tpu.matmul %137, %113, %cst_83 {dimension_numbers = #tpu.dot_dimension_numbers<[1], [0], [0], [1], [0, 0, 1, 1], [], []>} : vector<8x8xf32>, vector<8x256xf32>, vector<8x256xf32> -> vector<8x256xf32>
    %139 = vector.broadcast %116 : vector<1x256xf32> to vector<8x256xf32>
    %140 = arith.addf %138, %139 : vector<8x256xf32>
    %c0_84 = arith.constant 0 : index
    %c0_85 = arith.constant 0 : index
    %141 = vector.load %arg13[%c0_84, %c0_85] : memref<256x128xf32, #tpu.memory_space<vmem>>, vector<256x128xf32>
    %cst_86 = arith.constant dense<0.000000e+00> : vector<8x128xf32>
    %142 = tpu.matmul %140, %141, %cst_86 {dimension_numbers = #tpu.dot_dimension_numbers<[1], [0], [0], [1], [0, 0, 1, 1], [], []>} : vector<8x256xf32>, vector<256x128xf32>, vector<8x128xf32> -> vector<8x128xf32>
    %c0_87 = arith.constant 0 : index
    %c0_88 = arith.constant 0 : index
    %143 = vector.load %arg14[%c0_87, %c0_88] : memref<128x1xf32, #tpu.memory_space<vmem>>, vector<128x1xf32>
    %c0_89 = arith.constant 0 : index
    %c0_90 = arith.constant 0 : index
    %144 = vector.load %arg15[%c0_89, %c0_90] : memref<128x1xf32, #tpu.memory_space<vmem>>, vector<128x1xf32>
    %c0_91 = arith.constant 0 : index
    %c0_92 = arith.constant 0 : index
    %145 = vector.load %arg16[%c0_91, %c0_92] : memref<1x128xf32, #tpu.memory_space<vmem>>, vector<1x128xf32>
    %cst_93 = arith.constant dense<0.000000e+00> : vector<8x1xf32>
    %146 = tpu.matmul %142, %143, %cst_93 {dimension_numbers = #tpu.dot_dimension_numbers<[1], [0], [0], [1], [0, 0, 1, 1], [], []>} : vector<8x128xf32>, vector<128x1xf32>, vector<8x1xf32> -> vector<8x1xf32>
    %cst_94 = arith.constant dense<0.000000e+00> : vector<8x1xf32>
    %147 = tpu.matmul %142, %144, %cst_94 {dimension_numbers = #tpu.dot_dimension_numbers<[1], [0], [0], [1], [0, 0, 1, 1], [], []>} : vector<8x128xf32>, vector<128x1xf32>, vector<8x1xf32> -> vector<8x1xf32>
    %148 = tpu.transpose %146, [1, 0] : vector<8x1xf32> -> vector<1x8xf32>
    %149 = vector.broadcast %147 : vector<8x1xf32> to vector<8x8xf32>
    %150 = vector.broadcast %148 : vector<1x8xf32> to vector<8x8xf32>
    %151 = arith.addf %149, %150 : vector<8x8xf32>
    %cst_95 = arith.constant 0.000000e+00 : f32
    %152 = vector.broadcast %cst_95 : f32 to vector<8x8xf32>
    %153 = arith.cmpf ogt, %151, %152 : vector<8x8xf32>
    %cst_96 = arith.constant 2.000000e-01 : f32
    %154 = vector.broadcast %cst_96 : f32 to vector<8x8xf32>
    %155 = arith.mulf %154, %151 : vector<8x8xf32>
    %156 = arith.select %153, %151, %155 : vector<8x8xi1>, vector<8x8xf32>
    %cst_97 = arith.constant dense<0xFF800000> : vector<8xf32>
    %157 = vector.multi_reduction <maximumf>, %156, %cst_97 [1] : vector<8x8xf32> to vector<8xf32>
    %158 = vector.shape_cast %157 : vector<8xf32> to vector<8x1xf32>
    %159 = vector.broadcast %158 : vector<8x1xf32> to vector<8x8xf32>
    %160 = arith.subf %156, %159 : vector<8x8xf32>
    %161 = math.exp %160 : vector<8x8xf32>
    %cst_98 = arith.constant dense<0.000000e+00> : vector<8xf32>
    %162 = vector.multi_reduction <add>, %161, %cst_98 [1] : vector<8x8xf32> to vector<8xf32>
    %163 = vector.shape_cast %162 : vector<8xf32> to vector<8x1xf32>
    %164 = tpu.reciprocal %163 {approx = true} : vector<8x1xf32> -> vector<8x1xf32>
    %165 = vector.broadcast %164 : vector<8x1xf32> to vector<8x8xf32>
    %166 = arith.mulf %161, %165 : vector<8x8xf32>
    %cst_99 = arith.constant dense<0.000000e+00> : vector<8x128xf32>
    %167 = tpu.matmul %166, %142, %cst_99 {dimension_numbers = #tpu.dot_dimension_numbers<[1], [0], [0], [1], [0, 0, 1, 1], [], []>} : vector<8x8xf32>, vector<8x128xf32>, vector<8x128xf32> -> vector<8x128xf32>
    %168 = vector.broadcast %145 : vector<1x128xf32> to vector<8x128xf32>
    %169 = arith.addf %167, %168 : vector<8x128xf32>
    %c0_100 = arith.constant 0 : index
    %c0_101 = arith.constant 0 : index
    %170 = vector.load %arg17[%c0_100, %c0_101] : memref<128x64xf32, #tpu.memory_space<vmem>>, vector<128x64xf32>
    %cst_102 = arith.constant dense<0.000000e+00> : vector<8x64xf32>
    %171 = tpu.matmul %169, %170, %cst_102 {dimension_numbers = #tpu.dot_dimension_numbers<[1], [0], [0], [1], [0, 0, 1, 1], [], []>} : vector<8x128xf32>, vector<128x64xf32>, vector<8x64xf32> -> vector<8x64xf32>
    %c0_103 = arith.constant 0 : index
    %c0_104 = arith.constant 0 : index
    %172 = vector.load %arg18[%c0_103, %c0_104] : memref<64x1xf32, #tpu.memory_space<vmem>>, vector<64x1xf32>
    %c0_105 = arith.constant 0 : index
    %c0_106 = arith.constant 0 : index
    %173 = vector.load %arg19[%c0_105, %c0_106] : memref<64x1xf32, #tpu.memory_space<vmem>>, vector<64x1xf32>
    %c0_107 = arith.constant 0 : index
    %c0_108 = arith.constant 0 : index
    %174 = vector.load %arg20[%c0_107, %c0_108] : memref<1x64xf32, #tpu.memory_space<vmem>>, vector<1x64xf32>
    %cst_109 = arith.constant dense<0.000000e+00> : vector<8x1xf32>
    %175 = tpu.matmul %171, %172, %cst_109 {dimension_numbers = #tpu.dot_dimension_numbers<[1], [0], [0], [1], [0, 0, 1, 1], [], []>} : vector<8x64xf32>, vector<64x1xf32>, vector<8x1xf32> -> vector<8x1xf32>
    %cst_110 = arith.constant dense<0.000000e+00> : vector<8x1xf32>
    %176 = tpu.matmul %171, %173, %cst_110 {dimension_numbers = #tpu.dot_dimension_numbers<[1], [0], [0], [1], [0, 0, 1, 1], [], []>} : vector<8x64xf32>, vector<64x1xf32>, vector<8x1xf32> -> vector<8x1xf32>
    %177 = tpu.transpose %175, [1, 0] : vector<8x1xf32> -> vector<1x8xf32>
    %178 = vector.broadcast %176 : vector<8x1xf32> to vector<8x8xf32>
    %179 = vector.broadcast %177 : vector<1x8xf32> to vector<8x8xf32>
    %180 = arith.addf %178, %179 : vector<8x8xf32>
    %cst_111 = arith.constant 0.000000e+00 : f32
    %181 = vector.broadcast %cst_111 : f32 to vector<8x8xf32>
    %182 = arith.cmpf ogt, %180, %181 : vector<8x8xf32>
    %cst_112 = arith.constant 2.000000e-01 : f32
    %183 = vector.broadcast %cst_112 : f32 to vector<8x8xf32>
    %184 = arith.mulf %183, %180 : vector<8x8xf32>
    %185 = arith.select %182, %180, %184 : vector<8x8xi1>, vector<8x8xf32>
    %cst_113 = arith.constant dense<0xFF800000> : vector<8xf32>
    %186 = vector.multi_reduction <maximumf>, %185, %cst_113 [1] : vector<8x8xf32> to vector<8xf32>
    %187 = vector.shape_cast %186 : vector<8xf32> to vector<8x1xf32>
    %188 = vector.broadcast %187 : vector<8x1xf32> to vector<8x8xf32>
    %189 = arith.subf %185, %188 : vector<8x8xf32>
    %190 = math.exp %189 : vector<8x8xf32>
    %cst_114 = arith.constant dense<0.000000e+00> : vector<8xf32>
    %191 = vector.multi_reduction <add>, %190, %cst_114 [1] : vector<8x8xf32> to vector<8xf32>
    %192 = vector.shape_cast %191 : vector<8xf32> to vector<8x1xf32>
    %193 = tpu.reciprocal %192 {approx = true} : vector<8x1xf32> -> vector<8x1xf32>
    %194 = vector.broadcast %193 : vector<8x1xf32> to vector<8x8xf32>
    %195 = arith.mulf %190, %194 : vector<8x8xf32>
    %cst_115 = arith.constant dense<0.000000e+00> : vector<8x64xf32>
    %196 = tpu.matmul %195, %171, %cst_115 {dimension_numbers = #tpu.dot_dimension_numbers<[1], [0], [0], [1], [0, 0, 1, 1], [], []>} : vector<8x8xf32>, vector<8x64xf32>, vector<8x64xf32> -> vector<8x64xf32>
    %197 = vector.broadcast %174 : vector<1x64xf32> to vector<8x64xf32>
    %198 = arith.addf %196, %197 : vector<8x64xf32>
    %c0_116 = arith.constant 0 : index
    %c0_117 = arith.constant 0 : index
    %199 = vector.load %arg21[%c0_116, %c0_117] : memref<64x16xf32, #tpu.memory_space<vmem>>, vector<64x16xf32>
    %cst_118 = arith.constant dense<0.000000e+00> : vector<8x16xf32>
    %200 = tpu.matmul %198, %199, %cst_118 {dimension_numbers = #tpu.dot_dimension_numbers<[1], [0], [0], [1], [0, 0, 1, 1], [], []>} : vector<8x64xf32>, vector<64x16xf32>, vector<8x16xf32> -> vector<8x16xf32>
    %c0_119 = arith.constant 0 : index
    %c0_120 = arith.constant 0 : index
    %201 = vector.load %arg22[%c0_119, %c0_120] : memref<16x1xf32, #tpu.memory_space<vmem>>, vector<16x1xf32>
    %c0_121 = arith.constant 0 : index
    %c0_122 = arith.constant 0 : index
    %202 = vector.load %arg23[%c0_121, %c0_122] : memref<16x1xf32, #tpu.memory_space<vmem>>, vector<16x1xf32>
    %c0_123 = arith.constant 0 : index
    %c0_124 = arith.constant 0 : index
    %203 = vector.load %arg24[%c0_123, %c0_124] : memref<1x16xf32, #tpu.memory_space<vmem>>, vector<1x16xf32>
    %cst_125 = arith.constant dense<0.000000e+00> : vector<8x1xf32>
    %204 = tpu.matmul %200, %201, %cst_125 {dimension_numbers = #tpu.dot_dimension_numbers<[1], [0], [0], [1], [0, 0, 1, 1], [], []>} : vector<8x16xf32>, vector<16x1xf32>, vector<8x1xf32> -> vector<8x1xf32>
    %cst_126 = arith.constant dense<0.000000e+00> : vector<8x1xf32>
    %205 = tpu.matmul %200, %202, %cst_126 {dimension_numbers = #tpu.dot_dimension_numbers<[1], [0], [0], [1], [0, 0, 1, 1], [], []>} : vector<8x16xf32>, vector<16x1xf32>, vector<8x1xf32> -> vector<8x1xf32>
    %206 = tpu.transpose %204, [1, 0] : vector<8x1xf32> -> vector<1x8xf32>
    %207 = vector.broadcast %205 : vector<8x1xf32> to vector<8x8xf32>
    %208 = vector.broadcast %206 : vector<1x8xf32> to vector<8x8xf32>
    %209 = arith.addf %207, %208 : vector<8x8xf32>
    %cst_127 = arith.constant 0.000000e+00 : f32
    %210 = vector.broadcast %cst_127 : f32 to vector<8x8xf32>
    %211 = arith.cmpf ogt, %209, %210 : vector<8x8xf32>
    %cst_128 = arith.constant 2.000000e-01 : f32
    %212 = vector.broadcast %cst_128 : f32 to vector<8x8xf32>
    %213 = arith.mulf %212, %209 : vector<8x8xf32>
    %214 = arith.select %211, %209, %213 : vector<8x8xi1>, vector<8x8xf32>
    %cst_129 = arith.constant dense<0xFF800000> : vector<8xf32>
    %215 = vector.multi_reduction <maximumf>, %214, %cst_129 [1] : vector<8x8xf32> to vector<8xf32>
    %216 = vector.shape_cast %215 : vector<8xf32> to vector<8x1xf32>
    %217 = vector.broadcast %216 : vector<8x1xf32> to vector<8x8xf32>
    %218 = arith.subf %214, %217 : vector<8x8xf32>
    %219 = math.exp %218 : vector<8x8xf32>
    %cst_130 = arith.constant dense<0.000000e+00> : vector<8xf32>
    %220 = vector.multi_reduction <add>, %219, %cst_130 [1] : vector<8x8xf32> to vector<8xf32>
    %221 = vector.shape_cast %220 : vector<8xf32> to vector<8x1xf32>
    %222 = tpu.reciprocal %221 {approx = true} : vector<8x1xf32> -> vector<8x1xf32>
    %223 = vector.broadcast %222 : vector<8x1xf32> to vector<8x8xf32>
    %224 = arith.mulf %219, %223 : vector<8x8xf32>
    %cst_131 = arith.constant dense<0.000000e+00> : vector<8x16xf32>
    %225 = tpu.matmul %224, %200, %cst_131 {dimension_numbers = #tpu.dot_dimension_numbers<[1], [0], [0], [1], [0, 0, 1, 1], [], []>} : vector<8x8xf32>, vector<8x16xf32>, vector<8x16xf32> -> vector<8x16xf32>
    %226 = vector.broadcast %203 : vector<1x16xf32> to vector<8x16xf32>
    %227 = arith.addf %225, %226 : vector<8x16xf32>
    %c0_132 = arith.constant 0 : index
    %c0_133 = arith.constant 0 : index
    %228 = vector.load %arg25[%c0_132, %c0_133] : memref<16x8xf32, #tpu.memory_space<vmem>>, vector<16x8xf32>
    %cst_134 = arith.constant dense<0.000000e+00> : vector<8x8xf32>
    %229 = tpu.matmul %227, %228, %cst_134 {dimension_numbers = #tpu.dot_dimension_numbers<[1], [0], [0], [1], [0, 0, 1, 1], [], []>} : vector<8x16xf32>, vector<16x8xf32>, vector<8x8xf32> -> vector<8x8xf32>
    %c0_135 = arith.constant 0 : index
    %c0_136 = arith.constant 0 : index
    %230 = vector.load %arg26[%c0_135, %c0_136] : memref<8x1xf32, #tpu.memory_space<vmem>>, vector<8x1xf32>
    %c0_137 = arith.constant 0 : index
    %c0_138 = arith.constant 0 : index
    %231 = vector.load %arg27[%c0_137, %c0_138] : memref<8x1xf32, #tpu.memory_space<vmem>>, vector<8x1xf32>
    %c0_139 = arith.constant 0 : index
    %c0_140 = arith.constant 0 : index
    %232 = vector.load %arg28[%c0_139, %c0_140] : memref<1x8xf32, #tpu.memory_space<vmem>>, vector<1x8xf32>
    %cst_141 = arith.constant dense<0.000000e+00> : vector<8x1xf32>
    %233 = tpu.matmul %229, %230, %cst_141 {dimension_numbers = #tpu.dot_dimension_numbers<[1], [0], [0], [1], [0, 0, 1, 1], [], []>} : vector<8x8xf32>, vector<8x1xf32>, vector<8x1xf32> -> vector<8x1xf32>
    %cst_142 = arith.constant dense<0.000000e+00> : vector<8x1xf32>
    %234 = tpu.matmul %229, %231, %cst_142 {dimension_numbers = #tpu.dot_dimension_numbers<[1], [0], [0], [1], [0, 0, 1, 1], [], []>} : vector<8x8xf32>, vector<8x1xf32>, vector<8x1xf32> -> vector<8x1xf32>
    %235 = tpu.transpose %233, [1, 0] : vector<8x1xf32> -> vector<1x8xf32>
    %236 = vector.broadcast %234 : vector<8x1xf32> to vector<8x8xf32>
    %237 = vector.broadcast %235 : vector<1x8xf32> to vector<8x8xf32>
    %238 = arith.addf %236, %237 : vector<8x8xf32>
    %cst_143 = arith.constant 0.000000e+00 : f32
    %239 = vector.broadcast %cst_143 : f32 to vector<8x8xf32>
    %240 = arith.cmpf ogt, %238, %239 : vector<8x8xf32>
    %cst_144 = arith.constant 2.000000e-01 : f32
    %241 = vector.broadcast %cst_144 : f32 to vector<8x8xf32>
    %242 = arith.mulf %241, %238 : vector<8x8xf32>
    %243 = arith.select %240, %238, %242 : vector<8x8xi1>, vector<8x8xf32>
    %cst_145 = arith.constant dense<0xFF800000> : vector<8xf32>
    %244 = vector.multi_reduction <maximumf>, %243, %cst_145 [1] : vector<8x8xf32> to vector<8xf32>
    %245 = vector.shape_cast %244 : vector<8xf32> to vector<8x1xf32>
    %246 = vector.broadcast %245 : vector<8x1xf32> to vector<8x8xf32>
    %247 = arith.subf %243, %246 : vector<8x8xf32>
    %248 = math.exp %247 : vector<8x8xf32>
    %cst_146 = arith.constant dense<0.000000e+00> : vector<8xf32>
    %249 = vector.multi_reduction <add>, %248, %cst_146 [1] : vector<8x8xf32> to vector<8xf32>
    %250 = vector.shape_cast %249 : vector<8xf32> to vector<8x1xf32>
    %251 = tpu.reciprocal %250 {approx = true} : vector<8x1xf32> -> vector<8x1xf32>
    %252 = vector.broadcast %251 : vector<8x1xf32> to vector<8x8xf32>
    %253 = arith.mulf %248, %252 : vector<8x8xf32>
    %cst_147 = arith.constant dense<0.000000e+00> : vector<8x8xf32>
    %254 = tpu.matmul %253, %229, %cst_147 {dimension_numbers = #tpu.dot_dimension_numbers<[1], [0], [0], [1], [0, 0, 1, 1], [], []>} : vector<8x8xf32>, vector<8x8xf32>, vector<8x8xf32> -> vector<8x8xf32>
    %255 = vector.broadcast %232 : vector<1x8xf32> to vector<8x8xf32>
    %256 = arith.addf %254, %255 : vector<8x8xf32>
    %c0_148 = arith.constant 0 : index
    %c0_149 = arith.constant 0 : index
    %257 = vector.load %arg29[%c0_148, %c0_149] : memref<64x64xf32, #tpu.memory_space<vmem>>, vector<64x64xf32>
    %cst_150 = arith.constant dense<0.000000e+00> : vector<1x64xf32>
    %258 = tpu.matmul %17, %257, %cst_150 {dimension_numbers = #tpu.dot_dimension_numbers<[1], [0], [0], [1], [0, 0, 1, 1], [], []>} : vector<1x64xf32>, vector<64x64xf32>, vector<1x64xf32> -> vector<1x64xf32>
    %c0_151 = arith.constant 0 : index
    %c0_152 = arith.constant 0 : index
    %259 = vector.load %arg31[%c0_151, %c0_152] : memref<1x64xf32, #tpu.memory_space<vmem>>, vector<1x64xf32>
    %260 = arith.addf %258, %259 : vector<1x64xf32>
    %261 = vector.extract_strided_slice %256 {offsets = [0, 0], sizes = [1, 8], strides = [1, 1]} : vector<8x8xf32> to vector<1x8xf32>
    %c0_153 = arith.constant 0 : index
    %c0_154 = arith.constant 0 : index
    %262 = vector.load %arg30[%c0_153, %c0_154] : memref<64x64xf32, #tpu.memory_space<vmem>>, vector<8x64xf32>
    %cst_155 = arith.constant dense<0.000000e+00> : vector<1x64xf32>
    %263 = tpu.matmul %261, %262, %cst_155 {dimension_numbers = #tpu.dot_dimension_numbers<[1], [0], [0], [1], [0, 0, 1, 1], [], []>} : vector<1x8xf32>, vector<8x64xf32>, vector<1x64xf32> -> vector<1x64xf32>
    %264 = arith.addf %260, %263 : vector<1x64xf32>
    %265 = vector.extract_strided_slice %256 {offsets = [1, 0], sizes = [1, 8], strides = [1, 1]} : vector<8x8xf32> to vector<1x8xf32>
    %c8 = arith.constant 8 : index
    %c0_156 = arith.constant 0 : index
    %266 = vector.load %arg30[%c8, %c0_156] : memref<64x64xf32, #tpu.memory_space<vmem>>, vector<8x64xf32>
    %cst_157 = arith.constant dense<0.000000e+00> : vector<1x64xf32>
    %267 = tpu.matmul %265, %266, %cst_157 {dimension_numbers = #tpu.dot_dimension_numbers<[1], [0], [0], [1], [0, 0, 1, 1], [], []>} : vector<1x8xf32>, vector<8x64xf32>, vector<1x64xf32> -> vector<1x64xf32>
    %268 = arith.addf %264, %267 : vector<1x64xf32>
    %269 = vector.extract_strided_slice %256 {offsets = [2, 0], sizes = [1, 8], strides = [1, 1]} : vector<8x8xf32> to vector<1x8xf32>
    %c16 = arith.constant 16 : index
    %c0_158 = arith.constant 0 : index
    %270 = vector.load %arg30[%c16, %c0_158] : memref<64x64xf32, #tpu.memory_space<vmem>>, vector<8x64xf32>
    %cst_159 = arith.constant dense<0.000000e+00> : vector<1x64xf32>
    %271 = tpu.matmul %269, %270, %cst_159 {dimension_numbers = #tpu.dot_dimension_numbers<[1], [0], [0], [1], [0, 0, 1, 1], [], []>} : vector<1x8xf32>, vector<8x64xf32>, vector<1x64xf32> -> vector<1x64xf32>
    %272 = arith.addf %268, %271 : vector<1x64xf32>
    %273 = vector.extract_strided_slice %256 {offsets = [3, 0], sizes = [1, 8], strides = [1, 1]} : vector<8x8xf32> to vector<1x8xf32>
    %c24 = arith.constant 24 : index
    %c0_160 = arith.constant 0 : index
    %274 = vector.load %arg30[%c24, %c0_160] : memref<64x64xf32, #tpu.memory_space<vmem>>, vector<8x64xf32>
    %cst_161 = arith.constant dense<0.000000e+00> : vector<1x64xf32>
    %275 = tpu.matmul %273, %274, %cst_161 {dimension_numbers = #tpu.dot_dimension_numbers<[1], [0], [0], [1], [0, 0, 1, 1], [], []>} : vector<1x8xf32>, vector<8x64xf32>, vector<1x64xf32> -> vector<1x64xf32>
    %276 = arith.addf %272, %275 : vector<1x64xf32>
    %277 = vector.extract_strided_slice %256 {offsets = [4, 0], sizes = [1, 8], strides = [1, 1]} : vector<8x8xf32> to vector<1x8xf32>
    %c32 = arith.constant 32 : index
    %c0_162 = arith.constant 0 : index
    %278 = vector.load %arg30[%c32, %c0_162] : memref<64x64xf32, #tpu.memory_space<vmem>>, vector<8x64xf32>
    %cst_163 = arith.constant dense<0.000000e+00> : vector<1x64xf32>
    %279 = tpu.matmul %277, %278, %cst_163 {dimension_numbers = #tpu.dot_dimension_numbers<[1], [0], [0], [1], [0, 0, 1, 1], [], []>} : vector<1x8xf32>, vector<8x64xf32>, vector<1x64xf32> -> vector<1x64xf32>
    %280 = arith.addf %276, %279 : vector<1x64xf32>
    %281 = vector.extract_strided_slice %256 {offsets = [5, 0], sizes = [1, 8], strides = [1, 1]} : vector<8x8xf32> to vector<1x8xf32>
    %c40 = arith.constant 40 : index
    %c0_164 = arith.constant 0 : index
    %282 = vector.load %arg30[%c40, %c0_164] : memref<64x64xf32, #tpu.memory_space<vmem>>, vector<8x64xf32>
    %cst_165 = arith.constant dense<0.000000e+00> : vector<1x64xf32>
    %283 = tpu.matmul %281, %282, %cst_165 {dimension_numbers = #tpu.dot_dimension_numbers<[1], [0], [0], [1], [0, 0, 1, 1], [], []>} : vector<1x8xf32>, vector<8x64xf32>, vector<1x64xf32> -> vector<1x64xf32>
    %284 = arith.addf %280, %283 : vector<1x64xf32>
    %285 = vector.extract_strided_slice %256 {offsets = [6, 0], sizes = [1, 8], strides = [1, 1]} : vector<8x8xf32> to vector<1x8xf32>
    %c48 = arith.constant 48 : index
    %c0_166 = arith.constant 0 : index
    %286 = vector.load %arg30[%c48, %c0_166] : memref<64x64xf32, #tpu.memory_space<vmem>>, vector<8x64xf32>
    %cst_167 = arith.constant dense<0.000000e+00> : vector<1x64xf32>
    %287 = tpu.matmul %285, %286, %cst_167 {dimension_numbers = #tpu.dot_dimension_numbers<[1], [0], [0], [1], [0, 0, 1, 1], [], []>} : vector<1x8xf32>, vector<8x64xf32>, vector<1x64xf32> -> vector<1x64xf32>
    %288 = arith.addf %284, %287 : vector<1x64xf32>
    %289 = vector.extract_strided_slice %256 {offsets = [7, 0], sizes = [1, 8], strides = [1, 1]} : vector<8x8xf32> to vector<1x8xf32>
    %c56 = arith.constant 56 : index
    %c0_168 = arith.constant 0 : index
    %290 = vector.load %arg30[%c56, %c0_168] : memref<64x64xf32, #tpu.memory_space<vmem>>, vector<8x64xf32>
    %cst_169 = arith.constant dense<0.000000e+00> : vector<1x64xf32>
    %291 = tpu.matmul %289, %290, %cst_169 {dimension_numbers = #tpu.dot_dimension_numbers<[1], [0], [0], [1], [0, 0, 1, 1], [], []>} : vector<1x8xf32>, vector<8x64xf32>, vector<1x64xf32> -> vector<1x64xf32>
    %292 = arith.addf %288, %291 : vector<1x64xf32>
    %293 = arith.mulf %292, %292 : vector<1x64xf32>
    %cst_170 = arith.constant dense<0.000000e+00> : vector<1xf32>
    %294 = vector.multi_reduction <add>, %293, %cst_170 [1] : vector<1x64xf32> to vector<1xf32>
    %295 = vector.shape_cast %294 : vector<1xf32> to vector<1x1xf32>
    %cst_171 = arith.constant 1.000000e-24 : f32
    %296 = vector.broadcast %cst_171 : f32 to vector<1x1xf32>
    %297 = arith.maximumf %295, %296 : vector<1x1xf32>
    %298 = math.rsqrt %297 : vector<1x1xf32>
    %299 = vector.broadcast %298 : vector<1x1xf32> to vector<1x64xf32>
    %300 = arith.mulf %292, %299 : vector<1x64xf32>
    %c0_172 = arith.constant 0 : index
    %c0_173 = arith.constant 0 : index
    %c0_174 = arith.constant 0 : index
    %301 = vector.load %arg32[%c0_172, %c0_173, %c0_174] : memref<1x1x64xf32, #tpu.memory_space<vmem>>, vector<1x1x64xf32>
    %302 = vector.shape_cast %301 : vector<1x1x64xf32> to vector<1x64xf32>
    %303 = vector.shape_cast %300 : vector<1x64xf32> to vector<1x1x64xf32>
    tpu.vector_store %arg32[%c0_172, %c0_173, %c0_174], %303 {strides = array<i32>} : memref<1x1x64xf32, #tpu.memory_space<vmem>>, vector<1x1x64xf32>,
    return
  }
  func.func @transform_0(%arg0: i32) -> (i32, i32, i32) {
    %c0_i32 = arith.constant 0 : i32
    %c0_i32_0 = arith.constant 0 : i32
    %c0_i32_1 = arith.constant 0 : i32
    return %arg0, %c0_i32, %c0_i32_0 : i32, i32, i32
  }
  func.func @transform_1(%arg0: i32) -> (i32, i32, i32, i32) {
    %c0_i32 = arith.constant 0 : i32
    %c0_i32_0 = arith.constant 0 : i32
    %c0_i32_1 = arith.constant 0 : i32
    %c0_i32_2 = arith.constant 0 : i32
    return %arg0, %c0_i32, %c0_i32_0, %c0_i32_1 : i32, i32, i32, i32
  }
  func.func @transform_2(%arg0: i32) -> (i32, i32) {
    %c0_i32 = arith.constant 0 : i32
    %c0_i32_0 = arith.constant 0 : i32
    %c0_i32_1 = arith.constant 0 : i32
    return %c0_i32, %c0_i32_0 : i32, i32
  }
  func.func @transform_3(%arg0: i32) -> (i32, i32) {
    %c0_i32 = arith.constant 0 : i32
    %c0_i32_0 = arith.constant 0 : i32
    %c0_i32_1 = arith.constant 0 : i32
    return %c0_i32, %c0_i32_0 : i32, i32
  }
  func.func @transform_4(%arg0: i32) -> (i32, i32) {
    %c0_i32 = arith.constant 0 : i32
    %c0_i32_0 = arith.constant 0 : i32
    %c0_i32_1 = arith.constant 0 : i32
    return %c0_i32, %c0_i32_0 : i32, i32
  }
  func.func @transform_5(%arg0: i32) -> (i32, i32) {
    %c0_i32 = arith.constant 0 : i32
    %c0_i32_0 = arith.constant 0 : i32
    %c0_i32_1 = arith.constant 0 : i32
    return %c0_i32, %c0_i32_0 : i32, i32
  }
  func.func @transform_6(%arg0: i32) -> (i32, i32) {
    %c0_i32 = arith.constant 0 : i32
    %c0_i32_0 = arith.constant 0 : i32
    %c0_i32_1 = arith.constant 0 : i32
    return %c0_i32, %c0_i32_0 : i32, i32
  }
  func.func @transform_7(%arg0: i32) -> (i32, i32) {
    %c0_i32 = arith.constant 0 : i32
    %c0_i32_0 = arith.constant 0 : i32
    %c0_i32_1 = arith.constant 0 : i32
    return %c0_i32, %c0_i32_0 : i32, i32
  }
  func.func @transform_8(%arg0: i32) -> (i32, i32) {
    %c0_i32 = arith.constant 0 : i32
    %c0_i32_0 = arith.constant 0 : i32
    %c0_i32_1 = arith.constant 0 : i32
    return %c0_i32, %c0_i32_0 : i32, i32
  }
  func.func @transform_9(%arg0: i32) -> (i32, i32) {
    %c0_i32 = arith.constant 0 : i32
    %c0_i32_0 = arith.constant 0 : i32
    %c0_i32_1 = arith.constant 0 : i32
    return %c0_i32, %c0_i32_0 : i32, i32
  }
  func.func @transform_10(%arg0: i32) -> (i32, i32) {
    %c0_i32 = arith.constant 0 : i32
    %c0_i32_0 = arith.constant 0 : i32
    %c0_i32_1 = arith.constant 0 : i32
    return %c0_i32, %c0_i32_0 : i32, i32
  }
  func.func @transform_11(%arg0: i32) -> (i32, i32) {
    %c0_i32 = arith.constant 0 : i32
    %c0_i32_0 = arith.constant 0 : i32
    %c0_i32_1 = arith.constant 0 : i32
    return %c0_i32, %c0_i32_0 : i32, i32
  }
  func.func @transform_12(%arg0: i32) -> (i32, i32) {
    %c0_i32 = arith.constant 0 : i32
    %c0_i32_0 = arith.constant 0 : i32
    %c0_i32_1 = arith.constant 0 : i32
    return %c0_i32, %c0_i32_0 : i32, i32
  }
  func.func @transform_13(%arg0: i32) -> (i32, i32) {
    %c0_i32 = arith.constant 0 : i32
    %c0_i32_0 = arith.constant 0 : i32
    %c0_i32_1 = arith.constant 0 : i32
    return %c0_i32, %c0_i32_0 : i32, i32
  }
  func.func @transform_14(%arg0: i32) -> (i32, i32) {
    %c0_i32 = arith.constant 0 : i32
    %c0_i32_0 = arith.constant 0 : i32
    %c0_i32_1 = arith.constant 0 : i32
    return %c0_i32, %c0_i32_0 : i32, i32
  }
  func.func @transform_15(%arg0: i32) -> (i32, i32) {
    %c0_i32 = arith.constant 0 : i32
    %c0_i32_0 = arith.constant 0 : i32
    %c0_i32_1 = arith.constant 0 : i32
    return %c0_i32, %c0_i32_0 : i32, i32
  }
  func.func @transform_16(%arg0: i32) -> (i32, i32) {
    %c0_i32 = arith.constant 0 : i32
    %c0_i32_0 = arith.constant 0 : i32
    %c0_i32_1 = arith.constant 0 : i32
    return %c0_i32, %c0_i32_0 : i32, i32
  }
  func.func @transform_17(%arg0: i32) -> (i32, i32) {
    %c0_i32 = arith.constant 0 : i32
    %c0_i32_0 = arith.constant 0 : i32
    %c0_i32_1 = arith.constant 0 : i32
    return %c0_i32, %c0_i32_0 : i32, i32
  }
  func.func @transform_18(%arg0: i32) -> (i32, i32) {
    %c0_i32 = arith.constant 0 : i32
    %c0_i32_0 = arith.constant 0 : i32
    %c0_i32_1 = arith.constant 0 : i32
    return %c0_i32, %c0_i32_0 : i32, i32
  }
  func.func @transform_19(%arg0: i32) -> (i32, i32) {
    %c0_i32 = arith.constant 0 : i32
    %c0_i32_0 = arith.constant 0 : i32
    %c0_i32_1 = arith.constant 0 : i32
    return %c0_i32, %c0_i32_0 : i32, i32
  }
  func.func @transform_20(%arg0: i32) -> (i32, i32) {
    %c0_i32 = arith.constant 0 : i32
    %c0_i32_0 = arith.constant 0 : i32
    %c0_i32_1 = arith.constant 0 : i32
    return %c0_i32, %c0_i32_0 : i32, i32
  }
  func.func @transform_21(%arg0: i32) -> (i32, i32) {
    %c0_i32 = arith.constant 0 : i32
    %c0_i32_0 = arith.constant 0 : i32
    %c0_i32_1 = arith.constant 0 : i32
    return %c0_i32, %c0_i32_0 : i32, i32
  }
  func.func @transform_22(%arg0: i32) -> (i32, i32) {
    %c0_i32 = arith.constant 0 : i32
    %c0_i32_0 = arith.constant 0 : i32
    %c0_i32_1 = arith.constant 0 : i32
    return %c0_i32, %c0_i32_0 : i32, i32
  }
  func.func @transform_23(%arg0: i32) -> (i32, i32) {
    %c0_i32 = arith.constant 0 : i32
    %c0_i32_0 = arith.constant 0 : i32
    %c0_i32_1 = arith.constant 0 : i32
    return %c0_i32, %c0_i32_0 : i32, i32
  }
  func.func @transform_24(%arg0: i32) -> (i32, i32) {
    %c0_i32 = arith.constant 0 : i32
    %c0_i32_0 = arith.constant 0 : i32
    %c0_i32_1 = arith.constant 0 : i32
    return %c0_i32, %c0_i32_0 : i32, i32
  }
  func.func @transform_25(%arg0: i32) -> (i32, i32) {
    %c0_i32 = arith.constant 0 : i32
    %c0_i32_0 = arith.constant 0 : i32
    %c0_i32_1 = arith.constant 0 : i32
    return %c0_i32, %c0_i32_0 : i32, i32
  }
  func.func @transform_26(%arg0: i32) -> (i32, i32) {
    %c0_i32 = arith.constant 0 : i32
    %c0_i32_0 = arith.constant 0 : i32
    %c0_i32_1 = arith.constant 0 : i32
    return %c0_i32, %c0_i32_0 : i32, i32
  }
  func.func @transform_27(%arg0: i32) -> (i32, i32) {
    %c0_i32 = arith.constant 0 : i32
    %c0_i32_0 = arith.constant 0 : i32
    %c0_i32_1 = arith.constant 0 : i32
    return %c0_i32, %c0_i32_0 : i32, i32
  }
  func.func @transform_28(%arg0: i32) -> (i32, i32) {
    %c0_i32 = arith.constant 0 : i32
    %c0_i32_0 = arith.constant 0 : i32
    %c0_i32_1 = arith.constant 0 : i32
    return %c0_i32, %c0_i32_0 : i32, i32
  }
  func.func @transform_29(%arg0: i32) -> (i32, i32) {
    %c0_i32 = arith.constant 0 : i32
    %c0_i32_0 = arith.constant 0 : i32
    %c0_i32_1 = arith.constant 0 : i32
    return %c0_i32, %c0_i32_0 : i32, i32
  }
  func.func @transform_30(%arg0: i32) -> (i32, i32) {
    %c0_i32 = arith.constant 0 : i32
    %c0_i32_0 = arith.constant 0 : i32
    %c0_i32_1 = arith.constant 0 : i32
    return %c0_i32, %c0_i32_0 : i32, i32
  }
  func.func @transform_31(%arg0: i32) -> (i32, i32, i32) {
    %c0_i32 = arith.constant 0 : i32
    %c0_i32_0 = arith.constant 0 : i32
    %c0_i32_1 = arith.constant 0 : i32
    return %arg0, %c0_i32, %c0_i32_0 : i32, i32, i32
  }
}

</mosaic_0001>

<llo_original>
// kernel: scene_graph_forward.1
$region0: #{scene_graph_forward.1}
  #allocation0 [shape = 'u32[]', space=smem, size = 0x4, offset = 0x4, fixed_abs, tag = 'smem constant byte address 0x4 - core index']
  #allocation1 [shape = 'u32[72,128]{1,0:T(1,128)}', space=vmem, size = 0x9000, scoped, tag = 'internal scratch']
  %s0 = inlined_call_operand.smem [shape: u32[32], index: -1, kind: input, shape index: {}]
  %s1 = sld [smem:[%s0]]
  %s2 = scalar_lea.smem %s0, 1
  %s3 = sld [smem:[%s2]]
  %s4 = scalar_lea.smem %s0, 2
  %s5 = sld [smem:[%s4]]
  %s6 = scalar_lea.smem %s0, 3
  %s7 = sld [smem:[%s6]]
  %s8 = scalar_lea.smem %s0, 4
  %s9 = sld [smem:[%s8]]
  %s10 = scalar_lea.smem %s0, 5
  %s11 = sld [smem:[%s10]]
  %s12 = scalar_lea.smem %s0, 6
  %s13 = sld [smem:[%s12]]
  %s14 = scalar_lea.smem %s0, 7
  %s15 = sld [smem:[%s14]]
  %s16 = scalar_lea.smem %s0, 8
  %s17 = sld [smem:[%s16]]
  %s18 = scalar_lea.smem %s0, 9
  %s19 = sld [smem:[%s18]]
  %s20 = scalar_lea.smem %s0, 10
  %s21 = sld [smem:[%s20]]
  %s22 = scalar_lea.smem %s0, 11
  %s23 = sld [smem:[%s22]]
  %s24 = scalar_lea.smem %s0, 12
  %s25 = sld [smem:[%s24]]
  %s26 = scalar_lea.smem %s0, 13
  %s27 = sld [smem:[%s26]]
  %s28 = scalar_lea.smem %s0, 14
  %s29 = sld [smem:[%s28]]
  %s30 = scalar_lea.smem %s0, 15
  %s31 = sld [smem:[%s30]]
  %s32 = scalar_lea.smem %s0, 16
  %s33 = sld [smem:[%s32]]
  %s34 = scalar_lea.smem %s0, 17
  %s35 = sld [smem:[%s34]]
  %s36 = scalar_lea.smem %s0, 18
  %s37 = sld [smem:[%s36]]
  %s38 = scalar_lea.smem %s0, 19
  %s39 = sld [smem:[%s38]]
  %s40 = scalar_lea.smem %s0, 20
  %s41 = sld [smem:[%s40]]
  %s42 = scalar_lea.smem %s0, 21
  %s43 = sld [smem:[%s42]]
  %s44 = scalar_lea.smem %s0, 22
  %s45 = sld [smem:[%s44]]
  %s46 = scalar_lea.smem %s0, 23
  %s47 = sld [smem:[%s46]]
  %s48 = scalar_lea.smem %s0, 24
  %s49 = sld [smem:[%s48]]
  %s50 = scalar_lea.smem %s0, 25
  %s51 = sld [smem:[%s50]]
  %s52 = scalar_lea.smem %s0, 26
  %s53 = sld [smem:[%s52]]
  %s54 = scalar_lea.smem %s0, 27
  %s55 = sld [smem:[%s54]]
  %s56 = scalar_lea.smem %s0, 28
  %s57 = sld [smem:[%s56]]
  %s58 = scalar_lea.smem %s0, 29
  %s59 = sld [smem:[%s58]]
  %s60 = scalar_lea.smem %s0, 30
  %s61 = sld [smem:[%s60]]
  %s62 = scalar_lea.smem %s0, 31
  %s63 = sld [smem:[%s62]]
  %s64 = sld [smem:[#allocation0]]
  $region157: #{scene_graph_forward.1} parent=0
    _
  %s66 = ssub.s32 1, %s64
  %s67 = scalar_select 0, %s66, %s64
  $region1: #{scene_graph_forward.1} parent=0
    #allocation2 [shape = 'u8[1024]{0}', space=vmem, size = 0x400, scoped, tag = 'output window, operand 0']
    #allocation3 [shape = 's32[2]{0}', space=sflag, size = 0x8, scoped, tag = 'scoped memory for scene_graph_forward.1']
    %68 = vsyncpa [#allocation3], 0
    %s69 = scalar_lea.sflag [#allocation3], 1
    %70 = vsyncpa %s69, 0
    loop: start=0, step=1, limit=4
    $region2: #{scene_graph_forward.1} parent=1 // loop_pre_header
      _
    $region3: #{scene_graph_forward.1} parent=1 // loop_header
      %s72 = sphi 0, %s76
      %p73 = scmp.ge.s32.totalorder %s72, 4
      %s82 = sphi 0, %s84
      %s85 = sphi 0, %s82
      %s86 = sphi 0, %s85
      %s102 = sphi 0, %s86
      %s108 = sphi 0, %s110
      %s111 = sphi 0, %s108
      %s112 = sphi 0, %s111
      %s128 = sphi 0, %s112
      %s132 = sphi 0, %s132
      %s134 = sphi 0, %s132
      %s135 = sphi 0, %s134
      %s149 = sphi 0, %s135
      %s153 = sphi 0, %s153
      %s155 = sphi 0, %s153
      %s156 = sphi 0, %s155
      %s170 = sphi 0, %s156
      %s174 = sphi 0, %s174
      %s176 = sphi 0, %s174
      %s177 = sphi 0, %s176
      %s191 = sphi 0, %s177
      %s195 = sphi 0, %s195
      %s197 = sphi 0, %s195
      %s198 = sphi 0, %s197
      %s212 = sphi 0, %s198
      %s216 = sphi 0, %s216
      %s218 = sphi 0, %s216
      %s219 = sphi 0, %s218
      %s233 = sphi 0, %s219
      %s237 = sphi 0, %s237
      %s239 = sphi 0, %s237
      %s240 = sphi 0, %s239
      %s254 = sphi 0, %s240
      %s258 = sphi 0, %s258
      %s260 = sphi 0, %s258
      %s261 = sphi 0, %s260
      %s275 = sphi 0, %s261
      %s279 = sphi 0, %s279
      %s281 = sphi 0, %s279
      %s282 = sphi 0, %s281
      %s296 = sphi 0, %s282
      %s300 = sphi 0, %s300
      %s302 = sphi 0, %s300
      %s303 = sphi 0, %s302
      %s317 = sphi 0, %s303
      %s321 = sphi 0, %s321
      %s323 = sphi 0, %s321
      %s324 = sphi 0, %s323
      %s338 = sphi 0, %s324
      %s342 = sphi 0, %s342
      %s344 = sphi 0, %s342
      %s345 = sphi 0, %s344
      %s359 = sphi 0, %s345
      %s363 = sphi 0, %s363
      %s365 = sphi 0, %s363
      %s366 = sphi 0, %s365
      %s380 = sphi 0, %s366
      %s384 = sphi 0, %s384
      %s386 = sphi 0, %s384
      %s387 = sphi 0, %s386
      %s401 = sphi 0, %s387
      %s405 = sphi 0, %s405
      %s407 = sphi 0, %s405
      %s408 = sphi 0, %s407
      %s422 = sphi 0, %s408
      %s426 = sphi 0, %s426
      %s428 = sphi 0, %s426
      %s429 = sphi 0, %s428
      %s443 = sphi 0, %s429
      %s447 = sphi 0, %s447
      %s449 = sphi 0, %s447
      %s450 = sphi 0, %s449
      %s464 = sphi 0, %s450
      %s468 = sphi 0, %s468
      %s470 = sphi 0, %s468
      %s471 = sphi 0, %s470
      %s485 = sphi 0, %s471
      %s489 = sphi 0, %s489
      %s491 = sphi 0, %s489
      %s492 = sphi 0, %s491
      %s506 = sphi 0, %s492
      %s510 = sphi 0, %s510
      %s512 = sphi 0, %s510
      %s513 = sphi 0, %s512
      %s527 = sphi 0, %s513
      %s531 = sphi 0, %s531
      %s533 = sphi 0, %s531
      %s534 = sphi 0, %s533
      %s548 = sphi 0, %s534
      %s552 = sphi 0, %s552
      %s554 = sphi 0, %s552
      %s555 = sphi 0, %s554
      %s569 = sphi 0, %s555
      %s573 = sphi 0, %s573
      %s575 = sphi 0, %s573
      %s576 = sphi 0, %s575
      %s590 = sphi 0, %s576
      %s594 = sphi 0, %s594
      %s596 = sphi 0, %s594
      %s597 = sphi 0, %s596
      %s611 = sphi 0, %s597
      %s615 = sphi 0, %s615
      %s617 = sphi 0, %s615
      %s618 = sphi 0, %s617
      %s632 = sphi 0, %s618
      %s636 = sphi 0, %s636
      %s638 = sphi 0, %s636
      %s639 = sphi 0, %s638
      %s653 = sphi 0, %s639
      %s657 = sphi 0, %s657
      %s659 = sphi 0, %s657
      %s660 = sphi 0, %s659
      %s674 = sphi 0, %s660
      %s678 = sphi 0, %s678
      %s680 = sphi 0, %s678
      %s681 = sphi 0, %s680
      %s695 = sphi 0, %s681
      %s699 = sphi 0, %s699
      %s701 = sphi 0, %s699
      %s702 = sphi 0, %s701
      %s716 = sphi 0, %s702
      %s720 = sphi 0, %s720
      %s722 = sphi 0, %s720
      %s723 = sphi 0, %s722
      %s737 = sphi 0, %s723
      %s743 = sphi 0, %s745
      %s746 = sphi 0, %s743
      %s747 = sphi 0, %s746
      %s763 = sphi 0, %s747
    $region4: #{scene_graph_forward.1} parent=1 // loop_header_branch
      %75 = sbr.rel (%p73) target = $region8
    $region5: #{scene_graph_forward.1} parent=1 // loop_body
      %s77 = ssub.s32 %s72, 1
      %s78 = ssub.s32 %s72, 2
      %s79 = sadd.s32 %s72, 1
      %s80 = ssub.s32 %s72, %s79
      %p81 = scmp.eq.s32.totalorder %s80, 0
      %s83 = sadd.s32 %s82, 1
      %s84 = scalar_select %p81, %s82, %s83
      %p87 = pneg %p81
      %p88 = scmp.eq.s32.totalorder %s72, 1
      %p89 = por %p87, %p88
      %p90 = scmp.ne.s32.totalorder %s82, %s85
      %p91 = scmp.eq.s32.totalorder %s72, 0
      %p92 = por %p90, %p91
      %p93 = scmp.ne.s32.totalorder %s82, %s85
      %p94 = scmp.eq.s32.totalorder %s77, 1
      %p95 = por %p93, %p94
      %p96 = scmp.ne.s32.totalorder %s85, %s86
      %p97 = scmp.eq.s32.totalorder %s77, 0
      %p98 = por %p96, %p97
      %p99 = scmp.ne.s32.totalorder %s85, %s86
      %p100 = scmp.eq.s32.totalorder %s78, 1
      %p101 = por %p99, %p100
      %p103 = scmp.ne.s32.totalorder %s86, %s102
      %p104 = scmp.eq.s32.totalorder %s78, 0
      %p105 = por %p103, %p104
      %s106 = ssub.s32 %s72, %s79
      %p107 = scmp.eq.s32.totalorder %s106, 0
      %s109 = sadd.s32 %s108, 1
      %s110 = scalar_select %p107, %s108, %s109
      %p113 = pneg %p107
      %p114 = scmp.eq.s32.totalorder %s72, 1
      %p115 = por %p113, %p114
      %p116 = scmp.ne.s32.totalorder %s108, %s111
      %p117 = scmp.eq.s32.totalorder %s72, 0
      %p118 = por %p116, %p117
      %p119 = scmp.ne.s32.totalorder %s108, %s111
      %p120 = scmp.eq.s32.totalorder %s77, 1
      %p121 = por %p119, %p120
      %p122 = scmp.ne.s32.totalorder %s111, %s112
      %p123 = scmp.eq.s32.totalorder %s77, 0
      %p124 = por %p122, %p123
      %p125 = scmp.ne.s32.totalorder %s111, %s112
      %p126 = scmp.eq.s32.totalorder %s78, 1
      %p127 = por %p125, %p126
      %p129 = scmp.ne.s32.totalorder %s112, %s128
      %p130 = scmp.eq.s32.totalorder %s78, 0
      %p131 = por %p129, %p130
      %s133 = sadd.s32 %s132, 1
      %p136 = scmp.eq.s32.totalorder %s72, 1
      %p137 = scmp.ne.s32.totalorder %s132, %s134
      %p138 = scmp.eq.s32.totalorder %s72, 0
      %p139 = por %p137, %p138
      %p140 = scmp.ne.s32.totalorder %s132, %s134
      %p141 = scmp.eq.s32.totalorder %s77, 1
      %p142 = por %p140, %p141
      %p143 = scmp.ne.s32.totalorder %s134, %s135
      %p144 = scmp.eq.s32.totalorder %s77, 0
      %p145 = por %p143, %p144
      %p146 = scmp.ne.s32.totalorder %s134, %s135
      %p147 = scmp.eq.s32.totalorder %s78, 1
      %p148 = por %p146, %p147
      %p150 = scmp.ne.s32.totalorder %s135, %s149
      %p151 = scmp.eq.s32.totalorder %s78, 0
      %p152 = por %p150, %p151
      %s154 = sadd.s32 %s153, 1
      %p157 = scmp.eq.s32.totalorder %s72, 1
      %p158 = scmp.ne.s32.totalorder %s153, %s155
      %p159 = scmp.eq.s32.totalorder %s72, 0
      %p160 = por %p158, %p159
      %p161 = scmp.ne.s32.totalorder %s153, %s155
      %p162 = scmp.eq.s32.totalorder %s77, 1
      %p163 = por %p161, %p162
      %p164 = scmp.ne.s32.totalorder %s155, %s156
      %p165 = scmp.eq.s32.totalorder %s77, 0
      %p166 = por %p164, %p165
      %p167 = scmp.ne.s32.totalorder %s155, %s156
      %p168 = scmp.eq.s32.totalorder %s78, 1
      %p169 = por %p167, %p168
      %p171 = scmp.ne.s32.totalorder %s156, %s170
      %p172 = scmp.eq.s32.totalorder %s78, 0
      %p173 = por %p171, %p172
      %s175 = sadd.s32 %s174, 1
      %p178 = scmp.eq.s32.totalorder %s72, 1
      %p179 = scmp.ne.s32.totalorder %s174, %s176
      %p180 = scmp.eq.s32.totalorder %s72, 0
      %p181 = por %p179, %p180
      %p182 = scmp.ne.s32.totalorder %s174, %s176
      %p183 = scmp.eq.s32.totalorder %s77, 1
      %p184 = por %p182, %p183
      %p185 = scmp.ne.s32.totalorder %s176, %s177
      %p186 = scmp.eq.s32.totalorder %s77, 0
      %p187 = por %p185, %p186
      %p188 = scmp.ne.s32.totalorder %s176, %s177
      %p189 = scmp.eq.s32.totalorder %s78, 1
      %p190 = por %p188, %p189
      %p192 = scmp.ne.s32.totalorder %s177, %s191
      %p193 = scmp.eq.s32.totalorder %s78, 0
      %p194 = por %p192, %p193
      %s196 = sadd.s32 %s195, 1
      %p199 = scmp.eq.s32.totalorder %s72, 1
      %p200 = scmp.ne.s32.totalorder %s195, %s197
      %p201 = scmp.eq.s32.totalorder %s72, 0
      %p202 = por %p200, %p201
      %p203 = scmp.ne.s32.totalorder %s195, %s197
      %p204 = scmp.eq.s32.totalorder %s77, 1
      %p205 = por %p203, %p204
      %p206 = scmp.ne.s32.totalorder %s197, %s198
      %p207 = scmp.eq.s32.totalorder %s77, 0
      %p208 = por %p206, %p207
      %p209 = scmp.ne.s32.totalorder %s197, %s198
      %p210 = scmp.eq.s32.totalorder %s78, 1
      %p211 = por %p209, %p210
      %p213 = scmp.ne.s32.totalorder %s198, %s212
      %p214 = scmp.eq.s32.totalorder %s78, 0
      %p215 = por %p213, %p214
      %s217 = sadd.s32 %s216, 1
      %p220 = scmp.eq.s32.totalorder %s72, 1
      %p221 = scmp.ne.s32.totalorder %s216, %s218
      %p222 = scmp.eq.s32.totalorder %s72, 0
      %p223 = por %p221, %p222
      %p224 = scmp.ne.s32.totalorder %s216, %s218
      %p225 = scmp.eq.s32.totalorder %s77, 1
      %p226 = por %p224, %p225
      %p227 = scmp.ne.s32.totalorder %s218, %s219
      %p228 = scmp.eq.s32.totalorder %s77, 0
      %p229 = por %p227, %p228
      %p230 = scmp.ne.s32.totalorder %s218, %s219
      %p231 = scmp.eq.s32.totalorder %s78, 1
      %p232 = por %p230, %p231
      %p234 = scmp.ne.s32.totalorder %s219, %s233
      %p235 = scmp.eq.s32.totalorder %s78, 0
      %p236 = por %p234, %p235
      %s238 = sadd.s32 %s237, 1
      %p241 = scmp.eq.s32.totalorder %s72, 1
      %p242 = scmp.ne.s32.totalorder %s237, %s239
      %p243 = scmp.eq.s32.totalorder %s72, 0
      %p244 = por %p242, %p243
      %p245 = scmp.ne.s32.totalorder %s237, %s239
      %p246 = scmp.eq.s32.totalorder %s77, 1
      %p247 = por %p245, %p246
      %p248 = scmp.ne.s32.totalorder %s239, %s240
      %p249 = scmp.eq.s32.totalorder %s77, 0
      %p250 = por %p248, %p249
      %p251 = scmp.ne.s32.totalorder %s239, %s240
      %p252 = scmp.eq.s32.totalorder %s78, 1
      %p253 = por %p251, %p252
      %p255 = scmp.ne.s32.totalorder %s240, %s254
      %p256 = scmp.eq.s32.totalorder %s78, 0
      %p257 = por %p255, %p256
      %s259 = sadd.s32 %s258, 1
      %p262 = scmp.eq.s32.totalorder %s72, 1
      %p263 = scmp.ne.s32.totalorder %s258, %s260
      %p264 = scmp.eq.s32.totalorder %s72, 0
      %p265 = por %p263, %p264
      %p266 = scmp.ne.s32.totalorder %s258, %s260
      %p267 = scmp.eq.s32.totalorder %s77, 1
      %p268 = por %p266, %p267
      %p269 = scmp.ne.s32.totalorder %s260, %s261
      %p270 = scmp.eq.s32.totalorder %s77, 0
      %p271 = por %p269, %p270
      %p272 = scmp.ne.s32.totalorder %s260, %s261
      %p273 = scmp.eq.s32.totalorder %s78, 1
      %p274 = por %p272, %p273
      %p276 = scmp.ne.s32.totalorder %s261, %s275
      %p277 = scmp.eq.s32.totalorder %s78, 0
      %p278 = por %p276, %p277
      %s280 = sadd.s32 %s279, 1
      %p283 = scmp.eq.s32.totalorder %s72, 1
      %p284 = scmp.ne.s32.totalorder %s279, %s281
      %p285 = scmp.eq.s32.totalorder %s72, 0
      %p286 = por %p284, %p285
      %p287 = scmp.ne.s32.totalorder %s279, %s281
      %p288 = scmp.eq.s32.totalorder %s77, 1
      %p289 = por %p287, %p288
      %p290 = scmp.ne.s32.totalorder %s281, %s282
      %p291 = scmp.eq.s32.totalorder %s77, 0
      %p292 = por %p290, %p291
      %p293 = scmp.ne.s32.totalorder %s281, %s282
      %p294 = scmp.eq.s32.totalorder %s78, 1
      %p295 = por %p293, %p294
      %p297 = scmp.ne.s32.totalorder %s282, %s296
      %p298 = scmp.eq.s32.totalorder %s78, 0
      %p299 = por %p297, %p298
      %s301 = sadd.s32 %s300, 1
      %p304 = scmp.eq.s32.totalorder %s72, 1
      %p305 = scmp.ne.s32.totalorder %s300, %s302
      %p306 = scmp.eq.s32.totalorder %s72, 0
      %p307 = por %p305, %p306
      %p308 = scmp.ne.s32.totalorder %s300, %s302
      %p309 = scmp.eq.s32.totalorder %s77, 1
      %p310 = por %p308, %p309
      %p311 = scmp.ne.s32.totalorder %s302, %s303
      %p312 = scmp.eq.s32.totalorder %s77, 0
      %p313 = por %p311, %p312
      %p314 = scmp.ne.s32.totalorder %s302, %s303
      %p315 = scmp.eq.s32.totalorder %s78, 1
      %p316 = por %p314, %p315
      %p318 = scmp.ne.s32.totalorder %s303, %s317
      %p319 = scmp.eq.s32.totalorder %s78, 0
      %p320 = por %p318, %p319
      %s322 = sadd.s32 %s321, 1
      %p325 = scmp.eq.s32.totalorder %s72, 1
      %p326 = scmp.ne.s32.totalorder %s321, %s323
      %p327 = scmp.eq.s32.totalorder %s72, 0
      %p328 = por %p326, %p327
      %p329 = scmp.ne.s32.totalorder %s321, %s323
      %p330 = scmp.eq.s32.totalorder %s77, 1
      %p331 = por %p329, %p330
      %p332 = scmp.ne.s32.totalorder %s323, %s324
      %p333 = scmp.eq.s32.totalorder %s77, 0
      %p334 = por %p332, %p333
      %p335 = scmp.ne.s32.totalorder %s323, %s324
      %p336 = scmp.eq.s32.totalorder %s78, 1
      %p337 = por %p335, %p336
      %p339 = scmp.ne.s32.totalorder %s324, %s338
      %p340 = scmp.eq.s32.totalorder %s78, 0
      %p341 = por %p339, %p340
      %s343 = sadd.s32 %s342, 1
      %p346 = scmp.eq.s32.totalorder %s72, 1
      %p347 = scmp.ne.s32.totalorder %s342, %s344
      %p348 = scmp.eq.s32.totalorder %s72, 0
      %p349 = por %p347, %p348
      %p350 = scmp.ne.s32.totalorder %s342, %s344
      %p351 = scmp.eq.s32.totalorder %s77, 1
      %p352 = por %p350, %p351
      %p353 = scmp.ne.s32.totalorder %s344, %s345
      %p354 = scmp.eq.s32.totalorder %s77, 0
      %p355 = por %p353, %p354
      %p356 = scmp.ne.s32.totalorder %s344, %s345
      %p357 = scmp.eq.s32.totalorder %s78, 1
      %p358 = por %p356, %p357
      %p360 = scmp.ne.s32.totalorder %s345, %s359
      %p361 = scmp.eq.s32.totalorder %s78, 0
      %p362 = por %p360, %p361
      %s364 = sadd.s32 %s363, 1
      %p367 = scmp.eq.s32.totalorder %s72, 1
      %p368 = scmp.ne.s32.totalorder %s363, %s365
      %p369 = scmp.eq.s32.totalorder %s72, 0
      %p370 = por %p368, %p369
      %p371 = scmp.ne.s32.totalorder %s363, %s365
      %p372 = scmp.eq.s32.totalorder %s77, 1
      %p373 = por %p371, %p372
      %p374 = scmp.ne.s32.totalorder %s365, %s366
      %p375 = scmp.eq.s32.totalorder %s77, 0
      %p376 = por %p374, %p375
      %p377 = scmp.ne.s32.totalorder %s365, %s366
      %p378 = scmp.eq.s32.totalorder %s78, 1
      %p379 = por %p377, %p378
      %p381 = scmp.ne.s32.totalorder %s366, %s380
      %p382 = scmp.eq.s32.totalorder %s78, 0
      %p383 = por %p381, %p382
      %s385 = sadd.s32 %s384, 1
      %p388 = scmp.eq.s32.totalorder %s72, 1
      %p389 = scmp.ne.s32.totalorder %s384, %s386
      %p390 = scmp.eq.s32.totalorder %s72, 0
      %p391 = por %p389, %p390
      %p392 = scmp.ne.s32.totalorder %s384, %s386
      %p393 = scmp.eq.s32.totalorder %s77, 1
      %p394 = por %p392, %p393
      %p395 = scmp.ne.s32.totalorder %s386, %s387
      %p396 = scmp.eq.s32.totalorder %s77, 0
      %p397 = por %p395, %p396
      %p398 = scmp.ne.s32.totalorder %s386, %s387
      %p399 = scmp.eq.s32.totalorder %s78, 1
      %p400 = por %p398, %p399
      %p402 = scmp.ne.s32.totalorder %s387, %s401
      %p403 = scmp.eq.s32.totalorder %s78, 0
      %p404 = por %p402, %p403
      %s406 = sadd.s32 %s405, 1
      %p409 = scmp.eq.s32.totalorder %s72, 1
      %p410 = scmp.ne.s32.totalorder %s405, %s407
      %p411 = scmp.eq.s32.totalorder %s72, 0
      %p412 = por %p410, %p411
      %p413 = scmp.ne.s32.totalorder %s405, %s407
      %p414 = scmp.eq.s32.totalorder %s77, 1
      %p415 = por %p413, %p414
      %p416 = scmp.ne.s32.totalorder %s407, %s408
      %p417 = scmp.eq.s32.totalorder %s77, 0
      %p418 = por %p416, %p417
      %p419 = scmp.ne.s32.totalorder %s407, %s408
      %p420 = scmp.eq.s32.totalorder %s78, 1
      %p421 = por %p419, %p420
      %p423 = scmp.ne.s32.totalorder %s408, %s422
      %p424 = scmp.eq.s32.totalorder %s78, 0
      %p425 = por %p423, %p424
      %s427 = sadd.s32 %s426, 1
      %p430 = scmp.eq.s32.totalorder %s72, 1
      %p431 = scmp.ne.s32.totalorder %s426, %s428
      %p432 = scmp.eq.s32.totalorder %s72, 0
      %p433 = por %p431, %p432
      %p434 = scmp.ne.s32.totalorder %s426, %s428
      %p435 = scmp.eq.s32.totalorder %s77, 1
      %p436 = por %p434, %p435
      %p437 = scmp.ne.s32.totalorder %s428, %s429
      %p438 = scmp.eq.s32.totalorder %s77, 0
      %p439 = por %p437, %p438
      %p440 = scmp.ne.s32.totalorder %s428, %s429
      %p441 = scmp.eq.s32.totalorder %s78, 1
      %p442 = por %p440, %p441
      %p444 = scmp.ne.s32.totalorder %s429, %s443
      %p445 = scmp.eq.s32.totalorder %s78, 0
      %p446 = por %p444, %p445
      %s448 = sadd.s32 %s447, 1
      %p451 = scmp.eq.s32.totalorder %s72, 1
      %p452 = scmp.ne.s32.totalorder %s447, %s449
      %p453 = scmp.eq.s32.totalorder %s72, 0
      %p454 = por %p452, %p453
      %p455 = scmp.ne.s32.totalorder %s447, %s449
      %p456 = scmp.eq.s32.totalorder %s77, 1
      %p457 = por %p455, %p456
      %p458 = scmp.ne.s32.totalorder %s449, %s450
      %p459 = scmp.eq.s32.totalorder %s77, 0
      %p460 = por %p458, %p459
      %p461 = scmp.ne.s32.totalorder %s449, %s450
      %p462 = scmp.eq.s32.totalorder %s78, 1
      %p463 = por %p461, %p462
      %p465 = scmp.ne.s32.totalorder %s450, %s464
      %p466 = scmp.eq.s32.totalorder %s78, 0
      %p467 = por %p465, %p466
      %s469 = sadd.s32 %s468, 1
      %p472 = scmp.eq.s32.totalorder %s72, 1
      %p473 = scmp.ne.s32.totalorder %s468, %s470
      %p474 = scmp.eq.s32.totalorder %s72, 0
      %p475 = por %p473, %p474
      %p476 = scmp.ne.s32.totalorder %s468, %s470
      %p477 = scmp.eq.s32.totalorder %s77, 1
      %p478 = por %p476, %p477
      %p479 = scmp.ne.s32.totalorder %s470, %s471
      %p480 = scmp.eq.s32.totalorder %s77, 0
      %p481 = por %p479, %p480
      %p482 = scmp.ne.s32.totalorder %s470, %s471
      %p483 = scmp.eq.s32.totalorder %s78, 1
      %p484 = por %p482, %p483
      %p486 = scmp.ne.s32.totalorder %s471, %s485
      %p487 = scmp.eq.s32.totalorder %s78, 0
      %p488 = por %p486, %p487
      %s490 = sadd.s32 %s489, 1
      %p493 = scmp.eq.s32.totalorder %s72, 1
      %p494 = scmp.ne.s32.totalorder %s489, %s491
      %p495 = scmp.eq.s32.totalorder %s72, 0
      %p496 = por %p494, %p495
      %p497 = scmp.ne.s32.totalorder %s489, %s491
      %p498 = scmp.eq.s32.totalorder %s77, 1
      %p499 = por %p497, %p498
      %p500 = scmp.ne.s32.totalorder %s491, %s492
      %p501 = scmp.eq.s32.totalorder %s77, 0
      %p502 = por %p500, %p501
      %p503 = scmp.ne.s32.totalorder %s491, %s492
      %p504 = scmp.eq.s32.totalorder %s78, 1
      %p505 = por %p503, %p504
      %p507 = scmp.ne.s32.totalorder %s492, %s506
      %p508 = scmp.eq.s32.totalorder %s78, 0
      %p509 = por %p507, %p508
      %s511 = sadd.s32 %s510, 1
      %p514 = scmp.eq.s32.totalorder %s72, 1
      %p515 = scmp.ne.s32.totalorder %s510, %s512
      %p516 = scmp.eq.s32.totalorder %s72, 0
      %p517 = por %p515, %p516
      %p518 = scmp.ne.s32.totalorder %s510, %s512
      %p519 = scmp.eq.s32.totalorder %s77, 1
      %p520 = por %p518, %p519
      %p521 = scmp.ne.s32.totalorder %s512, %s513
      %p522 = scmp.eq.s32.totalorder %s77, 0
      %p523 = por %p521, %p522
      %p524 = scmp.ne.s32.totalorder %s512, %s513
      %p525 = scmp.eq.s32.totalorder %s78, 1
      %p526 = por %p524, %p525
      %p528 = scmp.ne.s32.totalorder %s513, %s527
      %p529 = scmp.eq.s32.totalorder %s78, 0
      %p530 = por %p528, %p529
      %s532 = sadd.s32 %s531, 1
      %p535 = scmp.eq.s32.totalorder %s72, 1
      %p536 = scmp.ne.s32.totalorder %s531, %s533
      %p537 = scmp.eq.s32.totalorder %s72, 0
      %p538 = por %p536, %p537
      %p539 = scmp.ne.s32.totalorder %s531, %s533
      %p540 = scmp.eq.s32.totalorder %s77, 1
      %p541 = por %p539, %p540
      %p542 = scmp.ne.s32.totalorder %s533, %s534
      %p543 = scmp.eq.s32.totalorder %s77, 0
      %p544 = por %p542, %p543
      %p545 = scmp.ne.s32.totalorder %s533, %s534
      %p546 = scmp.eq.s32.totalorder %s78, 1
      %p547 = por %p545, %p546
      %p549 = scmp.ne.s32.totalorder %s534, %s548
      %p550 = scmp.eq.s32.totalorder %s78, 0
      %p551 = por %p549, %p550
      %s553 = sadd.s32 %s552, 1
      %p556 = scmp.eq.s32.totalorder %s72, 1
      %p557 = scmp.ne.s32.totalorder %s552, %s554
      %p558 = scmp.eq.s32.totalorder %s72, 0
      %p559 = por %p557, %p558
      %p560 = scmp.ne.s32.totalorder %s552, %s554
      %p561 = scmp.eq.s32.totalorder %s77, 1
      %p562 = por %p560, %p561
      %p563 = scmp.ne.s32.totalorder %s554, %s555
      %p564 = scmp.eq.s32.totalorder %s77, 0
      %p565 = por %p563, %p564
      %p566 = scmp.ne.s32.totalorder %s554, %s555
      %p567 = scmp.eq.s32.totalorder %s78, 1
      %p568 = por %p566, %p567
      %p570 = scmp.ne.s32.totalorder %s555, %s569
      %p571 = scmp.eq.s32.totalorder %s78, 0
      %p572 = por %p570, %p571
      %s574 = sadd.s32 %s573, 1
      %p577 = scmp.eq.s32.totalorder %s72, 1
      %p578 = scmp.ne.s32.totalorder %s573, %s575
      %p579 = scmp.eq.s32.totalorder %s72, 0
      %p580 = por %p578, %p579
      %p581 = scmp.ne.s32.totalorder %s573, %s575
      %p582 = scmp.eq.s32.totalorder %s77, 1
      %p583 = por %p581, %p582
      %p584 = scmp.ne.s32.totalorder %s575, %s576
      %p585 = scmp.eq.s32.totalorder %s77, 0
      %p586 = por %p584, %p585
      %p587 = scmp.ne.s32.totalorder %s575, %s576
      %p588 = scmp.eq.s32.totalorder %s78, 1
      %p589 = por %p587, %p588
      %p591 = scmp.ne.s32.totalorder %s576, %s590
      %p592 = scmp.eq.s32.totalorder %s78, 0
      %p593 = por %p591, %p592
      %s595 = sadd.s32 %s594, 1
      %p598 = scmp.eq.s32.totalorder %s72, 1
      %p599 = scmp.ne.s32.totalorder %s594, %s596
      %p600 = scmp.eq.s32.totalorder %s72, 0
      %p601 = por %p599, %p600
      %p602 = scmp.ne.s32.totalorder %s594, %s596
      %p603 = scmp.eq.s32.totalorder %s77, 1
      %p604 = por %p602, %p603
      %p605 = scmp.ne.s32.totalorder %s596, %s597
      %p606 = scmp.eq.s32.totalorder %s77, 0
      %p607 = por %p605, %p606
      %p608 = scmp.ne.s32.totalorder %s596, %s597
      %p609 = scmp.eq.s32.totalorder %s78, 1
      %p610 = por %p608, %p609
      %p612 = scmp.ne.s32.totalorder %s597, %s611
      %p613 = scmp.eq.s32.totalorder %s78, 0
      %p614 = por %p612, %p613
      %s616 = sadd.s32 %s615, 1
      %p619 = scmp.eq.s32.totalorder %s72, 1
      %p620 = scmp.ne.s32.totalorder %s615, %s617
      %p621 = scmp.eq.s32.totalorder %s72, 0
      %p622 = por %p620, %p621
      %p623 = scmp.ne.s32.totalorder %s615, %s617
      %p624 = scmp.eq.s32.totalorder %s77, 1
      %p625 = por %p623, %p624
      %p626 = scmp.ne.s32.totalorder %s617, %s618
      %p627 = scmp.eq.s32.totalorder %s77, 0
      %p628 = por %p626, %p627
      %p629 = scmp.ne.s32.totalorder %s617, %s618
      %p630 = scmp.eq.s32.totalorder %s78, 1
      %p631 = por %p629, %p630
      %p633 = scmp.ne.s32.totalorder %s618, %s632
      %p634 = scmp.eq.s32.totalorder %s78, 0
      %p635 = por %p633, %p634
      %s637 = sadd.s32 %s636, 1
      %p640 = scmp.eq.s32.totalorder %s72, 1
      %p641 = scmp.ne.s32.totalorder %s636, %s638
      %p642 = scmp.eq.s32.totalorder %s72, 0
      %p643 = por %p641, %p642
      %p644 = scmp.ne.s32.totalorder %s636, %s638
      %p645 = scmp.eq.s32.totalorder %s77, 1
      %p646 = por %p644, %p645
      %p647 = scmp.ne.s32.totalorder %s638, %s639
      %p648 = scmp.eq.s32.totalorder %s77, 0
      %p649 = por %p647, %p648
      %p650 = scmp.ne.s32.totalorder %s638, %s639
      %p651 = scmp.eq.s32.totalorder %s78, 1
      %p652 = por %p650, %p651
      %p654 = scmp.ne.s32.totalorder %s639, %s653
      %p655 = scmp.eq.s32.totalorder %s78, 0
      %p656 = por %p654, %p655
      %s658 = sadd.s32 %s657, 1
      %p661 = scmp.eq.s32.totalorder %s72, 1
      %p662 = scmp.ne.s32.totalorder %s657, %s659
      %p663 = scmp.eq.s32.totalorder %s72, 0
      %p664 = por %p662, %p663
      %p665 = scmp.ne.s32.totalorder %s657, %s659
      %p666 = scmp.eq.s32.totalorder %s77, 1
      %p667 = por %p665, %p666
      %p668 = scmp.ne.s32.totalorder %s659, %s660
      %p669 = scmp.eq.s32.totalorder %s77, 0
      %p670 = por %p668, %p669
      %p671 = scmp.ne.s32.totalorder %s659, %s660
      %p672 = scmp.eq.s32.totalorder %s78, 1
      %p673 = por %p671, %p672
      %p675 = scmp.ne.s32.totalorder %s660, %s674
      %p676 = scmp.eq.s32.totalorder %s78, 0
      %p677 = por %p675, %p676
      %s679 = sadd.s32 %s678, 1
      %p682 = scmp.eq.s32.totalorder %s72, 1
      %p683 = scmp.ne.s32.totalorder %s678, %s680
      %p684 = scmp.eq.s32.totalorder %s72, 0
      %p685 = por %p683, %p684
      %p686 = scmp.ne.s32.totalorder %s678, %s680
      %p687 = scmp.eq.s32.totalorder %s77, 1
      %p688 = por %p686, %p687
      %p689 = scmp.ne.s32.totalorder %s680, %s681
      %p690 = scmp.eq.s32.totalorder %s77, 0
      %p691 = por %p689, %p690
      %p692 = scmp.ne.s32.totalorder %s680, %s681
      %p693 = scmp.eq.s32.totalorder %s78, 1
      %p694 = por %p692, %p693
      %p696 = scmp.ne.s32.totalorder %s681, %s695
      %p697 = scmp.eq.s32.totalorder %s78, 0
      %p698 = por %p696, %p697
      %s700 = sadd.s32 %s699, 1
      %p703 = scmp.eq.s32.totalorder %s72, 1
      %p704 = scmp.ne.s32.totalorder %s699, %s701
      %p705 = scmp.eq.s32.totalorder %s72, 0
      %p706 = por %p704, %p705
      %p707 = scmp.ne.s32.totalorder %s699, %s701
      %p708 = scmp.eq.s32.totalorder %s77, 1
      %p709 = por %p707, %p708
      %p710 = scmp.ne.s32.totalorder %s701, %s702
      %p711 = scmp.eq.s32.totalorder %s77, 0
      %p712 = por %p710, %p711
      %p713 = scmp.ne.s32.totalorder %s701, %s702
      %p714 = scmp.eq.s32.totalorder %s78, 1
      %p715 = por %p713, %p714
      %p717 = scmp.ne.s32.totalorder %s702, %s716
      %p718 = scmp.eq.s32.totalorder %s78, 0
      %p719 = por %p717, %p718
      %s721 = sadd.s32 %s720, 1
      %p724 = scmp.eq.s32.totalorder %s72, 1
      %p725 = scmp.ne.s32.totalorder %s720, %s722
      %p726 = scmp.eq.s32.totalorder %s72, 0
      %p727 = por %p725, %p726
      %p728 = scmp.ne.s32.totalorder %s720, %s722
      %p729 = scmp.eq.s32.totalorder %s77, 1
      %p730 = por %p728, %p729
      %p731 = scmp.ne.s32.totalorder %s722, %s723
      %p732 = scmp.eq.s32.totalorder %s77, 0
      %p733 = por %p731, %p732
      %p734 = scmp.ne.s32.totalorder %s722, %s723
      %p735 = scmp.eq.s32.totalorder %s78, 1
      %p736 = por %p734, %p735
      %p738 = scmp.ne.s32.totalorder %s723, %s737
      %p739 = scmp.eq.s32.totalorder %s78, 0
      %p740 = por %p738, %p739
      %s741 = ssub.s32 %s72, %s79
      %p742 = scmp.eq.s32.totalorder %s741, 0
      %s744 = sadd.s32 %s743, 1
      %s745 = scalar_select %p742, %s743, %s744
      %p748 = pneg %p742
      %p749 = scmp.eq.s32.totalorder %s72, 1
      %p750 = por %p748, %p749
      %p751 = scmp.ne.s32.totalorder %s743, %s746
      %p752 = scmp.eq.s32.totalorder %s72, 0
      %p753 = por %p751, %p752
      %p754 = scmp.ne.s32.totalorder %s743, %s746
      %p755 = scmp.eq.s32.totalorder %s77, 1
      %p756 = por %p754, %p755
      %p757 = scmp.ne.s32.totalorder %s746, %s747
      %p758 = scmp.eq.s32.totalorder %s77, 0
      %p759 = por %p757, %p758
      %p760 = scmp.ne.s32.totalorder %s746, %s747
      %p761 = scmp.eq.s32.totalorder %s78, 1
      %p762 = por %p760, %p761
      %p764 = scmp.ne.s32.totalorder %s747, %s763
      %p765 = scmp.eq.s32.totalorder %s78, 0
      %p766 = por %p764, %p765
      %p767 = scmp.le.s32.totalorder 1, %s72
      %p768 = scmp.lt.s32.totalorder %s72, 3
      %p769 = pnand %p767, %p768
      %p770 = pneg %p769
      // Predicated region
      $region9: #{scene_graph_forward.1} parent=5 // pred_check
        _
      $region10: #{scene_graph_forward.1} parent=5 // pred_check_branch
        %772 = sbr.rel (%p769) target = $region12
      $region11: #{scene_graph_forward.1} parent=5 // pred_region
        %s773 = ssub.s32 %s72, 1
        // Predicated region
        $region13: #{scene_graph_forward.1} parent=11 // pred_check
          %p774 = pneg %p145
        $region14: #{scene_graph_forward.1} parent=11 // pred_check_branch
          %776 = sbr.rel (%p774) target = $region16
        $region15: #{scene_graph_forward.1} parent=11 // pred_region
          _
        $region16: #{scene_graph_forward.1} parent=11 // pred_fallthru
          _
        // Predicated region
        $region17: #{scene_graph_forward.1} parent=11 // pred_check
          %p777 = pneg %p166
        $region18: #{scene_graph_forward.1} parent=11 // pred_check_branch
          %779 = sbr.rel (%p777) target = $region20
        $region19: #{scene_graph_forward.1} parent=11 // pred_region
          _
        $region20: #{scene_graph_forward.1} parent=11 // pred_fallthru
          _
        // Predicated region
        $region21: #{scene_graph_forward.1} parent=11 // pred_check
          %p780 = pneg %p187
        $region22: #{scene_graph_forward.1} parent=11 // pred_check_branch
          %782 = sbr.rel (%p780) target = $region24
        $region23: #{scene_graph_forward.1} parent=11 // pred_region
          _
        $region24: #{scene_graph_forward.1} parent=11 // pred_fallthru
          _
        // Predicated region
        $region25: #{scene_graph_forward.1} parent=11 // pred_check
          %p783 = pneg %p208
        $region26: #{scene_graph_forward.1} parent=11 // pred_check_branch
          %785 = sbr.rel (%p783) target = $region28
        $region27: #{scene_graph_forward.1} parent=11 // pred_region
          _
        $region28: #{scene_graph_forward.1} parent=11 // pred_fallthru
          _
        // Predicated region
        $region29: #{scene_graph_forward.1} parent=11 // pred_check
          %p786 = pneg %p229
        $region30: #{scene_graph_forward.1} parent=11 // pred_check_branch
          %788 = sbr.rel (%p786) target = $region32
        $region31: #{scene_graph_forward.1} parent=11 // pred_region
          _
        $region32: #{scene_graph_forward.1} parent=11 // pred_fallthru
          _
        // Predicated region
        $region33: #{scene_graph_forward.1} parent=11 // pred_check
          %p789 = pneg %p250
        $region34: #{scene_graph_forward.1} parent=11 // pred_check_branch
          %791 = sbr.rel (%p789) target = $region36
        $region35: #{scene_graph_forward.1} parent=11 // pred_region
          _
        $region36: #{scene_graph_forward.1} parent=11 // pred_fallthru
          _
        // Predicated region
        $region37: #{scene_graph_forward.1} parent=11 // pred_check
          %p792 = pneg %p271
        $region38: #{scene_graph_forward.1} parent=11 // pred_check_branch
          %794 = sbr.rel (%p792) target = $region40
        $region39: #{scene_graph_forward.1} parent=11 // pred_region
          _
        $region40: #{scene_graph_forward.1} parent=11 // pred_fallthru
          _
        // Predicated region
        $region41: #{scene_graph_forward.1} parent=11 // pred_check
          %p795 = pneg %p292
        $region42: #{scene_graph_forward.1} parent=11 // pred_check_branch
          %797 = sbr.rel (%p795) target = $region44
        $region43: #{scene_graph_forward.1} parent=11 // pred_region
          _
        $region44: #{scene_graph_forward.1} parent=11 // pred_fallthru
          _
        // Predicated region
        $region45: #{scene_graph_forward.1} parent=11 // pred_check
          %p798 = pneg %p313
        $region46: #{scene_graph_forward.1} parent=11 // pred_check_branch
          %800 = sbr.rel (%p798) target = $region48
        $region47: #{scene_graph_forward.1} parent=11 // pred_region
          _
        $region48: #{scene_graph_forward.1} parent=11 // pred_fallthru
          _
        // Predicated region
        $region49: #{scene_graph_forward.1} parent=11 // pred_check
          %p801 = pneg %p334
        $region50: #{scene_graph_forward.1} parent=11 // pred_check_branch
          %803 = sbr.rel (%p801) target = $region52
        $region51: #{scene_graph_forward.1} parent=11 // pred_region
          _
        $region52: #{scene_graph_forward.1} parent=11 // pred_fallthru
          _
        // Predicated region
        $region53: #{scene_graph_forward.1} parent=11 // pred_check
          %p804 = pneg %p355
        $region54: #{scene_graph_forward.1} parent=11 // pred_check_branch
          %806 = sbr.rel (%p804) target = $region56
        $region55: #{scene_graph_forward.1} parent=11 // pred_region
          _
        $region56: #{scene_graph_forward.1} parent=11 // pred_fallthru
          _
        // Predicated region
        $region57: #{scene_graph_forward.1} parent=11 // pred_check
          %p807 = pneg %p376
        $region58: #{scene_graph_forward.1} parent=11 // pred_check_branch
          %809 = sbr.rel (%p807) target = $region60
        $region59: #{scene_graph_forward.1} parent=11 // pred_region
          _
        $region60: #{scene_graph_forward.1} parent=11 // pred_fallthru
          _
        // Predicated region
        $region61: #{scene_graph_forward.1} parent=11 // pred_check
          %p810 = pneg %p397
        $region62: #{scene_graph_forward.1} parent=11 // pred_check_branch
          %812 = sbr.rel (%p810) target = $region64
        $region63: #{scene_graph_forward.1} parent=11 // pred_region
          _
        $region64: #{scene_graph_forward.1} parent=11 // pred_fallthru
          _
        // Predicated region
        $region65: #{scene_graph_forward.1} parent=11 // pred_check
          %p813 = pneg %p418
        $region66: #{scene_graph_forward.1} parent=11 // pred_check_branch
          %815 = sbr.rel (%p813) target = $region68
        $region67: #{scene_graph_forward.1} parent=11 // pred_region
          _
        $region68: #{scene_graph_forward.1} parent=11 // pred_fallthru
          _
        // Predicated region
        $region69: #{scene_graph_forward.1} parent=11 // pred_check
          %p816 = pneg %p439
        $region70: #{scene_graph_forward.1} parent=11 // pred_check_branch
          %818 = sbr.rel (%p816) target = $region72
        $region71: #{scene_graph_forward.1} parent=11 // pred_region
          _
        $region72: #{scene_graph_forward.1} parent=11 // pred_fallthru
          _
        // Predicated region
        $region73: #{scene_graph_forward.1} parent=11 // pred_check
          %p819 = pneg %p460
        $region74: #{scene_graph_forward.1} parent=11 // pred_check_branch
          %821 = sbr.rel (%p819) target = $region76
        $region75: #{scene_graph_forward.1} parent=11 // pred_region
          _
        $region76: #{scene_graph_forward.1} parent=11 // pred_fallthru
          _
        // Predicated region
        $region77: #{scene_graph_forward.1} parent=11 // pred_check
          %p822 = pneg %p481
        $region78: #{scene_graph_forward.1} parent=11 // pred_check_branch
          %824 = sbr.rel (%p822) target = $region80
        $region79: #{scene_graph_forward.1} parent=11 // pred_region
          _
        $region80: #{scene_graph_forward.1} parent=11 // pred_fallthru
          _
        // Predicated region
        $region81: #{scene_graph_forward.1} parent=11 // pred_check
          %p825 = pneg %p502
        $region82: #{scene_graph_forward.1} parent=11 // pred_check_branch
          %827 = sbr.rel (%p825) target = $region84
        $region83: #{scene_graph_forward.1} parent=11 // pred_region
          _
        $region84: #{scene_graph_forward.1} parent=11 // pred_fallthru
          _
        // Predicated region
        $region85: #{scene_graph_forward.1} parent=11 // pred_check
          %p828 = pneg %p523
        $region86: #{scene_graph_forward.1} parent=11 // pred_check_branch
          %830 = sbr.rel (%p828) target = $region88
        $region87: #{scene_graph_forward.1} parent=11 // pred_region
          _
        $region88: #{scene_graph_forward.1} parent=11 // pred_fallthru
          _
        // Predicated region
        $region89: #{scene_graph_forward.1} parent=11 // pred_check
          %p831 = pneg %p544
        $region90: #{scene_graph_forward.1} parent=11 // pred_check_branch
          %833 = sbr.rel (%p831) target = $region92
        $region91: #{scene_graph_forward.1} parent=11 // pred_region
          _
        $region92: #{scene_graph_forward.1} parent=11 // pred_fallthru
          _
        // Predicated region
        $region93: #{scene_graph_forward.1} parent=11 // pred_check
          %p834 = pneg %p565
        $region94: #{scene_graph_forward.1} parent=11 // pred_check_branch
          %836 = sbr.rel (%p834) target = $region96
        $region95: #{scene_graph_forward.1} parent=11 // pred_region
          _
        $region96: #{scene_graph_forward.1} parent=11 // pred_fallthru
          _
        // Predicated region
        $region97: #{scene_graph_forward.1} parent=11 // pred_check
          %p837 = pneg %p586
        $region98: #{scene_graph_forward.1} parent=11 // pred_check_branch
          %839 = sbr.rel (%p837) target = $region100
        $region99: #{scene_graph_forward.1} parent=11 // pred_region
          _
        $region100: #{scene_graph_forward.1} parent=11 // pred_fallthru
          _
        // Predicated region
        $region101: #{scene_graph_forward.1} parent=11 // pred_check
          %p840 = pneg %p607
        $region102: #{scene_graph_forward.1} parent=11 // pred_check_branch
          %842 = sbr.rel (%p840) target = $region104
        $region103: #{scene_graph_forward.1} parent=11 // pred_region
          _
        $region104: #{scene_graph_forward.1} parent=11 // pred_fallthru
          _
        // Predicated region
        $region105: #{scene_graph_forward.1} parent=11 // pred_check
          %p843 = pneg %p628
        $region106: #{scene_graph_forward.1} parent=11 // pred_check_branch
          %845 = sbr.rel (%p843) target = $region108
        $region107: #{scene_graph_forward.1} parent=11 // pred_region
          _
        $region108: #{scene_graph_forward.1} parent=11 // pred_fallthru
          _
        // Predicated region
        $region109: #{scene_graph_forward.1} parent=11 // pred_check
          %p846 = pneg %p649
        $region110: #{scene_graph_forward.1} parent=11 // pred_check_branch
          %848 = sbr.rel (%p846) target = $region112
        $region111: #{scene_graph_forward.1} parent=11 // pred_region
          _
        $region112: #{scene_graph_forward.1} parent=11 // pred_fallthru
          _
        // Predicated region
        $region113: #{scene_graph_forward.1} parent=11 // pred_check
          %p849 = pneg %p670
        $region114: #{scene_graph_forward.1} parent=11 // pred_check_branch
          %851 = sbr.rel (%p849) target = $region116
        $region115: #{scene_graph_forward.1} parent=11 // pred_region
          _
        $region116: #{scene_graph_forward.1} parent=11 // pred_fallthru
          _
        // Predicated region
        $region117: #{scene_graph_forward.1} parent=11 // pred_check
          %p852 = pneg %p691
        $region118: #{scene_graph_forward.1} parent=11 // pred_check_branch
          %854 = sbr.rel (%p852) target = $region120
        $region119: #{scene_graph_forward.1} parent=11 // pred_region
          _
        $region120: #{scene_graph_forward.1} parent=11 // pred_fallthru
          _
        // Predicated region
        $region121: #{scene_graph_forward.1} parent=11 // pred_check
          %p855 = pneg %p712
        $region122: #{scene_graph_forward.1} parent=11 // pred_check_branch
          %857 = sbr.rel (%p855) target = $region124
        $region123: #{scene_graph_forward.1} parent=11 // pred_region
          _
        $region124: #{scene_graph_forward.1} parent=11 // pred_fallthru
          _
        // Predicated region
        $region125: #{scene_graph_forward.1} parent=11 // pred_check
          %p858 = pneg %p733
        $region126: #{scene_graph_forward.1} parent=11 // pred_check_branch
          %860 = sbr.rel (%p858) target = $region128
        $region127: #{scene_graph_forward.1} parent=11 // pred_region
          _
        $region128: #{scene_graph_forward.1} parent=11 // pred_fallthru
          _
      $region12: #{scene_graph_forward.1} parent=5 // pred_fallthru
        _
      %p861 = scmp.lt.s32.totalorder %s72, 2
      // Predicated region
      $region129: #{scene_graph_forward.1} parent=5 // pred_check
        %p862 = pneg %p861
      $region130: #{scene_graph_forward.1} parent=5 // pred_check_branch
        %864 = sbr.rel (%p862) target = $region132
      $region131: #{scene_graph_forward.1} parent=5 // pred_region
        // Predicated region
        $region133: #{scene_graph_forward.1} parent=131 // pred_check
          %p865 = pneg %p92
        $region134: #{scene_graph_forward.1} parent=131 // pred_check_branch
          %867 = sbr.rel (%p865) target = $region136
        $region135: #{scene_graph_forward.1} parent=131 // pred_region
          %p868 = scmp.lt.s32.totalorder %s72, 1
          %s869 = scalar_select %p868, %s72, 1
          %s870 = smul.addr %s869, 4
          %s871 = smul.addr %s870, 4
          %s872 = scalar_lea.vmem %s1, %s871
        $region136: #{scene_graph_forward.1} parent=131 // pred_fallthru
          _
        // Predicated region
        $region137: #{scene_graph_forward.1} parent=131 // pred_check
          %p873 = pneg %p118
        $region138: #{scene_graph_forward.1} parent=131 // pred_check_branch
          %875 = sbr.rel (%p873) target = $region140
        $region139: #{scene_graph_forward.1} parent=131 // pred_region
          %p876 = scmp.lt.s32.totalorder %s72, 1
          %s877 = scalar_select %p876, %s72, 1
          %s878 = smul.addr %s877, 32
          %s879 = smul.addr %s878, 8
          %s880 = scalar_lea.vmem %s3, %s879
        $region140: #{scene_graph_forward.1} parent=131 // pred_fallthru
          _
      $region132: #{scene_graph_forward.1} parent=5 // pred_fallthru
        _
      %p881 = scmp.le.s32.totalorder 1, %s72
      %p882 = scmp.lt.s32.totalorder %s72, 3
      %p883 = pnand %p881, %p882
      %p884 = pneg %p883
      // Predicated region
      $region141: #{scene_graph_forward.1} parent=5 // pred_check
        _
      $region142: #{scene_graph_forward.1} parent=5 // pred_check_branch
        %886 = sbr.rel (%p883) target = $region144
      $region143: #{scene_graph_forward.1} parent=5 // pred_region
        %s887 = ssub.s32 %s72, 1
        %p888 = scmp.lt.s32.totalorder %s77, 1
        %s889 = scalar_select %p888, %s77, 1
        %s890 = smul.addr %s889, 4
        %s891 = smul.addr %s890, 4
        %s892 = scalar_lea.vmem %s1, %s891
        %p893 = pneg %p98
        %p894 = pneg %p95
        %p895 = scmp.lt.s32.totalorder %s77, 1
        %s896 = scalar_select %p895, %s77, 1
        %s897 = smul.addr %s896, 32
        %s898 = smul.addr %s897, 8
        %s899 = scalar_lea.vmem %s3, %s898
        %p900 = pneg %p124
        %p901 = pneg %p121
        %p902 = pneg %p145
        %p903 = pneg %p142
        %p904 = pneg %p166
        %p905 = pneg %p163
        %p906 = pneg %p187
        %p907 = pneg %p184
        %p908 = pneg %p208
        %p909 = pneg %p205
        %p910 = pneg %p229
        %p911 = pneg %p226
        %p912 = pneg %p250
        %p913 = pneg %p247
        %p914 = pneg %p271
        %p915 = pneg %p268
        %p916 = pneg %p292
        %p917 = pneg %p289
        %p918 = pneg %p313
        %p919 = pneg %p310
        %p920 = pneg %p334
        %p921 = pneg %p331
        %p922 = pneg %p355
        %p923 = pneg %p352
        %p924 = pneg %p376
        %p925 = pneg %p373
        %p926 = pneg %p397
        %p927 = pneg %p394
        %p928 = pneg %p418
        %p929 = pneg %p415
        %p930 = pneg %p439
        %p931 = pneg %p436
        %p932 = pneg %p460
        %p933 = pneg %p457
        %p934 = pneg %p481
        %p935 = pneg %p478
        %p936 = pneg %p502
        %p937 = pneg %p499
        %p938 = pneg %p523
        %p939 = pneg %p520
        %p940 = pneg %p544
        %p941 = pneg %p541
        %p942 = pneg %p565
        %p943 = pneg %p562
        %p944 = pneg %p586
        %p945 = pneg %p583
        %p946 = pneg %p607
        %p947 = pneg %p604
        %p948 = pneg %p628
        %p949 = pneg %p625
        %p950 = pneg %p649
        %p951 = pneg %p646
        %p952 = pneg %p670
        %p953 = pneg %p667
        %p954 = pneg %p691
        %p955 = pneg %p688
        %p956 = pneg %p712
        %p957 = pneg %p709
        %p958 = pneg %p733
        %p959 = pneg %p730
        %p960 = pneg %p759
        %p961 = pneg %p756
        %s962 = sand.u32 %s746, 1
        %s963 = scalar_lea.sflag [#allocation3], %s962
        %s964 = sand.u32 %s746, 1
        %s965 = scalar_lea.vmem [#allocation2], %s964
        %p966 = scmp.lt.s32.totalorder %s77, 1
        %s967 = scalar_select %p966, %s77, 1
        %s968 = smul.addr %s967, 4
        %s969 = smul.addr %s968, 4
        %s970 = scalar_lea.vmem %s1, %s969
        %p971 = scmp.lt.s32.totalorder %s77, 1
        %s972 = scalar_select %p971, %s77, 1
        %s973 = smul.addr %s972, 32
        %s974 = smul.addr %s973, 8
        %s975 = scalar_lea.vmem %s3, %s974
        %v976 = vld [vmem:[%s970] sm:$0xff]
        %v977 = vld [vmem:[%s970 + $0x8] sm:$0xff]
        %v978 = vld [vmem:[%s5] sm:$0xff]
        %v979 = vld [vmem:[%s5 + $0x8] sm:$0xff]
        %v980 = vld [vmem:[%s5 + $0x10] sm:$0xff]
        %v981 = vld [vmem:[%s5 + $0x18] sm:$0xff]
        %v982 = vld [vmem:[%s7] sm:$0xff]
        %v983 = vld [vmem:[%s7 + $0x8] sm:$0xff]
        %v984 = vld [vmem:[%s7 + $0x10] sm:$0xff]
        %v985 = vld [vmem:[%s7 + $0x18] sm:$0xff]
        %987 = vset.pattern.permute.xlu0 0
        %988 = vperm.xlu0 %987, %v982
        %v989 = vpop.permute.xlu0 %988
        %992 = vset.pattern.permute.xlu0 0
        %993 = vperm.xlu0 %992, %v983
        %v994 = vpop.permute.xlu0 %993
        %997 = vset.pattern.permute.xlu0 0
        %998 = vperm.xlu0 %997, %v984
        %v999 = vpop.permute.xlu0 %998
        %1002 = vset.pattern.permute.xlu0 0
        %1003 = vperm.xlu0 %1002, %v985
        %v1004 = vpop.permute.xlu0 %1003
        %1008 = vst [vmem:[#allocation1] ss:$2 sm:$0xff] %v976
        %s1009 = scalar_lea.vmem [#allocation1], 16
        %1010 = vst [vmem:[%s1009] ss:$2 sm:$0xff] %v977
        %v1011 = vld.sshfl [vmem:[#allocation1] sm:$0xff pattern:$0x75316420]
        %v1012 = vld.sshfl [vmem:[#allocation1 + $0x8] sm:$0xff pattern:$0x75316420]
        %v1013 = vld.sshfl [vmem:[#allocation1 + $0x10] sm:$0xff pattern:$0x75316420]
        %v1014 = vld.sshfl [vmem:[#allocation1 + $0x18] sm:$0xff pattern:$0x75316420]
        %vm1015 = vcmask 31744
        %v1017 = vsel %vm1015, %v978, 0
        %v1020 = vsel %vm1015, %v979, 0
        %v1023 = vsel %vm1015, %v980, 0
        %v1026 = vsel %vm1015, %v981, 0
        %vm1028 = vcmask 1043456
        %v1029 = vsel %vm1028, %v1011, 0
        %v1031 = vsel %vm1028, %v1012, 0
        %v1033 = vsel %vm1028, %v1013, 0
        %v1035 = vsel %vm1028, %v1014, 0
        %1037 = vmatpush.msra.mxu0 0.0
        %1038 = vmatpush.msra.mxu0 0.0
        %1039 = vmatpush.msra.mxu0 0.0
        %1040 = vmatpush.msra.mxu0 0.0
        %1041 = vmatpush.msra.mxu0 0.0
        %1042 = vmatpush.msra.mxu0 0.0
        %1043 = vmatpush.msra.mxu0 0.0
        %1044 = vmatpush.msra.mxu0 0.0
        %1045 = vmatpush.msra.mxu0 0.0
        %1046 = vmatpush.msra.mxu0 0.0
        %1047 = vmatpush.msra.mxu0 0.0
        %1048 = vmatpush.msra.mxu0 0.0
        %1049 = vmatpush.msra.mxu0 0.0
        %1050 = vmatpush.msra.mxu0 0.0
        %1051 = vmatpush.msra.mxu0 0.0
        %1052 = vmatpush.msra.mxu0 %v1029
        %1053 = vmatmul.f32.gmra.mxu0 %v1017
        %v1054 = vpop.f32.mrf.mxu0
        %v1055 = vadd.f32 %v989, %v1054
        %1056 = vmatmul.f32.gmra.mxu0 %v1020
        %v1057 = vpop.f32.mrf.mxu0
        %v1058 = vadd.f32 %v994, %v1057
        %1059 = vmatmul.f32.gmra.mxu0 %v1023
        %v1060 = vpop.f32.mrf.mxu0
        %v1061 = vadd.f32 %v999, %v1060
        %1062 = vmatmul.f32.gmra.mxu0 %v1026
        %v1063 = vpop.f32.mrf.mxu0
        %v1064 = vadd.f32 %v1004, %v1063
        %1065 = vdwg.mxu0
        %1066 = vmatpush.msra.mxu0 0.0
        %1067 = vmatpush.msra.mxu0 0.0
        %1068 = vmatpush.msra.mxu0 0.0
        %1069 = vmatpush.msra.mxu0 0.0
        %1070 = vmatpush.msra.mxu0 0.0
        %1071 = vmatpush.msra.mxu0 0.0
        %1072 = vmatpush.msra.mxu0 0.0
        %1073 = vmatpush.msra.mxu0 0.0
        %1074 = vmatpush.msra.mxu0 0.0
        %1075 = vmatpush.msra.mxu0 0.0
        %1076 = vmatpush.msra.mxu0 0.0
        %1077 = vmatpush.msra.mxu0 0.0
        %1078 = vmatpush.msra.mxu0 0.0
        %1079 = vmatpush.msra.mxu0 0.0
        %1080 = vmatpush.msra.mxu0 0.0
        %1081 = vmatpush.msra.mxu0 %v1031
        %1082 = vmatmul.f32.gmra.mxu0 %v1017
        %v1083 = vpop.f32.mrf.mxu0
        %v1084 = vadd.f32 %v989, %v1083
        %1085 = vmatmul.f32.gmra.mxu0 %v1020
        %v1086 = vpop.f32.mrf.mxu0
        %v1087 = vadd.f32 %v994, %v1086
        %1088 = vmatmul.f32.gmra.mxu0 %v1023
        %v1089 = vpop.f32.mrf.mxu0
        %v1090 = vadd.f32 %v999, %v1089
        %1091 = vmatmul.f32.gmra.mxu0 %v1026
        %v1092 = vpop.f32.mrf.mxu0
        %v1093 = vadd.f32 %v1004, %v1092
        %1094 = vdwg.mxu0
        %1095 = vmatpush.msra.mxu0 0.0
        %1096 = vmatpush.msra.mxu0 0.0
        %1097 = vmatpush.msra.mxu0 0.0
        %1098 = vmatpush.msra.mxu0 0.0
        %1099 = vmatpush.msra.mxu0 0.0
        %1100 = vmatpush.msra.mxu0 0.0
        %1101 = vmatpush.msra.mxu0 0.0
        %1102 = vmatpush.msra.mxu0 0.0
        %1103 = vmatpush.msra.mxu0 0.0
        %1104 = vmatpush.msra.mxu0 0.0
        %1105 = vmatpush.msra.mxu0 0.0
        %1106 = vmatpush.msra.mxu0 0.0
        %1107 = vmatpush.msra.mxu0 0.0
        %1108 = vmatpush.msra.mxu0 0.0
        %1109 = vmatpush.msra.mxu0 0.0
        %1110 = vmatpush.msra.mxu0 %v1033
        %1111 = vmatmul.f32.gmra.mxu0 %v1017
        %v1112 = vpop.f32.mrf.mxu0
        %v1113 = vadd.f32 %v989, %v1112
        %1114 = vmatmul.f32.gmra.mxu0 %v1020
        %v1115 = vpop.f32.mrf.mxu0
        %v1116 = vadd.f32 %v994, %v1115
        %1117 = vmatmul.f32.gmra.mxu0 %v1023
        %v1118 = vpop.f32.mrf.mxu0
        %v1119 = vadd.f32 %v999, %v1118
        %1120 = vmatmul.f32.gmra.mxu0 %v1026
        %v1121 = vpop.f32.mrf.mxu0
        %v1122 = vadd.f32 %v1004, %v1121
        %1123 = vdwg.mxu0
        %1124 = vmatpush.msra.mxu0 0.0
        %1125 = vmatpush.msra.mxu0 0.0
        %1126 = vmatpush.msra.mxu0 0.0
        %1127 = vmatpush.msra.mxu0 0.0
        %1128 = vmatpush.msra.mxu0 0.0
        %1129 = vmatpush.msra.mxu0 0.0
        %1130 = vmatpush.msra.mxu0 0.0
        %1131 = vmatpush.msra.mxu0 0.0
        %1132 = vmatpush.msra.mxu0 0.0
        %1133 = vmatpush.msra.mxu0 0.0
        %1134 = vmatpush.msra.mxu0 0.0
        %1135 = vmatpush.msra.mxu0 0.0
        %1136 = vmatpush.msra.mxu0 0.0
        %1137 = vmatpush.msra.mxu0 0.0
        %1138 = vmatpush.msra.mxu0 0.0
        %1139 = vmatpush.msra.mxu0 %v1035
        %1140 = vmatmul.f32.gmra.mxu0 %v1017
        %v1141 = vpop.f32.mrf.mxu0
        %v1142 = vadd.f32 %v989, %v1141
        %1143 = vmatmul.f32.gmra.mxu0 %v1020
        %v1144 = vpop.f32.mrf.mxu0
        %v1145 = vadd.f32 %v994, %v1144
        %1146 = vmatmul.f32.gmra.mxu0 %v1023
        %v1147 = vpop.f32.mrf.mxu0
        %v1148 = vadd.f32 %v999, %v1147
        %1149 = vmatmul.f32.gmra.mxu0 %v1026
        %v1150 = vpop.f32.mrf.mxu0
        %v1151 = vadd.f32 %v1004, %v1150
        %1152 = vdwg.mxu0
        %v1153 = vmax.f32 %v1055, 0.0
        %v1154 = vmax.f32 %v1084, 0.0
        %v1155 = vmax.f32 %v1113, 0.0
        %v1156 = vmax.f32 %v1142, 0.0
        %v1157 = vmax.f32 %v1058, 0.0
        %v1158 = vmax.f32 %v1087, 0.0
        %v1159 = vmax.f32 %v1116, 0.0
        %v1160 = vmax.f32 %v1145, 0.0
        %v1161 = vmax.f32 %v1061, 0.0
        %v1162 = vmax.f32 %v1090, 0.0
        %v1163 = vmax.f32 %v1119, 0.0
        %v1164 = vmax.f32 %v1148, 0.0
        %v1165 = vmax.f32 %v1064, 0.0
        %v1166 = vmax.f32 %v1093, 0.0
        %v1167 = vmax.f32 %v1122, 0.0
        %v1168 = vmax.f32 %v1151, 0.0
        %v1169 = vadd.f32 %v1153, %v1154
        %v1170 = vadd.f32 %v1169, %v1155
        %v1171 = vadd.f32 %v1170, %v1156
        %1172 = vadd.xlane.f32.xlu0 %v1171
        %v1173 = vpop.xlane.xlu0 %1172
        %v1174 = vadd.f32 %v1157, %v1158
        %v1175 = vadd.f32 %v1174, %v1159
        %v1176 = vadd.f32 %v1175, %v1160
        %1177 = vadd.xlane.f32.xlu0 %v1176
        %v1178 = vpop.xlane.xlu0 %1177
        %v1179 = vadd.f32 %v1161, %v1162
        %v1180 = vadd.f32 %v1179, %v1163
        %v1181 = vadd.f32 %v1180, %v1164
        %1182 = vadd.xlane.f32.xlu0 %v1181
        %v1183 = vpop.xlane.xlu0 %1182
        %v1184 = vadd.f32 %v1165, %v1166
        %v1185 = vadd.f32 %v1184, %v1167
        %v1186 = vadd.f32 %v1185, %v1168
        %1187 = vadd.xlane.f32.xlu0 %v1186
        %v1188 = vpop.xlane.xlu0 %1187
        %v1189 = vrcp.pop 512.0
        %v1190 = vmul.f32 512.0, %v1189
        %v1191 = vsub.f32 1.0, %v1190
        %v1192 = vmul.f32 %v1189, %v1191
        %v1193 = vadd.f32 %v1189, %v1192
        %vm1194 = vweird.f32 %v1189
        %v1195 = vsel %vm1194, %v1189, %v1193
        %v1196 = vmul.f32 %v1173, %v1195
        %v1197 = vmul.f32 %v1178, %v1195
        %v1198 = vmul.f32 %v1183, %v1195
        %v1199 = vmul.f32 %v1188, %v1195
        %1200 = vxpose.xlu0.b32.start [1/16] %v1196, 128
        %1201 = vxpose.xlu0.b32.cont [2/16] %v1197, 128
        %1202 = vxpose.xlu0.b32.cont [3/16] %v1198, 128
        %1203 = vxpose.xlu0.b32.cont [4/16] %v1199, 128
        %1204 = vxpose.xlu0.b32.cont [5/16] 0.0, 128
        %1205 = vxpose.xlu0.b32.cont [6/16] 0.0, 128
        %1206 = vxpose.xlu0.b32.cont [7/16] 0.0, 128
        %1207 = vxpose.xlu0.b32.cont [8/16] 0.0, 128
        %1208 = vxpose.xlu0.b32.cont [9/16] 0.0, 128
        %1209 = vxpose.xlu0.b32.cont [10/16] 0.0, 128
        %1210 = vxpose.xlu0.b32.cont [11/16] 0.0, 128
        %1211 = vxpose.xlu0.b32.cont [12/16] 0.0, 128
        %1212 = vxpose.xlu0.b32.cont [13/16] 0.0, 128
        %1213 = vxpose.xlu0.b32.cont [14/16] 0.0, 128
        %1214 = vxpose.xlu0.b32.cont [15/16] 0.0, 128
        %1215 = vxpose.xlu0.b32.end [16/16] 0.0, 128
        %v1216 = vpop.trf.xlu0
        %v1217 = vpop.trf.xlu0
        %v1218 = vpop.trf.xlu0
        %v1219 = vpop.trf.xlu0
        %v1220 = vpop.trf.xlu0
        %v1221 = vpop.trf.xlu0
        %v1222 = vpop.trf.xlu0
        %v1223 = vpop.trf.xlu0
        %v1224 = vpop.trf.xlu0
        %v1225 = vpop.trf.xlu0
        %v1226 = vpop.trf.xlu0
        %v1227 = vpop.trf.xlu0
        %v1228 = vpop.trf.xlu0
        %v1229 = vpop.trf.xlu0
        %v1230 = vpop.trf.xlu0
        %v1231 = vpop.trf.xlu0
        %v1232 = vld [vmem:[%s9] sm:$0xff]
        %v1233 = vld [vmem:[%s9 + $0x8] sm:$0xff]
        %v1234 = vld [vmem:[%s9 + $0x10] sm:$0xff]
        %v1235 = vld [vmem:[%s9 + $0x18] sm:$0xff]
        %v1236 = vld [vmem:[%s11] sm:$0x1]
        %vm1237 = vcmask 261120
        %v1239 = vsel %vm1237, %v1216, 0
        %1241 = vmatpush.msra.mxu0 0.0
        %1242 = vmatpush.msra.mxu0 0.0
        %1243 = vmatpush.msra.mxu0 0.0
        %1244 = vmatpush.msra.mxu0 0.0
        %1245 = vmatpush.msra.mxu0 0.0
        %1246 = vmatpush.msra.mxu0 0.0
        %1247 = vmatpush.msra.mxu0 0.0
        %1248 = vmatpush.msra.mxu0 0.0
        %1249 = vmatpush.msra.mxu0 0.0
        %1250 = vmatpush.msra.mxu0 0.0
        %1251 = vmatpush.msra.mxu0 0.0
        %1252 = vmatpush.msra.mxu0 0.0
        %1253 = vmatpush.msra.mxu0 %v1235
        %1254 = vmatpush.msra.mxu0 %v1234
        %1255 = vmatpush.msra.mxu0 %v1233
        %1256 = vmatpush.msra.mxu0 %v1232
        %1257 = vmatmul.f32.gmra.mxu0 %v1239
        %v1258 = vpop.f32.mrf.mxu0
        %v1259 = vadd.f32 %v1236, %v1258
        %1260 = vdwg.mxu0
        %v1261 = vld [vmem:[%s13] sm:$0xff]
        %v1262 = vld [vmem:[%s13 + $0x8] sm:$0xff]
        %v1263 = vld [vmem:[%s13 + $0x10] sm:$0xff]
        %v1264 = vld [vmem:[%s13 + $0x18] sm:$0xff]
        %v1265 = vld [vmem:[%s13 + $0x20] sm:$0xff]
        %v1266 = vld [vmem:[%s13 + $0x28] sm:$0xff]
        %v1267 = vld [vmem:[%s13 + $0x30] sm:$0xff]
        %v1268 = vld [vmem:[%s13 + $0x38] sm:$0xff]
        %v1269 = vld [vmem:[%s15] sm:$0xff]
        %v1270 = vld [vmem:[%s15 + $0x8] sm:$0xff]
        %v1271 = vld [vmem:[%s15 + $0x10] sm:$0xff]
        %v1272 = vld [vmem:[%s15 + $0x18] sm:$0xff]
        %v1273 = vld [vmem:[%s15 + $0x20] sm:$0xff]
        %v1274 = vld [vmem:[%s15 + $0x28] sm:$0xff]
        %v1275 = vld [vmem:[%s15 + $0x30] sm:$0xff]
        %v1276 = vld [vmem:[%s15 + $0x38] sm:$0xff]
        %1278 = vset.pattern.permute.xlu0 0
        %1279 = vperm.xlu0 %1278, %v1269
        %v1280 = vpop.permute.xlu0 %1279
        %1283 = vset.pattern.permute.xlu0 0
        %1284 = vperm.xlu0 %1283, %v1270
        %v1285 = vpop.permute.xlu0 %1284
        %1288 = vset.pattern.permute.xlu0 0
        %1289 = vperm.xlu0 %1288, %v1271
        %v1290 = vpop.permute.xlu0 %1289
        %1293 = vset.pattern.permute.xlu0 0
        %1294 = vperm.xlu0 %1293, %v1272
        %v1295 = vpop.permute.xlu0 %1294
        %1298 = vset.pattern.permute.xlu0 0
        %1299 = vperm.xlu0 %1298, %v1273
        %v1300 = vpop.permute.xlu0 %1299
        %1303 = vset.pattern.permute.xlu0 0
        %1304 = vperm.xlu0 %1303, %v1274
        %v1305 = vpop.permute.xlu0 %1304
        %1308 = vset.pattern.permute.xlu0 0
        %1309 = vperm.xlu0 %1308, %v1275
        %v1310 = vpop.permute.xlu0 %1309
        %1313 = vset.pattern.permute.xlu0 0
        %1314 = vperm.xlu0 %1313, %v1276
        %v1315 = vpop.permute.xlu0 %1314
        %1317 = vst [vmem:[#allocation1] ss:$2 sm:$0xff] %v976
        %s1318 = scalar_lea.vmem [#allocation1], 16
        %1319 = vst [vmem:[%s1318] ss:$2 sm:$0xff] %v977
        %v1320 = vld.sshfl [vmem:[#allocation1] sm:$0xff pattern:$0x75316420]
        %v1321 = vld.sshfl [vmem:[#allocation1 + $0x8] sm:$0xff pattern:$0x75316420]
        %v1322 = vld.sshfl [vmem:[#allocation1 + $0x10] sm:$0xff pattern:$0x75316420]
        %v1323 = vld.sshfl [vmem:[#allocation1 + $0x18] sm:$0xff pattern:$0x75316420]
        %v1325 = vsel %vm1015, %v1261, 0
        %v1328 = vsel %vm1015, %v1262, 0
        %v1331 = vsel %vm1015, %v1263, 0
        %v1334 = vsel %vm1015, %v1264, 0
        %v1337 = vsel %vm1015, %v1265, 0
        %v1340 = vsel %vm1015, %v1266, 0
        %v1343 = vsel %vm1015, %v1267, 0
        %v1346 = vsel %vm1015, %v1268, 0
        %v1348 = vsel %vm1028, %v1320, 0
        %v1350 = vsel %vm1028, %v1321, 0
        %v1352 = vsel %vm1028, %v1322, 0
        %v1354 = vsel %vm1028, %v1323, 0
        %1356 = vmatpush.msra.mxu0 0.0
        %1357 = vmatpush.msra.mxu0 0.0
        %1358 = vmatpush.msra.mxu0 0.0
        %1359 = vmatpush.msra.mxu0 0.0
        %1360 = vmatpush.msra.mxu0 0.0
        %1361 = vmatpush.msra.mxu0 0.0
        %1362 = vmatpush.msra.mxu0 0.0
        %1363 = vmatpush.msra.mxu0 0.0
        %1364 = vmatpush.msra.mxu0 0.0
        %1365 = vmatpush.msra.mxu0 0.0
        %1366 = vmatpush.msra.mxu0 0.0
        %1367 = vmatpush.msra.mxu0 0.0
        %1368 = vmatpush.msra.mxu0 0.0
        %1369 = vmatpush.msra.mxu0 0.0
        %1370 = vmatpush.msra.mxu0 0.0
        %1371 = vmatpush.msra.mxu0 %v1348
        %1372 = vmatmul.f32.gmra.mxu0 %v1325
        %v1373 = vpop.f32.mrf.mxu0
        %v1374 = vadd.f32 %v1280, %v1373
        %1375 = vmatmul.f32.gmra.mxu0 %v1328
        %v1376 = vpop.f32.mrf.mxu0
        %v1377 = vadd.f32 %v1285, %v1376
        %1378 = vmatmul.f32.gmra.mxu0 %v1331
        %v1379 = vpop.f32.mrf.mxu0
        %v1380 = vadd.f32 %v1290, %v1379
        %1381 = vmatmul.f32.gmra.mxu0 %v1334
        %v1382 = vpop.f32.mrf.mxu0
        %v1383 = vadd.f32 %v1295, %v1382
        %1384 = vmatmul.f32.gmra.mxu0 %v1337
        %v1385 = vpop.f32.mrf.mxu0
        %v1386 = vadd.f32 %v1300, %v1385
        %1387 = vmatmul.f32.gmra.mxu0 %v1340
        %v1388 = vpop.f32.mrf.mxu0
        %v1389 = vadd.f32 %v1305, %v1388
        %1390 = vmatmul.f32.gmra.mxu0 %v1343
        %v1391 = vpop.f32.mrf.mxu0
        %v1392 = vadd.f32 %v1310, %v1391
        %1393 = vmatmul.f32.gmra.mxu0 %v1346
        %v1394 = vpop.f32.mrf.mxu0
        %v1395 = vadd.f32 %v1315, %v1394
        %1396 = vdwg.mxu0
        %1397 = vmatpush.msra.mxu0 0.0
        %1398 = vmatpush.msra.mxu0 0.0
        %1399 = vmatpush.msra.mxu0 0.0
        %1400 = vmatpush.msra.mxu0 0.0
        %1401 = vmatpush.msra.mxu0 0.0
        %1402 = vmatpush.msra.mxu0 0.0
        %1403 = vmatpush.msra.mxu0 0.0
        %1404 = vmatpush.msra.mxu0 0.0
        %1405 = vmatpush.msra.mxu0 0.0
        %1406 = vmatpush.msra.mxu0 0.0
        %1407 = vmatpush.msra.mxu0 0.0
        %1408 = vmatpush.msra.mxu0 0.0
        %1409 = vmatpush.msra.mxu0 0.0
        %1410 = vmatpush.msra.mxu0 0.0
        %1411 = vmatpush.msra.mxu0 0.0
        %1412 = vmatpush.msra.mxu0 %v1350
        %1413 = vmatmul.f32.gmra.mxu0 %v1325
        %v1414 = vpop.f32.mrf.mxu0
        %v1415 = vadd.f32 %v1280, %v1414
        %1416 = vmatmul.f32.gmra.mxu0 %v1328
        %v1417 = vpop.f32.mrf.mxu0
        %v1418 = vadd.f32 %v1285, %v1417
        %1419 = vmatmul.f32.gmra.mxu0 %v1331
        %v1420 = vpop.f32.mrf.mxu0
        %v1421 = vadd.f32 %v1290, %v1420
        %1422 = vmatmul.f32.gmra.mxu0 %v1334
        %v1423 = vpop.f32.mrf.mxu0
        %v1424 = vadd.f32 %v1295, %v1423
        %1425 = vmatmul.f32.gmra.mxu0 %v1337
        %v1426 = vpop.f32.mrf.mxu0
        %v1427 = vadd.f32 %v1300, %v1426
        %1428 = vmatmul.f32.gmra.mxu0 %v1340
        %v1429 = vpop.f32.mrf.mxu0
        %v1430 = vadd.f32 %v1305, %v1429
        %1431 = vmatmul.f32.gmra.mxu0 %v1343
        %v1432 = vpop.f32.mrf.mxu0
        %v1433 = vadd.f32 %v1310, %v1432
        %1434 = vmatmul.f32.gmra.mxu0 %v1346
        %v1435 = vpop.f32.mrf.mxu0
        %v1436 = vadd.f32 %v1315, %v1435
        %1437 = vdwg.mxu0
        %1438 = vmatpush.msra.mxu0 0.0
        %1439 = vmatpush.msra.mxu0 0.0
        %1440 = vmatpush.msra.mxu0 0.0
        %1441 = vmatpush.msra.mxu0 0.0
        %1442 = vmatpush.msra.mxu0 0.0
        %1443 = vmatpush.msra.mxu0 0.0
        %1444 = vmatpush.msra.mxu0 0.0
        %1445 = vmatpush.msra.mxu0 0.0
        %1446 = vmatpush.msra.mxu0 0.0
        %1447 = vmatpush.msra.mxu0 0.0
        %1448 = vmatpush.msra.mxu0 0.0
        %1449 = vmatpush.msra.mxu0 0.0
        %1450 = vmatpush.msra.mxu0 0.0
        %1451 = vmatpush.msra.mxu0 0.0
        %1452 = vmatpush.msra.mxu0 0.0
        %1453 = vmatpush.msra.mxu0 %v1352
        %1454 = vmatmul.f32.gmra.mxu0 %v1325
        %v1455 = vpop.f32.mrf.mxu0
        %v1456 = vadd.f32 %v1280, %v1455
        %1457 = vmatmul.f32.gmra.mxu0 %v1328
        %v1458 = vpop.f32.mrf.mxu0
        %v1459 = vadd.f32 %v1285, %v1458
        %1460 = vmatmul.f32.gmra.mxu0 %v1331
        %v1461 = vpop.f32.mrf.mxu0
        %v1462 = vadd.f32 %v1290, %v1461
        %1463 = vmatmul.f32.gmra.mxu0 %v1334
        %v1464 = vpop.f32.mrf.mxu0
        %v1465 = vadd.f32 %v1295, %v1464
        %1466 = vmatmul.f32.gmra.mxu0 %v1337
        %v1467 = vpop.f32.mrf.mxu0
        %v1468 = vadd.f32 %v1300, %v1467
        %1469 = vmatmul.f32.gmra.mxu0 %v1340
        %v1470 = vpop.f32.mrf.mxu0
        %v1471 = vadd.f32 %v1305, %v1470
        %1472 = vmatmul.f32.gmra.mxu0 %v1343
        %v1473 = vpop.f32.mrf.mxu0
        %v1474 = vadd.f32 %v1310, %v1473
        %1475 = vmatmul.f32.gmra.mxu0 %v1346
        %v1476 = vpop.f32.mrf.mxu0
        %v1477 = vadd.f32 %v1315, %v1476
        %1478 = vdwg.mxu0
        %1479 = vmatpush.msra.mxu0 0.0
        %1480 = vmatpush.msra.mxu0 0.0
        %1481 = vmatpush.msra.mxu0 0.0
        %1482 = vmatpush.msra.mxu0 0.0
        %1483 = vmatpush.msra.mxu0 0.0
        %1484 = vmatpush.msra.mxu0 0.0
        %1485 = vmatpush.msra.mxu0 0.0
        %1486 = vmatpush.msra.mxu0 0.0
        %1487 = vmatpush.msra.mxu0 0.0
        %1488 = vmatpush.msra.mxu0 0.0
        %1489 = vmatpush.msra.mxu0 0.0
        %1490 = vmatpush.msra.mxu0 0.0
        %1491 = vmatpush.msra.mxu0 0.0
        %1492 = vmatpush.msra.mxu0 0.0
        %1493 = vmatpush.msra.mxu0 0.0
        %1494 = vmatpush.msra.mxu0 %v1354
        %1495 = vmatmul.f32.gmra.mxu0 %v1325
        %v1496 = vpop.f32.mrf.mxu0
        %v1497 = vadd.f32 %v1280, %v1496
        %1498 = vmatmul.f32.gmra.mxu0 %v1328
        %v1499 = vpop.f32.mrf.mxu0
        %v1500 = vadd.f32 %v1285, %v1499
        %1501 = vmatmul.f32.gmra.mxu0 %v1331
        %v1502 = vpop.f32.mrf.mxu0
        %v1503 = vadd.f32 %v1290, %v1502
        %1504 = vmatmul.f32.gmra.mxu0 %v1334
        %v1505 = vpop.f32.mrf.mxu0
        %v1506 = vadd.f32 %v1295, %v1505
        %1507 = vmatmul.f32.gmra.mxu0 %v1337
        %v1508 = vpop.f32.mrf.mxu0
        %v1509 = vadd.f32 %v1300, %v1508
        %1510 = vmatmul.f32.gmra.mxu0 %v1340
        %v1511 = vpop.f32.mrf.mxu0
        %v1512 = vadd.f32 %v1305, %v1511
        %1513 = vmatmul.f32.gmra.mxu0 %v1343
        %v1514 = vpop.f32.mrf.mxu0
        %v1515 = vadd.f32 %v1310, %v1514
        %1516 = vmatmul.f32.gmra.mxu0 %v1346
        %v1517 = vpop.f32.mrf.mxu0
        %v1518 = vadd.f32 %v1315, %v1517
        %1519 = vdwg.mxu0
        %v1520 = vmax.f32 %v1374, 0.0
        %v1521 = vmax.f32 %v1415, 0.0
        %v1522 = vmax.f32 %v1456, 0.0
        %v1523 = vmax.f32 %v1497, 0.0
        %v1524 = vmax.f32 %v1377, 0.0
        %v1525 = vmax.f32 %v1418, 0.0
        %v1526 = vmax.f32 %v1459, 0.0
        %v1527 = vmax.f32 %v1500, 0.0
        %v1528 = vmax.f32 %v1380, 0.0
        %v1529 = vmax.f32 %v1421, 0.0
        %v1530 = vmax.f32 %v1462, 0.0
        %v1531 = vmax.f32 %v1503, 0.0
        %v1532 = vmax.f32 %v1383, 0.0
        %v1533 = vmax.f32 %v1424, 0.0
        %v1534 = vmax.f32 %v1465, 0.0
        %v1535 = vmax.f32 %v1506, 0.0
        %v1536 = vmax.f32 %v1386, 0.0
        %v1537 = vmax.f32 %v1427, 0.0
        %v1538 = vmax.f32 %v1468, 0.0
        %v1539 = vmax.f32 %v1509, 0.0
        %v1540 = vmax.f32 %v1389, 0.0
        %v1541 = vmax.f32 %v1430, 0.0
        %v1542 = vmax.f32 %v1471, 0.0
        %v1543 = vmax.f32 %v1512, 0.0
        %v1544 = vmax.f32 %v1392, 0.0
        %v1545 = vmax.f32 %v1433, 0.0
        %v1546 = vmax.f32 %v1474, 0.0
        %v1547 = vmax.f32 %v1515, 0.0
        %v1548 = vmax.f32 %v1395, 0.0
        %v1549 = vmax.f32 %v1436, 0.0
        %v1550 = vmax.f32 %v1477, 0.0
        %v1551 = vmax.f32 %v1518, 0.0
        %v1552 = vld [vmem:[%s975] sm:$0xff]
        %v1553 = vld [vmem:[%s975 + $0x8] sm:$0xff]
        %v1554 = vld [vmem:[%s975 + $0x10] sm:$0xff]
        %v1555 = vld [vmem:[%s975 + $0x18] sm:$0xff]
        %v1560 = vrot.slane %v1553, 7
        %v1561 = vrot.slane %v1554, 6
        %v1562 = vrot.slane %v1555, 5
        %vm1563 = vcmask 1040384
        %v1564 = vsel %vm1563, %v1552, %v1560
        %vm1565 = vcmask 1042434
        %v1566 = vsel %vm1565, %v1561, %v1562
        %vm1567 = vcmask 1041408
        %v1568 = vsel %vm1567, %v1564, %v1566
        %vm1569 = vcmask 1041409
        %v1570 = vsel %vm1569, %v1552, %v1560
        %vm1571 = vcmask 1043459
        %v1572 = vsel %vm1571, %v1561, %v1562
        %vm1573 = vcmask 1042433
        %v1574 = vsel %vm1573, %v1570, %v1572
        %v1575 = vrot.slane %v1574, 1
        %v1576 = vsel %vm1565, %v1552, %v1560
        %vm1577 = vcmask 1044484
        %v1578 = vsel %vm1577, %v1561, %v1562
        %vm1579 = vcmask 1043458
        %v1580 = vsel %vm1579, %v1576, %v1578
        %v1581 = vrot.slane %v1580, 2
        %v1582 = vsel %vm1571, %v1552, %v1560
        %vm1583 = vcmask 1045509
        %v1584 = vsel %vm1583, %v1561, %v1562
        %vm1585 = vcmask 1044483
        %v1586 = vsel %vm1585, %v1582, %v1584
        %v1587 = vrot.slane %v1586, 3
        %v1588 = vsel %vm1577, %v1552, %v1560
        %vm1589 = vcmask 1046534
        %v1590 = vsel %vm1589, %v1561, %v1562
        %vm1591 = vcmask 1045508
        %v1592 = vsel %vm1591, %v1588, %v1590
        %v1593 = vrot.slane %v1592, 4
        %v1594 = vsel %vm1583, %v1552, %v1560
        %vm1595 = vcmask 1046528
        %v1596 = vsel %vm1595, %v1562, %v1561
        %vm1597 = vcmask 1046533
        %v1598 = vsel %vm1597, %v1594, %v1596
        %v1599 = vrot.slane %v1598, 5
        %v1600 = vsel %vm1589, %v1552, %v1560
        %v1601 = vsel %vm1563, %v1561, %v1562
        %vm1602 = vcmask 1045504
        %v1603 = vsel %vm1602, %v1601, %v1600
        %v1604 = vrot.slane %v1603, 6
        %v1605 = vsel %vm1595, %v1560, %v1552
        %v1606 = vsel %vm1569, %v1561, %v1562
        %vm1607 = vcmask 1046529
        %v1608 = vsel %vm1607, %v1606, %v1605
        %v1609 = vrot.slane %v1608, 7
        %v1610 = vperm.slane %v1568, 0
        %v1611 = vperm.slane %v1568, 1
        %v1612 = vperm.slane %v1568, 2
        %v1613 = vperm.slane %v1568, 3
        %v1614 = vperm.slane %v1575, 0
        %v1615 = vperm.slane %v1575, 1
        %v1616 = vperm.slane %v1575, 2
        %v1617 = vperm.slane %v1575, 3
        %v1618 = vperm.slane %v1581, 0
        %v1619 = vperm.slane %v1581, 1
        %v1620 = vperm.slane %v1581, 2
        %v1621 = vperm.slane %v1581, 3
        %v1622 = vperm.slane %v1587, 0
        %v1623 = vperm.slane %v1587, 1
        %v1624 = vperm.slane %v1587, 2
        %v1625 = vperm.slane %v1587, 3
        %v1626 = vperm.slane %v1593, 0
        %v1627 = vperm.slane %v1593, 1
        %v1628 = vperm.slane %v1593, 2
        %v1629 = vperm.slane %v1593, 3
        %v1630 = vperm.slane %v1599, 0
        %v1631 = vperm.slane %v1599, 1
        %v1632 = vperm.slane %v1599, 2
        %v1633 = vperm.slane %v1599, 3
        %v1634 = vperm.slane %v1604, 0
        %v1635 = vperm.slane %v1604, 1
        %v1636 = vperm.slane %v1604, 2
        %v1637 = vperm.slane %v1604, 3
        %v1638 = vperm.slane %v1609, 0
        %v1639 = vperm.slane %v1609, 1
        %v1640 = vperm.slane %v1609, 2
        %v1641 = vperm.slane %v1609, 3
        %v1674 = vadd.f32 %v1520, %v1610
        %v1675 = vadd.f32 %v1521, %v1611
        %v1676 = vadd.f32 %v1522, %v1612
        %v1677 = vadd.f32 %v1523, %v1613
        %v1678 = vadd.f32 %v1524, %v1610
        %v1679 = vadd.f32 %v1525, %v1611
        %v1680 = vadd.f32 %v1526, %v1612
        %v1681 = vadd.f32 %v1527, %v1613
        %v1682 = vadd.f32 %v1528, %v1610
        %v1683 = vadd.f32 %v1529, %v1611
        %v1684 = vadd.f32 %v1530, %v1612
        %v1685 = vadd.f32 %v1531, %v1613
        %v1686 = vadd.f32 %v1532, %v1610
        %v1687 = vadd.f32 %v1533, %v1611
        %v1688 = vadd.f32 %v1534, %v1612
        %v1689 = vadd.f32 %v1535, %v1613
        %v1690 = vadd.f32 %v1536, %v1610
        %v1691 = vadd.f32 %v1537, %v1611
        %v1692 = vadd.f32 %v1538, %v1612
        %v1693 = vadd.f32 %v1539, %v1613
        %v1694 = vadd.f32 %v1540, %v1610
        %v1695 = vadd.f32 %v1541, %v1611
        %v1696 = vadd.f32 %v1542, %v1612
        %v1697 = vadd.f32 %v1543, %v1613
        %v1698 = vadd.f32 %v1544, %v1610
        %v1699 = vadd.f32 %v1545, %v1611
        %v1700 = vadd.f32 %v1546, %v1612
        %v1701 = vadd.f32 %v1547, %v1613
        %v1702 = vadd.f32 %v1548, %v1610
        %v1703 = vadd.f32 %v1549, %v1611
        %v1704 = vadd.f32 %v1550, %v1612
        %v1705 = vadd.f32 %v1551, %v1613
        %v1706 = vadd.f32 %v1520, %v1614
        %v1707 = vadd.f32 %v1521, %v1615
        %v1708 = vadd.f32 %v1522, %v1616
        %v1709 = vadd.f32 %v1523, %v1617
        %v1710 = vadd.f32 %v1524, %v1614
        %v1711 = vadd.f32 %v1525, %v1615
        %v1712 = vadd.f32 %v1526, %v1616
        %v1713 = vadd.f32 %v1527, %v1617
        %v1714 = vadd.f32 %v1528, %v1614
        %v1715 = vadd.f32 %v1529, %v1615
        %v1716 = vadd.f32 %v1530, %v1616
        %v1717 = vadd.f32 %v1531, %v1617
        %v1718 = vadd.f32 %v1532, %v1614
        %v1719 = vadd.f32 %v1533, %v1615
        %v1720 = vadd.f32 %v1534, %v1616
        %v1721 = vadd.f32 %v1535, %v1617
        %v1722 = vadd.f32 %v1536, %v1614
        %v1723 = vadd.f32 %v1537, %v1615
        %v1724 = vadd.f32 %v1538, %v1616
        %v1725 = vadd.f32 %v1539, %v1617
        %v1726 = vadd.f32 %v1540, %v1614
        %v1727 = vadd.f32 %v1541, %v1615
        %v1728 = vadd.f32 %v1542, %v1616
        %v1729 = vadd.f32 %v1543, %v1617
        %v1730 = vadd.f32 %v1544, %v1614
        %v1731 = vadd.f32 %v1545, %v1615
        %v1732 = vadd.f32 %v1546, %v1616
        %v1733 = vadd.f32 %v1547, %v1617
        %v1734 = vadd.f32 %v1548, %v1614
        %v1735 = vadd.f32 %v1549, %v1615
        %v1736 = vadd.f32 %v1550, %v1616
        %v1737 = vadd.f32 %v1551, %v1617
        %v1738 = vadd.f32 %v1520, %v1618
        %v1739 = vadd.f32 %v1521, %v1619
        %v1740 = vadd.f32 %v1522, %v1620
        %v1741 = vadd.f32 %v1523, %v1621
        %v1742 = vadd.f32 %v1524, %v1618
        %v1743 = vadd.f32 %v1525, %v1619
        %v1744 = vadd.f32 %v1526, %v1620
        %v1745 = vadd.f32 %v1527, %v1621
        %v1746 = vadd.f32 %v1528, %v1618
        %v1747 = vadd.f32 %v1529, %v1619
        %v1748 = vadd.f32 %v1530, %v1620
        %v1749 = vadd.f32 %v1531, %v1621
        %v1750 = vadd.f32 %v1532, %v1618
        %v1751 = vadd.f32 %v1533, %v1619
        %v1752 = vadd.f32 %v1534, %v1620
        %v1753 = vadd.f32 %v1535, %v1621
        %v1754 = vadd.f32 %v1536, %v1618
        %v1755 = vadd.f32 %v1537, %v1619
        %v1756 = vadd.f32 %v1538, %v1620
        %v1757 = vadd.f32 %v1539, %v1621
        %v1758 = vadd.f32 %v1540, %v1618
        %v1759 = vadd.f32 %v1541, %v1619
        %v1760 = vadd.f32 %v1542, %v1620
        %v1761 = vadd.f32 %v1543, %v1621
        %v1762 = vadd.f32 %v1544, %v1618
        %v1763 = vadd.f32 %v1545, %v1619
        %v1764 = vadd.f32 %v1546, %v1620
        %v1765 = vadd.f32 %v1547, %v1621
        %v1766 = vadd.f32 %v1548, %v1618
        %v1767 = vadd.f32 %v1549, %v1619
        %v1768 = vadd.f32 %v1550, %v1620
        %v1769 = vadd.f32 %v1551, %v1621
        %v1770 = vadd.f32 %v1520, %v1622
        %v1771 = vadd.f32 %v1521, %v1623
        %v1772 = vadd.f32 %v1522, %v1624
        %v1773 = vadd.f32 %v1523, %v1625
        %v1774 = vadd.f32 %v1524, %v1622
        %v1775 = vadd.f32 %v1525, %v1623
        %v1776 = vadd.f32 %v1526, %v1624
        %v1777 = vadd.f32 %v1527, %v1625
        %v1778 = vadd.f32 %v1528, %v1622
        %v1779 = vadd.f32 %v1529, %v1623
        %v1780 = vadd.f32 %v1530, %v1624
        %v1781 = vadd.f32 %v1531, %v1625
        %v1782 = vadd.f32 %v1532, %v1622
        %v1783 = vadd.f32 %v1533, %v1623
        %v1784 = vadd.f32 %v1534, %v1624
        %v1785 = vadd.f32 %v1535, %v1625
        %v1786 = vadd.f32 %v1536, %v1622
        %v1787 = vadd.f32 %v1537, %v1623
        %v1788 = vadd.f32 %v1538, %v1624
        %v1789 = vadd.f32 %v1539, %v1625
        %v1790 = vadd.f32 %v1540, %v1622
        %v1791 = vadd.f32 %v1541, %v1623
        %v1792 = vadd.f32 %v1542, %v1624
        %v1793 = vadd.f32 %v1543, %v1625
        %v1794 = vadd.f32 %v1544, %v1622
        %v1795 = vadd.f32 %v1545, %v1623
        %v1796 = vadd.f32 %v1546, %v1624
        %v1797 = vadd.f32 %v1547, %v1625
        %v1798 = vadd.f32 %v1548, %v1622
        %v1799 = vadd.f32 %v1549, %v1623
        %v1800 = vadd.f32 %v1550, %v1624
        %v1801 = vadd.f32 %v1551, %v1625
        %v1802 = vadd.f32 %v1520, %v1626
        %v1803 = vadd.f32 %v1521, %v1627
        %v1804 = vadd.f32 %v1522, %v1628
        %v1805 = vadd.f32 %v1523, %v1629
        %v1806 = vadd.f32 %v1524, %v1626
        %v1807 = vadd.f32 %v1525, %v1627
        %v1808 = vadd.f32 %v1526, %v1628
        %v1809 = vadd.f32 %v1527, %v1629
        %v1810 = vadd.f32 %v1528, %v1626
        %v1811 = vadd.f32 %v1529, %v1627
        %v1812 = vadd.f32 %v1530, %v1628
        %v1813 = vadd.f32 %v1531, %v1629
        %v1814 = vadd.f32 %v1532, %v1626
        %v1815 = vadd.f32 %v1533, %v1627
        %v1816 = vadd.f32 %v1534, %v1628
        %v1817 = vadd.f32 %v1535, %v1629
        %v1818 = vadd.f32 %v1536, %v1626
        %v1819 = vadd.f32 %v1537, %v1627
        %v1820 = vadd.f32 %v1538, %v1628
        %v1821 = vadd.f32 %v1539, %v1629
        %v1822 = vadd.f32 %v1540, %v1626
        %v1823 = vadd.f32 %v1541, %v1627
        %v1824 = vadd.f32 %v1542, %v1628
        %v1825 = vadd.f32 %v1543, %v1629
        %v1826 = vadd.f32 %v1544, %v1626
        %v1827 = vadd.f32 %v1545, %v1627
        %v1828 = vadd.f32 %v1546, %v1628
        %v1829 = vadd.f32 %v1547, %v1629
        %v1830 = vadd.f32 %v1548, %v1626
        %v1831 = vadd.f32 %v1549, %v1627
        %v1832 = vadd.f32 %v1550, %v1628
        %v1833 = vadd.f32 %v1551, %v1629
        %v1834 = vadd.f32 %v1520, %v1630
        %v1835 = vadd.f32 %v1521, %v1631
        %v1836 = vadd.f32 %v1522, %v1632
        %v1837 = vadd.f32 %v1523, %v1633
        %v1838 = vadd.f32 %v1524, %v1630
        %v1839 = vadd.f32 %v1525, %v1631
        %v1840 = vadd.f32 %v1526, %v1632
        %v1841 = vadd.f32 %v1527, %v1633
        %v1842 = vadd.f32 %v1528, %v1630
        %v1843 = vadd.f32 %v1529, %v1631
        %v1844 = vadd.f32 %v1530, %v1632
        %v1845 = vadd.f32 %v1531, %v1633
        %v1846 = vadd.f32 %v1532, %v1630
        %v1847 = vadd.f32 %v1533, %v1631
        %v1848 = vadd.f32 %v1534, %v1632
        %v1849 = vadd.f32 %v1535, %v1633
        %v1850 = vadd.f32 %v1536, %v1630
        %v1851 = vadd.f32 %v1537, %v1631
        %v1852 = vadd.f32 %v1538, %v1632
        %v1853 = vadd.f32 %v1539, %v1633
        %v1854 = vadd.f32 %v1540, %v1630
        %v1855 = vadd.f32 %v1541, %v1631
        %v1856 = vadd.f32 %v1542, %v1632
        %v1857 = vadd.f32 %v1543, %v1633
        %v1858 = vadd.f32 %v1544, %v1630
        %v1859 = vadd.f32 %v1545, %v1631
        %v1860 = vadd.f32 %v1546, %v1632
        %v1861 = vadd.f32 %v1547, %v1633
        %v1862 = vadd.f32 %v1548, %v1630
        %v1863 = vadd.f32 %v1549, %v1631
        %v1864 = vadd.f32 %v1550, %v1632
        %v1865 = vadd.f32 %v1551, %v1633
        %v1866 = vadd.f32 %v1520, %v1634
        %v1867 = vadd.f32 %v1521, %v1635
        %v1868 = vadd.f32 %v1522, %v1636
        %v1869 = vadd.f32 %v1523, %v1637
        %v1870 = vadd.f32 %v1524, %v1634
        %v1871 = vadd.f32 %v1525, %v1635
        %v1872 = vadd.f32 %v1526, %v1636
        %v1873 = vadd.f32 %v1527, %v1637
        %v1874 = vadd.f32 %v1528, %v1634
        %v1875 = vadd.f32 %v1529, %v1635
        %v1876 = vadd.f32 %v1530, %v1636
        %v1877 = vadd.f32 %v1531, %v1637
        %v1878 = vadd.f32 %v1532, %v1634
        %v1879 = vadd.f32 %v1533, %v1635
        %v1880 = vadd.f32 %v1534, %v1636
        %v1881 = vadd.f32 %v1535, %v1637
        %v1882 = vadd.f32 %v1536, %v1634
        %v1883 = vadd.f32 %v1537, %v1635
        %v1884 = vadd.f32 %v1538, %v1636
        %v1885 = vadd.f32 %v1539, %v1637
        %v1886 = vadd.f32 %v1540, %v1634
        %v1887 = vadd.f32 %v1541, %v1635
        %v1888 = vadd.f32 %v1542, %v1636
        %v1889 = vadd.f32 %v1543, %v1637
        %v1890 = vadd.f32 %v1544, %v1634
        %v1891 = vadd.f32 %v1545, %v1635
        %v1892 = vadd.f32 %v1546, %v1636
        %v1893 = vadd.f32 %v1547, %v1637
        %v1894 = vadd.f32 %v1548, %v1634
        %v1895 = vadd.f32 %v1549, %v1635
        %v1896 = vadd.f32 %v1550, %v1636
        %v1897 = vadd.f32 %v1551, %v1637
        %v1898 = vadd.f32 %v1520, %v1638
        %v1899 = vadd.f32 %v1521, %v1639
        %v1900 = vadd.f32 %v1522, %v1640
        %v1901 = vadd.f32 %v1523, %v1641
        %v1902 = vadd.f32 %v1524, %v1638
        %v1903 = vadd.f32 %v1525, %v1639
        %v1904 = vadd.f32 %v1526, %v1640
        %v1905 = vadd.f32 %v1527, %v1641
        %v1906 = vadd.f32 %v1528, %v1638
        %v1907 = vadd.f32 %v1529, %v1639
        %v1908 = vadd.f32 %v1530, %v1640
        %v1909 = vadd.f32 %v1531, %v1641
        %v1910 = vadd.f32 %v1532, %v1638
        %v1911 = vadd.f32 %v1533, %v1639
        %v1912 = vadd.f32 %v1534, %v1640
        %v1913 = vadd.f32 %v1535, %v1641
        %v1914 = vadd.f32 %v1536, %v1638
        %v1915 = vadd.f32 %v1537, %v1639
        %v1916 = vadd.f32 %v1538, %v1640
        %v1917 = vadd.f32 %v1539, %v1641
        %v1918 = vadd.f32 %v1540, %v1638
        %v1919 = vadd.f32 %v1541, %v1639
        %v1920 = vadd.f32 %v1542, %v1640
        %v1921 = vadd.f32 %v1543, %v1641
        %v1922 = vadd.f32 %v1544, %v1638
        %v1923 = vadd.f32 %v1545, %v1639
        %v1924 = vadd.f32 %v1546, %v1640
        %v1925 = vadd.f32 %v1547, %v1641
        %v1926 = vadd.f32 %v1548, %v1638
        %v1927 = vadd.f32 %v1549, %v1639
        %v1928 = vadd.f32 %v1550, %v1640
        %v1929 = vadd.f32 %v1551, %v1641
        %v1930 = vmax.f32 %v1674, %v1675
        %v1931 = vmax.f32 %v1930, %v1676
        %v1932 = vmax.f32 %v1931, %v1677
        %1933 = vmax.xlane.f32.xlu0 %v1932
        %v1934 = vpop.xlane.xlu0 %1933
        %v1935 = vmax.f32 %v1678, %v1679
        %v1936 = vmax.f32 %v1935, %v1680
        %v1937 = vmax.f32 %v1936, %v1681
        %1938 = vmax.xlane.f32.xlu0 %v1937
        %v1939 = vpop.xlane.xlu0 %1938
        %v1940 = vmax.f32 %v1682, %v1683
        %v1941 = vmax.f32 %v1940, %v1684
        %v1942 = vmax.f32 %v1941, %v1685
        %1943 = vmax.xlane.f32.xlu0 %v1942
        %v1944 = vpop.xlane.xlu0 %1943
        %v1945 = vmax.f32 %v1686, %v1687
        %v1946 = vmax.f32 %v1945, %v1688
        %v1947 = vmax.f32 %v1946, %v1689
        %1948 = vmax.xlane.f32.xlu0 %v1947
        %v1949 = vpop.xlane.xlu0 %1948
        %v1950 = vmax.f32 %v1690, %v1691
        %v1951 = vmax.f32 %v1950, %v1692
        %v1952 = vmax.f32 %v1951, %v1693
        %1953 = vmax.xlane.f32.xlu0 %v1952
        %v1954 = vpop.xlane.xlu0 %1953
        %v1955 = vmax.f32 %v1694, %v1695
        %v1956 = vmax.f32 %v1955, %v1696
        %v1957 = vmax.f32 %v1956, %v1697
        %1958 = vmax.xlane.f32.xlu0 %v1957
        %v1959 = vpop.xlane.xlu0 %1958
        %v1960 = vmax.f32 %v1698, %v1699
        %v1961 = vmax.f32 %v1960, %v1700
        %v1962 = vmax.f32 %v1961, %v1701
        %1963 = vmax.xlane.f32.xlu0 %v1962
        %v1964 = vpop.xlane.xlu0 %1963
        %v1965 = vmax.f32 %v1702, %v1703
        %v1966 = vmax.f32 %v1965, %v1704
        %v1967 = vmax.f32 %v1966, %v1705
        %1968 = vmax.xlane.f32.xlu0 %v1967
        %v1969 = vpop.xlane.xlu0 %1968
        %v1970 = vmax.f32 %v1706, %v1707
        %v1971 = vmax.f32 %v1970, %v1708
        %v1972 = vmax.f32 %v1971, %v1709
        %1973 = vmax.xlane.f32.xlu0 %v1972
        %v1974 = vpop.xlane.xlu0 %1973
        %v1975 = vmax.f32 %v1710, %v1711
        %v1976 = vmax.f32 %v1975, %v1712
        %v1977 = vmax.f32 %v1976, %v1713
        %1978 = vmax.xlane.f32.xlu0 %v1977
        %v1979 = vpop.xlane.xlu0 %1978
        %v1980 = vmax.f32 %v1714, %v1715
        %v1981 = vmax.f32 %v1980, %v1716
        %v1982 = vmax.f32 %v1981, %v1717
        %1983 = vmax.xlane.f32.xlu0 %v1982
        %v1984 = vpop.xlane.xlu0 %1983
        %v1985 = vmax.f32 %v1718, %v1719
        %v1986 = vmax.f32 %v1985, %v1720
        %v1987 = vmax.f32 %v1986, %v1721
        %1988 = vmax.xlane.f32.xlu0 %v1987
        %v1989 = vpop.xlane.xlu0 %1988
        %v1990 = vmax.f32 %v1722, %v1723
        %v1991 = vmax.f32 %v1990, %v1724
        %v1992 = vmax.f32 %v1991, %v1725
        %1993 = vmax.xlane.f32.xlu0 %v1992
        %v1994 = vpop.xlane.xlu0 %1993
        %v1995 = vmax.f32 %v1726, %v1727
        %v1996 = vmax.f32 %v1995, %v1728
        %v1997 = vmax.f32 %v1996, %v1729
        %1998 = vmax.xlane.f32.xlu0 %v1997
        %v1999 = vpop.xlane.xlu0 %1998
        %v2000 = vmax.f32 %v1730, %v1731
        %v2001 = vmax.f32 %v2000, %v1732
        %v2002 = vmax.f32 %v2001, %v1733
        %2003 = vmax.xlane.f32.xlu0 %v2002
        %v2004 = vpop.xlane.xlu0 %2003
        %v2005 = vmax.f32 %v1734, %v1735
        %v2006 = vmax.f32 %v2005, %v1736
        %v2007 = vmax.f32 %v2006, %v1737
        %2008 = vmax.xlane.f32.xlu0 %v2007
        %v2009 = vpop.xlane.xlu0 %2008
        %v2010 = vmax.f32 %v1738, %v1739
        %v2011 = vmax.f32 %v2010, %v1740
        %v2012 = vmax.f32 %v2011, %v1741
        %2013 = vmax.xlane.f32.xlu0 %v2012
        %v2014 = vpop.xlane.xlu0 %2013
        %v2015 = vmax.f32 %v1742, %v1743
        %v2016 = vmax.f32 %v2015, %v1744
        %v2017 = vmax.f32 %v2016, %v1745
        %2018 = vmax.xlane.f32.xlu0 %v2017
        %v2019 = vpop.xlane.xlu0 %2018
        %v2020 = vmax.f32 %v1746, %v1747
        %v2021 = vmax.f32 %v2020, %v1748
        %v2022 = vmax.f32 %v2021, %v1749
        %2023 = vmax.xlane.f32.xlu0 %v2022
        %v2024 = vpop.xlane.xlu0 %2023
        %v2025 = vmax.f32 %v1750, %v1751
        %v2026 = vmax.f32 %v2025, %v1752
        %v2027 = vmax.f32 %v2026, %v1753
        %2028 = vmax.xlane.f32.xlu0 %v2027
        %v2029 = vpop.xlane.xlu0 %2028
        %v2030 = vmax.f32 %v1754, %v1755
        %v2031 = vmax.f32 %v2030, %v1756
        %v2032 = vmax.f32 %v2031, %v1757
        %2033 = vmax.xlane.f32.xlu0 %v2032
        %v2034 = vpop.xlane.xlu0 %2033
        %v2035 = vmax.f32 %v1758, %v1759
        %v2036 = vmax.f32 %v2035, %v1760
        %v2037 = vmax.f32 %v2036, %v1761
        %2038 = vmax.xlane.f32.xlu0 %v2037
        %v2039 = vpop.xlane.xlu0 %2038
        %v2040 = vmax.f32 %v1762, %v1763
        %v2041 = vmax.f32 %v2040, %v1764
        %v2042 = vmax.f32 %v2041, %v1765
        %2043 = vmax.xlane.f32.xlu0 %v2042
        %v2044 = vpop.xlane.xlu0 %2043
        %v2045 = vmax.f32 %v1766, %v1767
        %v2046 = vmax.f32 %v2045, %v1768
        %v2047 = vmax.f32 %v2046, %v1769
        %2048 = vmax.xlane.f32.xlu0 %v2047
        %v2049 = vpop.xlane.xlu0 %2048
        %v2050 = vmax.f32 %v1770, %v1771
        %v2051 = vmax.f32 %v2050, %v1772
        %v2052 = vmax.f32 %v2051, %v1773
        %2053 = vmax.xlane.f32.xlu0 %v2052
        %v2054 = vpop.xlane.xlu0 %2053
        %v2055 = vmax.f32 %v1774, %v1775
        %v2056 = vmax.f32 %v2055, %v1776
        %v2057 = vmax.f32 %v2056, %v1777
        %2058 = vmax.xlane.f32.xlu0 %v2057
        %v2059 = vpop.xlane.xlu0 %2058
        %v2060 = vmax.f32 %v1778, %v1779
        %v2061 = vmax.f32 %v2060, %v1780
        %v2062 = vmax.f32 %v2061, %v1781
        %2063 = vmax.xlane.f32.xlu0 %v2062
        %v2064 = vpop.xlane.xlu0 %2063
        %v2065 = vmax.f32 %v1782, %v1783
        %v2066 = vmax.f32 %v2065, %v1784
        %v2067 = vmax.f32 %v2066, %v1785
        %2068 = vmax.xlane.f32.xlu0 %v2067
        %v2069 = vpop.xlane.xlu0 %2068
        %v2070 = vmax.f32 %v1786, %v1787
        %v2071 = vmax.f32 %v2070, %v1788
        %v2072 = vmax.f32 %v2071, %v1789
        %2073 = vmax.xlane.f32.xlu0 %v2072
        %v2074 = vpop.xlane.xlu0 %2073
        %v2075 = vmax.f32 %v1790, %v1791
        %v2076 = vmax.f32 %v2075, %v1792
        %v2077 = vmax.f32 %v2076, %v1793
        %2078 = vmax.xlane.f32.xlu0 %v2077
        %v2079 = vpop.xlane.xlu0 %2078
        %v2080 = vmax.f32 %v1794, %v1795
        %v2081 = vmax.f32 %v2080, %v1796
        %v2082 = vmax.f32 %v2081, %v1797
        %2083 = vmax.xlane.f32.xlu0 %v2082
        %v2084 = vpop.xlane.xlu0 %2083
        %v2085 = vmax.f32 %v1798, %v1799
        %v2086 = vmax.f32 %v2085, %v1800
        %v2087 = vmax.f32 %v2086, %v1801
        %2088 = vmax.xlane.f32.xlu0 %v2087
        %v2089 = vpop.xlane.xlu0 %2088
        %v2090 = vmax.f32 %v1802, %v1803
        %v2091 = vmax.f32 %v2090, %v1804
        %v2092 = vmax.f32 %v2091, %v1805
        %2093 = vmax.xlane.f32.xlu0 %v2092
        %v2094 = vpop.xlane.xlu0 %2093
        %v2095 = vmax.f32 %v1806, %v1807
        %v2096 = vmax.f32 %v2095, %v1808
        %v2097 = vmax.f32 %v2096, %v1809
        %2098 = vmax.xlane.f32.xlu0 %v2097
        %v2099 = vpop.xlane.xlu0 %2098
        %v2100 = vmax.f32 %v1810, %v1811
        %v2101 = vmax.f32 %v2100, %v1812
        %v2102 = vmax.f32 %v2101, %v1813
        %2103 = vmax.xlane.f32.xlu0 %v2102
        %v2104 = vpop.xlane.xlu0 %2103
        %v2105 = vmax.f32 %v1814, %v1815
        %v2106 = vmax.f32 %v2105, %v1816
        %v2107 = vmax.f32 %v2106, %v1817
        %2108 = vmax.xlane.f32.xlu0 %v2107
        %v2109 = vpop.xlane.xlu0 %2108
        %v2110 = vmax.f32 %v1818, %v1819
        %v2111 = vmax.f32 %v2110, %v1820
        %v2112 = vmax.f32 %v2111, %v1821
        %2113 = vmax.xlane.f32.xlu0 %v2112
        %v2114 = vpop.xlane.xlu0 %2113
        %v2115 = vmax.f32 %v1822, %v1823
        %v2116 = vmax.f32 %v2115, %v1824
        %v2117 = vmax.f32 %v2116, %v1825
        %2118 = vmax.xlane.f32.xlu0 %v2117
        %v2119 = vpop.xlane.xlu0 %2118
        %v2120 = vmax.f32 %v1826, %v1827
        %v2121 = vmax.f32 %v2120, %v1828
        %v2122 = vmax.f32 %v2121, %v1829
        %2123 = vmax.xlane.f32.xlu0 %v2122
        %v2124 = vpop.xlane.xlu0 %2123
        %v2125 = vmax.f32 %v1830, %v1831
        %v2126 = vmax.f32 %v2125, %v1832
        %v2127 = vmax.f32 %v2126, %v1833
        %2128 = vmax.xlane.f32.xlu0 %v2127
        %v2129 = vpop.xlane.xlu0 %2128
        %v2130 = vmax.f32 %v1834, %v1835
        %v2131 = vmax.f32 %v2130, %v1836
        %v2132 = vmax.f32 %v2131, %v1837
        %2133 = vmax.xlane.f32.xlu0 %v2132
        %v2134 = vpop.xlane.xlu0 %2133
        %v2135 = vmax.f32 %v1838, %v1839
        %v2136 = vmax.f32 %v2135, %v1840
        %v2137 = vmax.f32 %v2136, %v1841
        %2138 = vmax.xlane.f32.xlu0 %v2137
        %v2139 = vpop.xlane.xlu0 %2138
        %v2140 = vmax.f32 %v1842, %v1843
        %v2141 = vmax.f32 %v2140, %v1844
        %v2142 = vmax.f32 %v2141, %v1845
        %2143 = vmax.xlane.f32.xlu0 %v2142
        %v2144 = vpop.xlane.xlu0 %2143
        %v2145 = vmax.f32 %v1846, %v1847
        %v2146 = vmax.f32 %v2145, %v1848
        %v2147 = vmax.f32 %v2146, %v1849
        %2148 = vmax.xlane.f32.xlu0 %v2147
        %v2149 = vpop.xlane.xlu0 %2148
        %v2150 = vmax.f32 %v1850, %v1851
        %v2151 = vmax.f32 %v2150, %v1852
        %v2152 = vmax.f32 %v2151, %v1853
        %2153 = vmax.xlane.f32.xlu0 %v2152
        %v2154 = vpop.xlane.xlu0 %2153
        %v2155 = vmax.f32 %v1854, %v1855
        %v2156 = vmax.f32 %v2155, %v1856
        %v2157 = vmax.f32 %v2156, %v1857
        %2158 = vmax.xlane.f32.xlu0 %v2157
        %v2159 = vpop.xlane.xlu0 %2158
        %v2160 = vmax.f32 %v1858, %v1859
        %v2161 = vmax.f32 %v2160, %v1860
        %v2162 = vmax.f32 %v2161, %v1861
        %2163 = vmax.xlane.f32.xlu0 %v2162
        %v2164 = vpop.xlane.xlu0 %2163
        %v2165 = vmax.f32 %v1862, %v1863
        %v2166 = vmax.f32 %v2165, %v1864
        %v2167 = vmax.f32 %v2166, %v1865
        %2168 = vmax.xlane.f32.xlu0 %v2167
        %v2169 = vpop.xlane.xlu0 %2168
        %v2170 = vmax.f32 %v1866, %v1867
        %v2171 = vmax.f32 %v2170, %v1868
        %v2172 = vmax.f32 %v2171, %v1869
        %2173 = vmax.xlane.f32.xlu0 %v2172
        %v2174 = vpop.xlane.xlu0 %2173
        %v2175 = vmax.f32 %v1870, %v1871
        %v2176 = vmax.f32 %v2175, %v1872
        %v2177 = vmax.f32 %v2176, %v1873
        %2178 = vmax.xlane.f32.xlu0 %v2177
        %v2179 = vpop.xlane.xlu0 %2178
        %v2180 = vmax.f32 %v1874, %v1875
        %v2181 = vmax.f32 %v2180, %v1876
        %v2182 = vmax.f32 %v2181, %v1877
        %2183 = vmax.xlane.f32.xlu0 %v2182
        %v2184 = vpop.xlane.xlu0 %2183
        %v2185 = vmax.f32 %v1878, %v1879
        %v2186 = vmax.f32 %v2185, %v1880
        %v2187 = vmax.f32 %v2186, %v1881
        %2188 = vmax.xlane.f32.xlu0 %v2187
        %v2189 = vpop.xlane.xlu0 %2188
        %v2190 = vmax.f32 %v1882, %v1883
        %v2191 = vmax.f32 %v2190, %v1884
        %v2192 = vmax.f32 %v2191, %v1885
        %2193 = vmax.xlane.f32.xlu0 %v2192
        %v2194 = vpop.xlane.xlu0 %2193
        %v2195 = vmax.f32 %v1886, %v1887
        %v2196 = vmax.f32 %v2195, %v1888
        %v2197 = vmax.f32 %v2196, %v1889
        %2198 = vmax.xlane.f32.xlu0 %v2197
        %v2199 = vpop.xlane.xlu0 %2198
        %v2200 = vmax.f32 %v1890, %v1891
        %v2201 = vmax.f32 %v2200, %v1892
        %v2202 = vmax.f32 %v2201, %v1893
        %2203 = vmax.xlane.f32.xlu0 %v2202
        %v2204 = vpop.xlane.xlu0 %2203
        %v2205 = vmax.f32 %v1894, %v1895
        %v2206 = vmax.f32 %v2205, %v1896
        %v2207 = vmax.f32 %v2206, %v1897
        %2208 = vmax.xlane.f32.xlu0 %v2207
        %v2209 = vpop.xlane.xlu0 %2208
        %v2210 = vmax.f32 %v1898, %v1899
        %v2211 = vmax.f32 %v2210, %v1900
        %v2212 = vmax.f32 %v2211, %v1901
        %2213 = vmax.xlane.f32.xlu0 %v2212
        %v2214 = vpop.xlane.xlu0 %2213
        %v2215 = vmax.f32 %v1902, %v1903
        %v2216 = vmax.f32 %v2215, %v1904
        %v2217 = vmax.f32 %v2216, %v1905
        %2218 = vmax.xlane.f32.xlu0 %v2217
        %v2219 = vpop.xlane.xlu0 %2218
        %v2220 = vmax.f32 %v1906, %v1907
        %v2221 = vmax.f32 %v2220, %v1908
        %v2222 = vmax.f32 %v2221, %v1909
        %2223 = vmax.xlane.f32.xlu0 %v2222
        %v2224 = vpop.xlane.xlu0 %2223
        %v2225 = vmax.f32 %v1910, %v1911
        %v2226 = vmax.f32 %v2225, %v1912
        %v2227 = vmax.f32 %v2226, %v1913
        %2228 = vmax.xlane.f32.xlu0 %v2227
        %v2229 = vpop.xlane.xlu0 %2228
        %v2230 = vmax.f32 %v1914, %v1915
        %v2231 = vmax.f32 %v2230, %v1916
        %v2232 = vmax.f32 %v2231, %v1917
        %2233 = vmax.xlane.f32.xlu0 %v2232
        %v2234 = vpop.xlane.xlu0 %2233
        %v2235 = vmax.f32 %v1918, %v1919
        %v2236 = vmax.f32 %v2235, %v1920
        %v2237 = vmax.f32 %v2236, %v1921
        %2238 = vmax.xlane.f32.xlu0 %v2237
        %v2239 = vpop.xlane.xlu0 %2238
        %v2240 = vmax.f32 %v1922, %v1923
        %v2241 = vmax.f32 %v2240, %v1924
        %v2242 = vmax.f32 %v2241, %v1925
        %2243 = vmax.xlane.f32.xlu0 %v2242
        %v2244 = vpop.xlane.xlu0 %2243
        %v2245 = vmax.f32 %v1926, %v1927
        %v2246 = vmax.f32 %v2245, %v1928
        %v2247 = vmax.f32 %v2246, %v1929
        %2248 = vmax.xlane.f32.xlu0 %v2247
        %v2249 = vpop.xlane.xlu0 %2248
        %v2250 = vld [vmem:[%s17] sm:$0xff]
        %v2251 = vld [vmem:[%s17 + $0x8] sm:$0xff]
        %v2252 = vld [vmem:[%s17 + $0x10] sm:$0xff]
        %v2253 = vld [vmem:[%s17 + $0x18] sm:$0xff]
        %v2254 = vld [vmem:[%s17 + $0x20] sm:$0xff]
        %v2255 = vld [vmem:[%s17 + $0x28] sm:$0xff]
        %v2256 = vld [vmem:[%s17 + $0x30] sm:$0xff]
        %v2257 = vld [vmem:[%s17 + $0x38] sm:$0xff]
        %v2258 = vld [vmem:[%s17 + $0x40] sm:$0xff]
        %v2259 = vld [vmem:[%s17 + $0x48] sm:$0xff]
        %v2260 = vld [vmem:[%s17 + $0x50] sm:$0xff]
        %v2261 = vld [vmem:[%s17 + $0x58] sm:$0xff]
        %v2262 = vld [vmem:[%s17 + $0x60] sm:$0xff]
        %v2263 = vld [vmem:[%s17 + $0x68] sm:$0xff]
        %v2264 = vld [vmem:[%s17 + $0x70] sm:$0xff]
        %v2265 = vld [vmem:[%s17 + $0x78] sm:$0xff]
        %s2266 = scalar_lea.vmem %s975, 32
        %v2267 = vld [vmem:[%s2266] sm:$0xff]
        %v2268 = vld [vmem:[%s2266 + $0x8] sm:$0xff]
        %v2269 = vld [vmem:[%s2266 + $0x10] sm:$0xff]
        %v2270 = vld [vmem:[%s2266 + $0x18] sm:$0xff]
        %v2275 = vrot.slane %v2268, 7
        %v2276 = vrot.slane %v2269, 6
        %v2277 = vrot.slane %v2270, 5
        %v2278 = vsel %vm1563, %v2267, %v2275
        %v2279 = vsel %vm1565, %v2276, %v2277
        %v2280 = vsel %vm1567, %v2278, %v2279
        %v2281 = vsel %vm1569, %v2267, %v2275
        %v2282 = vsel %vm1571, %v2276, %v2277
        %v2283 = vsel %vm1573, %v2281, %v2282
        %v2284 = vrot.slane %v2283, 1
        %v2285 = vsel %vm1565, %v2267, %v2275
        %v2286 = vsel %vm1577, %v2276, %v2277
        %v2287 = vsel %vm1579, %v2285, %v2286
        %v2288 = vrot.slane %v2287, 2
        %v2289 = vsel %vm1571, %v2267, %v2275
        %v2290 = vsel %vm1583, %v2276, %v2277
        %v2291 = vsel %vm1585, %v2289, %v2290
        %v2292 = vrot.slane %v2291, 3
        %v2293 = vsel %vm1577, %v2267, %v2275
        %v2294 = vsel %vm1589, %v2276, %v2277
        %v2295 = vsel %vm1591, %v2293, %v2294
        %v2296 = vrot.slane %v2295, 4
        %v2297 = vsel %vm1583, %v2267, %v2275
        %v2298 = vsel %vm1595, %v2277, %v2276
        %v2299 = vsel %vm1597, %v2297, %v2298
        %v2300 = vrot.slane %v2299, 5
        %v2301 = vsel %vm1589, %v2267, %v2275
        %v2302 = vsel %vm1563, %v2276, %v2277
        %v2303 = vsel %vm1602, %v2302, %v2301
        %v2304 = vrot.slane %v2303, 6
        %v2305 = vsel %vm1595, %v2275, %v2267
        %v2306 = vsel %vm1569, %v2276, %v2277
        %v2307 = vsel %vm1607, %v2306, %v2305
        %v2308 = vrot.slane %v2307, 7
        %v2309 = vperm.slane %v2280, 0
        %v2310 = vperm.slane %v2280, 1
        %v2311 = vperm.slane %v2280, 2
        %v2312 = vperm.slane %v2280, 3
        %v2313 = vperm.slane %v2284, 0
        %v2314 = vperm.slane %v2284, 1
        %v2315 = vperm.slane %v2284, 2
        %v2316 = vperm.slane %v2284, 3
        %v2317 = vperm.slane %v2288, 0
        %v2318 = vperm.slane %v2288, 1
        %v2319 = vperm.slane %v2288, 2
        %v2320 = vperm.slane %v2288, 3
        %v2321 = vperm.slane %v2292, 0
        %v2322 = vperm.slane %v2292, 1
        %v2323 = vperm.slane %v2292, 2
        %v2324 = vperm.slane %v2292, 3
        %v2325 = vperm.slane %v2296, 0
        %v2326 = vperm.slane %v2296, 1
        %v2327 = vperm.slane %v2296, 2
        %v2328 = vperm.slane %v2296, 3
        %v2329 = vperm.slane %v2300, 0
        %v2330 = vperm.slane %v2300, 1
        %v2331 = vperm.slane %v2300, 2
        %v2332 = vperm.slane %v2300, 3
        %v2333 = vperm.slane %v2304, 0
        %v2334 = vperm.slane %v2304, 1
        %v2335 = vperm.slane %v2304, 2
        %v2336 = vperm.slane %v2304, 3
        %v2337 = vperm.slane %v2308, 0
        %v2338 = vperm.slane %v2308, 1
        %v2339 = vperm.slane %v2308, 2
        %v2340 = vperm.slane %v2308, 3
        %v2373 = vadd.f32 %v1520, %v2309
        %v2374 = vadd.f32 %v1521, %v2310
        %v2375 = vadd.f32 %v1522, %v2311
        %v2376 = vadd.f32 %v1523, %v2312
        %v2377 = vadd.f32 %v1524, %v2309
        %v2378 = vadd.f32 %v1525, %v2310
        %v2379 = vadd.f32 %v1526, %v2311
        %v2380 = vadd.f32 %v1527, %v2312
        %v2381 = vadd.f32 %v1528, %v2309
        %v2382 = vadd.f32 %v1529, %v2310
        %v2383 = vadd.f32 %v1530, %v2311
        %v2384 = vadd.f32 %v1531, %v2312
        %v2385 = vadd.f32 %v1532, %v2309
        %v2386 = vadd.f32 %v1533, %v2310
        %v2387 = vadd.f32 %v1534, %v2311
        %v2388 = vadd.f32 %v1535, %v2312
        %v2389 = vadd.f32 %v1536, %v2309
        %v2390 = vadd.f32 %v1537, %v2310
        %v2391 = vadd.f32 %v1538, %v2311
        %v2392 = vadd.f32 %v1539, %v2312
        %v2393 = vadd.f32 %v1540, %v2309
        %v2394 = vadd.f32 %v1541, %v2310
        %v2395 = vadd.f32 %v1542, %v2311
        %v2396 = vadd.f32 %v1543, %v2312
        %v2397 = vadd.f32 %v1544, %v2309
        %v2398 = vadd.f32 %v1545, %v2310
        %v2399 = vadd.f32 %v1546, %v2311
        %v2400 = vadd.f32 %v1547, %v2312
        %v2401 = vadd.f32 %v1548, %v2309
        %v2402 = vadd.f32 %v1549, %v2310
        %v2403 = vadd.f32 %v1550, %v2311
        %v2404 = vadd.f32 %v1551, %v2312
        %v2405 = vadd.f32 %v1520, %v2313
        %v2406 = vadd.f32 %v1521, %v2314
        %v2407 = vadd.f32 %v1522, %v2315
        %v2408 = vadd.f32 %v1523, %v2316
        %v2409 = vadd.f32 %v1524, %v2313
        %v2410 = vadd.f32 %v1525, %v2314
        %v2411 = vadd.f32 %v1526, %v2315
        %v2412 = vadd.f32 %v1527, %v2316
        %v2413 = vadd.f32 %v1528, %v2313
        %v2414 = vadd.f32 %v1529, %v2314
        %v2415 = vadd.f32 %v1530, %v2315
        %v2416 = vadd.f32 %v1531, %v2316
        %v2417 = vadd.f32 %v1532, %v2313
        %v2418 = vadd.f32 %v1533, %v2314
        %v2419 = vadd.f32 %v1534, %v2315
        %v2420 = vadd.f32 %v1535, %v2316
        %v2421 = vadd.f32 %v1536, %v2313
        %v2422 = vadd.f32 %v1537, %v2314
        %v2423 = vadd.f32 %v1538, %v2315
        %v2424 = vadd.f32 %v1539, %v2316
        %v2425 = vadd.f32 %v1540, %v2313
        %v2426 = vadd.f32 %v1541, %v2314
        %v2427 = vadd.f32 %v1542, %v2315
        %v2428 = vadd.f32 %v1543, %v2316
        %v2429 = vadd.f32 %v1544, %v2313
        %v2430 = vadd.f32 %v1545, %v2314
        %v2431 = vadd.f32 %v1546, %v2315
        %v2432 = vadd.f32 %v1547, %v2316
        %v2433 = vadd.f32 %v1548, %v2313
        %v2434 = vadd.f32 %v1549, %v2314
        %v2435 = vadd.f32 %v1550, %v2315
        %v2436 = vadd.f32 %v1551, %v2316
        %v2437 = vadd.f32 %v1520, %v2317
        %v2438 = vadd.f32 %v1521, %v2318
        %v2439 = vadd.f32 %v1522, %v2319
        %v2440 = vadd.f32 %v1523, %v2320
        %v2441 = vadd.f32 %v1524, %v2317
        %v2442 = vadd.f32 %v1525, %v2318
        %v2443 = vadd.f32 %v1526, %v2319
        %v2444 = vadd.f32 %v1527, %v2320
        %v2445 = vadd.f32 %v1528, %v2317
        %v2446 = vadd.f32 %v1529, %v2318
        %v2447 = vadd.f32 %v1530, %v2319
        %v2448 = vadd.f32 %v1531, %v2320
        %v2449 = vadd.f32 %v1532, %v2317
        %v2450 = vadd.f32 %v1533, %v2318
        %v2451 = vadd.f32 %v1534, %v2319
        %v2452 = vadd.f32 %v1535, %v2320
        %v2453 = vadd.f32 %v1536, %v2317
        %v2454 = vadd.f32 %v1537, %v2318
        %v2455 = vadd.f32 %v1538, %v2319
        %v2456 = vadd.f32 %v1539, %v2320
        %v2457 = vadd.f32 %v1540, %v2317
        %v2458 = vadd.f32 %v1541, %v2318
        %v2459 = vadd.f32 %v1542, %v2319
        %v2460 = vadd.f32 %v1543, %v2320
        %v2461 = vadd.f32 %v1544, %v2317
        %v2462 = vadd.f32 %v1545, %v2318
        %v2463 = vadd.f32 %v1546, %v2319
        %v2464 = vadd.f32 %v1547, %v2320
        %v2465 = vadd.f32 %v1548, %v2317
        %v2466 = vadd.f32 %v1549, %v2318
        %v2467 = vadd.f32 %v1550, %v2319
        %v2468 = vadd.f32 %v1551, %v2320
        %v2469 = vadd.f32 %v1520, %v2321
        %v2470 = vadd.f32 %v1521, %v2322
        %v2471 = vadd.f32 %v1522, %v2323
        %v2472 = vadd.f32 %v1523, %v2324
        %v2473 = vadd.f32 %v1524, %v2321
        %v2474 = vadd.f32 %v1525, %v2322
        %v2475 = vadd.f32 %v1526, %v2323
        %v2476 = vadd.f32 %v1527, %v2324
        %v2477 = vadd.f32 %v1528, %v2321
        %v2478 = vadd.f32 %v1529, %v2322
        %v2479 = vadd.f32 %v1530, %v2323
        %v2480 = vadd.f32 %v1531, %v2324
        %v2481 = vadd.f32 %v1532, %v2321
        %v2482 = vadd.f32 %v1533, %v2322
        %v2483 = vadd.f32 %v1534, %v2323
        %v2484 = vadd.f32 %v1535, %v2324
        %v2485 = vadd.f32 %v1536, %v2321
        %v2486 = vadd.f32 %v1537, %v2322
        %v2487 = vadd.f32 %v1538, %v2323
        %v2488 = vadd.f32 %v1539, %v2324
        %v2489 = vadd.f32 %v1540, %v2321
        %v2490 = vadd.f32 %v1541, %v2322
        %v2491 = vadd.f32 %v1542, %v2323
        %v2492 = vadd.f32 %v1543, %v2324
        %v2493 = vadd.f32 %v1544, %v2321
        %v2494 = vadd.f32 %v1545, %v2322
        %v2495 = vadd.f32 %v1546, %v2323
        %v2496 = vadd.f32 %v1547, %v2324
        %v2497 = vadd.f32 %v1548, %v2321
        %v2498 = vadd.f32 %v1549, %v2322
        %v2499 = vadd.f32 %v1550, %v2323
        %v2500 = vadd.f32 %v1551, %v2324
        %v2501 = vadd.f32 %v1520, %v2325
        %v2502 = vadd.f32 %v1521, %v2326
        %v2503 = vadd.f32 %v1522, %v2327
        %v2504 = vadd.f32 %v1523, %v2328
        %v2505 = vadd.f32 %v1524, %v2325
        %v2506 = vadd.f32 %v1525, %v2326
        %v2507 = vadd.f32 %v1526, %v2327
        %v2508 = vadd.f32 %v1527, %v2328
        %v2509 = vadd.f32 %v1528, %v2325
        %v2510 = vadd.f32 %v1529, %v2326
        %v2511 = vadd.f32 %v1530, %v2327
        %v2512 = vadd.f32 %v1531, %v2328
        %v2513 = vadd.f32 %v1532, %v2325
        %v2514 = vadd.f32 %v1533, %v2326
        %v2515 = vadd.f32 %v1534, %v2327
        %v2516 = vadd.f32 %v1535, %v2328
        %v2517 = vadd.f32 %v1536, %v2325
        %v2518 = vadd.f32 %v1537, %v2326
        %v2519 = vadd.f32 %v1538, %v2327
        %v2520 = vadd.f32 %v1539, %v2328
        %v2521 = vadd.f32 %v1540, %v2325
        %v2522 = vadd.f32 %v1541, %v2326
        %v2523 = vadd.f32 %v1542, %v2327
        %v2524 = vadd.f32 %v1543, %v2328
        %v2525 = vadd.f32 %v1544, %v2325
        %v2526 = vadd.f32 %v1545, %v2326
        %v2527 = vadd.f32 %v1546, %v2327
        %v2528 = vadd.f32 %v1547, %v2328
        %v2529 = vadd.f32 %v1548, %v2325
        %v2530 = vadd.f32 %v1549, %v2326
        %v2531 = vadd.f32 %v1550, %v2327
        %v2532 = vadd.f32 %v1551, %v2328
        %v2533 = vadd.f32 %v1520, %v2329
        %v2534 = vadd.f32 %v1521, %v2330
        %v2535 = vadd.f32 %v1522, %v2331
        %v2536 = vadd.f32 %v1523, %v2332
        %v2537 = vadd.f32 %v1524, %v2329
        %v2538 = vadd.f32 %v1525, %v2330
        %v2539 = vadd.f32 %v1526, %v2331
        %v2540 = vadd.f32 %v1527, %v2332
        %v2541 = vadd.f32 %v1528, %v2329
        %v2542 = vadd.f32 %v1529, %v2330
        %v2543 = vadd.f32 %v1530, %v2331
        %v2544 = vadd.f32 %v1531, %v2332
        %v2545 = vadd.f32 %v1532, %v2329
        %v2546 = vadd.f32 %v1533, %v2330
        %v2547 = vadd.f32 %v1534, %v2331
        %v2548 = vadd.f32 %v1535, %v2332
        %v2549 = vadd.f32 %v1536, %v2329
        %v2550 = vadd.f32 %v1537, %v2330
        %v2551 = vadd.f32 %v1538, %v2331
        %v2552 = vadd.f32 %v1539, %v2332
        %v2553 = vadd.f32 %v1540, %v2329
        %v2554 = vadd.f32 %v1541, %v2330
        %v2555 = vadd.f32 %v1542, %v2331
        %v2556 = vadd.f32 %v1543, %v2332
        %v2557 = vadd.f32 %v1544, %v2329
        %v2558 = vadd.f32 %v1545, %v2330
        %v2559 = vadd.f32 %v1546, %v2331
        %v2560 = vadd.f32 %v1547, %v2332
        %v2561 = vadd.f32 %v1548, %v2329
        %v2562 = vadd.f32 %v1549, %v2330
        %v2563 = vadd.f32 %v1550, %v2331
        %v2564 = vadd.f32 %v1551, %v2332
        %v2565 = vadd.f32 %v1520, %v2333
        %v2566 = vadd.f32 %v1521, %v2334
        %v2567 = vadd.f32 %v1522, %v2335
        %v2568 = vadd.f32 %v1523, %v2336
        %v2569 = vadd.f32 %v1524, %v2333
        %v2570 = vadd.f32 %v1525, %v2334
        %v2571 = vadd.f32 %v1526, %v2335
        %v2572 = vadd.f32 %v1527, %v2336
        %v2573 = vadd.f32 %v1528, %v2333
        %v2574 = vadd.f32 %v1529, %v2334
        %v2575 = vadd.f32 %v1530, %v2335
        %v2576 = vadd.f32 %v1531, %v2336
        %v2577 = vadd.f32 %v1532, %v2333
        %v2578 = vadd.f32 %v1533, %v2334
        %v2579 = vadd.f32 %v1534, %v2335
        %v2580 = vadd.f32 %v1535, %v2336
        %v2581 = vadd.f32 %v1536, %v2333
        %v2582 = vadd.f32 %v1537, %v2334
        %v2583 = vadd.f32 %v1538, %v2335
        %v2584 = vadd.f32 %v1539, %v2336
        %v2585 = vadd.f32 %v1540, %v2333
        %v2586 = vadd.f32 %v1541, %v2334
        %v2587 = vadd.f32 %v1542, %v2335
        %v2588 = vadd.f32 %v1543, %v2336
        %v2589 = vadd.f32 %v1544, %v2333
        %v2590 = vadd.f32 %v1545, %v2334
        %v2591 = vadd.f32 %v1546, %v2335
        %v2592 = vadd.f32 %v1547, %v2336
        %v2593 = vadd.f32 %v1548, %v2333
        %v2594 = vadd.f32 %v1549, %v2334
        %v2595 = vadd.f32 %v1550, %v2335
        %v2596 = vadd.f32 %v1551, %v2336
        %v2597 = vadd.f32 %v1520, %v2337
        %v2598 = vadd.f32 %v1521, %v2338
        %v2599 = vadd.f32 %v1522, %v2339
        %v2600 = vadd.f32 %v1523, %v2340
        %v2601 = vadd.f32 %v1524, %v2337
        %v2602 = vadd.f32 %v1525, %v2338
        %v2603 = vadd.f32 %v1526, %v2339
        %v2604 = vadd.f32 %v1527, %v2340
        %v2605 = vadd.f32 %v1528, %v2337
        %v2606 = vadd.f32 %v1529, %v2338
        %v2607 = vadd.f32 %v1530, %v2339
        %v2608 = vadd.f32 %v1531, %v2340
        %v2609 = vadd.f32 %v1532, %v2337
        %v2610 = vadd.f32 %v1533, %v2338
        %v2611 = vadd.f32 %v1534, %v2339
        %v2612 = vadd.f32 %v1535, %v2340
        %v2613 = vadd.f32 %v1536, %v2337
        %v2614 = vadd.f32 %v1537, %v2338
        %v2615 = vadd.f32 %v1538, %v2339
        %v2616 = vadd.f32 %v1539, %v2340
        %v2617 = vadd.f32 %v1540, %v2337
        %v2618 = vadd.f32 %v1541, %v2338
        %v2619 = vadd.f32 %v1542, %v2339
        %v2620 = vadd.f32 %v1543, %v2340
        %v2621 = vadd.f32 %v1544, %v2337
        %v2622 = vadd.f32 %v1545, %v2338
        %v2623 = vadd.f32 %v1546, %v2339
        %v2624 = vadd.f32 %v1547, %v2340
        %v2625 = vadd.f32 %v1548, %v2337
        %v2626 = vadd.f32 %v1549, %v2338
        %v2627 = vadd.f32 %v1550, %v2339
        %v2628 = vadd.f32 %v1551, %v2340
        %v2629 = vmax.f32 %v2373, %v2374
        %v2630 = vmax.f32 %v2629, %v2375
        %v2631 = vmax.f32 %v2630, %v2376
        %2632 = vmax.xlane.f32.xlu0 %v2631
        %v2633 = vpop.xlane.xlu0 %2632
        %v2634 = vmax.f32 %v2377, %v2378
        %v2635 = vmax.f32 %v2634, %v2379
        %v2636 = vmax.f32 %v2635, %v2380
        %2637 = vmax.xlane.f32.xlu0 %v2636
        %v2638 = vpop.xlane.xlu0 %2637
        %v2639 = vmax.f32 %v2381, %v2382
        %v2640 = vmax.f32 %v2639, %v2383
        %v2641 = vmax.f32 %v2640, %v2384
        %2642 = vmax.xlane.f32.xlu0 %v2641
        %v2643 = vpop.xlane.xlu0 %2642
        %v2644 = vmax.f32 %v2385, %v2386
        %v2645 = vmax.f32 %v2644, %v2387
        %v2646 = vmax.f32 %v2645, %v2388
        %2647 = vmax.xlane.f32.xlu0 %v2646
        %v2648 = vpop.xlane.xlu0 %2647
        %v2649 = vmax.f32 %v2389, %v2390
        %v2650 = vmax.f32 %v2649, %v2391
        %v2651 = vmax.f32 %v2650, %v2392
        %2652 = vmax.xlane.f32.xlu0 %v2651
        %v2653 = vpop.xlane.xlu0 %2652
        %v2654 = vmax.f32 %v2393, %v2394
        %v2655 = vmax.f32 %v2654, %v2395
        %v2656 = vmax.f32 %v2655, %v2396
        %2657 = vmax.xlane.f32.xlu0 %v2656
        %v2658 = vpop.xlane.xlu0 %2657
        %v2659 = vmax.f32 %v2397, %v2398
        %v2660 = vmax.f32 %v2659, %v2399
        %v2661 = vmax.f32 %v2660, %v2400
        %2662 = vmax.xlane.f32.xlu0 %v2661
        %v2663 = vpop.xlane.xlu0 %2662
        %v2664 = vmax.f32 %v2401, %v2402
        %v2665 = vmax.f32 %v2664, %v2403
        %v2666 = vmax.f32 %v2665, %v2404
        %2667 = vmax.xlane.f32.xlu0 %v2666
        %v2668 = vpop.xlane.xlu0 %2667
        %v2669 = vmax.f32 %v2405, %v2406
        %v2670 = vmax.f32 %v2669, %v2407
        %v2671 = vmax.f32 %v2670, %v2408
        %2672 = vmax.xlane.f32.xlu0 %v2671
        %v2673 = vpop.xlane.xlu0 %2672
        %v2674 = vmax.f32 %v2409, %v2410
        %v2675 = vmax.f32 %v2674, %v2411
        %v2676 = vmax.f32 %v2675, %v2412
        %2677 = vmax.xlane.f32.xlu0 %v2676
        %v2678 = vpop.xlane.xlu0 %2677
        %v2679 = vmax.f32 %v2413, %v2414
        %v2680 = vmax.f32 %v2679, %v2415
        %v2681 = vmax.f32 %v2680, %v2416
        %2682 = vmax.xlane.f32.xlu0 %v2681
        %v2683 = vpop.xlane.xlu0 %2682
        %v2684 = vmax.f32 %v2417, %v2418
        %v2685 = vmax.f32 %v2684, %v2419
        %v2686 = vmax.f32 %v2685, %v2420
        %2687 = vmax.xlane.f32.xlu0 %v2686
        %v2688 = vpop.xlane.xlu0 %2687
        %v2689 = vmax.f32 %v2421, %v2422
        %v2690 = vmax.f32 %v2689, %v2423
        %v2691 = vmax.f32 %v2690, %v2424
        %2692 = vmax.xlane.f32.xlu0 %v2691
        %v2693 = vpop.xlane.xlu0 %2692
        %v2694 = vmax.f32 %v2425, %v2426
        %v2695 = vmax.f32 %v2694, %v2427
        %v2696 = vmax.f32 %v2695, %v2428
        %2697 = vmax.xlane.f32.xlu0 %v2696
        %v2698 = vpop.xlane.xlu0 %2697
        %v2699 = vmax.f32 %v2429, %v2430
        %v2700 = vmax.f32 %v2699, %v2431
        %v2701 = vmax.f32 %v2700, %v2432
        %2702 = vmax.xlane.f32.xlu0 %v2701
        %v2703 = vpop.xlane.xlu0 %2702
        %v2704 = vmax.f32 %v2433, %v2434
        %v2705 = vmax.f32 %v2704, %v2435
        %v2706 = vmax.f32 %v2705, %v2436
        %2707 = vmax.xlane.f32.xlu0 %v2706
        %v2708 = vpop.xlane.xlu0 %2707
        %v2709 = vmax.f32 %v2437, %v2438
        %v2710 = vmax.f32 %v2709, %v2439
        %v2711 = vmax.f32 %v2710, %v2440
        %2712 = vmax.xlane.f32.xlu0 %v2711
        %v2713 = vpop.xlane.xlu0 %2712
        %v2714 = vmax.f32 %v2441, %v2442
        %v2715 = vmax.f32 %v2714, %v2443
        %v2716 = vmax.f32 %v2715, %v2444
        %2717 = vmax.xlane.f32.xlu0 %v2716
        %v2718 = vpop.xlane.xlu0 %2717
        %v2719 = vmax.f32 %v2445, %v2446
        %v2720 = vmax.f32 %v2719, %v2447
        %v2721 = vmax.f32 %v2720, %v2448
        %2722 = vmax.xlane.f32.xlu0 %v2721
        %v2723 = vpop.xlane.xlu0 %2722
        %v2724 = vmax.f32 %v2449, %v2450
        %v2725 = vmax.f32 %v2724, %v2451
        %v2726 = vmax.f32 %v2725, %v2452
        %2727 = vmax.xlane.f32.xlu0 %v2726
        %v2728 = vpop.xlane.xlu0 %2727
        %v2729 = vmax.f32 %v2453, %v2454
        %v2730 = vmax.f32 %v2729, %v2455
        %v2731 = vmax.f32 %v2730, %v2456
        %2732 = vmax.xlane.f32.xlu0 %v2731
        %v2733 = vpop.xlane.xlu0 %2732
        %v2734 = vmax.f32 %v2457, %v2458
        %v2735 = vmax.f32 %v2734, %v2459
        %v2736 = vmax.f32 %v2735, %v2460
        %2737 = vmax.xlane.f32.xlu0 %v2736
        %v2738 = vpop.xlane.xlu0 %2737
        %v2739 = vmax.f32 %v2461, %v2462
        %v2740 = vmax.f32 %v2739, %v2463
        %v2741 = vmax.f32 %v2740, %v2464
        %2742 = vmax.xlane.f32.xlu0 %v2741
        %v2743 = vpop.xlane.xlu0 %2742
        %v2744 = vmax.f32 %v2465, %v2466
        %v2745 = vmax.f32 %v2744, %v2467
        %v2746 = vmax.f32 %v2745, %v2468
        %2747 = vmax.xlane.f32.xlu0 %v2746
        %v2748 = vpop.xlane.xlu0 %2747
        %v2749 = vmax.f32 %v2469, %v2470
        %v2750 = vmax.f32 %v2749, %v2471
        %v2751 = vmax.f32 %v2750, %v2472
        %2752 = vmax.xlane.f32.xlu0 %v2751
        %v2753 = vpop.xlane.xlu0 %2752
        %v2754 = vmax.f32 %v2473, %v2474
        %v2755 = vmax.f32 %v2754, %v2475
        %v2756 = vmax.f32 %v2755, %v2476
        %2757 = vmax.xlane.f32.xlu0 %v2756
        %v2758 = vpop.xlane.xlu0 %2757
        %v2759 = vmax.f32 %v2477, %v2478
        %v2760 = vmax.f32 %v2759, %v2479
        %v2761 = vmax.f32 %v2760, %v2480
        %2762 = vmax.xlane.f32.xlu0 %v2761
        %v2763 = vpop.xlane.xlu0 %2762
        %v2764 = vmax.f32 %v2481, %v2482
        %v2765 = vmax.f32 %v2764, %v2483
        %v2766 = vmax.f32 %v2765, %v2484
        %2767 = vmax.xlane.f32.xlu0 %v2766
        %v2768 = vpop.xlane.xlu0 %2767
        %v2769 = vmax.f32 %v2485, %v2486
        %v2770 = vmax.f32 %v2769, %v2487
        %v2771 = vmax.f32 %v2770, %v2488
        %2772 = vmax.xlane.f32.xlu0 %v2771
        %v2773 = vpop.xlane.xlu0 %2772
        %v2774 = vmax.f32 %v2489, %v2490
        %v2775 = vmax.f32 %v2774, %v2491
        %v2776 = vmax.f32 %v2775, %v2492
        %2777 = vmax.xlane.f32.xlu0 %v2776
        %v2778 = vpop.xlane.xlu0 %2777
        %v2779 = vmax.f32 %v2493, %v2494
        %v2780 = vmax.f32 %v2779, %v2495
        %v2781 = vmax.f32 %v2780, %v2496
        %2782 = vmax.xlane.f32.xlu0 %v2781
        %v2783 = vpop.xlane.xlu0 %2782
        %v2784 = vmax.f32 %v2497, %v2498
        %v2785 = vmax.f32 %v2784, %v2499
        %v2786 = vmax.f32 %v2785, %v2500
        %2787 = vmax.xlane.f32.xlu0 %v2786
        %v2788 = vpop.xlane.xlu0 %2787
        %v2789 = vmax.f32 %v2501, %v2502
        %v2790 = vmax.f32 %v2789, %v2503
        %v2791 = vmax.f32 %v2790, %v2504
        %2792 = vmax.xlane.f32.xlu0 %v2791
        %v2793 = vpop.xlane.xlu0 %2792
        %v2794 = vmax.f32 %v2505, %v2506
        %v2795 = vmax.f32 %v2794, %v2507
        %v2796 = vmax.f32 %v2795, %v2508
        %2797 = vmax.xlane.f32.xlu0 %v2796
        %v2798 = vpop.xlane.xlu0 %2797
        %v2799 = vmax.f32 %v2509, %v2510
        %v2800 = vmax.f32 %v2799, %v2511
        %v2801 = vmax.f32 %v2800, %v2512
        %2802 = vmax.xlane.f32.xlu0 %v2801
        %v2803 = vpop.xlane.xlu0 %2802
        %v2804 = vmax.f32 %v2513, %v2514
        %v2805 = vmax.f32 %v2804, %v2515
        %v2806 = vmax.f32 %v2805, %v2516
        %2807 = vmax.xlane.f32.xlu0 %v2806
        %v2808 = vpop.xlane.xlu0 %2807
        %v2809 = vmax.f32 %v2517, %v2518
        %v2810 = vmax.f32 %v2809, %v2519
        %v2811 = vmax.f32 %v2810, %v2520
        %2812 = vmax.xlane.f32.xlu0 %v2811
        %v2813 = vpop.xlane.xlu0 %2812
        %v2814 = vmax.f32 %v2521, %v2522
        %v2815 = vmax.f32 %v2814, %v2523
        %v2816 = vmax.f32 %v2815, %v2524
        %2817 = vmax.xlane.f32.xlu0 %v2816
        %v2818 = vpop.xlane.xlu0 %2817
        %v2819 = vmax.f32 %v2525, %v2526
        %v2820 = vmax.f32 %v2819, %v2527
        %v2821 = vmax.f32 %v2820, %v2528
        %2822 = vmax.xlane.f32.xlu0 %v2821
        %v2823 = vpop.xlane.xlu0 %2822
        %v2824 = vmax.f32 %v2529, %v2530
        %v2825 = vmax.f32 %v2824, %v2531
        %v2826 = vmax.f32 %v2825, %v2532
        %2827 = vmax.xlane.f32.xlu0 %v2826
        %v2828 = vpop.xlane.xlu0 %2827
        %v2829 = vmax.f32 %v2533, %v2534
        %v2830 = vmax.f32 %v2829, %v2535
        %v2831 = vmax.f32 %v2830, %v2536
        %2832 = vmax.xlane.f32.xlu0 %v2831
        %v2833 = vpop.xlane.xlu0 %2832
        %v2834 = vmax.f32 %v2537, %v2538
        %v2835 = vmax.f32 %v2834, %v2539
        %v2836 = vmax.f32 %v2835, %v2540
        %2837 = vmax.xlane.f32.xlu0 %v2836
        %v2838 = vpop.xlane.xlu0 %2837
        %v2839 = vmax.f32 %v2541, %v2542
        %v2840 = vmax.f32 %v2839, %v2543
        %v2841 = vmax.f32 %v2840, %v2544
        %2842 = vmax.xlane.f32.xlu0 %v2841
        %v2843 = vpop.xlane.xlu0 %2842
        %v2844 = vmax.f32 %v2545, %v2546
        %v2845 = vmax.f32 %v2844, %v2547
        %v2846 = vmax.f32 %v2845, %v2548
        %2847 = vmax.xlane.f32.xlu0 %v2846
        %v2848 = vpop.xlane.xlu0 %2847
        %v2849 = vmax.f32 %v2549, %v2550
        %v2850 = vmax.f32 %v2849, %v2551
        %v2851 = vmax.f32 %v2850, %v2552
        %2852 = vmax.xlane.f32.xlu0 %v2851
        %v2853 = vpop.xlane.xlu0 %2852
        %v2854 = vmax.f32 %v2553, %v2554
        %v2855 = vmax.f32 %v2854, %v2555
        %v2856 = vmax.f32 %v2855, %v2556
        %2857 = vmax.xlane.f32.xlu0 %v2856
        %v2858 = vpop.xlane.xlu0 %2857
        %v2859 = vmax.f32 %v2557, %v2558
        %v2860 = vmax.f32 %v2859, %v2559
        %v2861 = vmax.f32 %v2860, %v2560
        %2862 = vmax.xlane.f32.xlu0 %v2861
        %v2863 = vpop.xlane.xlu0 %2862
        %v2864 = vmax.f32 %v2561, %v2562
        %v2865 = vmax.f32 %v2864, %v2563
        %v2866 = vmax.f32 %v2865, %v2564
        %2867 = vmax.xlane.f32.xlu0 %v2866
        %v2868 = vpop.xlane.xlu0 %2867
        %v2869 = vmax.f32 %v2565, %v2566
        %v2870 = vmax.f32 %v2869, %v2567
        %v2871 = vmax.f32 %v2870, %v2568
        %2872 = vmax.xlane.f32.xlu0 %v2871
        %v2873 = vpop.xlane.xlu0 %2872
        %v2874 = vmax.f32 %v2569, %v2570
        %v2875 = vmax.f32 %v2874, %v2571
        %v2876 = vmax.f32 %v2875, %v2572
        %2877 = vmax.xlane.f32.xlu0 %v2876
        %v2878 = vpop.xlane.xlu0 %2877
        %v2879 = vmax.f32 %v2573, %v2574
        %v2880 = vmax.f32 %v2879, %v2575
        %v2881 = vmax.f32 %v2880, %v2576
        %2882 = vmax.xlane.f32.xlu0 %v2881
        %v2883 = vpop.xlane.xlu0 %2882
        %v2884 = vmax.f32 %v2577, %v2578
        %v2885 = vmax.f32 %v2884, %v2579
        %v2886 = vmax.f32 %v2885, %v2580
        %2887 = vmax.xlane.f32.xlu0 %v2886
        %v2888 = vpop.xlane.xlu0 %2887
        %v2889 = vmax.f32 %v2581, %v2582
        %v2890 = vmax.f32 %v2889, %v2583
        %v2891 = vmax.f32 %v2890, %v2584
        %2892 = vmax.xlane.f32.xlu0 %v2891
        %v2893 = vpop.xlane.xlu0 %2892
        %v2894 = vmax.f32 %v2585, %v2586
        %v2895 = vmax.f32 %v2894, %v2587
        %v2896 = vmax.f32 %v2895, %v2588
        %2897 = vmax.xlane.f32.xlu0 %v2896
        %v2898 = vpop.xlane.xlu0 %2897
        %v2899 = vmax.f32 %v2589, %v2590
        %v2900 = vmax.f32 %v2899, %v2591
        %v2901 = vmax.f32 %v2900, %v2592
        %2902 = vmax.xlane.f32.xlu0 %v2901
        %v2903 = vpop.xlane.xlu0 %2902
        %v2904 = vmax.f32 %v2593, %v2594
        %v2905 = vmax.f32 %v2904, %v2595
        %v2906 = vmax.f32 %v2905, %v2596
        %2907 = vmax.xlane.f32.xlu0 %v2906
        %v2908 = vpop.xlane.xlu0 %2907
        %v2909 = vmax.f32 %v2597, %v2598
        %v2910 = vmax.f32 %v2909, %v2599
        %v2911 = vmax.f32 %v2910, %v2600
        %2912 = vmax.xlane.f32.xlu0 %v2911
        %v2913 = vpop.xlane.xlu0 %2912
        %v2914 = vmax.f32 %v2601, %v2602
        %v2915 = vmax.f32 %v2914, %v2603
        %v2916 = vmax.f32 %v2915, %v2604
        %2917 = vmax.xlane.f32.xlu0 %v2916
        %v2918 = vpop.xlane.xlu0 %2917
        %v2919 = vmax.f32 %v2605, %v2606
        %v2920 = vmax.f32 %v2919, %v2607
        %v2921 = vmax.f32 %v2920, %v2608
        %2922 = vmax.xlane.f32.xlu0 %v2921
        %v2923 = vpop.xlane.xlu0 %2922
        %v2924 = vmax.f32 %v2609, %v2610
        %v2925 = vmax.f32 %v2924, %v2611
        %v2926 = vmax.f32 %v2925, %v2612
        %2927 = vmax.xlane.f32.xlu0 %v2926
        %v2928 = vpop.xlane.xlu0 %2927
        %v2929 = vmax.f32 %v2613, %v2614
        %v2930 = vmax.f32 %v2929, %v2615
        %v2931 = vmax.f32 %v2930, %v2616
        %2932 = vmax.xlane.f32.xlu0 %v2931
        %v2933 = vpop.xlane.xlu0 %2932
        %v2934 = vmax.f32 %v2617, %v2618
        %v2935 = vmax.f32 %v2934, %v2619
        %v2936 = vmax.f32 %v2935, %v2620
        %2937 = vmax.xlane.f32.xlu0 %v2936
        %v2938 = vpop.xlane.xlu0 %2937
        %v2939 = vmax.f32 %v2621, %v2622
        %v2940 = vmax.f32 %v2939, %v2623
        %v2941 = vmax.f32 %v2940, %v2624
        %2942 = vmax.xlane.f32.xlu0 %v2941
        %v2943 = vpop.xlane.xlu0 %2942
        %v2944 = vmax.f32 %v2625, %v2626
        %v2945 = vmax.f32 %v2944, %v2627
        %v2946 = vmax.f32 %v2945, %v2628
        %2947 = vmax.xlane.f32.xlu0 %v2946
        %v2948 = vpop.xlane.xlu0 %2947
        %v2949 = vld [vmem:[%s17 + $0x80] sm:$0xff]
        %v2950 = vld [vmem:[%s17 + $0x88] sm:$0xff]
        %v2951 = vld [vmem:[%s17 + $0x90] sm:$0xff]
        %v2952 = vld [vmem:[%s17 + $0x98] sm:$0xff]
        %v2953 = vld [vmem:[%s17 + $0xa0] sm:$0xff]
        %v2954 = vld [vmem:[%s17 + $0xa8] sm:$0xff]
        %v2955 = vld [vmem:[%s17 + $0xb0] sm:$0xff]
        %v2956 = vld [vmem:[%s17 + $0xb8] sm:$0xff]
        %v2957 = vld [vmem:[%s17 + $0xc0] sm:$0xff]
        %v2958 = vld [vmem:[%s17 + $0xc8] sm:$0xff]
        %v2959 = vld [vmem:[%s17 + $0xd0] sm:$0xff]
        %v2960 = vld [vmem:[%s17 + $0xd8] sm:$0xff]
        %v2961 = vld [vmem:[%s17 + $0xe0] sm:$0xff]
        %v2962 = vld [vmem:[%s17 + $0xe8] sm:$0xff]
        %v2963 = vld [vmem:[%s17 + $0xf0] sm:$0xff]
        %v2964 = vld [vmem:[%s17 + $0xf8] sm:$0xff]
        %v3029 = vlaneseq
        %v3030 = vand.u32 %v3029, 127
        %v3031 = vperm.slane %v2633, %v3030
        %v3032 = vadd.s32 %v3030, 4294967288
        %v3033 = vperm.slane %v2638, %v3032
        %vm3034 = vcmask 130112
        %v3035 = vsel %vm3034, %v3033, %v3031
        %v3036 = vadd.s32 %v3030, 4294967280
        %v3037 = vperm.slane %v2643, %v3036
        %vm3038 = vcmask 195712
        %v3039 = vsel %vm3038, %v3037, %v3035
        %v3040 = vadd.s32 %v3030, 4294967272
        %v3041 = vperm.slane %v2648, %v3040
        %vm3042 = vcmask 261312
        %v3043 = vsel %vm3042, %v3041, %v3039
        %v3044 = vadd.s32 %v3030, 4294967264
        %v3045 = vperm.slane %v2653, %v3044
        %vm3046 = vcmask 326912
        %v3047 = vsel %vm3046, %v3045, %v3043
        %v3048 = vadd.s32 %v3030, 4294967256
        %v3049 = vperm.slane %v2658, %v3048
        %vm3050 = vcmask 392512
        %v3051 = vsel %vm3050, %v3049, %v3047
        %v3052 = vadd.s32 %v3030, 4294967248
        %v3053 = vperm.slane %v2663, %v3052
        %vm3054 = vcmask 458112
        %v3055 = vsel %vm3054, %v3053, %v3051
        %v3056 = vadd.s32 %v3030, 4294967240
        %v3057 = vperm.slane %v2668, %v3056
        %vm3058 = vcmask 523712
        %v3059 = vsel %vm3058, %v3057, %v3055
        %v3060 = vperm.slane %v2673, %v3030
        %v3061 = vperm.slane %v2678, %v3032
        %v3062 = vsel %vm3034, %v3061, %v3060
        %v3063 = vperm.slane %v2683, %v3036
        %v3064 = vsel %vm3038, %v3063, %v3062
        %v3065 = vperm.slane %v2688, %v3040
        %v3066 = vsel %vm3042, %v3065, %v3064
        %v3067 = vperm.slane %v2693, %v3044
        %v3068 = vsel %vm3046, %v3067, %v3066
        %v3069 = vperm.slane %v2698, %v3048
        %v3070 = vsel %vm3050, %v3069, %v3068
        %v3071 = vperm.slane %v2703, %v3052
        %v3072 = vsel %vm3054, %v3071, %v3070
        %v3073 = vperm.slane %v2708, %v3056
        %v3074 = vsel %vm3058, %v3073, %v3072
        %v3075 = vperm.slane %v2713, %v3030
        %v3076 = vperm.slane %v2718, %v3032
        %v3077 = vsel %vm3034, %v3076, %v3075
        %v3078 = vperm.slane %v2723, %v3036
        %v3079 = vsel %vm3038, %v3078, %v3077
        %v3080 = vperm.slane %v2728, %v3040
        %v3081 = vsel %vm3042, %v3080, %v3079
        %v3082 = vperm.slane %v2733, %v3044
        %v3083 = vsel %vm3046, %v3082, %v3081
        %v3084 = vperm.slane %v2738, %v3048
        %v3085 = vsel %vm3050, %v3084, %v3083
        %v3086 = vperm.slane %v2743, %v3052
        %v3087 = vsel %vm3054, %v3086, %v3085
        %v3088 = vperm.slane %v2748, %v3056
        %v3089 = vsel %vm3058, %v3088, %v3087
        %v3090 = vperm.slane %v2753, %v3030
        %v3091 = vperm.slane %v2758, %v3032
        %v3092 = vsel %vm3034, %v3091, %v3090
        %v3093 = vperm.slane %v2763, %v3036
        %v3094 = vsel %vm3038, %v3093, %v3092
        %v3095 = vperm.slane %v2768, %v3040
        %v3096 = vsel %vm3042, %v3095, %v3094
        %v3097 = vperm.slane %v2773, %v3044
        %v3098 = vsel %vm3046, %v3097, %v3096
        %v3099 = vperm.slane %v2778, %v3048
        %v3100 = vsel %vm3050, %v3099, %v3098
        %v3101 = vperm.slane %v2783, %v3052
        %v3102 = vsel %vm3054, %v3101, %v3100
        %v3103 = vperm.slane %v2788, %v3056
        %v3104 = vsel %vm3058, %v3103, %v3102
        %v3105 = vperm.slane %v2793, %v3030
        %v3106 = vperm.slane %v2798, %v3032
        %v3107 = vsel %vm3034, %v3106, %v3105
        %v3108 = vperm.slane %v2803, %v3036
        %v3109 = vsel %vm3038, %v3108, %v3107
        %v3110 = vperm.slane %v2808, %v3040
        %v3111 = vsel %vm3042, %v3110, %v3109
        %v3112 = vperm.slane %v2813, %v3044
        %v3113 = vsel %vm3046, %v3112, %v3111
        %v3114 = vperm.slane %v2818, %v3048
        %v3115 = vsel %vm3050, %v3114, %v3113
        %v3116 = vperm.slane %v2823, %v3052
        %v3117 = vsel %vm3054, %v3116, %v3115
        %v3118 = vperm.slane %v2828, %v3056
        %v3119 = vsel %vm3058, %v3118, %v3117
        %v3120 = vperm.slane %v2833, %v3030
        %v3121 = vperm.slane %v2838, %v3032
        %v3122 = vsel %vm3034, %v3121, %v3120
        %v3123 = vperm.slane %v2843, %v3036
        %v3124 = vsel %vm3038, %v3123, %v3122
        %v3125 = vperm.slane %v2848, %v3040
        %v3126 = vsel %vm3042, %v3125, %v3124
        %v3127 = vperm.slane %v2853, %v3044
        %v3128 = vsel %vm3046, %v3127, %v3126
        %v3129 = vperm.slane %v2858, %v3048
        %v3130 = vsel %vm3050, %v3129, %v3128
        %v3131 = vperm.slane %v2863, %v3052
        %v3132 = vsel %vm3054, %v3131, %v3130
        %v3133 = vperm.slane %v2868, %v3056
        %v3134 = vsel %vm3058, %v3133, %v3132
        %v3135 = vperm.slane %v2873, %v3030
        %v3136 = vperm.slane %v2878, %v3032
        %v3137 = vsel %vm3034, %v3136, %v3135
        %v3138 = vperm.slane %v2883, %v3036
        %v3139 = vsel %vm3038, %v3138, %v3137
        %v3140 = vperm.slane %v2888, %v3040
        %v3141 = vsel %vm3042, %v3140, %v3139
        %v3142 = vperm.slane %v2893, %v3044
        %v3143 = vsel %vm3046, %v3142, %v3141
        %v3144 = vperm.slane %v2898, %v3048
        %v3145 = vsel %vm3050, %v3144, %v3143
        %v3146 = vperm.slane %v2903, %v3052
        %v3147 = vsel %vm3054, %v3146, %v3145
        %v3148 = vperm.slane %v2908, %v3056
        %v3149 = vsel %vm3058, %v3148, %v3147
        %v3150 = vperm.slane %v2913, %v3030
        %v3151 = vperm.slane %v2918, %v3032
        %v3152 = vsel %vm3034, %v3151, %v3150
        %v3153 = vperm.slane %v2923, %v3036
        %v3154 = vsel %vm3038, %v3153, %v3152
        %v3155 = vperm.slane %v2928, %v3040
        %v3156 = vsel %vm3042, %v3155, %v3154
        %v3157 = vperm.slane %v2933, %v3044
        %v3158 = vsel %vm3046, %v3157, %v3156
        %v3159 = vperm.slane %v2938, %v3048
        %v3160 = vsel %vm3050, %v3159, %v3158
        %v3161 = vperm.slane %v2943, %v3052
        %v3162 = vsel %vm3054, %v3161, %v3160
        %v3163 = vperm.slane %v2948, %v3056
        %v3164 = vsel %vm3058, %v3163, %v3162
        %v3165 = vsel %vm1569, %v3074, %v3059
        %v3166 = vsel %vm1565, %v3089, %v3165
        %v3167 = vsel %vm1571, %v3104, %v3166
        %v3168 = vsel %vm1577, %v3119, %v3167
        %v3169 = vsel %vm1583, %v3134, %v3168
        %v3170 = vsel %vm1589, %v3149, %v3169
        %vm3171 = vcmask 1047559
        %v3172 = vsel %vm3171, %v3164, %v3170
        %vm3173 = vcmask 523264
        %v3174 = vsel %vm3173, %v3172, 0
        %3176 = vmatpush.msra.mxu0 0.0
        %3177 = vmatpush.msra.mxu0 0.0
        %3178 = vmatpush.msra.mxu0 0.0
        %3179 = vmatpush.msra.mxu0 0.0
        %3180 = vmatpush.msra.mxu0 0.0
        %3181 = vmatpush.msra.mxu0 0.0
        %3182 = vmatpush.msra.mxu0 0.0
        %3183 = vmatpush.msra.mxu0 0.0
        %3184 = vmatpush.msra.mxu0 %v2963
        %3185 = vmatpush.msra.mxu0 %v2961
        %3186 = vmatpush.msra.mxu0 %v2959
        %3187 = vmatpush.msra.mxu0 %v2957
        %3188 = vmatpush.msra.mxu0 %v2955
        %3189 = vmatpush.msra.mxu0 %v2953
        %3190 = vmatpush.msra.mxu0 %v2951
        %3191 = vmatpush.msra.mxu0 %v2949
        %3192 = vmatmul.f32.gmra.mxu0 %v3174
        %v3193 = vpop.f32.mrf.mxu0
        %v3194 = vadd.f32 0.0, %v3193
        %3195 = vdwg.mxu0
        %3196 = vmatpush.msra.mxu0 0.0
        %3197 = vmatpush.msra.mxu0 0.0
        %3198 = vmatpush.msra.mxu0 0.0
        %3199 = vmatpush.msra.mxu0 0.0
        %3200 = vmatpush.msra.mxu0 0.0
        %3201 = vmatpush.msra.mxu0 0.0
        %3202 = vmatpush.msra.mxu0 0.0
        %3203 = vmatpush.msra.mxu0 0.0
        %3204 = vmatpush.msra.mxu0 %v2964
        %3205 = vmatpush.msra.mxu0 %v2962
        %3206 = vmatpush.msra.mxu0 %v2960
        %3207 = vmatpush.msra.mxu0 %v2958
        %3208 = vmatpush.msra.mxu0 %v2956
        %3209 = vmatpush.msra.mxu0 %v2954
        %3210 = vmatpush.msra.mxu0 %v2952
        %3211 = vmatpush.msra.mxu0 %v2950
        %3212 = vmatmul.f32.gmra.mxu0 %v3174
        %v3213 = vpop.f32.mrf.mxu0
        %v3214 = vadd.f32 0.0, %v3213
        %3215 = vdwg.mxu0
        %v3280 = vperm.slane %v1934, %v3030
        %v3281 = vperm.slane %v1939, %v3032
        %v3282 = vsel %vm3034, %v3281, %v3280
        %v3283 = vperm.slane %v1944, %v3036
        %v3284 = vsel %vm3038, %v3283, %v3282
        %v3285 = vperm.slane %v1949, %v3040
        %v3286 = vsel %vm3042, %v3285, %v3284
        %v3287 = vperm.slane %v1954, %v3044
        %v3288 = vsel %vm3046, %v3287, %v3286
        %v3289 = vperm.slane %v1959, %v3048
        %v3290 = vsel %vm3050, %v3289, %v3288
        %v3291 = vperm.slane %v1964, %v3052
        %v3292 = vsel %vm3054, %v3291, %v3290
        %v3293 = vperm.slane %v1969, %v3056
        %v3294 = vsel %vm3058, %v3293, %v3292
        %v3295 = vperm.slane %v1974, %v3030
        %v3296 = vperm.slane %v1979, %v3032
        %v3297 = vsel %vm3034, %v3296, %v3295
        %v3298 = vperm.slane %v1984, %v3036
        %v3299 = vsel %vm3038, %v3298, %v3297
        %v3300 = vperm.slane %v1989, %v3040
        %v3301 = vsel %vm3042, %v3300, %v3299
        %v3302 = vperm.slane %v1994, %v3044
        %v3303 = vsel %vm3046, %v3302, %v3301
        %v3304 = vperm.slane %v1999, %v3048
        %v3305 = vsel %vm3050, %v3304, %v3303
        %v3306 = vperm.slane %v2004, %v3052
        %v3307 = vsel %vm3054, %v3306, %v3305
        %v3308 = vperm.slane %v2009, %v3056
        %v3309 = vsel %vm3058, %v3308, %v3307
        %v3310 = vperm.slane %v2014, %v3030
        %v3311 = vperm.slane %v2019, %v3032
        %v3312 = vsel %vm3034, %v3311, %v3310
        %v3313 = vperm.slane %v2024, %v3036
        %v3314 = vsel %vm3038, %v3313, %v3312
        %v3315 = vperm.slane %v2029, %v3040
        %v3316 = vsel %vm3042, %v3315, %v3314
        %v3317 = vperm.slane %v2034, %v3044
        %v3318 = vsel %vm3046, %v3317, %v3316
        %v3319 = vperm.slane %v2039, %v3048
        %v3320 = vsel %vm3050, %v3319, %v3318
        %v3321 = vperm.slane %v2044, %v3052
        %v3322 = vsel %vm3054, %v3321, %v3320
        %v3323 = vperm.slane %v2049, %v3056
        %v3324 = vsel %vm3058, %v3323, %v3322
        %v3325 = vperm.slane %v2054, %v3030
        %v3326 = vperm.slane %v2059, %v3032
        %v3327 = vsel %vm3034, %v3326, %v3325
        %v3328 = vperm.slane %v2064, %v3036
        %v3329 = vsel %vm3038, %v3328, %v3327
        %v3330 = vperm.slane %v2069, %v3040
        %v3331 = vsel %vm3042, %v3330, %v3329
        %v3332 = vperm.slane %v2074, %v3044
        %v3333 = vsel %vm3046, %v3332, %v3331
        %v3334 = vperm.slane %v2079, %v3048
        %v3335 = vsel %vm3050, %v3334, %v3333
        %v3336 = vperm.slane %v2084, %v3052
        %v3337 = vsel %vm3054, %v3336, %v3335
        %v3338 = vperm.slane %v2089, %v3056
        %v3339 = vsel %vm3058, %v3338, %v3337
        %v3340 = vperm.slane %v2094, %v3030
        %v3341 = vperm.slane %v2099, %v3032
        %v3342 = vsel %vm3034, %v3341, %v3340
        %v3343 = vperm.slane %v2104, %v3036
        %v3344 = vsel %vm3038, %v3343, %v3342
        %v3345 = vperm.slane %v2109, %v3040
        %v3346 = vsel %vm3042, %v3345, %v3344
        %v3347 = vperm.slane %v2114, %v3044
        %v3348 = vsel %vm3046, %v3347, %v3346
        %v3349 = vperm.slane %v2119, %v3048
        %v3350 = vsel %vm3050, %v3349, %v3348
        %v3351 = vperm.slane %v2124, %v3052
        %v3352 = vsel %vm3054, %v3351, %v3350
        %v3353 = vperm.slane %v2129, %v3056
        %v3354 = vsel %vm3058, %v3353, %v3352
        %v3355 = vperm.slane %v2134, %v3030
        %v3356 = vperm.slane %v2139, %v3032
        %v3357 = vsel %vm3034, %v3356, %v3355
        %v3358 = vperm.slane %v2144, %v3036
        %v3359 = vsel %vm3038, %v3358, %v3357
        %v3360 = vperm.slane %v2149, %v3040
        %v3361 = vsel %vm3042, %v3360, %v3359
        %v3362 = vperm.slane %v2154, %v3044
        %v3363 = vsel %vm3046, %v3362, %v3361
        %v3364 = vperm.slane %v2159, %v3048
        %v3365 = vsel %vm3050, %v3364, %v3363
        %v3366 = vperm.slane %v2164, %v3052
        %v3367 = vsel %vm3054, %v3366, %v3365
        %v3368 = vperm.slane %v2169, %v3056
        %v3369 = vsel %vm3058, %v3368, %v3367
        %v3370 = vperm.slane %v2174, %v3030
        %v3371 = vperm.slane %v2179, %v3032
        %v3372 = vsel %vm3034, %v3371, %v3370
        %v3373 = vperm.slane %v2184, %v3036
        %v3374 = vsel %vm3038, %v3373, %v3372
        %v3375 = vperm.slane %v2189, %v3040
        %v3376 = vsel %vm3042, %v3375, %v3374
        %v3377 = vperm.slane %v2194, %v3044
        %v3378 = vsel %vm3046, %v3377, %v3376
        %v3379 = vperm.slane %v2199, %v3048
        %v3380 = vsel %vm3050, %v3379, %v3378
        %v3381 = vperm.slane %v2204, %v3052
        %v3382 = vsel %vm3054, %v3381, %v3380
        %v3383 = vperm.slane %v2209, %v3056
        %v3384 = vsel %vm3058, %v3383, %v3382
        %v3385 = vperm.slane %v2214, %v3030
        %v3386 = vperm.slane %v2219, %v3032
        %v3387 = vsel %vm3034, %v3386, %v3385
        %v3388 = vperm.slane %v2224, %v3036
        %v3389 = vsel %vm3038, %v3388, %v3387
        %v3390 = vperm.slane %v2229, %v3040
        %v3391 = vsel %vm3042, %v3390, %v3389
        %v3392 = vperm.slane %v2234, %v3044
        %v3393 = vsel %vm3046, %v3392, %v3391
        %v3394 = vperm.slane %v2239, %v3048
        %v3395 = vsel %vm3050, %v3394, %v3393
        %v3396 = vperm.slane %v2244, %v3052
        %v3397 = vsel %vm3054, %v3396, %v3395
        %v3398 = vperm.slane %v2249, %v3056
        %v3399 = vsel %vm3058, %v3398, %v3397
        %v3400 = vsel %vm1569, %v3309, %v3294
        %v3401 = vsel %vm1565, %v3324, %v3400
        %v3402 = vsel %vm1571, %v3339, %v3401
        %v3403 = vsel %vm1577, %v3354, %v3402
        %v3404 = vsel %vm1583, %v3369, %v3403
        %v3405 = vsel %vm1589, %v3384, %v3404
        %v3406 = vsel %vm3171, %v3399, %v3405
        %v3407 = vsel %vm3173, %v3406, 0
        %3409 = vmatpush.msra.mxu0 0.0
        %3410 = vmatpush.msra.mxu0 0.0
        %3411 = vmatpush.msra.mxu0 0.0
        %3412 = vmatpush.msra.mxu0 0.0
        %3413 = vmatpush.msra.mxu0 0.0
        %3414 = vmatpush.msra.mxu0 0.0
        %3415 = vmatpush.msra.mxu0 0.0
        %3416 = vmatpush.msra.mxu0 0.0
        %3417 = vmatpush.msra.mxu0 %v2264
        %3418 = vmatpush.msra.mxu0 %v2262
        %3419 = vmatpush.msra.mxu0 %v2260
        %3420 = vmatpush.msra.mxu0 %v2258
        %3421 = vmatpush.msra.mxu0 %v2256
        %3422 = vmatpush.msra.mxu0 %v2254
        %3423 = vmatpush.msra.mxu0 %v2252
        %3424 = vmatpush.msra.mxu0 %v2250
        %3425 = vmatmul.f32.gmra.mxu0 %v3407
        %v3426 = vpop.f32.mrf.mxu0
        %v3427 = vadd.f32 %v3194, %v3426
        %3428 = vdwg.mxu0
        %3429 = vmatpush.msra.mxu0 0.0
        %3430 = vmatpush.msra.mxu0 0.0
        %3431 = vmatpush.msra.mxu0 0.0
        %3432 = vmatpush.msra.mxu0 0.0
        %3433 = vmatpush.msra.mxu0 0.0
        %3434 = vmatpush.msra.mxu0 0.0
        %3435 = vmatpush.msra.mxu0 0.0
        %3436 = vmatpush.msra.mxu0 0.0
        %3437 = vmatpush.msra.mxu0 %v2265
        %3438 = vmatpush.msra.mxu0 %v2263
        %3439 = vmatpush.msra.mxu0 %v2261
        %3440 = vmatpush.msra.mxu0 %v2259
        %3441 = vmatpush.msra.mxu0 %v2257
        %3442 = vmatpush.msra.mxu0 %v2255
        %3443 = vmatpush.msra.mxu0 %v2253
        %3444 = vmatpush.msra.mxu0 %v2251
        %3445 = vmatmul.f32.gmra.mxu0 %v3407
        %v3446 = vpop.f32.mrf.mxu0
        %v3447 = vadd.f32 %v3214, %v3446
        %3448 = vdwg.mxu0
        %s3449 = scalar_lea.vmem %s975, 64
        %v3450 = vld [vmem:[%s3449] sm:$0xff]
        %v3451 = vld [vmem:[%s3449 + $0x8] sm:$0xff]
        %v3452 = vld [vmem:[%s3449 + $0x10] sm:$0xff]
        %v3453 = vld [vmem:[%s3449 + $0x18] sm:$0xff]
        %v3458 = vrot.slane %v3451, 7
        %v3459 = vrot.slane %v3452, 6
        %v3460 = vrot.slane %v3453, 5
        %v3461 = vsel %vm1563, %v3450, %v3458
        %v3462 = vsel %vm1565, %v3459, %v3460
        %v3463 = vsel %vm1567, %v3461, %v3462
        %v3464 = vsel %vm1569, %v3450, %v3458
        %v3465 = vsel %vm1571, %v3459, %v3460
        %v3466 = vsel %vm1573, %v3464, %v3465
        %v3467 = vrot.slane %v3466, 1
        %v3468 = vsel %vm1565, %v3450, %v3458
        %v3469 = vsel %vm1577, %v3459, %v3460
        %v3470 = vsel %vm1579, %v3468, %v3469
        %v3471 = vrot.slane %v3470, 2
        %v3472 = vsel %vm1571, %v3450, %v3458
        %v3473 = vsel %vm1583, %v3459, %v3460
        %v3474 = vsel %vm1585, %v3472, %v3473
        %v3475 = vrot.slane %v3474, 3
        %v3476 = vsel %vm1577, %v3450, %v3458
        %v3477 = vsel %vm1589, %v3459, %v3460
        %v3478 = vsel %vm1591, %v3476, %v3477
        %v3479 = vrot.slane %v3478, 4
        %v3480 = vsel %vm1583, %v3450, %v3458
        %v3481 = vsel %vm1595, %v3460, %v3459
        %v3482 = vsel %vm1597, %v3480, %v3481
        %v3483 = vrot.slane %v3482, 5
        %v3484 = vsel %vm1589, %v3450, %v3458
        %v3485 = vsel %vm1563, %v3459, %v3460
        %v3486 = vsel %vm1602, %v3485, %v3484
        %v3487 = vrot.slane %v3486, 6
        %v3488 = vsel %vm1595, %v3458, %v3450
        %v3489 = vsel %vm1569, %v3459, %v3460
        %v3490 = vsel %vm1607, %v3489, %v3488
        %v3491 = vrot.slane %v3490, 7
        %v3492 = vperm.slane %v3463, 0
        %v3493 = vperm.slane %v3463, 1
        %v3494 = vperm.slane %v3463, 2
        %v3495 = vperm.slane %v3463, 3
        %v3496 = vperm.slane %v3467, 0
        %v3497 = vperm.slane %v3467, 1
        %v3498 = vperm.slane %v3467, 2
        %v3499 = vperm.slane %v3467, 3
        %v3500 = vperm.slane %v3471, 0
        %v3501 = vperm.slane %v3471, 1
        %v3502 = vperm.slane %v3471, 2
        %v3503 = vperm.slane %v3471, 3
        %v3504 = vperm.slane %v3475, 0
        %v3505 = vperm.slane %v3475, 1
        %v3506 = vperm.slane %v3475, 2
        %v3507 = vperm.slane %v3475, 3
        %v3508 = vperm.slane %v3479, 0
        %v3509 = vperm.slane %v3479, 1
        %v3510 = vperm.slane %v3479, 2
        %v3511 = vperm.slane %v3479, 3
        %v3512 = vperm.slane %v3483, 0
        %v3513 = vperm.slane %v3483, 1
        %v3514 = vperm.slane %v3483, 2
        %v3515 = vperm.slane %v3483, 3
        %v3516 = vperm.slane %v3487, 0
        %v3517 = vperm.slane %v3487, 1
        %v3518 = vperm.slane %v3487, 2
        %v3519 = vperm.slane %v3487, 3
        %v3520 = vperm.slane %v3491, 0
        %v3521 = vperm.slane %v3491, 1
        %v3522 = vperm.slane %v3491, 2
        %v3523 = vperm.slane %v3491, 3
        %v3556 = vadd.f32 %v1520, %v3492
        %v3557 = vadd.f32 %v1521, %v3493
        %v3558 = vadd.f32 %v1522, %v3494
        %v3559 = vadd.f32 %v1523, %v3495
        %v3560 = vadd.f32 %v1524, %v3492
        %v3561 = vadd.f32 %v1525, %v3493
        %v3562 = vadd.f32 %v1526, %v3494
        %v3563 = vadd.f32 %v1527, %v3495
        %v3564 = vadd.f32 %v1528, %v3492
        %v3565 = vadd.f32 %v1529, %v3493
        %v3566 = vadd.f32 %v1530, %v3494
        %v3567 = vadd.f32 %v1531, %v3495
        %v3568 = vadd.f32 %v1532, %v3492
        %v3569 = vadd.f32 %v1533, %v3493
        %v3570 = vadd.f32 %v1534, %v3494
        %v3571 = vadd.f32 %v1535, %v3495
        %v3572 = vadd.f32 %v1536, %v3492
        %v3573 = vadd.f32 %v1537, %v3493
        %v3574 = vadd.f32 %v1538, %v3494
        %v3575 = vadd.f32 %v1539, %v3495
        %v3576 = vadd.f32 %v1540, %v3492
        %v3577 = vadd.f32 %v1541, %v3493
        %v3578 = vadd.f32 %v1542, %v3494
        %v3579 = vadd.f32 %v1543, %v3495
        %v3580 = vadd.f32 %v1544, %v3492
        %v3581 = vadd.f32 %v1545, %v3493
        %v3582 = vadd.f32 %v1546, %v3494
        %v3583 = vadd.f32 %v1547, %v3495
        %v3584 = vadd.f32 %v1548, %v3492
        %v3585 = vadd.f32 %v1549, %v3493
        %v3586 = vadd.f32 %v1550, %v3494
        %v3587 = vadd.f32 %v1551, %v3495
        %v3588 = vadd.f32 %v1520, %v3496
        %v3589 = vadd.f32 %v1521, %v3497
        %v3590 = vadd.f32 %v1522, %v3498
        %v3591 = vadd.f32 %v1523, %v3499
        %v3592 = vadd.f32 %v1524, %v3496
        %v3593 = vadd.f32 %v1525, %v3497
        %v3594 = vadd.f32 %v1526, %v3498
        %v3595 = vadd.f32 %v1527, %v3499
        %v3596 = vadd.f32 %v1528, %v3496
        %v3597 = vadd.f32 %v1529, %v3497
        %v3598 = vadd.f32 %v1530, %v3498
        %v3599 = vadd.f32 %v1531, %v3499
        %v3600 = vadd.f32 %v1532, %v3496
        %v3601 = vadd.f32 %v1533, %v3497
        %v3602 = vadd.f32 %v1534, %v3498
        %v3603 = vadd.f32 %v1535, %v3499
        %v3604 = vadd.f32 %v1536, %v3496
        %v3605 = vadd.f32 %v1537, %v3497
        %v3606 = vadd.f32 %v1538, %v3498
        %v3607 = vadd.f32 %v1539, %v3499
        %v3608 = vadd.f32 %v1540, %v3496
        %v3609 = vadd.f32 %v1541, %v3497
        %v3610 = vadd.f32 %v1542, %v3498
        %v3611 = vadd.f32 %v1543, %v3499
        %v3612 = vadd.f32 %v1544, %v3496
        %v3613 = vadd.f32 %v1545, %v3497
        %v3614 = vadd.f32 %v1546, %v3498
        %v3615 = vadd.f32 %v1547, %v3499
        %v3616 = vadd.f32 %v1548, %v3496
        %v3617 = vadd.f32 %v1549, %v3497
        %v3618 = vadd.f32 %v1550, %v3498
        %v3619 = vadd.f32 %v1551, %v3499
        %v3620 = vadd.f32 %v1520, %v3500
        %v3621 = vadd.f32 %v1521, %v3501
        %v3622 = vadd.f32 %v1522, %v3502
        %v3623 = vadd.f32 %v1523, %v3503
        %v3624 = vadd.f32 %v1524, %v3500
        %v3625 = vadd.f32 %v1525, %v3501
        %v3626 = vadd.f32 %v1526, %v3502
        %v3627 = vadd.f32 %v1527, %v3503
        %v3628 = vadd.f32 %v1528, %v3500
        %v3629 = vadd.f32 %v1529, %v3501
        %v3630 = vadd.f32 %v1530, %v3502
        %v3631 = vadd.f32 %v1531, %v3503
        %v3632 = vadd.f32 %v1532, %v3500
        %v3633 = vadd.f32 %v1533, %v3501
        %v3634 = vadd.f32 %v1534, %v3502
        %v3635 = vadd.f32 %v1535, %v3503
        %v3636 = vadd.f32 %v1536, %v3500
        %v3637 = vadd.f32 %v1537, %v3501
        %v3638 = vadd.f32 %v1538, %v3502
        %v3639 = vadd.f32 %v1539, %v3503
        %v3640 = vadd.f32 %v1540, %v3500
        %v3641 = vadd.f32 %v1541, %v3501
        %v3642 = vadd.f32 %v1542, %v3502
        %v3643 = vadd.f32 %v1543, %v3503
        %v3644 = vadd.f32 %v1544, %v3500
        %v3645 = vadd.f32 %v1545, %v3501
        %v3646 = vadd.f32 %v1546, %v3502
        %v3647 = vadd.f32 %v1547, %v3503
        %v3648 = vadd.f32 %v1548, %v3500
        %v3649 = vadd.f32 %v1549, %v3501
        %v3650 = vadd.f32 %v1550, %v3502
        %v3651 = vadd.f32 %v1551, %v3503
        %v3652 = vadd.f32 %v1520, %v3504
        %v3653 = vadd.f32 %v1521, %v3505
        %v3654 = vadd.f32 %v1522, %v3506
        %v3655 = vadd.f32 %v1523, %v3507
        %v3656 = vadd.f32 %v1524, %v3504
        %v3657 = vadd.f32 %v1525, %v3505
        %v3658 = vadd.f32 %v1526, %v3506
        %v3659 = vadd.f32 %v1527, %v3507
        %v3660 = vadd.f32 %v1528, %v3504
        %v3661 = vadd.f32 %v1529, %v3505
        %v3662 = vadd.f32 %v1530, %v3506
        %v3663 = vadd.f32 %v1531, %v3507
        %v3664 = vadd.f32 %v1532, %v3504
        %v3665 = vadd.f32 %v1533, %v3505
        %v3666 = vadd.f32 %v1534, %v3506
        %v3667 = vadd.f32 %v1535, %v3507
        %v3668 = vadd.f32 %v1536, %v3504
        %v3669 = vadd.f32 %v1537, %v3505
        %v3670 = vadd.f32 %v1538, %v3506
        %v3671 = vadd.f32 %v1539, %v3507
        %v3672 = vadd.f32 %v1540, %v3504
        %v3673 = vadd.f32 %v1541, %v3505
        %v3674 = vadd.f32 %v1542, %v3506
        %v3675 = vadd.f32 %v1543, %v3507
        %v3676 = vadd.f32 %v1544, %v3504
        %v3677 = vadd.f32 %v1545, %v3505
        %v3678 = vadd.f32 %v1546, %v3506
        %v3679 = vadd.f32 %v1547, %v3507
        %v3680 = vadd.f32 %v1548, %v3504
        %v3681 = vadd.f32 %v1549, %v3505
        %v3682 = vadd.f32 %v1550, %v3506
        %v3683 = vadd.f32 %v1551, %v3507
        %v3684 = vadd.f32 %v1520, %v3508
        %v3685 = vadd.f32 %v1521, %v3509
        %v3686 = vadd.f32 %v1522, %v3510
        %v3687 = vadd.f32 %v1523, %v3511
        %v3688 = vadd.f32 %v1524, %v3508
        %v3689 = vadd.f32 %v1525, %v3509
        %v3690 = vadd.f32 %v1526, %v3510
        %v3691 = vadd.f32 %v1527, %v3511
        %v3692 = vadd.f32 %v1528, %v3508
        %v3693 = vadd.f32 %v1529, %v3509
        %v3694 = vadd.f32 %v1530, %v3510
        %v3695 = vadd.f32 %v1531, %v3511
        %v3696 = vadd.f32 %v1532, %v3508
        %v3697 = vadd.f32 %v1533, %v3509
        %v3698 = vadd.f32 %v1534, %v3510
        %v3699 = vadd.f32 %v1535, %v3511
        %v3700 = vadd.f32 %v1536, %v3508
        %v3701 = vadd.f32 %v1537, %v3509
        %v3702 = vadd.f32 %v1538, %v3510
        %v3703 = vadd.f32 %v1539, %v3511
        %v3704 = vadd.f32 %v1540, %v3508
        %v3705 = vadd.f32 %v1541, %v3509
        %v3706 = vadd.f32 %v1542, %v3510
        %v3707 = vadd.f32 %v1543, %v3511
        %v3708 = vadd.f32 %v1544, %v3508
        %v3709 = vadd.f32 %v1545, %v3509
        %v3710 = vadd.f32 %v1546, %v3510
        %v3711 = vadd.f32 %v1547, %v3511
        %v3712 = vadd.f32 %v1548, %v3508
        %v3713 = vadd.f32 %v1549, %v3509
        %v3714 = vadd.f32 %v1550, %v3510
        %v3715 = vadd.f32 %v1551, %v3511
        %v3716 = vadd.f32 %v1520, %v3512
        %v3717 = vadd.f32 %v1521, %v3513
        %v3718 = vadd.f32 %v1522, %v3514
        %v3719 = vadd.f32 %v1523, %v3515
        %v3720 = vadd.f32 %v1524, %v3512
        %v3721 = vadd.f32 %v1525, %v3513
        %v3722 = vadd.f32 %v1526, %v3514
        %v3723 = vadd.f32 %v1527, %v3515
        %v3724 = vadd.f32 %v1528, %v3512
        %v3725 = vadd.f32 %v1529, %v3513
        %v3726 = vadd.f32 %v1530, %v3514
        %v3727 = vadd.f32 %v1531, %v3515
        %v3728 = vadd.f32 %v1532, %v3512
        %v3729 = vadd.f32 %v1533, %v3513
        %v3730 = vadd.f32 %v1534, %v3514
        %v3731 = vadd.f32 %v1535, %v3515
        %v3732 = vadd.f32 %v1536, %v3512
        %v3733 = vadd.f32 %v1537, %v3513
        %v3734 = vadd.f32 %v1538, %v3514
        %v3735 = vadd.f32 %v1539, %v3515
        %v3736 = vadd.f32 %v1540, %v3512
        %v3737 = vadd.f32 %v1541, %v3513
        %v3738 = vadd.f32 %v1542, %v3514
        %v3739 = vadd.f32 %v1543, %v3515
        %v3740 = vadd.f32 %v1544, %v3512
        %v3741 = vadd.f32 %v1545, %v3513
        %v3742 = vadd.f32 %v1546, %v3514
        %v3743 = vadd.f32 %v1547, %v3515
        %v3744 = vadd.f32 %v1548, %v3512
        %v3745 = vadd.f32 %v1549, %v3513
        %v3746 = vadd.f32 %v1550, %v3514
        %v3747 = vadd.f32 %v1551, %v3515
        %v3748 = vadd.f32 %v1520, %v3516
        %v3749 = vadd.f32 %v1521, %v3517
        %v3750 = vadd.f32 %v1522, %v3518
        %v3751 = vadd.f32 %v1523, %v3519
        %v3752 = vadd.f32 %v1524, %v3516
        %v3753 = vadd.f32 %v1525, %v3517
        %v3754 = vadd.f32 %v1526, %v3518
        %v3755 = vadd.f32 %v1527, %v3519
        %v3756 = vadd.f32 %v1528, %v3516
        %v3757 = vadd.f32 %v1529, %v3517
        %v3758 = vadd.f32 %v1530, %v3518
        %v3759 = vadd.f32 %v1531, %v3519
        %v3760 = vadd.f32 %v1532, %v3516
        %v3761 = vadd.f32 %v1533, %v3517
        %v3762 = vadd.f32 %v1534, %v3518
        %v3763 = vadd.f32 %v1535, %v3519
        %v3764 = vadd.f32 %v1536, %v3516
        %v3765 = vadd.f32 %v1537, %v3517
        %v3766 = vadd.f32 %v1538, %v3518
        %v3767 = vadd.f32 %v1539, %v3519
        %v3768 = vadd.f32 %v1540, %v3516
        %v3769 = vadd.f32 %v1541, %v3517
        %v3770 = vadd.f32 %v1542, %v3518
        %v3771 = vadd.f32 %v1543, %v3519
        %v3772 = vadd.f32 %v1544, %v3516
        %v3773 = vadd.f32 %v1545, %v3517
        %v3774 = vadd.f32 %v1546, %v3518
        %v3775 = vadd.f32 %v1547, %v3519
        %v3776 = vadd.f32 %v1548, %v3516
        %v3777 = vadd.f32 %v1549, %v3517
        %v3778 = vadd.f32 %v1550, %v3518
        %v3779 = vadd.f32 %v1551, %v3519
        %v3780 = vadd.f32 %v1520, %v3520
        %v3781 = vadd.f32 %v1521, %v3521
        %v3782 = vadd.f32 %v1522, %v3522
        %v3783 = vadd.f32 %v1523, %v3523
        %v3784 = vadd.f32 %v1524, %v3520
        %v3785 = vadd.f32 %v1525, %v3521
        %v3786 = vadd.f32 %v1526, %v3522
        %v3787 = vadd.f32 %v1527, %v3523
        %v3788 = vadd.f32 %v1528, %v3520
        %v3789 = vadd.f32 %v1529, %v3521
        %v3790 = vadd.f32 %v1530, %v3522
        %v3791 = vadd.f32 %v1531, %v3523
        %v3792 = vadd.f32 %v1532, %v3520
        %v3793 = vadd.f32 %v1533, %v3521
        %v3794 = vadd.f32 %v1534, %v3522
        %v3795 = vadd.f32 %v1535, %v3523
        %v3796 = vadd.f32 %v1536, %v3520
        %v3797 = vadd.f32 %v1537, %v3521
        %v3798 = vadd.f32 %v1538, %v3522
        %v3799 = vadd.f32 %v1539, %v3523
        %v3800 = vadd.f32 %v1540, %v3520
        %v3801 = vadd.f32 %v1541, %v3521
        %v3802 = vadd.f32 %v1542, %v3522
        %v3803 = vadd.f32 %v1543, %v3523
        %v3804 = vadd.f32 %v1544, %v3520
        %v3805 = vadd.f32 %v1545, %v3521
        %v3806 = vadd.f32 %v1546, %v3522
        %v3807 = vadd.f32 %v1547, %v3523
        %v3808 = vadd.f32 %v1548, %v3520
        %v3809 = vadd.f32 %v1549, %v3521
        %v3810 = vadd.f32 %v1550, %v3522
        %v3811 = vadd.f32 %v1551, %v3523
        %v3812 = vmax.f32 %v3556, %v3557
        %v3813 = vmax.f32 %v3812, %v3558
        %v3814 = vmax.f32 %v3813, %v3559
        %3815 = vmax.xlane.f32.xlu0 %v3814
        %v3816 = vpop.xlane.xlu0 %3815
        %v3817 = vmax.f32 %v3560, %v3561
        %v3818 = vmax.f32 %v3817, %v3562
        %v3819 = vmax.f32 %v3818, %v3563
        %3820 = vmax.xlane.f32.xlu0 %v3819
        %v3821 = vpop.xlane.xlu0 %3820
        %v3822 = vmax.f32 %v3564, %v3565
        %v3823 = vmax.f32 %v3822, %v3566
        %v3824 = vmax.f32 %v3823, %v3567
        %3825 = vmax.xlane.f32.xlu0 %v3824
        %v3826 = vpop.xlane.xlu0 %3825
        %v3827 = vmax.f32 %v3568, %v3569
        %v3828 = vmax.f32 %v3827, %v3570
        %v3829 = vmax.f32 %v3828, %v3571
        %3830 = vmax.xlane.f32.xlu0 %v3829
        %v3831 = vpop.xlane.xlu0 %3830
        %v3832 = vmax.f32 %v3572, %v3573
        %v3833 = vmax.f32 %v3832, %v3574
        %v3834 = vmax.f32 %v3833, %v3575
        %3835 = vmax.xlane.f32.xlu0 %v3834
        %v3836 = vpop.xlane.xlu0 %3835
        %v3837 = vmax.f32 %v3576, %v3577
        %v3838 = vmax.f32 %v3837, %v3578
        %v3839 = vmax.f32 %v3838, %v3579
        %3840 = vmax.xlane.f32.xlu0 %v3839
        %v3841 = vpop.xlane.xlu0 %3840
        %v3842 = vmax.f32 %v3580, %v3581
        %v3843 = vmax.f32 %v3842, %v3582
        %v3844 = vmax.f32 %v3843, %v3583
        %3845 = vmax.xlane.f32.xlu0 %v3844
        %v3846 = vpop.xlane.xlu0 %3845
        %v3847 = vmax.f32 %v3584, %v3585
        %v3848 = vmax.f32 %v3847, %v3586
        %v3849 = vmax.f32 %v3848, %v3587
        %3850 = vmax.xlane.f32.xlu0 %v3849
        %v3851 = vpop.xlane.xlu0 %3850
        %v3852 = vmax.f32 %v3588, %v3589
        %v3853 = vmax.f32 %v3852, %v3590
        %v3854 = vmax.f32 %v3853, %v3591
        %3855 = vmax.xlane.f32.xlu0 %v3854
        %v3856 = vpop.xlane.xlu0 %3855
        %v3857 = vmax.f32 %v3592, %v3593
        %v3858 = vmax.f32 %v3857, %v3594
        %v3859 = vmax.f32 %v3858, %v3595
        %3860 = vmax.xlane.f32.xlu0 %v3859
        %v3861 = vpop.xlane.xlu0 %3860
        %v3862 = vmax.f32 %v3596, %v3597
        %v3863 = vmax.f32 %v3862, %v3598
        %v3864 = vmax.f32 %v3863, %v3599
        %3865 = vmax.xlane.f32.xlu0 %v3864
        %v3866 = vpop.xlane.xlu0 %3865
        %v3867 = vmax.f32 %v3600, %v3601
        %v3868 = vmax.f32 %v3867, %v3602
        %v3869 = vmax.f32 %v3868, %v3603
        %3870 = vmax.xlane.f32.xlu0 %v3869
        %v3871 = vpop.xlane.xlu0 %3870
        %v3872 = vmax.f32 %v3604, %v3605
        %v3873 = vmax.f32 %v3872, %v3606
        %v3874 = vmax.f32 %v3873, %v3607
        %3875 = vmax.xlane.f32.xlu0 %v3874
        %v3876 = vpop.xlane.xlu0 %3875
        %v3877 = vmax.f32 %v3608, %v3609
        %v3878 = vmax.f32 %v3877, %v3610
        %v3879 = vmax.f32 %v3878, %v3611
        %3880 = vmax.xlane.f32.xlu0 %v3879
        %v3881 = vpop.xlane.xlu0 %3880
        %v3882 = vmax.f32 %v3612, %v3613
        %v3883 = vmax.f32 %v3882, %v3614
        %v3884 = vmax.f32 %v3883, %v3615
        %3885 = vmax.xlane.f32.xlu0 %v3884
        %v3886 = vpop.xlane.xlu0 %3885
        %v3887 = vmax.f32 %v3616, %v3617
        %v3888 = vmax.f32 %v3887, %v3618
        %v3889 = vmax.f32 %v3888, %v3619
        %3890 = vmax.xlane.f32.xlu0 %v3889
        %v3891 = vpop.xlane.xlu0 %3890
        %v3892 = vmax.f32 %v3620, %v3621
        %v3893 = vmax.f32 %v3892, %v3622
        %v3894 = vmax.f32 %v3893, %v3623
        %3895 = vmax.xlane.f32.xlu0 %v3894
        %v3896 = vpop.xlane.xlu0 %3895
        %v3897 = vmax.f32 %v3624, %v3625
        %v3898 = vmax.f32 %v3897, %v3626
        %v3899 = vmax.f32 %v3898, %v3627
        %3900 = vmax.xlane.f32.xlu0 %v3899
        %v3901 = vpop.xlane.xlu0 %3900
        %v3902 = vmax.f32 %v3628, %v3629
        %v3903 = vmax.f32 %v3902, %v3630
        %v3904 = vmax.f32 %v3903, %v3631
        %3905 = vmax.xlane.f32.xlu0 %v3904
        %v3906 = vpop.xlane.xlu0 %3905
        %v3907 = vmax.f32 %v3632, %v3633
        %v3908 = vmax.f32 %v3907, %v3634
        %v3909 = vmax.f32 %v3908, %v3635
        %3910 = vmax.xlane.f32.xlu0 %v3909
        %v3911 = vpop.xlane.xlu0 %3910
        %v3912 = vmax.f32 %v3636, %v3637
        %v3913 = vmax.f32 %v3912, %v3638
        %v3914 = vmax.f32 %v3913, %v3639
        %3915 = vmax.xlane.f32.xlu0 %v3914
        %v3916 = vpop.xlane.xlu0 %3915
        %v3917 = vmax.f32 %v3640, %v3641
        %v3918 = vmax.f32 %v3917, %v3642
        %v3919 = vmax.f32 %v3918, %v3643
        %3920 = vmax.xlane.f32.xlu0 %v3919
        %v3921 = vpop.xlane.xlu0 %3920
        %v3922 = vmax.f32 %v3644, %v3645
        %v3923 = vmax.f32 %v3922, %v3646
        %v3924 = vmax.f32 %v3923, %v3647
        %3925 = vmax.xlane.f32.xlu0 %v3924
        %v3926 = vpop.xlane.xlu0 %3925
        %v3927 = vmax.f32 %v3648, %v3649
        %v3928 = vmax.f32 %v3927, %v3650
        %v3929 = vmax.f32 %v3928, %v3651
        %3930 = vmax.xlane.f32.xlu0 %v3929
        %v3931 = vpop.xlane.xlu0 %3930
        %v3932 = vmax.f32 %v3652, %v3653
        %v3933 = vmax.f32 %v3932, %v3654
        %v3934 = vmax.f32 %v3933, %v3655
        %3935 = vmax.xlane.f32.xlu0 %v3934
        %v3936 = vpop.xlane.xlu0 %3935
        %v3937 = vmax.f32 %v3656, %v3657
        %v3938 = vmax.f32 %v3937, %v3658
        %v3939 = vmax.f32 %v3938, %v3659
        %3940 = vmax.xlane.f32.xlu0 %v3939
        %v3941 = vpop.xlane.xlu0 %3940
        %v3942 = vmax.f32 %v3660, %v3661
        %v3943 = vmax.f32 %v3942, %v3662
        %v3944 = vmax.f32 %v3943, %v3663
        %3945 = vmax.xlane.f32.xlu0 %v3944
        %v3946 = vpop.xlane.xlu0 %3945
        %v3947 = vmax.f32 %v3664, %v3665
        %v3948 = vmax.f32 %v3947, %v3666
        %v3949 = vmax.f32 %v3948, %v3667
        %3950 = vmax.xlane.f32.xlu0 %v3949
        %v3951 = vpop.xlane.xlu0 %3950
        %v3952 = vmax.f32 %v3668, %v3669
        %v3953 = vmax.f32 %v3952, %v3670
        %v3954 = vmax.f32 %v3953, %v3671
        %3955 = vmax.xlane.f32.xlu0 %v3954
        %v3956 = vpop.xlane.xlu0 %3955
        %v3957 = vmax.f32 %v3672, %v3673
        %v3958 = vmax.f32 %v3957, %v3674
        %v3959 = vmax.f32 %v3958, %v3675
        %3960 = vmax.xlane.f32.xlu0 %v3959
        %v3961 = vpop.xlane.xlu0 %3960
        %v3962 = vmax.f32 %v3676, %v3677
        %v3963 = vmax.f32 %v3962, %v3678
        %v3964 = vmax.f32 %v3963, %v3679
        %3965 = vmax.xlane.f32.xlu0 %v3964
        %v3966 = vpop.xlane.xlu0 %3965
        %v3967 = vmax.f32 %v3680, %v3681
        %v3968 = vmax.f32 %v3967, %v3682
        %v3969 = vmax.f32 %v3968, %v3683
        %3970 = vmax.xlane.f32.xlu0 %v3969
        %v3971 = vpop.xlane.xlu0 %3970
        %v3972 = vmax.f32 %v3684, %v3685
        %v3973 = vmax.f32 %v3972, %v3686
        %v3974 = vmax.f32 %v3973, %v3687
        %3975 = vmax.xlane.f32.xlu0 %v3974
        %v3976 = vpop.xlane.xlu0 %3975
        %v3977 = vmax.f32 %v3688, %v3689
        %v3978 = vmax.f32 %v3977, %v3690
        %v3979 = vmax.f32 %v3978, %v3691
        %3980 = vmax.xlane.f32.xlu0 %v3979
        %v3981 = vpop.xlane.xlu0 %3980
        %v3982 = vmax.f32 %v3692, %v3693
        %v3983 = vmax.f32 %v3982, %v3694
        %v3984 = vmax.f32 %v3983, %v3695
        %3985 = vmax.xlane.f32.xlu0 %v3984
        %v3986 = vpop.xlane.xlu0 %3985
        %v3987 = vmax.f32 %v3696, %v3697
        %v3988 = vmax.f32 %v3987, %v3698
        %v3989 = vmax.f32 %v3988, %v3699
        %3990 = vmax.xlane.f32.xlu0 %v3989
        %v3991 = vpop.xlane.xlu0 %3990
        %v3992 = vmax.f32 %v3700, %v3701
        %v3993 = vmax.f32 %v3992, %v3702
        %v3994 = vmax.f32 %v3993, %v3703
        %3995 = vmax.xlane.f32.xlu0 %v3994
        %v3996 = vpop.xlane.xlu0 %3995
        %v3997 = vmax.f32 %v3704, %v3705
        %v3998 = vmax.f32 %v3997, %v3706
        %v3999 = vmax.f32 %v3998, %v3707
        %4000 = vmax.xlane.f32.xlu0 %v3999
        %v4001 = vpop.xlane.xlu0 %4000
        %v4002 = vmax.f32 %v3708, %v3709
        %v4003 = vmax.f32 %v4002, %v3710
        %v4004 = vmax.f32 %v4003, %v3711
        %4005 = vmax.xlane.f32.xlu0 %v4004
        %v4006 = vpop.xlane.xlu0 %4005
        %v4007 = vmax.f32 %v3712, %v3713
        %v4008 = vmax.f32 %v4007, %v3714
        %v4009 = vmax.f32 %v4008, %v3715
        %4010 = vmax.xlane.f32.xlu0 %v4009
        %v4011 = vpop.xlane.xlu0 %4010
        %v4012 = vmax.f32 %v3716, %v3717
        %v4013 = vmax.f32 %v4012, %v3718
        %v4014 = vmax.f32 %v4013, %v3719
        %4015 = vmax.xlane.f32.xlu0 %v4014
        %v4016 = vpop.xlane.xlu0 %4015
        %v4017 = vmax.f32 %v3720, %v3721
        %v4018 = vmax.f32 %v4017, %v3722
        %v4019 = vmax.f32 %v4018, %v3723
        %4020 = vmax.xlane.f32.xlu0 %v4019
        %v4021 = vpop.xlane.xlu0 %4020
        %v4022 = vmax.f32 %v3724, %v3725
        %v4023 = vmax.f32 %v4022, %v3726
        %v4024 = vmax.f32 %v4023, %v3727
        %4025 = vmax.xlane.f32.xlu0 %v4024
        %v4026 = vpop.xlane.xlu0 %4025
        %v4027 = vmax.f32 %v3728, %v3729
        %v4028 = vmax.f32 %v4027, %v3730
        %v4029 = vmax.f32 %v4028, %v3731
        %4030 = vmax.xlane.f32.xlu0 %v4029
        %v4031 = vpop.xlane.xlu0 %4030
        %v4032 = vmax.f32 %v3732, %v3733
        %v4033 = vmax.f32 %v4032, %v3734
        %v4034 = vmax.f32 %v4033, %v3735
        %4035 = vmax.xlane.f32.xlu0 %v4034
        %v4036 = vpop.xlane.xlu0 %4035
        %v4037 = vmax.f32 %v3736, %v3737
        %v4038 = vmax.f32 %v4037, %v3738
        %v4039 = vmax.f32 %v4038, %v3739
        %4040 = vmax.xlane.f32.xlu0 %v4039
        %v4041 = vpop.xlane.xlu0 %4040
        %v4042 = vmax.f32 %v3740, %v3741
        %v4043 = vmax.f32 %v4042, %v3742
        %v4044 = vmax.f32 %v4043, %v3743
        %4045 = vmax.xlane.f32.xlu0 %v4044
        %v4046 = vpop.xlane.xlu0 %4045
        %v4047 = vmax.f32 %v3744, %v3745
        %v4048 = vmax.f32 %v4047, %v3746
        %v4049 = vmax.f32 %v4048, %v3747
        %4050 = vmax.xlane.f32.xlu0 %v4049
        %v4051 = vpop.xlane.xlu0 %4050
        %v4052 = vmax.f32 %v3748, %v3749
        %v4053 = vmax.f32 %v4052, %v3750
        %v4054 = vmax.f32 %v4053, %v3751
        %4055 = vmax.xlane.f32.xlu0 %v4054
        %v4056 = vpop.xlane.xlu0 %4055
        %v4057 = vmax.f32 %v3752, %v3753
        %v4058 = vmax.f32 %v4057, %v3754
        %v4059 = vmax.f32 %v4058, %v3755
        %4060 = vmax.xlane.f32.xlu0 %v4059
        %v4061 = vpop.xlane.xlu0 %4060
        %v4062 = vmax.f32 %v3756, %v3757
        %v4063 = vmax.f32 %v4062, %v3758
        %v4064 = vmax.f32 %v4063, %v3759
        %4065 = vmax.xlane.f32.xlu0 %v4064
        %v4066 = vpop.xlane.xlu0 %4065
        %v4067 = vmax.f32 %v3760, %v3761
        %v4068 = vmax.f32 %v4067, %v3762
        %v4069 = vmax.f32 %v4068, %v3763
        %4070 = vmax.xlane.f32.xlu0 %v4069
        %v4071 = vpop.xlane.xlu0 %4070
        %v4072 = vmax.f32 %v3764, %v3765
        %v4073 = vmax.f32 %v4072, %v3766
        %v4074 = vmax.f32 %v4073, %v3767
        %4075 = vmax.xlane.f32.xlu0 %v4074
        %v4076 = vpop.xlane.xlu0 %4075
        %v4077 = vmax.f32 %v3768, %v3769
        %v4078 = vmax.f32 %v4077, %v3770
        %v4079 = vmax.f32 %v4078, %v3771
        %4080 = vmax.xlane.f32.xlu0 %v4079
        %v4081 = vpop.xlane.xlu0 %4080
        %v4082 = vmax.f32 %v3772, %v3773
        %v4083 = vmax.f32 %v4082, %v3774
        %v4084 = vmax.f32 %v4083, %v3775
        %4085 = vmax.xlane.f32.xlu0 %v4084
        %v4086 = vpop.xlane.xlu0 %4085
        %v4087 = vmax.f32 %v3776, %v3777
        %v4088 = vmax.f32 %v4087, %v3778
        %v4089 = vmax.f32 %v4088, %v3779
        %4090 = vmax.xlane.f32.xlu0 %v4089
        %v4091 = vpop.xlane.xlu0 %4090
        %v4092 = vmax.f32 %v3780, %v3781
        %v4093 = vmax.f32 %v4092, %v3782
        %v4094 = vmax.f32 %v4093, %v3783
        %4095 = vmax.xlane.f32.xlu0 %v4094
        %v4096 = vpop.xlane.xlu0 %4095
        %v4097 = vmax.f32 %v3784, %v3785
        %v4098 = vmax.f32 %v4097, %v3786
        %v4099 = vmax.f32 %v4098, %v3787
        %4100 = vmax.xlane.f32.xlu0 %v4099
        %v4101 = vpop.xlane.xlu0 %4100
        %v4102 = vmax.f32 %v3788, %v3789
        %v4103 = vmax.f32 %v4102, %v3790
        %v4104 = vmax.f32 %v4103, %v3791
        %4105 = vmax.xlane.f32.xlu0 %v4104
        %v4106 = vpop.xlane.xlu0 %4105
        %v4107 = vmax.f32 %v3792, %v3793
        %v4108 = vmax.f32 %v4107, %v3794
        %v4109 = vmax.f32 %v4108, %v3795
        %4110 = vmax.xlane.f32.xlu0 %v4109
        %v4111 = vpop.xlane.xlu0 %4110
        %v4112 = vmax.f32 %v3796, %v3797
        %v4113 = vmax.f32 %v4112, %v3798
        %v4114 = vmax.f32 %v4113, %v3799
        %4115 = vmax.xlane.f32.xlu0 %v4114
        %v4116 = vpop.xlane.xlu0 %4115
        %v4117 = vmax.f32 %v3800, %v3801
        %v4118 = vmax.f32 %v4117, %v3802
        %v4119 = vmax.f32 %v4118, %v3803
        %4120 = vmax.xlane.f32.xlu0 %v4119
        %v4121 = vpop.xlane.xlu0 %4120
        %v4122 = vmax.f32 %v3804, %v3805
        %v4123 = vmax.f32 %v4122, %v3806
        %v4124 = vmax.f32 %v4123, %v3807
        %4125 = vmax.xlane.f32.xlu0 %v4124
        %v4126 = vpop.xlane.xlu0 %4125
        %v4127 = vmax.f32 %v3808, %v3809
        %v4128 = vmax.f32 %v4127, %v3810
        %v4129 = vmax.f32 %v4128, %v3811
        %4130 = vmax.xlane.f32.xlu0 %v4129
        %v4131 = vpop.xlane.xlu0 %4130
        %v4132 = vld [vmem:[%s17 + $0x100] sm:$0xff]
        %v4133 = vld [vmem:[%s17 + $0x108] sm:$0xff]
        %v4134 = vld [vmem:[%s17 + $0x110] sm:$0xff]
        %v4135 = vld [vmem:[%s17 + $0x118] sm:$0xff]
        %v4136 = vld [vmem:[%s17 + $0x120] sm:$0xff]
        %v4137 = vld [vmem:[%s17 + $0x128] sm:$0xff]
        %v4138 = vld [vmem:[%s17 + $0x130] sm:$0xff]
        %v4139 = vld [vmem:[%s17 + $0x138] sm:$0xff]
        %v4140 = vld [vmem:[%s17 + $0x140] sm:$0xff]
        %v4141 = vld [vmem:[%s17 + $0x148] sm:$0xff]
        %v4142 = vld [vmem:[%s17 + $0x150] sm:$0xff]
        %v4143 = vld [vmem:[%s17 + $0x158] sm:$0xff]
        %v4144 = vld [vmem:[%s17 + $0x160] sm:$0xff]
        %v4145 = vld [vmem:[%s17 + $0x168] sm:$0xff]
        %v4146 = vld [vmem:[%s17 + $0x170] sm:$0xff]
        %v4147 = vld [vmem:[%s17 + $0x178] sm:$0xff]
        %v4212 = vperm.slane %v3816, %v3030
        %v4213 = vperm.slane %v3821, %v3032
        %v4214 = vsel %vm3034, %v4213, %v4212
        %v4215 = vperm.slane %v3826, %v3036
        %v4216 = vsel %vm3038, %v4215, %v4214
        %v4217 = vperm.slane %v3831, %v3040
        %v4218 = vsel %vm3042, %v4217, %v4216
        %v4219 = vperm.slane %v3836, %v3044
        %v4220 = vsel %vm3046, %v4219, %v4218
        %v4221 = vperm.slane %v3841, %v3048
        %v4222 = vsel %vm3050, %v4221, %v4220
        %v4223 = vperm.slane %v3846, %v3052
        %v4224 = vsel %vm3054, %v4223, %v4222
        %v4225 = vperm.slane %v3851, %v3056
        %v4226 = vsel %vm3058, %v4225, %v4224
        %v4227 = vperm.slane %v3856, %v3030
        %v4228 = vperm.slane %v3861, %v3032
        %v4229 = vsel %vm3034, %v4228, %v4227
        %v4230 = vperm.slane %v3866, %v3036
        %v4231 = vsel %vm3038, %v4230, %v4229
        %v4232 = vperm.slane %v3871, %v3040
        %v4233 = vsel %vm3042, %v4232, %v4231
        %v4234 = vperm.slane %v3876, %v3044
        %v4235 = vsel %vm3046, %v4234, %v4233
        %v4236 = vperm.slane %v3881, %v3048
        %v4237 = vsel %vm3050, %v4236, %v4235
        %v4238 = vperm.slane %v3886, %v3052
        %v4239 = vsel %vm3054, %v4238, %v4237
        %v4240 = vperm.slane %v3891, %v3056
        %v4241 = vsel %vm3058, %v4240, %v4239
        %v4242 = vperm.slane %v3896, %v3030
        %v4243 = vperm.slane %v3901, %v3032
        %v4244 = vsel %vm3034, %v4243, %v4242
        %v4245 = vperm.slane %v3906, %v3036
        %v4246 = vsel %vm3038, %v4245, %v4244
        %v4247 = vperm.slane %v3911, %v3040
        %v4248 = vsel %vm3042, %v4247, %v4246
        %v4249 = vperm.slane %v3916, %v3044
        %v4250 = vsel %vm3046, %v4249, %v4248
        %v4251 = vperm.slane %v3921, %v3048
        %v4252 = vsel %vm3050, %v4251, %v4250
        %v4253 = vperm.slane %v3926, %v3052
        %v4254 = vsel %vm3054, %v4253, %v4252
        %v4255 = vperm.slane %v3931, %v3056
        %v4256 = vsel %vm3058, %v4255, %v4254
        %v4257 = vperm.slane %v3936, %v3030
        %v4258 = vperm.slane %v3941, %v3032
        %v4259 = vsel %vm3034, %v4258, %v4257
        %v4260 = vperm.slane %v3946, %v3036
        %v4261 = vsel %vm3038, %v4260, %v4259
        %v4262 = vperm.slane %v3951, %v3040
        %v4263 = vsel %vm3042, %v4262, %v4261
        %v4264 = vperm.slane %v3956, %v3044
        %v4265 = vsel %vm3046, %v4264, %v4263
        %v4266 = vperm.slane %v3961, %v3048
        %v4267 = vsel %vm3050, %v4266, %v4265
        %v4268 = vperm.slane %v3966, %v3052
        %v4269 = vsel %vm3054, %v4268, %v4267
        %v4270 = vperm.slane %v3971, %v3056
        %v4271 = vsel %vm3058, %v4270, %v4269
        %v4272 = vperm.slane %v3976, %v3030
        %v4273 = vperm.slane %v3981, %v3032
        %v4274 = vsel %vm3034, %v4273, %v4272
        %v4275 = vperm.slane %v3986, %v3036
        %v4276 = vsel %vm3038, %v4275, %v4274
        %v4277 = vperm.slane %v3991, %v3040
        %v4278 = vsel %vm3042, %v4277, %v4276
        %v4279 = vperm.slane %v3996, %v3044
        %v4280 = vsel %vm3046, %v4279, %v4278
        %v4281 = vperm.slane %v4001, %v3048
        %v4282 = vsel %vm3050, %v4281, %v4280
        %v4283 = vperm.slane %v4006, %v3052
        %v4284 = vsel %vm3054, %v4283, %v4282
        %v4285 = vperm.slane %v4011, %v3056
        %v4286 = vsel %vm3058, %v4285, %v4284
        %v4287 = vperm.slane %v4016, %v3030
        %v4288 = vperm.slane %v4021, %v3032
        %v4289 = vsel %vm3034, %v4288, %v4287
        %v4290 = vperm.slane %v4026, %v3036
        %v4291 = vsel %vm3038, %v4290, %v4289
        %v4292 = vperm.slane %v4031, %v3040
        %v4293 = vsel %vm3042, %v4292, %v4291
        %v4294 = vperm.slane %v4036, %v3044
        %v4295 = vsel %vm3046, %v4294, %v4293
        %v4296 = vperm.slane %v4041, %v3048
        %v4297 = vsel %vm3050, %v4296, %v4295
        %v4298 = vperm.slane %v4046, %v3052
        %v4299 = vsel %vm3054, %v4298, %v4297
        %v4300 = vperm.slane %v4051, %v3056
        %v4301 = vsel %vm3058, %v4300, %v4299
        %v4302 = vperm.slane %v4056, %v3030
        %v4303 = vperm.slane %v4061, %v3032
        %v4304 = vsel %vm3034, %v4303, %v4302
        %v4305 = vperm.slane %v4066, %v3036
        %v4306 = vsel %vm3038, %v4305, %v4304
        %v4307 = vperm.slane %v4071, %v3040
        %v4308 = vsel %vm3042, %v4307, %v4306
        %v4309 = vperm.slane %v4076, %v3044
        %v4310 = vsel %vm3046, %v4309, %v4308
        %v4311 = vperm.slane %v4081, %v3048
        %v4312 = vsel %vm3050, %v4311, %v4310
        %v4313 = vperm.slane %v4086, %v3052
        %v4314 = vsel %vm3054, %v4313, %v4312
        %v4315 = vperm.slane %v4091, %v3056
        %v4316 = vsel %vm3058, %v4315, %v4314
        %v4317 = vperm.slane %v4096, %v3030
        %v4318 = vperm.slane %v4101, %v3032
        %v4319 = vsel %vm3034, %v4318, %v4317
        %v4320 = vperm.slane %v4106, %v3036
        %v4321 = vsel %vm3038, %v4320, %v4319
        %v4322 = vperm.slane %v4111, %v3040
        %v4323 = vsel %vm3042, %v4322, %v4321
        %v4324 = vperm.slane %v4116, %v3044
        %v4325 = vsel %vm3046, %v4324, %v4323
        %v4326 = vperm.slane %v4121, %v3048
        %v4327 = vsel %vm3050, %v4326, %v4325
        %v4328 = vperm.slane %v4126, %v3052
        %v4329 = vsel %vm3054, %v4328, %v4327
        %v4330 = vperm.slane %v4131, %v3056
        %v4331 = vsel %vm3058, %v4330, %v4329
        %v4332 = vsel %vm1569, %v4241, %v4226
        %v4333 = vsel %vm1565, %v4256, %v4332
        %v4334 = vsel %vm1571, %v4271, %v4333
        %v4335 = vsel %vm1577, %v4286, %v4334
        %v4336 = vsel %vm1583, %v4301, %v4335
        %v4337 = vsel %vm1589, %v4316, %v4336
        %v4338 = vsel %vm3171, %v4331, %v4337
        %v4339 = vsel %vm3173, %v4338, 0
        %4341 = vmatpush.msra.mxu0 0.0
        %4342 = vmatpush.msra.mxu0 0.0
        %4343 = vmatpush.msra.mxu0 0.0
        %4344 = vmatpush.msra.mxu0 0.0
        %4345 = vmatpush.msra.mxu0 0.0
        %4346 = vmatpush.msra.mxu0 0.0
        %4347 = vmatpush.msra.mxu0 0.0
        %4348 = vmatpush.msra.mxu0 0.0
        %4349 = vmatpush.msra.mxu0 %v4146
        %4350 = vmatpush.msra.mxu0 %v4144
        %4351 = vmatpush.msra.mxu0 %v4142
        %4352 = vmatpush.msra.mxu0 %v4140
        %4353 = vmatpush.msra.mxu0 %v4138
        %4354 = vmatpush.msra.mxu0 %v4136
        %4355 = vmatpush.msra.mxu0 %v4134
        %4356 = vmatpush.msra.mxu0 %v4132
        %4357 = vmatmul.f32.gmra.mxu0 %v4339
        %v4358 = vpop.f32.mrf.mxu0
        %v4359 = vadd.f32 0.0, %v4358
        %4360 = vdwg.mxu0
        %4361 = vmatpush.msra.mxu0 0.0
        %4362 = vmatpush.msra.mxu0 0.0
        %4363 = vmatpush.msra.mxu0 0.0
        %4364 = vmatpush.msra.mxu0 0.0
        %4365 = vmatpush.msra.mxu0 0.0
        %4366 = vmatpush.msra.mxu0 0.0
        %4367 = vmatpush.msra.mxu0 0.0
        %4368 = vmatpush.msra.mxu0 0.0
        %4369 = vmatpush.msra.mxu0 %v4147
        %4370 = vmatpush.msra.mxu0 %v4145
        %4371 = vmatpush.msra.mxu0 %v4143
        %4372 = vmatpush.msra.mxu0 %v4141
        %4373 = vmatpush.msra.mxu0 %v4139
        %4374 = vmatpush.msra.mxu0 %v4137
        %4375 = vmatpush.msra.mxu0 %v4135
        %4376 = vmatpush.msra.mxu0 %v4133
        %4377 = vmatmul.f32.gmra.mxu0 %v4339
        %v4378 = vpop.f32.mrf.mxu0
        %v4379 = vadd.f32 0.0, %v4378
        %4380 = vdwg.mxu0
        %v4381 = vadd.f32 %v3427, %v4359
        %v4382 = vadd.f32 %v3447, %v4379
        %s4383 = scalar_lea.vmem %s975, 96
        %v4384 = vld [vmem:[%s4383] sm:$0xff]
        %v4385 = vld [vmem:[%s4383 + $0x8] sm:$0xff]
        %v4386 = vld [vmem:[%s4383 + $0x10] sm:$0xff]
        %v4387 = vld [vmem:[%s4383 + $0x18] sm:$0xff]
        %v4392 = vrot.slane %v4385, 7
        %v4393 = vrot.slane %v4386, 6
        %v4394 = vrot.slane %v4387, 5
        %v4395 = vsel %vm1563, %v4384, %v4392
        %v4396 = vsel %vm1565, %v4393, %v4394
        %v4397 = vsel %vm1567, %v4395, %v4396
        %v4398 = vsel %vm1569, %v4384, %v4392
        %v4399 = vsel %vm1571, %v4393, %v4394
        %v4400 = vsel %vm1573, %v4398, %v4399
        %v4401 = vrot.slane %v4400, 1
        %v4402 = vsel %vm1565, %v4384, %v4392
        %v4403 = vsel %vm1577, %v4393, %v4394
        %v4404 = vsel %vm1579, %v4402, %v4403
        %v4405 = vrot.slane %v4404, 2
        %v4406 = vsel %vm1571, %v4384, %v4392
        %v4407 = vsel %vm1583, %v4393, %v4394
        %v4408 = vsel %vm1585, %v4406, %v4407
        %v4409 = vrot.slane %v4408, 3
        %v4410 = vsel %vm1577, %v4384, %v4392
        %v4411 = vsel %vm1589, %v4393, %v4394
        %v4412 = vsel %vm1591, %v4410, %v4411
        %v4413 = vrot.slane %v4412, 4
        %v4414 = vsel %vm1583, %v4384, %v4392
        %v4415 = vsel %vm1595, %v4394, %v4393
        %v4416 = vsel %vm1597, %v4414, %v4415
        %v4417 = vrot.slane %v4416, 5
        %v4418 = vsel %vm1589, %v4384, %v4392
        %v4419 = vsel %vm1563, %v4393, %v4394
        %v4420 = vsel %vm1602, %v4419, %v4418
        %v4421 = vrot.slane %v4420, 6
        %v4422 = vsel %vm1595, %v4392, %v4384
        %v4423 = vsel %vm1569, %v4393, %v4394
        %v4424 = vsel %vm1607, %v4423, %v4422
        %v4425 = vrot.slane %v4424, 7
        %v4426 = vperm.slane %v4397, 0
        %v4427 = vperm.slane %v4397, 1
        %v4428 = vperm.slane %v4397, 2
        %v4429 = vperm.slane %v4397, 3
        %v4430 = vperm.slane %v4401, 0
        %v4431 = vperm.slane %v4401, 1
        %v4432 = vperm.slane %v4401, 2
        %v4433 = vperm.slane %v4401, 3
        %v4434 = vperm.slane %v4405, 0
        %v4435 = vperm.slane %v4405, 1
        %v4436 = vperm.slane %v4405, 2
        %v4437 = vperm.slane %v4405, 3
        %v4438 = vperm.slane %v4409, 0
        %v4439 = vperm.slane %v4409, 1
        %v4440 = vperm.slane %v4409, 2
        %v4441 = vperm.slane %v4409, 3
        %v4442 = vperm.slane %v4413, 0
        %v4443 = vperm.slane %v4413, 1
        %v4444 = vperm.slane %v4413, 2
        %v4445 = vperm.slane %v4413, 3
        %v4446 = vperm.slane %v4417, 0
        %v4447 = vperm.slane %v4417, 1
        %v4448 = vperm.slane %v4417, 2
        %v4449 = vperm.slane %v4417, 3
        %v4450 = vperm.slane %v4421, 0
        %v4451 = vperm.slane %v4421, 1
        %v4452 = vperm.slane %v4421, 2
        %v4453 = vperm.slane %v4421, 3
        %v4454 = vperm.slane %v4425, 0
        %v4455 = vperm.slane %v4425, 1
        %v4456 = vperm.slane %v4425, 2
        %v4457 = vperm.slane %v4425, 3
        %v4490 = vadd.f32 %v1520, %v4426
        %v4491 = vadd.f32 %v1521, %v4427
        %v4492 = vadd.f32 %v1522, %v4428
        %v4493 = vadd.f32 %v1523, %v4429
        %v4494 = vadd.f32 %v1524, %v4426
        %v4495 = vadd.f32 %v1525, %v4427
        %v4496 = vadd.f32 %v1526, %v4428
        %v4497 = vadd.f32 %v1527, %v4429
        %v4498 = vadd.f32 %v1528, %v4426
        %v4499 = vadd.f32 %v1529, %v4427
        %v4500 = vadd.f32 %v1530, %v4428
        %v4501 = vadd.f32 %v1531, %v4429
        %v4502 = vadd.f32 %v1532, %v4426
        %v4503 = vadd.f32 %v1533, %v4427
        %v4504 = vadd.f32 %v1534, %v4428
        %v4505 = vadd.f32 %v1535, %v4429
        %v4506 = vadd.f32 %v1536, %v4426
        %v4507 = vadd.f32 %v1537, %v4427
        %v4508 = vadd.f32 %v1538, %v4428
        %v4509 = vadd.f32 %v1539, %v4429
        %v4510 = vadd.f32 %v1540, %v4426
        %v4511 = vadd.f32 %v1541, %v4427
        %v4512 = vadd.f32 %v1542, %v4428
        %v4513 = vadd.f32 %v1543, %v4429
        %v4514 = vadd.f32 %v1544, %v4426
        %v4515 = vadd.f32 %v1545, %v4427
        %v4516 = vadd.f32 %v1546, %v4428
        %v4517 = vadd.f32 %v1547, %v4429
        %v4518 = vadd.f32 %v1548, %v4426
        %v4519 = vadd.f32 %v1549, %v4427
        %v4520 = vadd.f32 %v1550, %v4428
        %v4521 = vadd.f32 %v1551, %v4429
        %v4522 = vadd.f32 %v1520, %v4430
        %v4523 = vadd.f32 %v1521, %v4431
        %v4524 = vadd.f32 %v1522, %v4432
        %v4525 = vadd.f32 %v1523, %v4433
        %v4526 = vadd.f32 %v1524, %v4430
        %v4527 = vadd.f32 %v1525, %v4431
        %v4528 = vadd.f32 %v1526, %v4432
        %v4529 = vadd.f32 %v1527, %v4433
        %v4530 = vadd.f32 %v1528, %v4430
        %v4531 = vadd.f32 %v1529, %v4431
        %v4532 = vadd.f32 %v1530, %v4432
        %v4533 = vadd.f32 %v1531, %v4433
        %v4534 = vadd.f32 %v1532, %v4430
        %v4535 = vadd.f32 %v1533, %v4431
        %v4536 = vadd.f32 %v1534, %v4432
        %v4537 = vadd.f32 %v1535, %v4433
        %v4538 = vadd.f32 %v1536, %v4430
        %v4539 = vadd.f32 %v1537, %v4431
        %v4540 = vadd.f32 %v1538, %v4432
        %v4541 = vadd.f32 %v1539, %v4433
        %v4542 = vadd.f32 %v1540, %v4430
        %v4543 = vadd.f32 %v1541, %v4431
        %v4544 = vadd.f32 %v1542, %v4432
        %v4545 = vadd.f32 %v1543, %v4433
        %v4546 = vadd.f32 %v1544, %v4430
        %v4547 = vadd.f32 %v1545, %v4431
        %v4548 = vadd.f32 %v1546, %v4432
        %v4549 = vadd.f32 %v1547, %v4433
        %v4550 = vadd.f32 %v1548, %v4430
        %v4551 = vadd.f32 %v1549, %v4431
        %v4552 = vadd.f32 %v1550, %v4432
        %v4553 = vadd.f32 %v1551, %v4433
        %v4554 = vadd.f32 %v1520, %v4434
        %v4555 = vadd.f32 %v1521, %v4435
        %v4556 = vadd.f32 %v1522, %v4436
        %v4557 = vadd.f32 %v1523, %v4437
        %v4558 = vadd.f32 %v1524, %v4434
        %v4559 = vadd.f32 %v1525, %v4435
        %v4560 = vadd.f32 %v1526, %v4436
        %v4561 = vadd.f32 %v1527, %v4437
        %v4562 = vadd.f32 %v1528, %v4434
        %v4563 = vadd.f32 %v1529, %v4435
        %v4564 = vadd.f32 %v1530, %v4436
        %v4565 = vadd.f32 %v1531, %v4437
        %v4566 = vadd.f32 %v1532, %v4434
        %v4567 = vadd.f32 %v1533, %v4435
        %v4568 = vadd.f32 %v1534, %v4436
        %v4569 = vadd.f32 %v1535, %v4437
        %v4570 = vadd.f32 %v1536, %v4434
        %v4571 = vadd.f32 %v1537, %v4435
        %v4572 = vadd.f32 %v1538, %v4436
        %v4573 = vadd.f32 %v1539, %v4437
        %v4574 = vadd.f32 %v1540, %v4434
        %v4575 = vadd.f32 %v1541, %v4435
        %v4576 = vadd.f32 %v1542, %v4436
        %v4577 = vadd.f32 %v1543, %v4437
        %v4578 = vadd.f32 %v1544, %v4434
        %v4579 = vadd.f32 %v1545, %v4435
        %v4580 = vadd.f32 %v1546, %v4436
        %v4581 = vadd.f32 %v1547, %v4437
        %v4582 = vadd.f32 %v1548, %v4434
        %v4583 = vadd.f32 %v1549, %v4435
        %v4584 = vadd.f32 %v1550, %v4436
        %v4585 = vadd.f32 %v1551, %v4437
        %v4586 = vadd.f32 %v1520, %v4438
        %v4587 = vadd.f32 %v1521, %v4439
        %v4588 = vadd.f32 %v1522, %v4440
        %v4589 = vadd.f32 %v1523, %v4441
        %v4590 = vadd.f32 %v1524, %v4438
        %v4591 = vadd.f32 %v1525, %v4439
        %v4592 = vadd.f32 %v1526, %v4440
        %v4593 = vadd.f32 %v1527, %v4441
        %v4594 = vadd.f32 %v1528, %v4438
        %v4595 = vadd.f32 %v1529, %v4439
        %v4596 = vadd.f32 %v1530, %v4440
        %v4597 = vadd.f32 %v1531, %v4441
        %v4598 = vadd.f32 %v1532, %v4438
        %v4599 = vadd.f32 %v1533, %v4439
        %v4600 = vadd.f32 %v1534, %v4440
        %v4601 = vadd.f32 %v1535, %v4441
        %v4602 = vadd.f32 %v1536, %v4438
        %v4603 = vadd.f32 %v1537, %v4439
        %v4604 = vadd.f32 %v1538, %v4440
        %v4605 = vadd.f32 %v1539, %v4441
        %v4606 = vadd.f32 %v1540, %v4438
        %v4607 = vadd.f32 %v1541, %v4439
        %v4608 = vadd.f32 %v1542, %v4440
        %v4609 = vadd.f32 %v1543, %v4441
        %v4610 = vadd.f32 %v1544, %v4438
        %v4611 = vadd.f32 %v1545, %v4439
        %v4612 = vadd.f32 %v1546, %v4440
        %v4613 = vadd.f32 %v1547, %v4441
        %v4614 = vadd.f32 %v1548, %v4438
        %v4615 = vadd.f32 %v1549, %v4439
        %v4616 = vadd.f32 %v1550, %v4440
        %v4617 = vadd.f32 %v1551, %v4441
        %v4618 = vadd.f32 %v1520, %v4442
        %v4619 = vadd.f32 %v1521, %v4443
        %v4620 = vadd.f32 %v1522, %v4444
        %v4621 = vadd.f32 %v1523, %v4445
        %v4622 = vadd.f32 %v1524, %v4442
        %v4623 = vadd.f32 %v1525, %v4443
        %v4624 = vadd.f32 %v1526, %v4444
        %v4625 = vadd.f32 %v1527, %v4445
        %v4626 = vadd.f32 %v1528, %v4442
        %v4627 = vadd.f32 %v1529, %v4443
        %v4628 = vadd.f32 %v1530, %v4444
        %v4629 = vadd.f32 %v1531, %v4445
        %v4630 = vadd.f32 %v1532, %v4442
        %v4631 = vadd.f32 %v1533, %v4443
        %v4632 = vadd.f32 %v1534, %v4444
        %v4633 = vadd.f32 %v1535, %v4445
        %v4634 = vadd.f32 %v1536, %v4442
        %v4635 = vadd.f32 %v1537, %v4443
        %v4636 = vadd.f32 %v1538, %v4444
        %v4637 = vadd.f32 %v1539, %v4445
        %v4638 = vadd.f32 %v1540, %v4442
        %v4639 = vadd.f32 %v1541, %v4443
        %v4640 = vadd.f32 %v1542, %v4444
        %v4641 = vadd.f32 %v1543, %v4445
        %v4642 = vadd.f32 %v1544, %v4442
        %v4643 = vadd.f32 %v1545, %v4443
        %v4644 = vadd.f32 %v1546, %v4444
        %v4645 = vadd.f32 %v1547, %v4445
        %v4646 = vadd.f32 %v1548, %v4442
        %v4647 = vadd.f32 %v1549, %v4443
        %v4648 = vadd.f32 %v1550, %v4444
        %v4649 = vadd.f32 %v1551, %v4445
        %v4650 = vadd.f32 %v1520, %v4446
        %v4651 = vadd.f32 %v1521, %v4447
        %v4652 = vadd.f32 %v1522, %v4448
        %v4653 = vadd.f32 %v1523, %v4449
        %v4654 = vadd.f32 %v1524, %v4446
        %v4655 = vadd.f32 %v1525, %v4447
        %v4656 = vadd.f32 %v1526, %v4448
        %v4657 = vadd.f32 %v1527, %v4449
        %v4658 = vadd.f32 %v1528, %v4446
        %v4659 = vadd.f32 %v1529, %v4447
        %v4660 = vadd.f32 %v1530, %v4448
        %v4661 = vadd.f32 %v1531, %v4449
        %v4662 = vadd.f32 %v1532, %v4446
        %v4663 = vadd.f32 %v1533, %v4447
        %v4664 = vadd.f32 %v1534, %v4448
        %v4665 = vadd.f32 %v1535, %v4449
        %v4666 = vadd.f32 %v1536, %v4446
        %v4667 = vadd.f32 %v1537, %v4447
        %v4668 = vadd.f32 %v1538, %v4448
        %v4669 = vadd.f32 %v1539, %v4449
        %v4670 = vadd.f32 %v1540, %v4446
        %v4671 = vadd.f32 %v1541, %v4447
        %v4672 = vadd.f32 %v1542, %v4448
        %v4673 = vadd.f32 %v1543, %v4449
        %v4674 = vadd.f32 %v1544, %v4446
        %v4675 = vadd.f32 %v1545, %v4447
        %v4676 = vadd.f32 %v1546, %v4448
        %v4677 = vadd.f32 %v1547, %v4449
        %v4678 = vadd.f32 %v1548, %v4446
        %v4679 = vadd.f32 %v1549, %v4447
        %v4680 = vadd.f32 %v1550, %v4448
        %v4681 = vadd.f32 %v1551, %v4449
        %v4682 = vadd.f32 %v1520, %v4450
        %v4683 = vadd.f32 %v1521, %v4451
        %v4684 = vadd.f32 %v1522, %v4452
        %v4685 = vadd.f32 %v1523, %v4453
        %v4686 = vadd.f32 %v1524, %v4450
        %v4687 = vadd.f32 %v1525, %v4451
        %v4688 = vadd.f32 %v1526, %v4452
        %v4689 = vadd.f32 %v1527, %v4453
        %v4690 = vadd.f32 %v1528, %v4450
        %v4691 = vadd.f32 %v1529, %v4451
        %v4692 = vadd.f32 %v1530, %v4452
        %v4693 = vadd.f32 %v1531, %v4453
        %v4694 = vadd.f32 %v1532, %v4450
        %v4695 = vadd.f32 %v1533, %v4451
        %v4696 = vadd.f32 %v1534, %v4452
        %v4697 = vadd.f32 %v1535, %v4453
        %v4698 = vadd.f32 %v1536, %v4450
        %v4699 = vadd.f32 %v1537, %v4451
        %v4700 = vadd.f32 %v1538, %v4452
        %v4701 = vadd.f32 %v1539, %v4453
        %v4702 = vadd.f32 %v1540, %v4450
        %v4703 = vadd.f32 %v1541, %v4451
        %v4704 = vadd.f32 %v1542, %v4452
        %v4705 = vadd.f32 %v1543, %v4453
        %v4706 = vadd.f32 %v1544, %v4450
        %v4707 = vadd.f32 %v1545, %v4451
        %v4708 = vadd.f32 %v1546, %v4452
        %v4709 = vadd.f32 %v1547, %v4453
        %v4710 = vadd.f32 %v1548, %v4450
        %v4711 = vadd.f32 %v1549, %v4451
        %v4712 = vadd.f32 %v1550, %v4452
        %v4713 = vadd.f32 %v1551, %v4453
        %v4714 = vadd.f32 %v1520, %v4454
        %v4715 = vadd.f32 %v1521, %v4455
        %v4716 = vadd.f32 %v1522, %v4456
        %v4717 = vadd.f32 %v1523, %v4457
        %v4718 = vadd.f32 %v1524, %v4454
        %v4719 = vadd.f32 %v1525, %v4455
        %v4720 = vadd.f32 %v1526, %v4456
        %v4721 = vadd.f32 %v1527, %v4457
        %v4722 = vadd.f32 %v1528, %v4454
        %v4723 = vadd.f32 %v1529, %v4455
        %v4724 = vadd.f32 %v1530, %v4456
        %v4725 = vadd.f32 %v1531, %v4457
        %v4726 = vadd.f32 %v1532, %v4454
        %v4727 = vadd.f32 %v1533, %v4455
        %v4728 = vadd.f32 %v1534, %v4456
        %v4729 = vadd.f32 %v1535, %v4457
        %v4730 = vadd.f32 %v1536, %v4454
        %v4731 = vadd.f32 %v1537, %v4455
        %v4732 = vadd.f32 %v1538, %v4456
        %v4733 = vadd.f32 %v1539, %v4457
        %v4734 = vadd.f32 %v1540, %v4454
        %v4735 = vadd.f32 %v1541, %v4455
        %v4736 = vadd.f32 %v1542, %v4456
        %v4737 = vadd.f32 %v1543, %v4457
        %v4738 = vadd.f32 %v1544, %v4454
        %v4739 = vadd.f32 %v1545, %v4455
        %v4740 = vadd.f32 %v1546, %v4456
        %v4741 = vadd.f32 %v1547, %v4457
        %v4742 = vadd.f32 %v1548, %v4454
        %v4743 = vadd.f32 %v1549, %v4455
        %v4744 = vadd.f32 %v1550, %v4456
        %v4745 = vadd.f32 %v1551, %v4457
        %v4746 = vmax.f32 %v4490, %v4491
        %v4747 = vmax.f32 %v4746, %v4492
        %v4748 = vmax.f32 %v4747, %v4493
        %4749 = vmax.xlane.f32.xlu0 %v4748
        %v4750 = vpop.xlane.xlu0 %4749
        %v4751 = vmax.f32 %v4494, %v4495
        %v4752 = vmax.f32 %v4751, %v4496
        %v4753 = vmax.f32 %v4752, %v4497
        %4754 = vmax.xlane.f32.xlu0 %v4753
        %v4755 = vpop.xlane.xlu0 %4754
        %v4756 = vmax.f32 %v4498, %v4499
        %v4757 = vmax.f32 %v4756, %v4500
        %v4758 = vmax.f32 %v4757, %v4501
        %4759 = vmax.xlane.f32.xlu0 %v4758
        %v4760 = vpop.xlane.xlu0 %4759
        %v4761 = vmax.f32 %v4502, %v4503
        %v4762 = vmax.f32 %v4761, %v4504
        %v4763 = vmax.f32 %v4762, %v4505
        %4764 = vmax.xlane.f32.xlu0 %v4763
        %v4765 = vpop.xlane.xlu0 %4764
        %v4766 = vmax.f32 %v4506, %v4507
        %v4767 = vmax.f32 %v4766, %v4508
        %v4768 = vmax.f32 %v4767, %v4509
        %4769 = vmax.xlane.f32.xlu0 %v4768
        %v4770 = vpop.xlane.xlu0 %4769
        %v4771 = vmax.f32 %v4510, %v4511
        %v4772 = vmax.f32 %v4771, %v4512
        %v4773 = vmax.f32 %v4772, %v4513
        %4774 = vmax.xlane.f32.xlu0 %v4773
        %v4775 = vpop.xlane.xlu0 %4774
        %v4776 = vmax.f32 %v4514, %v4515
        %v4777 = vmax.f32 %v4776, %v4516
        %v4778 = vmax.f32 %v4777, %v4517
        %4779 = vmax.xlane.f32.xlu0 %v4778
        %v4780 = vpop.xlane.xlu0 %4779
        %v4781 = vmax.f32 %v4518, %v4519
        %v4782 = vmax.f32 %v4781, %v4520
        %v4783 = vmax.f32 %v4782, %v4521
        %4784 = vmax.xlane.f32.xlu0 %v4783
        %v4785 = vpop.xlane.xlu0 %4784
        %v4786 = vmax.f32 %v4522, %v4523
        %v4787 = vmax.f32 %v4786, %v4524
        %v4788 = vmax.f32 %v4787, %v4525
        %4789 = vmax.xlane.f32.xlu0 %v4788
        %v4790 = vpop.xlane.xlu0 %4789
        %v4791 = vmax.f32 %v4526, %v4527
        %v4792 = vmax.f32 %v4791, %v4528
        %v4793 = vmax.f32 %v4792, %v4529
        %4794 = vmax.xlane.f32.xlu0 %v4793
        %v4795 = vpop.xlane.xlu0 %4794
        %v4796 = vmax.f32 %v4530, %v4531
        %v4797 = vmax.f32 %v4796, %v4532
        %v4798 = vmax.f32 %v4797, %v4533
        %4799 = vmax.xlane.f32.xlu0 %v4798
        %v4800 = vpop.xlane.xlu0 %4799
        %v4801 = vmax.f32 %v4534, %v4535
        %v4802 = vmax.f32 %v4801, %v4536
        %v4803 = vmax.f32 %v4802, %v4537
        %4804 = vmax.xlane.f32.xlu0 %v4803
        %v4805 = vpop.xlane.xlu0 %4804
        %v4806 = vmax.f32 %v4538, %v4539
        %v4807 = vmax.f32 %v4806, %v4540
        %v4808 = vmax.f32 %v4807, %v4541
        %4809 = vmax.xlane.f32.xlu0 %v4808
        %v4810 = vpop.xlane.xlu0 %4809
        %v4811 = vmax.f32 %v4542, %v4543
        %v4812 = vmax.f32 %v4811, %v4544
        %v4813 = vmax.f32 %v4812, %v4545
        %4814 = vmax.xlane.f32.xlu0 %v4813
        %v4815 = vpop.xlane.xlu0 %4814
        %v4816 = vmax.f32 %v4546, %v4547
        %v4817 = vmax.f32 %v4816, %v4548
        %v4818 = vmax.f32 %v4817, %v4549
        %4819 = vmax.xlane.f32.xlu0 %v4818
        %v4820 = vpop.xlane.xlu0 %4819
        %v4821 = vmax.f32 %v4550, %v4551
        %v4822 = vmax.f32 %v4821, %v4552
        %v4823 = vmax.f32 %v4822, %v4553
        %4824 = vmax.xlane.f32.xlu0 %v4823
        %v4825 = vpop.xlane.xlu0 %4824
        %v4826 = vmax.f32 %v4554, %v4555
        %v4827 = vmax.f32 %v4826, %v4556
        %v4828 = vmax.f32 %v4827, %v4557
        %4829 = vmax.xlane.f32.xlu0 %v4828
        %v4830 = vpop.xlane.xlu0 %4829
        %v4831 = vmax.f32 %v4558, %v4559
        %v4832 = vmax.f32 %v4831, %v4560
        %v4833 = vmax.f32 %v4832, %v4561
        %4834 = vmax.xlane.f32.xlu0 %v4833
        %v4835 = vpop.xlane.xlu0 %4834
        %v4836 = vmax.f32 %v4562, %v4563
        %v4837 = vmax.f32 %v4836, %v4564
        %v4838 = vmax.f32 %v4837, %v4565
        %4839 = vmax.xlane.f32.xlu0 %v4838
        %v4840 = vpop.xlane.xlu0 %4839
        %v4841 = vmax.f32 %v4566, %v4567
        %v4842 = vmax.f32 %v4841, %v4568
        %v4843 = vmax.f32 %v4842, %v4569
        %4844 = vmax.xlane.f32.xlu0 %v4843
        %v4845 = vpop.xlane.xlu0 %4844
        %v4846 = vmax.f32 %v4570, %v4571
        %v4847 = vmax.f32 %v4846, %v4572
        %v4848 = vmax.f32 %v4847, %v4573
        %4849 = vmax.xlane.f32.xlu0 %v4848
        %v4850 = vpop.xlane.xlu0 %4849
        %v4851 = vmax.f32 %v4574, %v4575
        %v4852 = vmax.f32 %v4851, %v4576
        %v4853 = vmax.f32 %v4852, %v4577
        %4854 = vmax.xlane.f32.xlu0 %v4853
        %v4855 = vpop.xlane.xlu0 %4854
        %v4856 = vmax.f32 %v4578, %v4579
        %v4857 = vmax.f32 %v4856, %v4580
        %v4858 = vmax.f32 %v4857, %v4581
        %4859 = vmax.xlane.f32.xlu0 %v4858
        %v4860 = vpop.xlane.xlu0 %4859
        %v4861 = vmax.f32 %v4582, %v4583
        %v4862 = vmax.f32 %v4861, %v4584
        %v4863 = vmax.f32 %v4862, %v4585
        %4864 = vmax.xlane.f32.xlu0 %v4863
        %v4865 = vpop.xlane.xlu0 %4864
        %v4866 = vmax.f32 %v4586, %v4587
        %v4867 = vmax.f32 %v4866, %v4588
        %v4868 = vmax.f32 %v4867, %v4589
        %4869 = vmax.xlane.f32.xlu0 %v4868
        %v4870 = vpop.xlane.xlu0 %4869
        %v4871 = vmax.f32 %v4590, %v4591
        %v4872 = vmax.f32 %v4871, %v4592
        %v4873 = vmax.f32 %v4872, %v4593
        %4874 = vmax.xlane.f32.xlu0 %v4873
        %v4875 = vpop.xlane.xlu0 %4874
        %v4876 = vmax.f32 %v4594, %v4595
        %v4877 = vmax.f32 %v4876, %v4596
        %v4878 = vmax.f32 %v4877, %v4597
        %4879 = vmax.xlane.f32.xlu0 %v4878
        %v4880 = vpop.xlane.xlu0 %4879
        %v4881 = vmax.f32 %v4598, %v4599
        %v4882 = vmax.f32 %v4881, %v4600
        %v4883 = vmax.f32 %v4882, %v4601
        %4884 = vmax.xlane.f32.xlu0 %v4883
        %v4885 = vpop.xlane.xlu0 %4884
        %v4886 = vmax.f32 %v4602, %v4603
        %v4887 = vmax.f32 %v4886, %v4604
        %v4888 = vmax.f32 %v4887, %v4605
        %4889 = vmax.xlane.f32.xlu0 %v4888
        %v4890 = vpop.xlane.xlu0 %4889
        %v4891 = vmax.f32 %v4606, %v4607
        %v4892 = vmax.f32 %v4891, %v4608
        %v4893 = vmax.f32 %v4892, %v4609
        %4894 = vmax.xlane.f32.xlu0 %v4893
        %v4895 = vpop.xlane.xlu0 %4894
        %v4896 = vmax.f32 %v4610, %v4611
        %v4897 = vmax.f32 %v4896, %v4612
        %v4898 = vmax.f32 %v4897, %v4613
        %4899 = vmax.xlane.f32.xlu0 %v4898
        %v4900 = vpop.xlane.xlu0 %4899
        %v4901 = vmax.f32 %v4614, %v4615
        %v4902 = vmax.f32 %v4901, %v4616
        %v4903 = vmax.f32 %v4902, %v4617
        %4904 = vmax.xlane.f32.xlu0 %v4903
        %v4905 = vpop.xlane.xlu0 %4904
        %v4906 = vmax.f32 %v4618, %v4619
        %v4907 = vmax.f32 %v4906, %v4620
        %v4908 = vmax.f32 %v4907, %v4621
        %4909 = vmax.xlane.f32.xlu0 %v4908
        %v4910 = vpop.xlane.xlu0 %4909
        %v4911 = vmax.f32 %v4622, %v4623
        %v4912 = vmax.f32 %v4911, %v4624
        %v4913 = vmax.f32 %v4912, %v4625
        %4914 = vmax.xlane.f32.xlu0 %v4913
        %v4915 = vpop.xlane.xlu0 %4914
        %v4916 = vmax.f32 %v4626, %v4627
        %v4917 = vmax.f32 %v4916, %v4628
        %v4918 = vmax.f32 %v4917, %v4629
        %4919 = vmax.xlane.f32.xlu0 %v4918
        %v4920 = vpop.xlane.xlu0 %4919
        %v4921 = vmax.f32 %v4630, %v4631
        %v4922 = vmax.f32 %v4921, %v4632
        %v4923 = vmax.f32 %v4922, %v4633
        %4924 = vmax.xlane.f32.xlu0 %v4923
        %v4925 = vpop.xlane.xlu0 %4924
        %v4926 = vmax.f32 %v4634, %v4635
        %v4927 = vmax.f32 %v4926, %v4636
        %v4928 = vmax.f32 %v4927, %v4637
        %4929 = vmax.xlane.f32.xlu0 %v4928
        %v4930 = vpop.xlane.xlu0 %4929
        %v4931 = vmax.f32 %v4638, %v4639
        %v4932 = vmax.f32 %v4931, %v4640
        %v4933 = vmax.f32 %v4932, %v4641
        %4934 = vmax.xlane.f32.xlu0 %v4933
        %v4935 = vpop.xlane.xlu0 %4934
        %v4936 = vmax.f32 %v4642, %v4643
        %v4937 = vmax.f32 %v4936, %v4644
        %v4938 = vmax.f32 %v4937, %v4645
        %4939 = vmax.xlane.f32.xlu0 %v4938
        %v4940 = vpop.xlane.xlu0 %4939
        %v4941 = vmax.f32 %v4646, %v4647
        %v4942 = vmax.f32 %v4941, %v4648
        %v4943 = vmax.f32 %v4942, %v4649
        %4944 = vmax.xlane.f32.xlu0 %v4943
        %v4945 = vpop.xlane.xlu0 %4944
        %v4946 = vmax.f32 %v4650, %v4651
        %v4947 = vmax.f32 %v4946, %v4652
        %v4948 = vmax.f32 %v4947, %v4653
        %4949 = vmax.xlane.f32.xlu0 %v4948
        %v4950 = vpop.xlane.xlu0 %4949
        %v4951 = vmax.f32 %v4654, %v4655
        %v4952 = vmax.f32 %v4951, %v4656
        %v4953 = vmax.f32 %v4952, %v4657
        %4954 = vmax.xlane.f32.xlu0 %v4953
        %v4955 = vpop.xlane.xlu0 %4954
        %v4956 = vmax.f32 %v4658, %v4659
        %v4957 = vmax.f32 %v4956, %v4660
        %v4958 = vmax.f32 %v4957, %v4661
        %4959 = vmax.xlane.f32.xlu0 %v4958
        %v4960 = vpop.xlane.xlu0 %4959
        %v4961 = vmax.f32 %v4662, %v4663
        %v4962 = vmax.f32 %v4961, %v4664
        %v4963 = vmax.f32 %v4962, %v4665
        %4964 = vmax.xlane.f32.xlu0 %v4963
        %v4965 = vpop.xlane.xlu0 %4964
        %v4966 = vmax.f32 %v4666, %v4667
        %v4967 = vmax.f32 %v4966, %v4668
        %v4968 = vmax.f32 %v4967, %v4669
        %4969 = vmax.xlane.f32.xlu0 %v4968
        %v4970 = vpop.xlane.xlu0 %4969
        %v4971 = vmax.f32 %v4670, %v4671
        %v4972 = vmax.f32 %v4971, %v4672
        %v4973 = vmax.f32 %v4972, %v4673
        %4974 = vmax.xlane.f32.xlu0 %v4973
        %v4975 = vpop.xlane.xlu0 %4974
        %v4976 = vmax.f32 %v4674, %v4675
        %v4977 = vmax.f32 %v4976, %v4676
        %v4978 = vmax.f32 %v4977, %v4677
        %4979 = vmax.xlane.f32.xlu0 %v4978
        %v4980 = vpop.xlane.xlu0 %4979
        %v4981 = vmax.f32 %v4678, %v4679
        %v4982 = vmax.f32 %v4981, %v4680
        %v4983 = vmax.f32 %v4982, %v4681
        %4984 = vmax.xlane.f32.xlu0 %v4983
        %v4985 = vpop.xlane.xlu0 %4984
        %v4986 = vmax.f32 %v4682, %v4683
        %v4987 = vmax.f32 %v4986, %v4684
        %v4988 = vmax.f32 %v4987, %v4685
        %4989 = vmax.xlane.f32.xlu0 %v4988
        %v4990 = vpop.xlane.xlu0 %4989
        %v4991 = vmax.f32 %v4686, %v4687
        %v4992 = vmax.f32 %v4991, %v4688
        %v4993 = vmax.f32 %v4992, %v4689
        %4994 = vmax.xlane.f32.xlu0 %v4993
        %v4995 = vpop.xlane.xlu0 %4994
        %v4996 = vmax.f32 %v4690, %v4691
        %v4997 = vmax.f32 %v4996, %v4692
        %v4998 = vmax.f32 %v4997, %v4693
        %4999 = vmax.xlane.f32.xlu0 %v4998
        %v5000 = vpop.xlane.xlu0 %4999
        %v5001 = vmax.f32 %v4694, %v4695
        %v5002 = vmax.f32 %v5001, %v4696
        %v5003 = vmax.f32 %v5002, %v4697
        %5004 = vmax.xlane.f32.xlu0 %v5003
        %v5005 = vpop.xlane.xlu0 %5004
        %v5006 = vmax.f32 %v4698, %v4699
        %v5007 = vmax.f32 %v5006, %v4700
        %v5008 = vmax.f32 %v5007, %v4701
        %5009 = vmax.xlane.f32.xlu0 %v5008
        %v5010 = vpop.xlane.xlu0 %5009
        %v5011 = vmax.f32 %v4702, %v4703
        %v5012 = vmax.f32 %v5011, %v4704
        %v5013 = vmax.f32 %v5012, %v4705
        %5014 = vmax.xlane.f32.xlu0 %v5013
        %v5015 = vpop.xlane.xlu0 %5014
        %v5016 = vmax.f32 %v4706, %v4707
        %v5017 = vmax.f32 %v5016, %v4708
        %v5018 = vmax.f32 %v5017, %v4709
        %5019 = vmax.xlane.f32.xlu0 %v5018
        %v5020 = vpop.xlane.xlu0 %5019
        %v5021 = vmax.f32 %v4710, %v4711
        %v5022 = vmax.f32 %v5021, %v4712
        %v5023 = vmax.f32 %v5022, %v4713
        %5024 = vmax.xlane.f32.xlu0 %v5023
        %v5025 = vpop.xlane.xlu0 %5024
        %v5026 = vmax.f32 %v4714, %v4715
        %v5027 = vmax.f32 %v5026, %v4716
        %v5028 = vmax.f32 %v5027, %v4717
        %5029 = vmax.xlane.f32.xlu0 %v5028
        %v5030 = vpop.xlane.xlu0 %5029
        %v5031 = vmax.f32 %v4718, %v4719
        %v5032 = vmax.f32 %v5031, %v4720
        %v5033 = vmax.f32 %v5032, %v4721
        %5034 = vmax.xlane.f32.xlu0 %v5033
        %v5035 = vpop.xlane.xlu0 %5034
        %v5036 = vmax.f32 %v4722, %v4723
        %v5037 = vmax.f32 %v5036, %v4724
        %v5038 = vmax.f32 %v5037, %v4725
        %5039 = vmax.xlane.f32.xlu0 %v5038
        %v5040 = vpop.xlane.xlu0 %5039
        %v5041 = vmax.f32 %v4726, %v4727
        %v5042 = vmax.f32 %v5041, %v4728
        %v5043 = vmax.f32 %v5042, %v4729
        %5044 = vmax.xlane.f32.xlu0 %v5043
        %v5045 = vpop.xlane.xlu0 %5044
        %v5046 = vmax.f32 %v4730, %v4731
        %v5047 = vmax.f32 %v5046, %v4732
        %v5048 = vmax.f32 %v5047, %v4733
        %5049 = vmax.xlane.f32.xlu0 %v5048
        %v5050 = vpop.xlane.xlu0 %5049
        %v5051 = vmax.f32 %v4734, %v4735
        %v5052 = vmax.f32 %v5051, %v4736
        %v5053 = vmax.f32 %v5052, %v4737
        %5054 = vmax.xlane.f32.xlu0 %v5053
        %v5055 = vpop.xlane.xlu0 %5054
        %v5056 = vmax.f32 %v4738, %v4739
        %v5057 = vmax.f32 %v5056, %v4740
        %v5058 = vmax.f32 %v5057, %v4741
        %5059 = vmax.xlane.f32.xlu0 %v5058
        %v5060 = vpop.xlane.xlu0 %5059
        %v5061 = vmax.f32 %v4742, %v4743
        %v5062 = vmax.f32 %v5061, %v4744
        %v5063 = vmax.f32 %v5062, %v4745
        %5064 = vmax.xlane.f32.xlu0 %v5063
        %v5065 = vpop.xlane.xlu0 %5064
        %v5066 = vld [vmem:[%s17 + $0x180] sm:$0xff]
        %v5067 = vld [vmem:[%s17 + $0x188] sm:$0xff]
        %v5068 = vld [vmem:[%s17 + $0x190] sm:$0xff]
        %v5069 = vld [vmem:[%s17 + $0x198] sm:$0xff]
        %v5070 = vld [vmem:[%s17 + $0x1a0] sm:$0xff]
        %v5071 = vld [vmem:[%s17 + $0x1a8] sm:$0xff]
        %v5072 = vld [vmem:[%s17 + $0x1b0] sm:$0xff]
        %v5073 = vld [vmem:[%s17 + $0x1b8] sm:$0xff]
        %v5074 = vld [vmem:[%s17 + $0x1c0] sm:$0xff]
        %v5075 = vld [vmem:[%s17 + $0x1c8] sm:$0xff]
        %v5076 = vld [vmem:[%s17 + $0x1d0] sm:$0xff]
        %v5077 = vld [vmem:[%s17 + $0x1d8] sm:$0xff]
        %v5078 = vld [vmem:[%s17 + $0x1e0] sm:$0xff]
        %v5079 = vld [vmem:[%s17 + $0x1e8] sm:$0xff]
        %v5080 = vld [vmem:[%s17 + $0x1f0] sm:$0xff]
        %v5081 = vld [vmem:[%s17 + $0x1f8] sm:$0xff]
        %v5146 = vperm.slane %v4750, %v3030
        %v5147 = vperm.slane %v4755, %v3032
        %v5148 = vsel %vm3034, %v5147, %v5146
        %v5149 = vperm.slane %v4760, %v3036
        %v5150 = vsel %vm3038, %v5149, %v5148
        %v5151 = vperm.slane %v4765, %v3040
        %v5152 = vsel %vm3042, %v5151, %v5150
        %v5153 = vperm.slane %v4770, %v3044
        %v5154 = vsel %vm3046, %v5153, %v5152
        %v5155 = vperm.slane %v4775, %v3048
        %v5156 = vsel %vm3050, %v5155, %v5154
        %v5157 = vperm.slane %v4780, %v3052
        %v5158 = vsel %vm3054, %v5157, %v5156
        %v5159 = vperm.slane %v4785, %v3056
        %v5160 = vsel %vm3058, %v5159, %v5158
        %v5161 = vperm.slane %v4790, %v3030
        %v5162 = vperm.slane %v4795, %v3032
        %v5163 = vsel %vm3034, %v5162, %v5161
        %v5164 = vperm.slane %v4800, %v3036
        %v5165 = vsel %vm3038, %v5164, %v5163
        %v5166 = vperm.slane %v4805, %v3040
        %v5167 = vsel %vm3042, %v5166, %v5165
        %v5168 = vperm.slane %v4810, %v3044
        %v5169 = vsel %vm3046, %v5168, %v5167
        %v5170 = vperm.slane %v4815, %v3048
        %v5171 = vsel %vm3050, %v5170, %v5169
        %v5172 = vperm.slane %v4820, %v3052
        %v5173 = vsel %vm3054, %v5172, %v5171
        %v5174 = vperm.slane %v4825, %v3056
        %v5175 = vsel %vm3058, %v5174, %v5173
        %v5176 = vperm.slane %v4830, %v3030
        %v5177 = vperm.slane %v4835, %v3032
        %v5178 = vsel %vm3034, %v5177, %v5176
        %v5179 = vperm.slane %v4840, %v3036
        %v5180 = vsel %vm3038, %v5179, %v5178
        %v5181 = vperm.slane %v4845, %v3040
        %v5182 = vsel %vm3042, %v5181, %v5180
        %v5183 = vperm.slane %v4850, %v3044
        %v5184 = vsel %vm3046, %v5183, %v5182
        %v5185 = vperm.slane %v4855, %v3048
        %v5186 = vsel %vm3050, %v5185, %v5184
        %v5187 = vperm.slane %v4860, %v3052
        %v5188 = vsel %vm3054, %v5187, %v5186
        %v5189 = vperm.slane %v4865, %v3056
        %v5190 = vsel %vm3058, %v5189, %v5188
        %v5191 = vperm.slane %v4870, %v3030
        %v5192 = vperm.slane %v4875, %v3032
        %v5193 = vsel %vm3034, %v5192, %v5191
        %v5194 = vperm.slane %v4880, %v3036
        %v5195 = vsel %vm3038, %v5194, %v5193
        %v5196 = vperm.slane %v4885, %v3040
        %v5197 = vsel %vm3042, %v5196, %v5195
        %v5198 = vperm.slane %v4890, %v3044
        %v5199 = vsel %vm3046, %v5198, %v5197
        %v5200 = vperm.slane %v4895, %v3048
        %v5201 = vsel %vm3050, %v5200, %v5199
        %v5202 = vperm.slane %v4900, %v3052
        %v5203 = vsel %vm3054, %v5202, %v5201
        %v5204 = vperm.slane %v4905, %v3056
        %v5205 = vsel %vm3058, %v5204, %v5203
        %v5206 = vperm.slane %v4910, %v3030
        %v5207 = vperm.slane %v4915, %v3032
        %v5208 = vsel %vm3034, %v5207, %v5206
        %v5209 = vperm.slane %v4920, %v3036
        %v5210 = vsel %vm3038, %v5209, %v5208
        %v5211 = vperm.slane %v4925, %v3040
        %v5212 = vsel %vm3042, %v5211, %v5210
        %v5213 = vperm.slane %v4930, %v3044
        %v5214 = vsel %vm3046, %v5213, %v5212
        %v5215 = vperm.slane %v4935, %v3048
        %v5216 = vsel %vm3050, %v5215, %v5214
        %v5217 = vperm.slane %v4940, %v3052
        %v5218 = vsel %vm3054, %v5217, %v5216
        %v5219 = vperm.slane %v4945, %v3056
        %v5220 = vsel %vm3058, %v5219, %v5218
        %v5221 = vperm.slane %v4950, %v3030
        %v5222 = vperm.slane %v4955, %v3032
        %v5223 = vsel %vm3034, %v5222, %v5221
        %v5224 = vperm.slane %v4960, %v3036
        %v5225 = vsel %vm3038, %v5224, %v5223
        %v5226 = vperm.slane %v4965, %v3040
        %v5227 = vsel %vm3042, %v5226, %v5225
        %v5228 = vperm.slane %v4970, %v3044
        %v5229 = vsel %vm3046, %v5228, %v5227
        %v5230 = vperm.slane %v4975, %v3048
        %v5231 = vsel %vm3050, %v5230, %v5229
        %v5232 = vperm.slane %v4980, %v3052
        %v5233 = vsel %vm3054, %v5232, %v5231
        %v5234 = vperm.slane %v4985, %v3056
        %v5235 = vsel %vm3058, %v5234, %v5233
        %v5236 = vperm.slane %v4990, %v3030
        %v5237 = vperm.slane %v4995, %v3032
        %v5238 = vsel %vm3034, %v5237, %v5236
        %v5239 = vperm.slane %v5000, %v3036
        %v5240 = vsel %vm3038, %v5239, %v5238
        %v5241 = vperm.slane %v5005, %v3040
        %v5242 = vsel %vm3042, %v5241, %v5240
        %v5243 = vperm.slane %v5010, %v3044
        %v5244 = vsel %vm3046, %v5243, %v5242
        %v5245 = vperm.slane %v5015, %v3048
        %v5246 = vsel %vm3050, %v5245, %v5244
        %v5247 = vperm.slane %v5020, %v3052
        %v5248 = vsel %vm3054, %v5247, %v5246
        %v5249 = vperm.slane %v5025, %v3056
        %v5250 = vsel %vm3058, %v5249, %v5248
        %v5251 = vperm.slane %v5030, %v3030
        %v5252 = vperm.slane %v5035, %v3032
        %v5253 = vsel %vm3034, %v5252, %v5251
        %v5254 = vperm.slane %v5040, %v3036
        %v5255 = vsel %vm3038, %v5254, %v5253
        %v5256 = vperm.slane %v5045, %v3040
        %v5257 = vsel %vm3042, %v5256, %v5255
        %v5258 = vperm.slane %v5050, %v3044
        %v5259 = vsel %vm3046, %v5258, %v5257
        %v5260 = vperm.slane %v5055, %v3048
        %v5261 = vsel %vm3050, %v5260, %v5259
        %v5262 = vperm.slane %v5060, %v3052
        %v5263 = vsel %vm3054, %v5262, %v5261
        %v5264 = vperm.slane %v5065, %v3056
        %v5265 = vsel %vm3058, %v5264, %v5263
        %v5266 = vsel %vm1569, %v5175, %v5160
        %v5267 = vsel %vm1565, %v5190, %v5266
        %v5268 = vsel %vm1571, %v5205, %v5267
        %v5269 = vsel %vm1577, %v5220, %v5268
        %v5270 = vsel %vm1583, %v5235, %v5269
        %v5271 = vsel %vm1589, %v5250, %v5270
        %v5272 = vsel %vm3171, %v5265, %v5271
        %v5273 = vsel %vm3173, %v5272, 0
        %5275 = vmatpush.msra.mxu0 0.0
        %5276 = vmatpush.msra.mxu0 0.0
        %5277 = vmatpush.msra.mxu0 0.0
        %5278 = vmatpush.msra.mxu0 0.0
        %5279 = vmatpush.msra.mxu0 0.0
        %5280 = vmatpush.msra.mxu0 0.0
        %5281 = vmatpush.msra.mxu0 0.0
        %5282 = vmatpush.msra.mxu0 0.0
        %5283 = vmatpush.msra.mxu0 %v5080
        %5284 = vmatpush.msra.mxu0 %v5078
        %5285 = vmatpush.msra.mxu0 %v5076
        %5286 = vmatpush.msra.mxu0 %v5074
        %5287 = vmatpush.msra.mxu0 %v5072
        %5288 = vmatpush.msra.mxu0 %v5070
        %5289 = vmatpush.msra.mxu0 %v5068
        %5290 = vmatpush.msra.mxu0 %v5066
        %5291 = vmatmul.f32.gmra.mxu0 %v5273
        %v5292 = vpop.f32.mrf.mxu0
        %v5293 = vadd.f32 0.0, %v5292
        %5294 = vdwg.mxu0
        %5295 = vmatpush.msra.mxu0 0.0
        %5296 = vmatpush.msra.mxu0 0.0
        %5297 = vmatpush.msra.mxu0 0.0
        %5298 = vmatpush.msra.mxu0 0.0
        %5299 = vmatpush.msra.mxu0 0.0
        %5300 = vmatpush.msra.mxu0 0.0
        %5301 = vmatpush.msra.mxu0 0.0
        %5302 = vmatpush.msra.mxu0 0.0
        %5303 = vmatpush.msra.mxu0 %v5081
        %5304 = vmatpush.msra.mxu0 %v5079
        %5305 = vmatpush.msra.mxu0 %v5077
        %5306 = vmatpush.msra.mxu0 %v5075
        %5307 = vmatpush.msra.mxu0 %v5073
        %5308 = vmatpush.msra.mxu0 %v5071
        %5309 = vmatpush.msra.mxu0 %v5069
        %5310 = vmatpush.msra.mxu0 %v5067
        %5311 = vmatmul.f32.gmra.mxu0 %v5273
        %v5312 = vpop.f32.mrf.mxu0
        %v5313 = vadd.f32 0.0, %v5312
        %5314 = vdwg.mxu0
        %v5315 = vadd.f32 %v4381, %v5293
        %v5316 = vadd.f32 %v4382, %v5313
        %s5317 = scalar_lea.vmem %s975, 128
        %v5318 = vld [vmem:[%s5317] sm:$0xff]
        %v5319 = vld [vmem:[%s5317 + $0x8] sm:$0xff]
        %v5320 = vld [vmem:[%s5317 + $0x10] sm:$0xff]
        %v5321 = vld [vmem:[%s5317 + $0x18] sm:$0xff]
        %v5326 = vrot.slane %v5319, 7
        %v5327 = vrot.slane %v5320, 6
        %v5328 = vrot.slane %v5321, 5
        %v5329 = vsel %vm1563, %v5318, %v5326
        %v5330 = vsel %vm1565, %v5327, %v5328
        %v5331 = vsel %vm1567, %v5329, %v5330
        %v5332 = vsel %vm1569, %v5318, %v5326
        %v5333 = vsel %vm1571, %v5327, %v5328
        %v5334 = vsel %vm1573, %v5332, %v5333
        %v5335 = vrot.slane %v5334, 1
        %v5336 = vsel %vm1565, %v5318, %v5326
        %v5337 = vsel %vm1577, %v5327, %v5328
        %v5338 = vsel %vm1579, %v5336, %v5337
        %v5339 = vrot.slane %v5338, 2
        %v5340 = vsel %vm1571, %v5318, %v5326
        %v5341 = vsel %vm1583, %v5327, %v5328
        %v5342 = vsel %vm1585, %v5340, %v5341
        %v5343 = vrot.slane %v5342, 3
        %v5344 = vsel %vm1577, %v5318, %v5326
        %v5345 = vsel %vm1589, %v5327, %v5328
        %v5346 = vsel %vm1591, %v5344, %v5345
        %v5347 = vrot.slane %v5346, 4
        %v5348 = vsel %vm1583, %v5318, %v5326
        %v5349 = vsel %vm1595, %v5328, %v5327
        %v5350 = vsel %vm1597, %v5348, %v5349
        %v5351 = vrot.slane %v5350, 5
        %v5352 = vsel %vm1589, %v5318, %v5326
        %v5353 = vsel %vm1563, %v5327, %v5328
        %v5354 = vsel %vm1602, %v5353, %v5352
        %v5355 = vrot.slane %v5354, 6
        %v5356 = vsel %vm1595, %v5326, %v5318
        %v5357 = vsel %vm1569, %v5327, %v5328
        %v5358 = vsel %vm1607, %v5357, %v5356
        %v5359 = vrot.slane %v5358, 7
        %v5360 = vperm.slane %v5331, 0
        %v5361 = vperm.slane %v5331, 1
        %v5362 = vperm.slane %v5331, 2
        %v5363 = vperm.slane %v5331, 3
        %v5364 = vperm.slane %v5335, 0
        %v5365 = vperm.slane %v5335, 1
        %v5366 = vperm.slane %v5335, 2
        %v5367 = vperm.slane %v5335, 3
        %v5368 = vperm.slane %v5339, 0
        %v5369 = vperm.slane %v5339, 1
        %v5370 = vperm.slane %v5339, 2
        %v5371 = vperm.slane %v5339, 3
        %v5372 = vperm.slane %v5343, 0
        %v5373 = vperm.slane %v5343, 1
        %v5374 = vperm.slane %v5343, 2
        %v5375 = vperm.slane %v5343, 3
        %v5376 = vperm.slane %v5347, 0
        %v5377 = vperm.slane %v5347, 1
        %v5378 = vperm.slane %v5347, 2
        %v5379 = vperm.slane %v5347, 3
        %v5380 = vperm.slane %v5351, 0
        %v5381 = vperm.slane %v5351, 1
        %v5382 = vperm.slane %v5351, 2
        %v5383 = vperm.slane %v5351, 3
        %v5384 = vperm.slane %v5355, 0
        %v5385 = vperm.slane %v5355, 1
        %v5386 = vperm.slane %v5355, 2
        %v5387 = vperm.slane %v5355, 3
        %v5388 = vperm.slane %v5359, 0
        %v5389 = vperm.slane %v5359, 1
        %v5390 = vperm.slane %v5359, 2
        %v5391 = vperm.slane %v5359, 3
        %v5424 = vadd.f32 %v1520, %v5360
        %v5425 = vadd.f32 %v1521, %v5361
        %v5426 = vadd.f32 %v1522, %v5362
        %v5427 = vadd.f32 %v1523, %v5363
        %v5428 = vadd.f32 %v1524, %v5360
        %v5429 = vadd.f32 %v1525, %v5361
        %v5430 = vadd.f32 %v1526, %v5362
        %v5431 = vadd.f32 %v1527, %v5363
        %v5432 = vadd.f32 %v1528, %v5360
        %v5433 = vadd.f32 %v1529, %v5361
        %v5434 = vadd.f32 %v1530, %v5362
        %v5435 = vadd.f32 %v1531, %v5363
        %v5436 = vadd.f32 %v1532, %v5360
        %v5437 = vadd.f32 %v1533, %v5361
        %v5438 = vadd.f32 %v1534, %v5362
        %v5439 = vadd.f32 %v1535, %v5363
        %v5440 = vadd.f32 %v1536, %v5360
        %v5441 = vadd.f32 %v1537, %v5361
        %v5442 = vadd.f32 %v1538, %v5362
        %v5443 = vadd.f32 %v1539, %v5363
        %v5444 = vadd.f32 %v1540, %v5360
        %v5445 = vadd.f32 %v1541, %v5361
        %v5446 = vadd.f32 %v1542, %v5362
        %v5447 = vadd.f32 %v1543, %v5363
        %v5448 = vadd.f32 %v1544, %v5360
        %v5449 = vadd.f32 %v1545, %v5361
        %v5450 = vadd.f32 %v1546, %v5362
        %v5451 = vadd.f32 %v1547, %v5363
        %v5452 = vadd.f32 %v1548, %v5360
        %v5453 = vadd.f32 %v1549, %v5361
        %v5454 = vadd.f32 %v1550, %v5362
        %v5455 = vadd.f32 %v1551, %v5363
        %v5456 = vadd.f32 %v1520, %v5364
        %v5457 = vadd.f32 %v1521, %v5365
        %v5458 = vadd.f32 %v1522, %v5366
        %v5459 = vadd.f32 %v1523, %v5367
        %v5460 = vadd.f32 %v1524, %v5364
        %v5461 = vadd.f32 %v1525, %v5365
        %v5462 = vadd.f32 %v1526, %v5366
        %v5463 = vadd.f32 %v1527, %v5367
        %v5464 = vadd.f32 %v1528, %v5364
        %v5465 = vadd.f32 %v1529, %v5365
        %v5466 = vadd.f32 %v1530, %v5366
        %v5467 = vadd.f32 %v1531, %v5367
        %v5468 = vadd.f32 %v1532, %v5364
        %v5469 = vadd.f32 %v1533, %v5365
        %v5470 = vadd.f32 %v1534, %v5366
        %v5471 = vadd.f32 %v1535, %v5367
        %v5472 = vadd.f32 %v1536, %v5364
        %v5473 = vadd.f32 %v1537, %v5365
        %v5474 = vadd.f32 %v1538, %v5366
        %v5475 = vadd.f32 %v1539, %v5367
        %v5476 = vadd.f32 %v1540, %v5364
        %v5477 = vadd.f32 %v1541, %v5365
        %v5478 = vadd.f32 %v1542, %v5366
        %v5479 = vadd.f32 %v1543, %v5367
        %v5480 = vadd.f32 %v1544, %v5364
        %v5481 = vadd.f32 %v1545, %v5365
        %v5482 = vadd.f32 %v1546, %v5366
        %v5483 = vadd.f32 %v1547, %v5367
        %v5484 = vadd.f32 %v1548, %v5364
        %v5485 = vadd.f32 %v1549, %v5365
        %v5486 = vadd.f32 %v1550, %v5366
        %v5487 = vadd.f32 %v1551, %v5367
        %v5488 = vadd.f32 %v1520, %v5368
        %v5489 = vadd.f32 %v1521, %v5369
        %v5490 = vadd.f32 %v1522, %v5370
        %v5491 = vadd.f32 %v1523, %v5371
        %v5492 = vadd.f32 %v1524, %v5368
        %v5493 = vadd.f32 %v1525, %v5369
        %v5494 = vadd.f32 %v1526, %v5370
        %v5495 = vadd.f32 %v1527, %v5371
        %v5496 = vadd.f32 %v1528, %v5368
        %v5497 = vadd.f32 %v1529, %v5369
        %v5498 = vadd.f32 %v1530, %v5370
        %v5499 = vadd.f32 %v1531, %v5371
        %v5500 = vadd.f32 %v1532, %v5368
        %v5501 = vadd.f32 %v1533, %v5369
        %v5502 = vadd.f32 %v1534, %v5370
        %v5503 = vadd.f32 %v1535, %v5371
        %v5504 = vadd.f32 %v1536, %v5368
        %v5505 = vadd.f32 %v1537, %v5369
        %v5506 = vadd.f32 %v1538, %v5370
        %v5507 = vadd.f32 %v1539, %v5371
        %v5508 = vadd.f32 %v1540, %v5368
        %v5509 = vadd.f32 %v1541, %v5369
        %v5510 = vadd.f32 %v1542, %v5370
        %v5511 = vadd.f32 %v1543, %v5371
        %v5512 = vadd.f32 %v1544, %v5368
        %v5513 = vadd.f32 %v1545, %v5369
        %v5514 = vadd.f32 %v1546, %v5370
        %v5515 = vadd.f32 %v1547, %v5371
        %v5516 = vadd.f32 %v1548, %v5368
        %v5517 = vadd.f32 %v1549, %v5369
        %v5518 = vadd.f32 %v1550, %v5370
        %v5519 = vadd.f32 %v1551, %v5371
        %v5520 = vadd.f32 %v1520, %v5372
        %v5521 = vadd.f32 %v1521, %v5373
        %v5522 = vadd.f32 %v1522, %v5374
        %v5523 = vadd.f32 %v1523, %v5375
        %v5524 = vadd.f32 %v1524, %v5372
        %v5525 = vadd.f32 %v1525, %v5373
        %v5526 = vadd.f32 %v1526, %v5374
        %v5527 = vadd.f32 %v1527, %v5375
        %v5528 = vadd.f32 %v1528, %v5372
        %v5529 = vadd.f32 %v1529, %v5373
        %v5530 = vadd.f32 %v1530, %v5374
        %v5531 = vadd.f32 %v1531, %v5375
        %v5532 = vadd.f32 %v1532, %v5372
        %v5533 = vadd.f32 %v1533, %v5373
        %v5534 = vadd.f32 %v1534, %v5374
        %v5535 = vadd.f32 %v1535, %v5375
        %v5536 = vadd.f32 %v1536, %v5372
        %v5537 = vadd.f32 %v1537, %v5373
        %v5538 = vadd.f32 %v1538, %v5374
        %v5539 = vadd.f32 %v1539, %v5375
        %v5540 = vadd.f32 %v1540, %v5372
        %v5541 = vadd.f32 %v1541, %v5373
        %v5542 = vadd.f32 %v1542, %v5374
        %v5543 = vadd.f32 %v1543, %v5375
        %v5544 = vadd.f32 %v1544, %v5372
        %v5545 = vadd.f32 %v1545, %v5373
        %v5546 = vadd.f32 %v1546, %v5374
        %v5547 = vadd.f32 %v1547, %v5375
        %v5548 = vadd.f32 %v1548, %v5372
        %v5549 = vadd.f32 %v1549, %v5373
        %v5550 = vadd.f32 %v1550, %v5374
        %v5551 = vadd.f32 %v1551, %v5375
        %v5552 = vadd.f32 %v1520, %v5376
        %v5553 = vadd.f32 %v1521, %v5377
        %v5554 = vadd.f32 %v1522, %v5378
        %v5555 = vadd.f32 %v1523, %v5379
        %v5556 = vadd.f32 %v1524, %v5376
        %v5557 = vadd.f32 %v1525, %v5377
        %v5558 = vadd.f32 %v1526, %v5378
        %v5559 = vadd.f32 %v1527, %v5379
        %v5560 = vadd.f32 %v1528, %v5376
        %v5561 = vadd.f32 %v1529, %v5377
        %v5562 = vadd.f32 %v1530, %v5378
        %v5563 = vadd.f32 %v1531, %v5379
        %v5564 = vadd.f32 %v1532, %v5376
        %v5565 = vadd.f32 %v1533, %v5377
        %v5566 = vadd.f32 %v1534, %v5378
        %v5567 = vadd.f32 %v1535, %v5379
        %v5568 = vadd.f32 %v1536, %v5376
        %v5569 = vadd.f32 %v1537, %v5377
        %v5570 = vadd.f32 %v1538, %v5378
        %v5571 = vadd.f32 %v1539, %v5379
        %v5572 = vadd.f32 %v1540, %v5376
        %v5573 = vadd.f32 %v1541, %v5377
        %v5574 = vadd.f32 %v1542, %v5378
        %v5575 = vadd.f32 %v1543, %v5379
        %v5576 = vadd.f32 %v1544, %v5376
        %v5577 = vadd.f32 %v1545, %v5377
        %v5578 = vadd.f32 %v1546, %v5378
        %v5579 = vadd.f32 %v1547, %v5379
        %v5580 = vadd.f32 %v1548, %v5376
        %v5581 = vadd.f32 %v1549, %v5377
        %v5582 = vadd.f32 %v1550, %v5378
        %v5583 = vadd.f32 %v1551, %v5379
        %v5584 = vadd.f32 %v1520, %v5380
        %v5585 = vadd.f32 %v1521, %v5381
        %v5586 = vadd.f32 %v1522, %v5382
        %v5587 = vadd.f32 %v1523, %v5383
        %v5588 = vadd.f32 %v1524, %v5380
        %v5589 = vadd.f32 %v1525, %v5381
        %v5590 = vadd.f32 %v1526, %v5382
        %v5591 = vadd.f32 %v1527, %v5383
        %v5592 = vadd.f32 %v1528, %v5380
        %v5593 = vadd.f32 %v1529, %v5381
        %v5594 = vadd.f32 %v1530, %v5382
        %v5595 = vadd.f32 %v1531, %v5383
        %v5596 = vadd.f32 %v1532, %v5380
        %v5597 = vadd.f32 %v1533, %v5381
        %v5598 = vadd.f32 %v1534, %v5382
        %v5599 = vadd.f32 %v1535, %v5383
        %v5600 = vadd.f32 %v1536, %v5380
        %v5601 = vadd.f32 %v1537, %v5381
        %v5602 = vadd.f32 %v1538, %v5382
        %v5603 = vadd.f32 %v1539, %v5383
        %v5604 = vadd.f32 %v1540, %v5380
        %v5605 = vadd.f32 %v1541, %v5381
        %v5606 = vadd.f32 %v1542, %v5382
        %v5607 = vadd.f32 %v1543, %v5383
        %v5608 = vadd.f32 %v1544, %v5380
        %v5609 = vadd.f32 %v1545, %v5381
        %v5610 = vadd.f32 %v1546, %v5382
        %v5611 = vadd.f32 %v1547, %v5383
        %v5612 = vadd.f32 %v1548, %v5380
        %v5613 = vadd.f32 %v1549, %v5381
        %v5614 = vadd.f32 %v1550, %v5382
        %v5615 = vadd.f32 %v1551, %v5383
        %v5616 = vadd.f32 %v1520, %v5384
        %v5617 = vadd.f32 %v1521, %v5385
        %v5618 = vadd.f32 %v1522, %v5386
        %v5619 = vadd.f32 %v1523, %v5387
        %v5620 = vadd.f32 %v1524, %v5384
        %v5621 = vadd.f32 %v1525, %v5385
        %v5622 = vadd.f32 %v1526, %v5386
        %v5623 = vadd.f32 %v1527, %v5387
        %v5624 = vadd.f32 %v1528, %v5384
        %v5625 = vadd.f32 %v1529, %v5385
        %v5626 = vadd.f32 %v1530, %v5386
        %v5627 = vadd.f32 %v1531, %v5387
        %v5628 = vadd.f32 %v1532, %v5384
        %v5629 = vadd.f32 %v1533, %v5385
        %v5630 = vadd.f32 %v1534, %v5386
        %v5631 = vadd.f32 %v1535, %v5387
        %v5632 = vadd.f32 %v1536, %v5384
        %v5633 = vadd.f32 %v1537, %v5385
        %v5634 = vadd.f32 %v1538, %v5386
        %v5635 = vadd.f32 %v1539, %v5387
        %v5636 = vadd.f32 %v1540, %v5384
        %v5637 = vadd.f32 %v1541, %v5385
        %v5638 = vadd.f32 %v1542, %v5386
        %v5639 = vadd.f32 %v1543, %v5387
        %v5640 = vadd.f32 %v1544, %v5384
        %v5641 = vadd.f32 %v1545, %v5385
        %v5642 = vadd.f32 %v1546, %v5386
        %v5643 = vadd.f32 %v1547, %v5387
        %v5644 = vadd.f32 %v1548, %v5384
        %v5645 = vadd.f32 %v1549, %v5385
        %v5646 = vadd.f32 %v1550, %v5386
        %v5647 = vadd.f32 %v1551, %v5387
        %v5648 = vadd.f32 %v1520, %v5388
        %v5649 = vadd.f32 %v1521, %v5389
        %v5650 = vadd.f32 %v1522, %v5390
        %v5651 = vadd.f32 %v1523, %v5391
        %v5652 = vadd.f32 %v1524, %v5388
        %v5653 = vadd.f32 %v1525, %v5389
        %v5654 = vadd.f32 %v1526, %v5390
        %v5655 = vadd.f32 %v1527, %v5391
        %v5656 = vadd.f32 %v1528, %v5388
        %v5657 = vadd.f32 %v1529, %v5389
        %v5658 = vadd.f32 %v1530, %v5390
        %v5659 = vadd.f32 %v1531, %v5391
        %v5660 = vadd.f32 %v1532, %v5388
        %v5661 = vadd.f32 %v1533, %v5389
        %v5662 = vadd.f32 %v1534, %v5390
        %v5663 = vadd.f32 %v1535, %v5391
        %v5664 = vadd.f32 %v1536, %v5388
        %v5665 = vadd.f32 %v1537, %v5389
        %v5666 = vadd.f32 %v1538, %v5390
        %v5667 = vadd.f32 %v1539, %v5391
        %v5668 = vadd.f32 %v1540, %v5388
        %v5669 = vadd.f32 %v1541, %v5389
        %v5670 = vadd.f32 %v1542, %v5390
        %v5671 = vadd.f32 %v1543, %v5391
        %v5672 = vadd.f32 %v1544, %v5388
        %v5673 = vadd.f32 %v1545, %v5389
        %v5674 = vadd.f32 %v1546, %v5390
        %v5675 = vadd.f32 %v1547, %v5391
        %v5676 = vadd.f32 %v1548, %v5388
        %v5677 = vadd.f32 %v1549, %v5389
        %v5678 = vadd.f32 %v1550, %v5390
        %v5679 = vadd.f32 %v1551, %v5391
        %v5680 = vmax.f32 %v5424, %v5425
        %v5681 = vmax.f32 %v5680, %v5426
        %v5682 = vmax.f32 %v5681, %v5427
        %5683 = vmax.xlane.f32.xlu0 %v5682
        %v5684 = vpop.xlane.xlu0 %5683
        %v5685 = vmax.f32 %v5428, %v5429
        %v5686 = vmax.f32 %v5685, %v5430
        %v5687 = vmax.f32 %v5686, %v5431
        %5688 = vmax.xlane.f32.xlu0 %v5687
        %v5689 = vpop.xlane.xlu0 %5688
        %v5690 = vmax.f32 %v5432, %v5433
        %v5691 = vmax.f32 %v5690, %v5434
        %v5692 = vmax.f32 %v5691, %v5435
        %5693 = vmax.xlane.f32.xlu0 %v5692
        %v5694 = vpop.xlane.xlu0 %5693
        %v5695 = vmax.f32 %v5436, %v5437
        %v5696 = vmax.f32 %v5695, %v5438
        %v5697 = vmax.f32 %v5696, %v5439
        %5698 = vmax.xlane.f32.xlu0 %v5697
        %v5699 = vpop.xlane.xlu0 %5698
        %v5700 = vmax.f32 %v5440, %v5441
        %v5701 = vmax.f32 %v5700, %v5442
        %v5702 = vmax.f32 %v5701, %v5443
        %5703 = vmax.xlane.f32.xlu0 %v5702
        %v5704 = vpop.xlane.xlu0 %5703
        %v5705 = vmax.f32 %v5444, %v5445
        %v5706 = vmax.f32 %v5705, %v5446
        %v5707 = vmax.f32 %v5706, %v5447
        %5708 = vmax.xlane.f32.xlu0 %v5707
        %v5709 = vpop.xlane.xlu0 %5708
        %v5710 = vmax.f32 %v5448, %v5449
        %v5711 = vmax.f32 %v5710, %v5450
        %v5712 = vmax.f32 %v5711, %v5451
        %5713 = vmax.xlane.f32.xlu0 %v5712
        %v5714 = vpop.xlane.xlu0 %5713
        %v5715 = vmax.f32 %v5452, %v5453
        %v5716 = vmax.f32 %v5715, %v5454
        %v5717 = vmax.f32 %v5716, %v5455
        %5718 = vmax.xlane.f32.xlu0 %v5717
        %v5719 = vpop.xlane.xlu0 %5718
        %v5720 = vmax.f32 %v5456, %v5457
        %v5721 = vmax.f32 %v5720, %v5458
        %v5722 = vmax.f32 %v5721, %v5459
        %5723 = vmax.xlane.f32.xlu0 %v5722
        %v5724 = vpop.xlane.xlu0 %5723
        %v5725 = vmax.f32 %v5460, %v5461
        %v5726 = vmax.f32 %v5725, %v5462
        %v5727 = vmax.f32 %v5726, %v5463
        %5728 = vmax.xlane.f32.xlu0 %v5727
        %v5729 = vpop.xlane.xlu0 %5728
        %v5730 = vmax.f32 %v5464, %v5465
        %v5731 = vmax.f32 %v5730, %v5466
        %v5732 = vmax.f32 %v5731, %v5467
        %5733 = vmax.xlane.f32.xlu0 %v5732
        %v5734 = vpop.xlane.xlu0 %5733
        %v5735 = vmax.f32 %v5468, %v5469
        %v5736 = vmax.f32 %v5735, %v5470
        %v5737 = vmax.f32 %v5736, %v5471
        %5738 = vmax.xlane.f32.xlu0 %v5737
        %v5739 = vpop.xlane.xlu0 %5738
        %v5740 = vmax.f32 %v5472, %v5473
        %v5741 = vmax.f32 %v5740, %v5474
        %v5742 = vmax.f32 %v5741, %v5475
        %5743 = vmax.xlane.f32.xlu0 %v5742
        %v5744 = vpop.xlane.xlu0 %5743
        %v5745 = vmax.f32 %v5476, %v5477
        %v5746 = vmax.f32 %v5745, %v5478
        %v5747 = vmax.f32 %v5746, %v5479
        %5748 = vmax.xlane.f32.xlu0 %v5747
        %v5749 = vpop.xlane.xlu0 %5748
        %v5750 = vmax.f32 %v5480, %v5481
        %v5751 = vmax.f32 %v5750, %v5482
        %v5752 = vmax.f32 %v5751, %v5483
        %5753 = vmax.xlane.f32.xlu0 %v5752
        %v5754 = vpop.xlane.xlu0 %5753
        %v5755 = vmax.f32 %v5484, %v5485
        %v5756 = vmax.f32 %v5755, %v5486
        %v5757 = vmax.f32 %v5756, %v5487
        %5758 = vmax.xlane.f32.xlu0 %v5757
        %v5759 = vpop.xlane.xlu0 %5758
        %v5760 = vmax.f32 %v5488, %v5489
        %v5761 = vmax.f32 %v5760, %v5490
        %v5762 = vmax.f32 %v5761, %v5491
        %5763 = vmax.xlane.f32.xlu0 %v5762
        %v5764 = vpop.xlane.xlu0 %5763
        %v5765 = vmax.f32 %v5492, %v5493
        %v5766 = vmax.f32 %v5765, %v5494
        %v5767 = vmax.f32 %v5766, %v5495
        %5768 = vmax.xlane.f32.xlu0 %v5767
        %v5769 = vpop.xlane.xlu0 %5768
        %v5770 = vmax.f32 %v5496, %v5497
        %v5771 = vmax.f32 %v5770, %v5498
        %v5772 = vmax.f32 %v5771, %v5499
        %5773 = vmax.xlane.f32.xlu0 %v5772
        %v5774 = vpop.xlane.xlu0 %5773
        %v5775 = vmax.f32 %v5500, %v5501
        %v5776 = vmax.f32 %v5775, %v5502
        %v5777 = vmax.f32 %v5776, %v5503
        %5778 = vmax.xlane.f32.xlu0 %v5777
        %v5779 = vpop.xlane.xlu0 %5778
        %v5780 = vmax.f32 %v5504, %v5505
        %v5781 = vmax.f32 %v5780, %v5506
        %v5782 = vmax.f32 %v5781, %v5507
        %5783 = vmax.xlane.f32.xlu0 %v5782
        %v5784 = vpop.xlane.xlu0 %5783
        %v5785 = vmax.f32 %v5508, %v5509
        %v5786 = vmax.f32 %v5785, %v5510
        %v5787 = vmax.f32 %v5786, %v5511
        %5788 = vmax.xlane.f32.xlu0 %v5787
        %v5789 = vpop.xlane.xlu0 %5788
        %v5790 = vmax.f32 %v5512, %v5513
        %v5791 = vmax.f32 %v5790, %v5514
        %v5792 = vmax.f32 %v5791, %v5515
        %5793 = vmax.xlane.f32.xlu0 %v5792
        %v5794 = vpop.xlane.xlu0 %5793
        %v5795 = vmax.f32 %v5516, %v5517
        %v5796 = vmax.f32 %v5795, %v5518
        %v5797 = vmax.f32 %v5796, %v5519
        %5798 = vmax.xlane.f32.xlu0 %v5797
        %v5799 = vpop.xlane.xlu0 %5798
        %v5800 = vmax.f32 %v5520, %v5521
        %v5801 = vmax.f32 %v5800, %v5522
        %v5802 = vmax.f32 %v5801, %v5523
        %5803 = vmax.xlane.f32.xlu0 %v5802
        %v5804 = vpop.xlane.xlu0 %5803
        %v5805 = vmax.f32 %v5524, %v5525
        %v5806 = vmax.f32 %v5805, %v5526
        %v5807 = vmax.f32 %v5806, %v5527
        %5808 = vmax.xlane.f32.xlu0 %v5807
        %v5809 = vpop.xlane.xlu0 %5808
        %v5810 = vmax.f32 %v5528, %v5529
        %v5811 = vmax.f32 %v5810, %v5530
        %v5812 = vmax.f32 %v5811, %v5531
        %5813 = vmax.xlane.f32.xlu0 %v5812
        %v5814 = vpop.xlane.xlu0 %5813
        %v5815 = vmax.f32 %v5532, %v5533
        %v5816 = vmax.f32 %v5815, %v5534
        %v5817 = vmax.f32 %v5816, %v5535
        %5818 = vmax.xlane.f32.xlu0 %v5817
        %v5819 = vpop.xlane.xlu0 %5818
        %v5820 = vmax.f32 %v5536, %v5537
        %v5821 = vmax.f32 %v5820, %v5538
        %v5822 = vmax.f32 %v5821, %v5539
        %5823 = vmax.xlane.f32.xlu0 %v5822
        %v5824 = vpop.xlane.xlu0 %5823
        %v5825 = vmax.f32 %v5540, %v5541
        %v5826 = vmax.f32 %v5825, %v5542
        %v5827 = vmax.f32 %v5826, %v5543
        %5828 = vmax.xlane.f32.xlu0 %v5827
        %v5829 = vpop.xlane.xlu0 %5828
        %v5830 = vmax.f32 %v5544, %v5545
        %v5831 = vmax.f32 %v5830, %v5546
        %v5832 = vmax.f32 %v5831, %v5547
        %5833 = vmax.xlane.f32.xlu0 %v5832
        %v5834 = vpop.xlane.xlu0 %5833
        %v5835 = vmax.f32 %v5548, %v5549
        %v5836 = vmax.f32 %v5835, %v5550
        %v5837 = vmax.f32 %v5836, %v5551
        %5838 = vmax.xlane.f32.xlu0 %v5837
        %v5839 = vpop.xlane.xlu0 %5838
        %v5840 = vmax.f32 %v5552, %v5553
        %v5841 = vmax.f32 %v5840, %v5554
        %v5842 = vmax.f32 %v5841, %v5555
        %5843 = vmax.xlane.f32.xlu0 %v5842
        %v5844 = vpop.xlane.xlu0 %5843
        %v5845 = vmax.f32 %v5556, %v5557
        %v5846 = vmax.f32 %v5845, %v5558
        %v5847 = vmax.f32 %v5846, %v5559
        %5848 = vmax.xlane.f32.xlu0 %v5847
        %v5849 = vpop.xlane.xlu0 %5848
        %v5850 = vmax.f32 %v5560, %v5561
        %v5851 = vmax.f32 %v5850, %v5562
        %v5852 = vmax.f32 %v5851, %v5563
        %5853 = vmax.xlane.f32.xlu0 %v5852
        %v5854 = vpop.xlane.xlu0 %5853
        %v5855 = vmax.f32 %v5564, %v5565
        %v5856 = vmax.f32 %v5855, %v5566
        %v5857 = vmax.f32 %v5856, %v5567
        %5858 = vmax.xlane.f32.xlu0 %v5857
        %v5859 = vpop.xlane.xlu0 %5858
        %v5860 = vmax.f32 %v5568, %v5569
        %v5861 = vmax.f32 %v5860, %v5570
        %v5862 = vmax.f32 %v5861, %v5571
        %5863 = vmax.xlane.f32.xlu0 %v5862
        %v5864 = vpop.xlane.xlu0 %5863
        %v5865 = vmax.f32 %v5572, %v5573
        %v5866 = vmax.f32 %v5865, %v5574
        %v5867 = vmax.f32 %v5866, %v5575
        %5868 = vmax.xlane.f32.xlu0 %v5867
        %v5869 = vpop.xlane.xlu0 %5868
        %v5870 = vmax.f32 %v5576, %v5577
        %v5871 = vmax.f32 %v5870, %v5578
        %v5872 = vmax.f32 %v5871, %v5579
        %5873 = vmax.xlane.f32.xlu0 %v5872
        %v5874 = vpop.xlane.xlu0 %5873
        %v5875 = vmax.f32 %v5580, %v5581
        %v5876 = vmax.f32 %v5875, %v5582
        %v5877 = vmax.f32 %v5876, %v5583
        %5878 = vmax.xlane.f32.xlu0 %v5877
        %v5879 = vpop.xlane.xlu0 %5878
        %v5880 = vmax.f32 %v5584, %v5585
        %v5881 = vmax.f32 %v5880, %v5586
        %v5882 = vmax.f32 %v5881, %v5587
        %5883 = vmax.xlane.f32.xlu0 %v5882
        %v5884 = vpop.xlane.xlu0 %5883
        %v5885 = vmax.f32 %v5588, %v5589
        %v5886 = vmax.f32 %v5885, %v5590
        %v5887 = vmax.f32 %v5886, %v5591
        %5888 = vmax.xlane.f32.xlu0 %v5887
        %v5889 = vpop.xlane.xlu0 %5888
        %v5890 = vmax.f32 %v5592, %v5593
        %v5891 = vmax.f32 %v5890, %v5594
        %v5892 = vmax.f32 %v5891, %v5595
        %5893 = vmax.xlane.f32.xlu0 %v5892
        %v5894 = vpop.xlane.xlu0 %5893
        %v5895 = vmax.f32 %v5596, %v5597
        %v5896 = vmax.f32 %v5895, %v5598
        %v5897 = vmax.f32 %v5896, %v5599
        %5898 = vmax.xlane.f32.xlu0 %v5897
        %v5899 = vpop.xlane.xlu0 %5898
        %v5900 = vmax.f32 %v5600, %v5601
        %v5901 = vmax.f32 %v5900, %v5602
        %v5902 = vmax.f32 %v5901, %v5603
        %5903 = vmax.xlane.f32.xlu0 %v5902
        %v5904 = vpop.xlane.xlu0 %5903
        %v5905 = vmax.f32 %v5604, %v5605
        %v5906 = vmax.f32 %v5905, %v5606
        %v5907 = vmax.f32 %v5906, %v5607
        %5908 = vmax.xlane.f32.xlu0 %v5907
        %v5909 = vpop.xlane.xlu0 %5908
        %v5910 = vmax.f32 %v5608, %v5609
        %v5911 = vmax.f32 %v5910, %v5610
        %v5912 = vmax.f32 %v5911, %v5611
        %5913 = vmax.xlane.f32.xlu0 %v5912
        %v5914 = vpop.xlane.xlu0 %5913
        %v5915 = vmax.f32 %v5612, %v5613
        %v5916 = vmax.f32 %v5915, %v5614
        %v5917 = vmax.f32 %v5916, %v5615
        %5918 = vmax.xlane.f32.xlu0 %v5917
        %v5919 = vpop.xlane.xlu0 %5918
        %v5920 = vmax.f32 %v5616, %v5617
        %v5921 = vmax.f32 %v5920, %v5618
        %v5922 = vmax.f32 %v5921, %v5619
        %5923 = vmax.xlane.f32.xlu0 %v5922
        %v5924 = vpop.xlane.xlu0 %5923
        %v5925 = vmax.f32 %v5620, %v5621
        %v5926 = vmax.f32 %v5925, %v5622
        %v5927 = vmax.f32 %v5926, %v5623
        %5928 = vmax.xlane.f32.xlu0 %v5927
        %v5929 = vpop.xlane.xlu0 %5928
        %v5930 = vmax.f32 %v5624, %v5625
        %v5931 = vmax.f32 %v5930, %v5626
        %v5932 = vmax.f32 %v5931, %v5627
        %5933 = vmax.xlane.f32.xlu0 %v5932
        %v5934 = vpop.xlane.xlu0 %5933
        %v5935 = vmax.f32 %v5628, %v5629
        %v5936 = vmax.f32 %v5935, %v5630
        %v5937 = vmax.f32 %v5936, %v5631
        %5938 = vmax.xlane.f32.xlu0 %v5937
        %v5939 = vpop.xlane.xlu0 %5938
        %v5940 = vmax.f32 %v5632, %v5633
        %v5941 = vmax.f32 %v5940, %v5634
        %v5942 = vmax.f32 %v5941, %v5635
        %5943 = vmax.xlane.f32.xlu0 %v5942
        %v5944 = vpop.xlane.xlu0 %5943
        %v5945 = vmax.f32 %v5636, %v5637
        %v5946 = vmax.f32 %v5945, %v5638
        %v5947 = vmax.f32 %v5946, %v5639
        %5948 = vmax.xlane.f32.xlu0 %v5947
        %v5949 = vpop.xlane.xlu0 %5948
        %v5950 = vmax.f32 %v5640, %v5641
        %v5951 = vmax.f32 %v5950, %v5642
        %v5952 = vmax.f32 %v5951, %v5643
        %5953 = vmax.xlane.f32.xlu0 %v5952
        %v5954 = vpop.xlane.xlu0 %5953
        %v5955 = vmax.f32 %v5644, %v5645
        %v5956 = vmax.f32 %v5955, %v5646
        %v5957 = vmax.f32 %v5956, %v5647
        %5958 = vmax.xlane.f32.xlu0 %v5957
        %v5959 = vpop.xlane.xlu0 %5958
        %v5960 = vmax.f32 %v5648, %v5649
        %v5961 = vmax.f32 %v5960, %v5650
        %v5962 = vmax.f32 %v5961, %v5651
        %5963 = vmax.xlane.f32.xlu0 %v5962
        %v5964 = vpop.xlane.xlu0 %5963
        %v5965 = vmax.f32 %v5652, %v5653
        %v5966 = vmax.f32 %v5965, %v5654
        %v5967 = vmax.f32 %v5966, %v5655
        %5968 = vmax.xlane.f32.xlu0 %v5967
        %v5969 = vpop.xlane.xlu0 %5968
        %v5970 = vmax.f32 %v5656, %v5657
        %v5971 = vmax.f32 %v5970, %v5658
        %v5972 = vmax.f32 %v5971, %v5659
        %5973 = vmax.xlane.f32.xlu0 %v5972
        %v5974 = vpop.xlane.xlu0 %5973
        %v5975 = vmax.f32 %v5660, %v5661
        %v5976 = vmax.f32 %v5975, %v5662
        %v5977 = vmax.f32 %v5976, %v5663
        %5978 = vmax.xlane.f32.xlu0 %v5977
        %v5979 = vpop.xlane.xlu0 %5978
        %v5980 = vmax.f32 %v5664, %v5665
        %v5981 = vmax.f32 %v5980, %v5666
        %v5982 = vmax.f32 %v5981, %v5667
        %5983 = vmax.xlane.f32.xlu0 %v5982
        %v5984 = vpop.xlane.xlu0 %5983
        %v5985 = vmax.f32 %v5668, %v5669
        %v5986 = vmax.f32 %v5985, %v5670
        %v5987 = vmax.f32 %v5986, %v5671
        %5988 = vmax.xlane.f32.xlu0 %v5987
        %v5989 = vpop.xlane.xlu0 %5988
        %v5990 = vmax.f32 %v5672, %v5673
        %v5991 = vmax.f32 %v5990, %v5674
        %v5992 = vmax.f32 %v5991, %v5675
        %5993 = vmax.xlane.f32.xlu0 %v5992
        %v5994 = vpop.xlane.xlu0 %5993
        %v5995 = vmax.f32 %v5676, %v5677
        %v5996 = vmax.f32 %v5995, %v5678
        %v5997 = vmax.f32 %v5996, %v5679
        %5998 = vmax.xlane.f32.xlu0 %v5997
        %v5999 = vpop.xlane.xlu0 %5998
        %v6000 = vld [vmem:[%s17 + $0x200] sm:$0xff]
        %v6001 = vld [vmem:[%s17 + $0x208] sm:$0xff]
        %v6002 = vld [vmem:[%s17 + $0x210] sm:$0xff]
        %v6003 = vld [vmem:[%s17 + $0x218] sm:$0xff]
        %v6004 = vld [vmem:[%s17 + $0x220] sm:$0xff]
        %v6005 = vld [vmem:[%s17 + $0x228] sm:$0xff]
        %v6006 = vld [vmem:[%s17 + $0x230] sm:$0xff]
        %v6007 = vld [vmem:[%s17 + $0x238] sm:$0xff]
        %v6008 = vld [vmem:[%s17 + $0x240] sm:$0xff]
        %v6009 = vld [vmem:[%s17 + $0x248] sm:$0xff]
        %v6010 = vld [vmem:[%s17 + $0x250] sm:$0xff]
        %v6011 = vld [vmem:[%s17 + $0x258] sm:$0xff]
        %v6012 = vld [vmem:[%s17 + $0x260] sm:$0xff]
        %v6013 = vld [vmem:[%s17 + $0x268] sm:$0xff]
        %v6014 = vld [vmem:[%s17 + $0x270] sm:$0xff]
        %v6015 = vld [vmem:[%s17 + $0x278] sm:$0xff]
        %v6080 = vperm.slane %v5684, %v3030
        %v6081 = vperm.slane %v5689, %v3032
        %v6082 = vsel %vm3034, %v6081, %v6080
        %v6083 = vperm.slane %v5694, %v3036
        %v6084 = vsel %vm3038, %v6083, %v6082
        %v6085 = vperm.slane %v5699, %v3040
        %v6086 = vsel %vm3042, %v6085, %v6084
        %v6087 = vperm.slane %v5704, %v3044
        %v6088 = vsel %vm3046, %v6087, %v6086
        %v6089 = vperm.slane %v5709, %v3048
        %v6090 = vsel %vm3050, %v6089, %v6088
        %v6091 = vperm.slane %v5714, %v3052
        %v6092 = vsel %vm3054, %v6091, %v6090
        %v6093 = vperm.slane %v5719, %v3056
        %v6094 = vsel %vm3058, %v6093, %v6092
        %v6095 = vperm.slane %v5724, %v3030
        %v6096 = vperm.slane %v5729, %v3032
        %v6097 = vsel %vm3034, %v6096, %v6095
        %v6098 = vperm.slane %v5734, %v3036
        %v6099 = vsel %vm3038, %v6098, %v6097
        %v6100 = vperm.slane %v5739, %v3040
        %v6101 = vsel %vm3042, %v6100, %v6099
        %v6102 = vperm.slane %v5744, %v3044
        %v6103 = vsel %vm3046, %v6102, %v6101
        %v6104 = vperm.slane %v5749, %v3048
        %v6105 = vsel %vm3050, %v6104, %v6103
        %v6106 = vperm.slane %v5754, %v3052
        %v6107 = vsel %vm3054, %v6106, %v6105
        %v6108 = vperm.slane %v5759, %v3056
        %v6109 = vsel %vm3058, %v6108, %v6107
        %v6110 = vperm.slane %v5764, %v3030
        %v6111 = vperm.slane %v5769, %v3032
        %v6112 = vsel %vm3034, %v6111, %v6110
        %v6113 = vperm.slane %v5774, %v3036
        %v6114 = vsel %vm3038, %v6113, %v6112
        %v6115 = vperm.slane %v5779, %v3040
        %v6116 = vsel %vm3042, %v6115, %v6114
        %v6117 = vperm.slane %v5784, %v3044
        %v6118 = vsel %vm3046, %v6117, %v6116
        %v6119 = vperm.slane %v5789, %v3048
        %v6120 = vsel %vm3050, %v6119, %v6118
        %v6121 = vperm.slane %v5794, %v3052
        %v6122 = vsel %vm3054, %v6121, %v6120
        %v6123 = vperm.slane %v5799, %v3056
        %v6124 = vsel %vm3058, %v6123, %v6122
        %v6125 = vperm.slane %v5804, %v3030
        %v6126 = vperm.slane %v5809, %v3032
        %v6127 = vsel %vm3034, %v6126, %v6125
        %v6128 = vperm.slane %v5814, %v3036
        %v6129 = vsel %vm3038, %v6128, %v6127
        %v6130 = vperm.slane %v5819, %v3040
        %v6131 = vsel %vm3042, %v6130, %v6129
        %v6132 = vperm.slane %v5824, %v3044
        %v6133 = vsel %vm3046, %v6132, %v6131
        %v6134 = vperm.slane %v5829, %v3048
        %v6135 = vsel %vm3050, %v6134, %v6133
        %v6136 = vperm.slane %v5834, %v3052
        %v6137 = vsel %vm3054, %v6136, %v6135
        %v6138 = vperm.slane %v5839, %v3056
        %v6139 = vsel %vm3058, %v6138, %v6137
        %v6140 = vperm.slane %v5844, %v3030
        %v6141 = vperm.slane %v5849, %v3032
        %v6142 = vsel %vm3034, %v6141, %v6140
        %v6143 = vperm.slane %v5854, %v3036
        %v6144 = vsel %vm3038, %v6143, %v6142
        %v6145 = vperm.slane %v5859, %v3040
        %v6146 = vsel %vm3042, %v6145, %v6144
        %v6147 = vperm.slane %v5864, %v3044
        %v6148 = vsel %vm3046, %v6147, %v6146
        %v6149 = vperm.slane %v5869, %v3048
        %v6150 = vsel %vm3050, %v6149, %v6148
        %v6151 = vperm.slane %v5874, %v3052
        %v6152 = vsel %vm3054, %v6151, %v6150
        %v6153 = vperm.slane %v5879, %v3056
        %v6154 = vsel %vm3058, %v6153, %v6152
        %v6155 = vperm.slane %v5884, %v3030
        %v6156 = vperm.slane %v5889, %v3032
        %v6157 = vsel %vm3034, %v6156, %v6155
        %v6158 = vperm.slane %v5894, %v3036
        %v6159 = vsel %vm3038, %v6158, %v6157
        %v6160 = vperm.slane %v5899, %v3040
        %v6161 = vsel %vm3042, %v6160, %v6159
        %v6162 = vperm.slane %v5904, %v3044
        %v6163 = vsel %vm3046, %v6162, %v6161
        %v6164 = vperm.slane %v5909, %v3048
        %v6165 = vsel %vm3050, %v6164, %v6163
        %v6166 = vperm.slane %v5914, %v3052
        %v6167 = vsel %vm3054, %v6166, %v6165
        %v6168 = vperm.slane %v5919, %v3056
        %v6169 = vsel %vm3058, %v6168, %v6167
        %v6170 = vperm.slane %v5924, %v3030
        %v6171 = vperm.slane %v5929, %v3032
        %v6172 = vsel %vm3034, %v6171, %v6170
        %v6173 = vperm.slane %v5934, %v3036
        %v6174 = vsel %vm3038, %v6173, %v6172
        %v6175 = vperm.slane %v5939, %v3040
        %v6176 = vsel %vm3042, %v6175, %v6174
        %v6177 = vperm.slane %v5944, %v3044
        %v6178 = vsel %vm3046, %v6177, %v6176
        %v6179 = vperm.slane %v5949, %v3048
        %v6180 = vsel %vm3050, %v6179, %v6178
        %v6181 = vperm.slane %v5954, %v3052
        %v6182 = vsel %vm3054, %v6181, %v6180
        %v6183 = vperm.slane %v5959, %v3056
        %v6184 = vsel %vm3058, %v6183, %v6182
        %v6185 = vperm.slane %v5964, %v3030
        %v6186 = vperm.slane %v5969, %v3032
        %v6187 = vsel %vm3034, %v6186, %v6185
        %v6188 = vperm.slane %v5974, %v3036
        %v6189 = vsel %vm3038, %v6188, %v6187
        %v6190 = vperm.slane %v5979, %v3040
        %v6191 = vsel %vm3042, %v6190, %v6189
        %v6192 = vperm.slane %v5984, %v3044
        %v6193 = vsel %vm3046, %v6192, %v6191
        %v6194 = vperm.slane %v5989, %v3048
        %v6195 = vsel %vm3050, %v6194, %v6193
        %v6196 = vperm.slane %v5994, %v3052
        %v6197 = vsel %vm3054, %v6196, %v6195
        %v6198 = vperm.slane %v5999, %v3056
        %v6199 = vsel %vm3058, %v6198, %v6197
        %v6200 = vsel %vm1569, %v6109, %v6094
        %v6201 = vsel %vm1565, %v6124, %v6200
        %v6202 = vsel %vm1571, %v6139, %v6201
        %v6203 = vsel %vm1577, %v6154, %v6202
        %v6204 = vsel %vm1583, %v6169, %v6203
        %v6205 = vsel %vm1589, %v6184, %v6204
        %v6206 = vsel %vm3171, %v6199, %v6205
        %v6207 = vsel %vm3173, %v6206, 0
        %6209 = vmatpush.msra.mxu0 0.0
        %6210 = vmatpush.msra.mxu0 0.0
        %6211 = vmatpush.msra.mxu0 0.0
        %6212 = vmatpush.msra.mxu0 0.0
        %6213 = vmatpush.msra.mxu0 0.0
        %6214 = vmatpush.msra.mxu0 0.0
        %6215 = vmatpush.msra.mxu0 0.0
        %6216 = vmatpush.msra.mxu0 0.0
        %6217 = vmatpush.msra.mxu0 %v6014
        %6218 = vmatpush.msra.mxu0 %v6012
        %6219 = vmatpush.msra.mxu0 %v6010
        %6220 = vmatpush.msra.mxu0 %v6008
        %6221 = vmatpush.msra.mxu0 %v6006
        %6222 = vmatpush.msra.mxu0 %v6004
        %6223 = vmatpush.msra.mxu0 %v6002
        %6224 = vmatpush.msra.mxu0 %v6000
        %6225 = vmatmul.f32.gmra.mxu0 %v6207
        %v6226 = vpop.f32.mrf.mxu0
        %v6227 = vadd.f32 0.0, %v6226
        %6228 = vdwg.mxu0
        %6229 = vmatpush.msra.mxu0 0.0
        %6230 = vmatpush.msra.mxu0 0.0
        %6231 = vmatpush.msra.mxu0 0.0
        %6232 = vmatpush.msra.mxu0 0.0
        %6233 = vmatpush.msra.mxu0 0.0
        %6234 = vmatpush.msra.mxu0 0.0
        %6235 = vmatpush.msra.mxu0 0.0
        %6236 = vmatpush.msra.mxu0 0.0
        %6237 = vmatpush.msra.mxu0 %v6015
        %6238 = vmatpush.msra.mxu0 %v6013
        %6239 = vmatpush.msra.mxu0 %v6011
        %6240 = vmatpush.msra.mxu0 %v6009
        %6241 = vmatpush.msra.mxu0 %v6007
        %6242 = vmatpush.msra.mxu0 %v6005
        %6243 = vmatpush.msra.mxu0 %v6003
        %6244 = vmatpush.msra.mxu0 %v6001
        %6245 = vmatmul.f32.gmra.mxu0 %v6207
        %v6246 = vpop.f32.mrf.mxu0
        %v6247 = vadd.f32 0.0, %v6246
        %6248 = vdwg.mxu0
        %v6249 = vadd.f32 %v5315, %v6227
        %v6250 = vadd.f32 %v5316, %v6247
        %s6251 = scalar_lea.vmem %s975, 160
        %v6252 = vld [vmem:[%s6251] sm:$0xff]
        %v6253 = vld [vmem:[%s6251 + $0x8] sm:$0xff]
        %v6254 = vld [vmem:[%s6251 + $0x10] sm:$0xff]
        %v6255 = vld [vmem:[%s6251 + $0x18] sm:$0xff]
        %v6260 = vrot.slane %v6253, 7
        %v6261 = vrot.slane %v6254, 6
        %v6262 = vrot.slane %v6255, 5
        %v6263 = vsel %vm1563, %v6252, %v6260
        %v6264 = vsel %vm1565, %v6261, %v6262
        %v6265 = vsel %vm1567, %v6263, %v6264
        %v6266 = vsel %vm1569, %v6252, %v6260
        %v6267 = vsel %vm1571, %v6261, %v6262
        %v6268 = vsel %vm1573, %v6266, %v6267
        %v6269 = vrot.slane %v6268, 1
        %v6270 = vsel %vm1565, %v6252, %v6260
        %v6271 = vsel %vm1577, %v6261, %v6262
        %v6272 = vsel %vm1579, %v6270, %v6271
        %v6273 = vrot.slane %v6272, 2
        %v6274 = vsel %vm1571, %v6252, %v6260
        %v6275 = vsel %vm1583, %v6261, %v6262
        %v6276 = vsel %vm1585, %v6274, %v6275
        %v6277 = vrot.slane %v6276, 3
        %v6278 = vsel %vm1577, %v6252, %v6260
        %v6279 = vsel %vm1589, %v6261, %v6262
        %v6280 = vsel %vm1591, %v6278, %v6279
        %v6281 = vrot.slane %v6280, 4
        %v6282 = vsel %vm1583, %v6252, %v6260
        %v6283 = vsel %vm1595, %v6262, %v6261
        %v6284 = vsel %vm1597, %v6282, %v6283
        %v6285 = vrot.slane %v6284, 5
        %v6286 = vsel %vm1589, %v6252, %v6260
        %v6287 = vsel %vm1563, %v6261, %v6262
        %v6288 = vsel %vm1602, %v6287, %v6286
        %v6289 = vrot.slane %v6288, 6
        %v6290 = vsel %vm1595, %v6260, %v6252
        %v6291 = vsel %vm1569, %v6261, %v6262
        %v6292 = vsel %vm1607, %v6291, %v6290
        %v6293 = vrot.slane %v6292, 7
        %v6294 = vperm.slane %v6265, 0
        %v6295 = vperm.slane %v6265, 1
        %v6296 = vperm.slane %v6265, 2
        %v6297 = vperm.slane %v6265, 3
        %v6298 = vperm.slane %v6269, 0
        %v6299 = vperm.slane %v6269, 1
        %v6300 = vperm.slane %v6269, 2
        %v6301 = vperm.slane %v6269, 3
        %v6302 = vperm.slane %v6273, 0
        %v6303 = vperm.slane %v6273, 1
        %v6304 = vperm.slane %v6273, 2
        %v6305 = vperm.slane %v6273, 3
        %v6306 = vperm.slane %v6277, 0
        %v6307 = vperm.slane %v6277, 1
        %v6308 = vperm.slane %v6277, 2
        %v6309 = vperm.slane %v6277, 3
        %v6310 = vperm.slane %v6281, 0
        %v6311 = vperm.slane %v6281, 1
        %v6312 = vperm.slane %v6281, 2
        %v6313 = vperm.slane %v6281, 3
        %v6314 = vperm.slane %v6285, 0
        %v6315 = vperm.slane %v6285, 1
        %v6316 = vperm.slane %v6285, 2
        %v6317 = vperm.slane %v6285, 3
        %v6318 = vperm.slane %v6289, 0
        %v6319 = vperm.slane %v6289, 1
        %v6320 = vperm.slane %v6289, 2
        %v6321 = vperm.slane %v6289, 3
        %v6322 = vperm.slane %v6293, 0
        %v6323 = vperm.slane %v6293, 1
        %v6324 = vperm.slane %v6293, 2
        %v6325 = vperm.slane %v6293, 3
        %v6358 = vadd.f32 %v1520, %v6294
        %v6359 = vadd.f32 %v1521, %v6295
        %v6360 = vadd.f32 %v1522, %v6296
        %v6361 = vadd.f32 %v1523, %v6297
        %v6362 = vadd.f32 %v1524, %v6294
        %v6363 = vadd.f32 %v1525, %v6295
        %v6364 = vadd.f32 %v1526, %v6296
        %v6365 = vadd.f32 %v1527, %v6297
        %v6366 = vadd.f32 %v1528, %v6294
        %v6367 = vadd.f32 %v1529, %v6295
        %v6368 = vadd.f32 %v1530, %v6296
        %v6369 = vadd.f32 %v1531, %v6297
        %v6370 = vadd.f32 %v1532, %v6294
        %v6371 = vadd.f32 %v1533, %v6295
        %v6372 = vadd.f32 %v1534, %v6296
        %v6373 = vadd.f32 %v1535, %v6297
        %v6374 = vadd.f32 %v1536, %v6294
        %v6375 = vadd.f32 %v1537, %v6295
        %v6376 = vadd.f32 %v1538, %v6296
        %v6377 = vadd.f32 %v1539, %v6297
        %v6378 = vadd.f32 %v1540, %v6294
        %v6379 = vadd.f32 %v1541, %v6295
        %v6380 = vadd.f32 %v1542, %v6296
        %v6381 = vadd.f32 %v1543, %v6297
        %v6382 = vadd.f32 %v1544, %v6294
        %v6383 = vadd.f32 %v1545, %v6295
        %v6384 = vadd.f32 %v1546, %v6296
        %v6385 = vadd.f32 %v1547, %v6297
        %v6386 = vadd.f32 %v1548, %v6294
        %v6387 = vadd.f32 %v1549, %v6295
        %v6388 = vadd.f32 %v1550, %v6296
        %v6389 = vadd.f32 %v1551, %v6297
        %v6390 = vadd.f32 %v1520, %v6298
        %v6391 = vadd.f32 %v1521, %v6299
        %v6392 = vadd.f32 %v1522, %v6300
        %v6393 = vadd.f32 %v1523, %v6301
        %v6394 = vadd.f32 %v1524, %v6298
        %v6395 = vadd.f32 %v1525, %v6299
        %v6396 = vadd.f32 %v1526, %v6300
        %v6397 = vadd.f32 %v1527, %v6301
        %v6398 = vadd.f32 %v1528, %v6298
        %v6399 = vadd.f32 %v1529, %v6299
        %v6400 = vadd.f32 %v1530, %v6300
        %v6401 = vadd.f32 %v1531, %v6301
        %v6402 = vadd.f32 %v1532, %v6298
        %v6403 = vadd.f32 %v1533, %v6299
        %v6404 = vadd.f32 %v1534, %v6300
        %v6405 = vadd.f32 %v1535, %v6301
        %v6406 = vadd.f32 %v1536, %v6298
        %v6407 = vadd.f32 %v1537, %v6299
        %v6408 = vadd.f32 %v1538, %v6300
        %v6409 = vadd.f32 %v1539, %v6301
        %v6410 = vadd.f32 %v1540, %v6298
        %v6411 = vadd.f32 %v1541, %v6299
        %v6412 = vadd.f32 %v1542, %v6300
        %v6413 = vadd.f32 %v1543, %v6301
        %v6414 = vadd.f32 %v1544, %v6298
        %v6415 = vadd.f32 %v1545, %v6299
        %v6416 = vadd.f32 %v1546, %v6300
        %v6417 = vadd.f32 %v1547, %v6301
        %v6418 = vadd.f32 %v1548, %v6298
        %v6419 = vadd.f32 %v1549, %v6299
        %v6420 = vadd.f32 %v1550, %v6300
        %v6421 = vadd.f32 %v1551, %v6301
        %v6422 = vadd.f32 %v1520, %v6302
        %v6423 = vadd.f32 %v1521, %v6303
        %v6424 = vadd.f32 %v1522, %v6304
        %v6425 = vadd.f32 %v1523, %v6305
        %v6426 = vadd.f32 %v1524, %v6302
        %v6427 = vadd.f32 %v1525, %v6303
        %v6428 = vadd.f32 %v1526, %v6304
        %v6429 = vadd.f32 %v1527, %v6305
        %v6430 = vadd.f32 %v1528, %v6302
        %v6431 = vadd.f32 %v1529, %v6303
        %v6432 = vadd.f32 %v1530, %v6304
        %v6433 = vadd.f32 %v1531, %v6305
        %v6434 = vadd.f32 %v1532, %v6302
        %v6435 = vadd.f32 %v1533, %v6303
        %v6436 = vadd.f32 %v1534, %v6304
        %v6437 = vadd.f32 %v1535, %v6305
        %v6438 = vadd.f32 %v1536, %v6302
        %v6439 = vadd.f32 %v1537, %v6303
        %v6440 = vadd.f32 %v1538, %v6304
        %v6441 = vadd.f32 %v1539, %v6305
        %v6442 = vadd.f32 %v1540, %v6302
        %v6443 = vadd.f32 %v1541, %v6303
        %v6444 = vadd.f32 %v1542, %v6304
        %v6445 = vadd.f32 %v1543, %v6305
        %v6446 = vadd.f32 %v1544, %v6302
        %v6447 = vadd.f32 %v1545, %v6303
        %v6448 = vadd.f32 %v1546, %v6304
        %v6449 = vadd.f32 %v1547, %v6305
        %v6450 = vadd.f32 %v1548, %v6302
        %v6451 = vadd.f32 %v1549, %v6303
        %v6452 = vadd.f32 %v1550, %v6304
        %v6453 = vadd.f32 %v1551, %v6305
        %v6454 = vadd.f32 %v1520, %v6306
        %v6455 = vadd.f32 %v1521, %v6307
        %v6456 = vadd.f32 %v1522, %v6308
        %v6457 = vadd.f32 %v1523, %v6309
        %v6458 = vadd.f32 %v1524, %v6306
        %v6459 = vadd.f32 %v1525, %v6307
        %v6460 = vadd.f32 %v1526, %v6308
        %v6461 = vadd.f32 %v1527, %v6309
        %v6462 = vadd.f32 %v1528, %v6306
        %v6463 = vadd.f32 %v1529, %v6307
        %v6464 = vadd.f32 %v1530, %v6308
        %v6465 = vadd.f32 %v1531, %v6309
        %v6466 = vadd.f32 %v1532, %v6306
        %v6467 = vadd.f32 %v1533, %v6307
        %v6468 = vadd.f32 %v1534, %v6308
        %v6469 = vadd.f32 %v1535, %v6309
        %v6470 = vadd.f32 %v1536, %v6306
        %v6471 = vadd.f32 %v1537, %v6307
        %v6472 = vadd.f32 %v1538, %v6308
        %v6473 = vadd.f32 %v1539, %v6309
        %v6474 = vadd.f32 %v1540, %v6306
        %v6475 = vadd.f32 %v1541, %v6307
        %v6476 = vadd.f32 %v1542, %v6308
        %v6477 = vadd.f32 %v1543, %v6309
        %v6478 = vadd.f32 %v1544, %v6306
        %v6479 = vadd.f32 %v1545, %v6307
        %v6480 = vadd.f32 %v1546, %v6308
        %v6481 = vadd.f32 %v1547, %v6309
        %v6482 = vadd.f32 %v1548, %v6306
        %v6483 = vadd.f32 %v1549, %v6307
        %v6484 = vadd.f32 %v1550, %v6308
        %v6485 = vadd.f32 %v1551, %v6309
        %v6486 = vadd.f32 %v1520, %v6310
        %v6487 = vadd.f32 %v1521, %v6311
        %v6488 = vadd.f32 %v1522, %v6312
        %v6489 = vadd.f32 %v1523, %v6313
        %v6490 = vadd.f32 %v1524, %v6310
        %v6491 = vadd.f32 %v1525, %v6311
        %v6492 = vadd.f32 %v1526, %v6312
        %v6493 = vadd.f32 %v1527, %v6313
        %v6494 = vadd.f32 %v1528, %v6310
        %v6495 = vadd.f32 %v1529, %v6311
        %v6496 = vadd.f32 %v1530, %v6312
        %v6497 = vadd.f32 %v1531, %v6313
        %v6498 = vadd.f32 %v1532, %v6310
        %v6499 = vadd.f32 %v1533, %v6311
        %v6500 = vadd.f32 %v1534, %v6312
        %v6501 = vadd.f32 %v1535, %v6313
        %v6502 = vadd.f32 %v1536, %v6310
        %v6503 = vadd.f32 %v1537, %v6311
        %v6504 = vadd.f32 %v1538, %v6312
        %v6505 = vadd.f32 %v1539, %v6313
        %v6506 = vadd.f32 %v1540, %v6310
        %v6507 = vadd.f32 %v1541, %v6311
        %v6508 = vadd.f32 %v1542, %v6312
        %v6509 = vadd.f32 %v1543, %v6313
        %v6510 = vadd.f32 %v1544, %v6310
        %v6511 = vadd.f32 %v1545, %v6311
        %v6512 = vadd.f32 %v1546, %v6312
        %v6513 = vadd.f32 %v1547, %v6313
        %v6514 = vadd.f32 %v1548, %v6310
        %v6515 = vadd.f32 %v1549, %v6311
        %v6516 = vadd.f32 %v1550, %v6312
        %v6517 = vadd.f32 %v1551, %v6313
        %v6518 = vadd.f32 %v1520, %v6314
        %v6519 = vadd.f32 %v1521, %v6315
        %v6520 = vadd.f32 %v1522, %v6316
        %v6521 = vadd.f32 %v1523, %v6317
        %v6522 = vadd.f32 %v1524, %v6314
        %v6523 = vadd.f32 %v1525, %v6315
        %v6524 = vadd.f32 %v1526, %v6316
        %v6525 = vadd.f32 %v1527, %v6317
        %v6526 = vadd.f32 %v1528, %v6314
        %v6527 = vadd.f32 %v1529, %v6315
        %v6528 = vadd.f32 %v1530, %v6316
        %v6529 = vadd.f32 %v1531, %v6317
        %v6530 = vadd.f32 %v1532, %v6314
        %v6531 = vadd.f32 %v1533, %v6315
        %v6532 = vadd.f32 %v1534, %v6316
        %v6533 = vadd.f32 %v1535, %v6317
        %v6534 = vadd.f32 %v1536, %v6314
        %v6535 = vadd.f32 %v1537, %v6315
        %v6536 = vadd.f32 %v1538, %v6316
        %v6537 = vadd.f32 %v1539, %v6317
        %v6538 = vadd.f32 %v1540, %v6314
        %v6539 = vadd.f32 %v1541, %v6315
        %v6540 = vadd.f32 %v1542, %v6316
        %v6541 = vadd.f32 %v1543, %v6317
        %v6542 = vadd.f32 %v1544, %v6314
        %v6543 = vadd.f32 %v1545, %v6315
        %v6544 = vadd.f32 %v1546, %v6316
        %v6545 = vadd.f32 %v1547, %v6317
        %v6546 = vadd.f32 %v1548, %v6314
        %v6547 = vadd.f32 %v1549, %v6315
        %v6548 = vadd.f32 %v1550, %v6316
        %v6549 = vadd.f32 %v1551, %v6317
        %v6550 = vadd.f32 %v1520, %v6318
        %v6551 = vadd.f32 %v1521, %v6319
        %v6552 = vadd.f32 %v1522, %v6320
        %v6553 = vadd.f32 %v1523, %v6321
        %v6554 = vadd.f32 %v1524, %v6318
        %v6555 = vadd.f32 %v1525, %v6319
        %v6556 = vadd.f32 %v1526, %v6320
        %v6557 = vadd.f32 %v1527, %v6321
        %v6558 = vadd.f32 %v1528, %v6318
        %v6559 = vadd.f32 %v1529, %v6319
        %v6560 = vadd.f32 %v1530, %v6320
        %v6561 = vadd.f32 %v1531, %v6321
        %v6562 = vadd.f32 %v1532, %v6318
        %v6563 = vadd.f32 %v1533, %v6319
        %v6564 = vadd.f32 %v1534, %v6320
        %v6565 = vadd.f32 %v1535, %v6321
        %v6566 = vadd.f32 %v1536, %v6318
        %v6567 = vadd.f32 %v1537, %v6319
        %v6568 = vadd.f32 %v1538, %v6320
        %v6569 = vadd.f32 %v1539, %v6321
        %v6570 = vadd.f32 %v1540, %v6318
        %v6571 = vadd.f32 %v1541, %v6319
        %v6572 = vadd.f32 %v1542, %v6320
        %v6573 = vadd.f32 %v1543, %v6321
        %v6574 = vadd.f32 %v1544, %v6318
        %v6575 = vadd.f32 %v1545, %v6319
        %v6576 = vadd.f32 %v1546, %v6320
        %v6577 = vadd.f32 %v1547, %v6321
        %v6578 = vadd.f32 %v1548, %v6318
        %v6579 = vadd.f32 %v1549, %v6319
        %v6580 = vadd.f32 %v1550, %v6320
        %v6581 = vadd.f32 %v1551, %v6321
        %v6582 = vadd.f32 %v1520, %v6322
        %v6583 = vadd.f32 %v1521, %v6323
        %v6584 = vadd.f32 %v1522, %v6324
        %v6585 = vadd.f32 %v1523, %v6325
        %v6586 = vadd.f32 %v1524, %v6322
        %v6587 = vadd.f32 %v1525, %v6323
        %v6588 = vadd.f32 %v1526, %v6324
        %v6589 = vadd.f32 %v1527, %v6325
        %v6590 = vadd.f32 %v1528, %v6322
        %v6591 = vadd.f32 %v1529, %v6323
        %v6592 = vadd.f32 %v1530, %v6324
        %v6593 = vadd.f32 %v1531, %v6325
        %v6594 = vadd.f32 %v1532, %v6322
        %v6595 = vadd.f32 %v1533, %v6323
        %v6596 = vadd.f32 %v1534, %v6324
        %v6597 = vadd.f32 %v1535, %v6325
        %v6598 = vadd.f32 %v1536, %v6322
        %v6599 = vadd.f32 %v1537, %v6323
        %v6600 = vadd.f32 %v1538, %v6324
        %v6601 = vadd.f32 %v1539, %v6325
        %v6602 = vadd.f32 %v1540, %v6322
        %v6603 = vadd.f32 %v1541, %v6323
        %v6604 = vadd.f32 %v1542, %v6324
        %v6605 = vadd.f32 %v1543, %v6325
        %v6606 = vadd.f32 %v1544, %v6322
        %v6607 = vadd.f32 %v1545, %v6323
        %v6608 = vadd.f32 %v1546, %v6324
        %v6609 = vadd.f32 %v1547, %v6325
        %v6610 = vadd.f32 %v1548, %v6322
        %v6611 = vadd.f32 %v1549, %v6323
        %v6612 = vadd.f32 %v1550, %v6324
        %v6613 = vadd.f32 %v1551, %v6325
        %v6614 = vmax.f32 %v6358, %v6359
        %v6615 = vmax.f32 %v6614, %v6360
        %v6616 = vmax.f32 %v6615, %v6361
        %6617 = vmax.xlane.f32.xlu0 %v6616
        %v6618 = vpop.xlane.xlu0 %6617
        %v6619 = vmax.f32 %v6362, %v6363
        %v6620 = vmax.f32 %v6619, %v6364
        %v6621 = vmax.f32 %v6620, %v6365
        %6622 = vmax.xlane.f32.xlu0 %v6621
        %v6623 = vpop.xlane.xlu0 %6622
        %v6624 = vmax.f32 %v6366, %v6367
        %v6625 = vmax.f32 %v6624, %v6368
        %v6626 = vmax.f32 %v6625, %v6369
        %6627 = vmax.xlane.f32.xlu0 %v6626
        %v6628 = vpop.xlane.xlu0 %6627
        %v6629 = vmax.f32 %v6370, %v6371
        %v6630 = vmax.f32 %v6629, %v6372
        %v6631 = vmax.f32 %v6630, %v6373
        %6632 = vmax.xlane.f32.xlu0 %v6631
        %v6633 = vpop.xlane.xlu0 %6632
        %v6634 = vmax.f32 %v6374, %v6375
        %v6635 = vmax.f32 %v6634, %v6376
        %v6636 = vmax.f32 %v6635, %v6377
        %6637 = vmax.xlane.f32.xlu0 %v6636
        %v6638 = vpop.xlane.xlu0 %6637
        %v6639 = vmax.f32 %v6378, %v6379
        %v6640 = vmax.f32 %v6639, %v6380
        %v6641 = vmax.f32 %v6640, %v6381
        %6642 = vmax.xlane.f32.xlu0 %v6641
        %v6643 = vpop.xlane.xlu0 %6642
        %v6644 = vmax.f32 %v6382, %v6383
        %v6645 = vmax.f32 %v6644, %v6384
        %v6646 = vmax.f32 %v6645, %v6385
        %6647 = vmax.xlane.f32.xlu0 %v6646
        %v6648 = vpop.xlane.xlu0 %6647
        %v6649 = vmax.f32 %v6386, %v6387
        %v6650 = vmax.f32 %v6649, %v6388
        %v6651 = vmax.f32 %v6650, %v6389
        %6652 = vmax.xlane.f32.xlu0 %v6651
        %v6653 = vpop.xlane.xlu0 %6652
        %v6654 = vmax.f32 %v6390, %v6391
        %v6655 = vmax.f32 %v6654, %v6392
        %v6656 = vmax.f32 %v6655, %v6393
        %6657 = vmax.xlane.f32.xlu0 %v6656
        %v6658 = vpop.xlane.xlu0 %6657
        %v6659 = vmax.f32 %v6394, %v6395
        %v6660 = vmax.f32 %v6659, %v6396
        %v6661 = vmax.f32 %v6660, %v6397
        %6662 = vmax.xlane.f32.xlu0 %v6661
        %v6663 = vpop.xlane.xlu0 %6662
        %v6664 = vmax.f32 %v6398, %v6399
        %v6665 = vmax.f32 %v6664, %v6400
        %v6666 = vmax.f32 %v6665, %v6401
        %6667 = vmax.xlane.f32.xlu0 %v6666
        %v6668 = vpop.xlane.xlu0 %6667
        %v6669 = vmax.f32 %v6402, %v6403
        %v6670 = vmax.f32 %v6669, %v6404
        %v6671 = vmax.f32 %v6670, %v6405
        %6672 = vmax.xlane.f32.xlu0 %v6671
        %v6673 = vpop.xlane.xlu0 %6672
        %v6674 = vmax.f32 %v6406, %v6407
        %v6675 = vmax.f32 %v6674, %v6408
        %v6676 = vmax.f32 %v6675, %v6409
        %6677 = vmax.xlane.f32.xlu0 %v6676
        %v6678 = vpop.xlane.xlu0 %6677
        %v6679 = vmax.f32 %v6410, %v6411
        %v6680 = vmax.f32 %v6679, %v6412
        %v6681 = vmax.f32 %v6680, %v6413
        %6682 = vmax.xlane.f32.xlu0 %v6681
        %v6683 = vpop.xlane.xlu0 %6682
        %v6684 = vmax.f32 %v6414, %v6415
        %v6685 = vmax.f32 %v6684, %v6416
        %v6686 = vmax.f32 %v6685, %v6417
        %6687 = vmax.xlane.f32.xlu0 %v6686
        %v6688 = vpop.xlane.xlu0 %6687
        %v6689 = vmax.f32 %v6418, %v6419
        %v6690 = vmax.f32 %v6689, %v6420
        %v6691 = vmax.f32 %v6690, %v6421
        %6692 = vmax.xlane.f32.xlu0 %v6691
        %v6693 = vpop.xlane.xlu0 %6692
        %v6694 = vmax.f32 %v6422, %v6423
        %v6695 = vmax.f32 %v6694, %v6424
        %v6696 = vmax.f32 %v6695, %v6425
        %6697 = vmax.xlane.f32.xlu0 %v6696
        %v6698 = vpop.xlane.xlu0 %6697
        %v6699 = vmax.f32 %v6426, %v6427
        %v6700 = vmax.f32 %v6699, %v6428
        %v6701 = vmax.f32 %v6700, %v6429
        %6702 = vmax.xlane.f32.xlu0 %v6701
        %v6703 = vpop.xlane.xlu0 %6702
        %v6704 = vmax.f32 %v6430, %v6431
        %v6705 = vmax.f32 %v6704, %v6432
        %v6706 = vmax.f32 %v6705, %v6433
        %6707 = vmax.xlane.f32.xlu0 %v6706
        %v6708 = vpop.xlane.xlu0 %6707
        %v6709 = vmax.f32 %v6434, %v6435
        %v6710 = vmax.f32 %v6709, %v6436
        %v6711 = vmax.f32 %v6710, %v6437
        %6712 = vmax.xlane.f32.xlu0 %v6711
        %v6713 = vpop.xlane.xlu0 %6712
        %v6714 = vmax.f32 %v6438, %v6439
        %v6715 = vmax.f32 %v6714, %v6440
        %v6716 = vmax.f32 %v6715, %v6441
        %6717 = vmax.xlane.f32.xlu0 %v6716
        %v6718 = vpop.xlane.xlu0 %6717
        %v6719 = vmax.f32 %v6442, %v6443
        %v6720 = vmax.f32 %v6719, %v6444
        %v6721 = vmax.f32 %v6720, %v6445
        %6722 = vmax.xlane.f32.xlu0 %v6721
        %v6723 = vpop.xlane.xlu0 %6722
        %v6724 = vmax.f32 %v6446, %v6447
        %v6725 = vmax.f32 %v6724, %v6448
        %v6726 = vmax.f32 %v6725, %v6449
        %6727 = vmax.xlane.f32.xlu0 %v6726
        %v6728 = vpop.xlane.xlu0 %6727
        %v6729 = vmax.f32 %v6450, %v6451
        %v6730 = vmax.f32 %v6729, %v6452
        %v6731 = vmax.f32 %v6730, %v6453
        %6732 = vmax.xlane.f32.xlu0 %v6731
        %v6733 = vpop.xlane.xlu0 %6732
        %v6734 = vmax.f32 %v6454, %v6455
        %v6735 = vmax.f32 %v6734, %v6456
        %v6736 = vmax.f32 %v6735, %v6457
        %6737 = vmax.xlane.f32.xlu0 %v6736
        %v6738 = vpop.xlane.xlu0 %6737
        %v6739 = vmax.f32 %v6458, %v6459
        %v6740 = vmax.f32 %v6739, %v6460
        %v6741 = vmax.f32 %v6740, %v6461
        %6742 = vmax.xlane.f32.xlu0 %v6741
        %v6743 = vpop.xlane.xlu0 %6742
        %v6744 = vmax.f32 %v6462, %v6463
        %v6745 = vmax.f32 %v6744, %v6464
        %v6746 = vmax.f32 %v6745, %v6465
        %6747 = vmax.xlane.f32.xlu0 %v6746
        %v6748 = vpop.xlane.xlu0 %6747
        %v6749 = vmax.f32 %v6466, %v6467
        %v6750 = vmax.f32 %v6749, %v6468
        %v6751 = vmax.f32 %v6750, %v6469
        %6752 = vmax.xlane.f32.xlu0 %v6751
        %v6753 = vpop.xlane.xlu0 %6752
        %v6754 = vmax.f32 %v6470, %v6471
        %v6755 = vmax.f32 %v6754, %v6472
        %v6756 = vmax.f32 %v6755, %v6473
        %6757 = vmax.xlane.f32.xlu0 %v6756
        %v6758 = vpop.xlane.xlu0 %6757
        %v6759 = vmax.f32 %v6474, %v6475
        %v6760 = vmax.f32 %v6759, %v6476
        %v6761 = vmax.f32 %v6760, %v6477
        %6762 = vmax.xlane.f32.xlu0 %v6761
        %v6763 = vpop.xlane.xlu0 %6762
        %v6764 = vmax.f32 %v6478, %v6479
        %v6765 = vmax.f32 %v6764, %v6480
        %v6766 = vmax.f32 %v6765, %v6481
        %6767 = vmax.xlane.f32.xlu0 %v6766
        %v6768 = vpop.xlane.xlu0 %6767
        %v6769 = vmax.f32 %v6482, %v6483
        %v6770 = vmax.f32 %v6769, %v6484
        %v6771 = vmax.f32 %v6770, %v6485
        %6772 = vmax.xlane.f32.xlu0 %v6771
        %v6773 = vpop.xlane.xlu0 %6772
        %v6774 = vmax.f32 %v6486, %v6487
        %v6775 = vmax.f32 %v6774, %v6488
        %v6776 = vmax.f32 %v6775, %v6489
        %6777 = vmax.xlane.f32.xlu0 %v6776
        %v6778 = vpop.xlane.xlu0 %6777
        %v6779 = vmax.f32 %v6490, %v6491
        %v6780 = vmax.f32 %v6779, %v6492
        %v6781 = vmax.f32 %v6780, %v6493
        %6782 = vmax.xlane.f32.xlu0 %v6781
        %v6783 = vpop.xlane.xlu0 %6782
        %v6784 = vmax.f32 %v6494, %v6495
        %v6785 = vmax.f32 %v6784, %v6496
        %v6786 = vmax.f32 %v6785, %v6497
        %6787 = vmax.xlane.f32.xlu0 %v6786
        %v6788 = vpop.xlane.xlu0 %6787
        %v6789 = vmax.f32 %v6498, %v6499
        %v6790 = vmax.f32 %v6789, %v6500
        %v6791 = vmax.f32 %v6790, %v6501
        %6792 = vmax.xlane.f32.xlu0 %v6791
        %v6793 = vpop.xlane.xlu0 %6792
        %v6794 = vmax.f32 %v6502, %v6503
        %v6795 = vmax.f32 %v6794, %v6504
        %v6796 = vmax.f32 %v6795, %v6505
        %6797 = vmax.xlane.f32.xlu0 %v6796
        %v6798 = vpop.xlane.xlu0 %6797
        %v6799 = vmax.f32 %v6506, %v6507
        %v6800 = vmax.f32 %v6799, %v6508
        %v6801 = vmax.f32 %v6800, %v6509
        %6802 = vmax.xlane.f32.xlu0 %v6801
        %v6803 = vpop.xlane.xlu0 %6802
        %v6804 = vmax.f32 %v6510, %v6511
        %v6805 = vmax.f32 %v6804, %v6512
        %v6806 = vmax.f32 %v6805, %v6513
        %6807 = vmax.xlane.f32.xlu0 %v6806
        %v6808 = vpop.xlane.xlu0 %6807
        %v6809 = vmax.f32 %v6514, %v6515
        %v6810 = vmax.f32 %v6809, %v6516
        %v6811 = vmax.f32 %v6810, %v6517
        %6812 = vmax.xlane.f32.xlu0 %v6811
        %v6813 = vpop.xlane.xlu0 %6812
        %v6814 = vmax.f32 %v6518, %v6519
        %v6815 = vmax.f32 %v6814, %v6520
        %v6816 = vmax.f32 %v6815, %v6521
        %6817 = vmax.xlane.f32.xlu0 %v6816
        %v6818 = vpop.xlane.xlu0 %6817
        %v6819 = vmax.f32 %v6522, %v6523
        %v6820 = vmax.f32 %v6819, %v6524
        %v6821 = vmax.f32 %v6820, %v6525
        %6822 = vmax.xlane.f32.xlu0 %v6821
        %v6823 = vpop.xlane.xlu0 %6822
        %v6824 = vmax.f32 %v6526, %v6527
        %v6825 = vmax.f32 %v6824, %v6528
        %v6826 = vmax.f32 %v6825, %v6529
        %6827 = vmax.xlane.f32.xlu0 %v6826
        %v6828 = vpop.xlane.xlu0 %6827
        %v6829 = vmax.f32 %v6530, %v6531
        %v6830 = vmax.f32 %v6829, %v6532
        %v6831 = vmax.f32 %v6830, %v6533
        %6832 = vmax.xlane.f32.xlu0 %v6831
        %v6833 = vpop.xlane.xlu0 %6832
        %v6834 = vmax.f32 %v6534, %v6535
        %v6835 = vmax.f32 %v6834, %v6536
        %v6836 = vmax.f32 %v6835, %v6537
        %6837 = vmax.xlane.f32.xlu0 %v6836
        %v6838 = vpop.xlane.xlu0 %6837
        %v6839 = vmax.f32 %v6538, %v6539
        %v6840 = vmax.f32 %v6839, %v6540
        %v6841 = vmax.f32 %v6840, %v6541
        %6842 = vmax.xlane.f32.xlu0 %v6841
        %v6843 = vpop.xlane.xlu0 %6842
        %v6844 = vmax.f32 %v6542, %v6543
        %v6845 = vmax.f32 %v6844, %v6544
        %v6846 = vmax.f32 %v6845, %v6545
        %6847 = vmax.xlane.f32.xlu0 %v6846
        %v6848 = vpop.xlane.xlu0 %6847
        %v6849 = vmax.f32 %v6546, %v6547
        %v6850 = vmax.f32 %v6849, %v6548
        %v6851 = vmax.f32 %v6850, %v6549
        %6852 = vmax.xlane.f32.xlu0 %v6851
        %v6853 = vpop.xlane.xlu0 %6852
        %v6854 = vmax.f32 %v6550, %v6551
        %v6855 = vmax.f32 %v6854, %v6552
        %v6856 = vmax.f32 %v6855, %v6553
        %6857 = vmax.xlane.f32.xlu0 %v6856
        %v6858 = vpop.xlane.xlu0 %6857
        %v6859 = vmax.f32 %v6554, %v6555
        %v6860 = vmax.f32 %v6859, %v6556
        %v6861 = vmax.f32 %v6860, %v6557
        %6862 = vmax.xlane.f32.xlu0 %v6861
        %v6863 = vpop.xlane.xlu0 %6862
        %v6864 = vmax.f32 %v6558, %v6559
        %v6865 = vmax.f32 %v6864, %v6560
        %v6866 = vmax.f32 %v6865, %v6561
        %6867 = vmax.xlane.f32.xlu0 %v6866
        %v6868 = vpop.xlane.xlu0 %6867
        %v6869 = vmax.f32 %v6562, %v6563
        %v6870 = vmax.f32 %v6869, %v6564
        %v6871 = vmax.f32 %v6870, %v6565
        %6872 = vmax.xlane.f32.xlu0 %v6871
        %v6873 = vpop.xlane.xlu0 %6872
        %v6874 = vmax.f32 %v6566, %v6567
        %v6875 = vmax.f32 %v6874, %v6568
        %v6876 = vmax.f32 %v6875, %v6569
        %6877 = vmax.xlane.f32.xlu0 %v6876
        %v6878 = vpop.xlane.xlu0 %6877
        %v6879 = vmax.f32 %v6570, %v6571
        %v6880 = vmax.f32 %v6879, %v6572
        %v6881 = vmax.f32 %v6880, %v6573
        %6882 = vmax.xlane.f32.xlu0 %v6881
        %v6883 = vpop.xlane.xlu0 %6882
        %v6884 = vmax.f32 %v6574, %v6575
        %v6885 = vmax.f32 %v6884, %v6576
        %v6886 = vmax.f32 %v6885, %v6577
        %6887 = vmax.xlane.f32.xlu0 %v6886
        %v6888 = vpop.xlane.xlu0 %6887
        %v6889 = vmax.f32 %v6578, %v6579
        %v6890 = vmax.f32 %v6889, %v6580
        %v6891 = vmax.f32 %v6890, %v6581
        %6892 = vmax.xlane.f32.xlu0 %v6891
        %v6893 = vpop.xlane.xlu0 %6892
        %v6894 = vmax.f32 %v6582, %v6583
        %v6895 = vmax.f32 %v6894, %v6584
        %v6896 = vmax.f32 %v6895, %v6585
        %6897 = vmax.xlane.f32.xlu0 %v6896
        %v6898 = vpop.xlane.xlu0 %6897
        %v6899 = vmax.f32 %v6586, %v6587
        %v6900 = vmax.f32 %v6899, %v6588
        %v6901 = vmax.f32 %v6900, %v6589
        %6902 = vmax.xlane.f32.xlu0 %v6901
        %v6903 = vpop.xlane.xlu0 %6902
        %v6904 = vmax.f32 %v6590, %v6591
        %v6905 = vmax.f32 %v6904, %v6592
        %v6906 = vmax.f32 %v6905, %v6593
        %6907 = vmax.xlane.f32.xlu0 %v6906
        %v6908 = vpop.xlane.xlu0 %6907
        %v6909 = vmax.f32 %v6594, %v6595
        %v6910 = vmax.f32 %v6909, %v6596
        %v6911 = vmax.f32 %v6910, %v6597
        %6912 = vmax.xlane.f32.xlu0 %v6911
        %v6913 = vpop.xlane.xlu0 %6912
        %v6914 = vmax.f32 %v6598, %v6599
        %v6915 = vmax.f32 %v6914, %v6600
        %v6916 = vmax.f32 %v6915, %v6601
        %6917 = vmax.xlane.f32.xlu0 %v6916
        %v6918 = vpop.xlane.xlu0 %6917
        %v6919 = vmax.f32 %v6602, %v6603
        %v6920 = vmax.f32 %v6919, %v6604
        %v6921 = vmax.f32 %v6920, %v6605
        %6922 = vmax.xlane.f32.xlu0 %v6921
        %v6923 = vpop.xlane.xlu0 %6922
        %v6924 = vmax.f32 %v6606, %v6607
        %v6925 = vmax.f32 %v6924, %v6608
        %v6926 = vmax.f32 %v6925, %v6609
        %6927 = vmax.xlane.f32.xlu0 %v6926
        %v6928 = vpop.xlane.xlu0 %6927
        %v6929 = vmax.f32 %v6610, %v6611
        %v6930 = vmax.f32 %v6929, %v6612
        %v6931 = vmax.f32 %v6930, %v6613
        %6932 = vmax.xlane.f32.xlu0 %v6931
        %v6933 = vpop.xlane.xlu0 %6932
        %v6934 = vld [vmem:[%s17 + $0x280] sm:$0xff]
        %v6935 = vld [vmem:[%s17 + $0x288] sm:$0xff]
        %v6936 = vld [vmem:[%s17 + $0x290] sm:$0xff]
        %v6937 = vld [vmem:[%s17 + $0x298] sm:$0xff]
        %v6938 = vld [vmem:[%s17 + $0x2a0] sm:$0xff]
        %v6939 = vld [vmem:[%s17 + $0x2a8] sm:$0xff]
        %v6940 = vld [vmem:[%s17 + $0x2b0] sm:$0xff]
        %v6941 = vld [vmem:[%s17 + $0x2b8] sm:$0xff]
        %v6942 = vld [vmem:[%s17 + $0x2c0] sm:$0xff]
        %v6943 = vld [vmem:[%s17 + $0x2c8] sm:$0xff]
        %v6944 = vld [vmem:[%s17 + $0x2d0] sm:$0xff]
        %v6945 = vld [vmem:[%s17 + $0x2d8] sm:$0xff]
        %v6946 = vld [vmem:[%s17 + $0x2e0] sm:$0xff]
        %v6947 = vld [vmem:[%s17 + $0x2e8] sm:$0xff]
        %v6948 = vld [vmem:[%s17 + $0x2f0] sm:$0xff]
        %v6949 = vld [vmem:[%s17 + $0x2f8] sm:$0xff]
        %v7014 = vperm.slane %v6618, %v3030
        %v7015 = vperm.slane %v6623, %v3032
        %v7016 = vsel %vm3034, %v7015, %v7014
        %v7017 = vperm.slane %v6628, %v3036
        %v7018 = vsel %vm3038, %v7017, %v7016
        %v7019 = vperm.slane %v6633, %v3040
        %v7020 = vsel %vm3042, %v7019, %v7018
        %v7021 = vperm.slane %v6638, %v3044
        %v7022 = vsel %vm3046, %v7021, %v7020
        %v7023 = vperm.slane %v6643, %v3048
        %v7024 = vsel %vm3050, %v7023, %v7022
        %v7025 = vperm.slane %v6648, %v3052
        %v7026 = vsel %vm3054, %v7025, %v7024
        %v7027 = vperm.slane %v6653, %v3056
        %v7028 = vsel %vm3058, %v7027, %v7026
        %v7029 = vperm.slane %v6658, %v3030
        %v7030 = vperm.slane %v6663, %v3032
        %v7031 = vsel %vm3034, %v7030, %v7029
        %v7032 = vperm.slane %v6668, %v3036
        %v7033 = vsel %vm3038, %v7032, %v7031
        %v7034 = vperm.slane %v6673, %v3040
        %v7035 = vsel %vm3042, %v7034, %v7033
        %v7036 = vperm.slane %v6678, %v3044
        %v7037 = vsel %vm3046, %v7036, %v7035
        %v7038 = vperm.slane %v6683, %v3048
        %v7039 = vsel %vm3050, %v7038, %v7037
        %v7040 = vperm.slane %v6688, %v3052
        %v7041 = vsel %vm3054, %v7040, %v7039
        %v7042 = vperm.slane %v6693, %v3056
        %v7043 = vsel %vm3058, %v7042, %v7041
        %v7044 = vperm.slane %v6698, %v3030
        %v7045 = vperm.slane %v6703, %v3032
        %v7046 = vsel %vm3034, %v7045, %v7044
        %v7047 = vperm.slane %v6708, %v3036
        %v7048 = vsel %vm3038, %v7047, %v7046
        %v7049 = vperm.slane %v6713, %v3040
        %v7050 = vsel %vm3042, %v7049, %v7048
        %v7051 = vperm.slane %v6718, %v3044
        %v7052 = vsel %vm3046, %v7051, %v7050
        %v7053 = vperm.slane %v6723, %v3048
        %v7054 = vsel %vm3050, %v7053, %v7052
        %v7055 = vperm.slane %v6728, %v3052
        %v7056 = vsel %vm3054, %v7055, %v7054
        %v7057 = vperm.slane %v6733, %v3056
        %v7058 = vsel %vm3058, %v7057, %v7056
        %v7059 = vperm.slane %v6738, %v3030
        %v7060 = vperm.slane %v6743, %v3032
        %v7061 = vsel %vm3034, %v7060, %v7059
        %v7062 = vperm.slane %v6748, %v3036
        %v7063 = vsel %vm3038, %v7062, %v7061
        %v7064 = vperm.slane %v6753, %v3040
        %v7065 = vsel %vm3042, %v7064, %v7063
        %v7066 = vperm.slane %v6758, %v3044
        %v7067 = vsel %vm3046, %v7066, %v7065
        %v7068 = vperm.slane %v6763, %v3048
        %v7069 = vsel %vm3050, %v7068, %v7067
        %v7070 = vperm.slane %v6768, %v3052
        %v7071 = vsel %vm3054, %v7070, %v7069
        %v7072 = vperm.slane %v6773, %v3056
        %v7073 = vsel %vm3058, %v7072, %v7071
        %v7074 = vperm.slane %v6778, %v3030
        %v7075 = vperm.slane %v6783, %v3032
        %v7076 = vsel %vm3034, %v7075, %v7074
        %v7077 = vperm.slane %v6788, %v3036
        %v7078 = vsel %vm3038, %v7077, %v7076
        %v7079 = vperm.slane %v6793, %v3040
        %v7080 = vsel %vm3042, %v7079, %v7078
        %v7081 = vperm.slane %v6798, %v3044
        %v7082 = vsel %vm3046, %v7081, %v7080
        %v7083 = vperm.slane %v6803, %v3048
        %v7084 = vsel %vm3050, %v7083, %v7082
        %v7085 = vperm.slane %v6808, %v3052
        %v7086 = vsel %vm3054, %v7085, %v7084
        %v7087 = vperm.slane %v6813, %v3056
        %v7088 = vsel %vm3058, %v7087, %v7086
        %v7089 = vperm.slane %v6818, %v3030
        %v7090 = vperm.slane %v6823, %v3032
        %v7091 = vsel %vm3034, %v7090, %v7089
        %v7092 = vperm.slane %v6828, %v3036
        %v7093 = vsel %vm3038, %v7092, %v7091
        %v7094 = vperm.slane %v6833, %v3040
        %v7095 = vsel %vm3042, %v7094, %v7093
        %v7096 = vperm.slane %v6838, %v3044
        %v7097 = vsel %vm3046, %v7096, %v7095
        %v7098 = vperm.slane %v6843, %v3048
        %v7099 = vsel %vm3050, %v7098, %v7097
        %v7100 = vperm.slane %v6848, %v3052
        %v7101 = vsel %vm3054, %v7100, %v7099
        %v7102 = vperm.slane %v6853, %v3056
        %v7103 = vsel %vm3058, %v7102, %v7101
        %v7104 = vperm.slane %v6858, %v3030
        %v7105 = vperm.slane %v6863, %v3032
        %v7106 = vsel %vm3034, %v7105, %v7104
        %v7107 = vperm.slane %v6868, %v3036
        %v7108 = vsel %vm3038, %v7107, %v7106
        %v7109 = vperm.slane %v6873, %v3040
        %v7110 = vsel %vm3042, %v7109, %v7108
        %v7111 = vperm.slane %v6878, %v3044
        %v7112 = vsel %vm3046, %v7111, %v7110
        %v7113 = vperm.slane %v6883, %v3048
        %v7114 = vsel %vm3050, %v7113, %v7112
        %v7115 = vperm.slane %v6888, %v3052
        %v7116 = vsel %vm3054, %v7115, %v7114
        %v7117 = vperm.slane %v6893, %v3056
        %v7118 = vsel %vm3058, %v7117, %v7116
        %v7119 = vperm.slane %v6898, %v3030
        %v7120 = vperm.slane %v6903, %v3032
        %v7121 = vsel %vm3034, %v7120, %v7119
        %v7122 = vperm.slane %v6908, %v3036
        %v7123 = vsel %vm3038, %v7122, %v7121
        %v7124 = vperm.slane %v6913, %v3040
        %v7125 = vsel %vm3042, %v7124, %v7123
        %v7126 = vperm.slane %v6918, %v3044
        %v7127 = vsel %vm3046, %v7126, %v7125
        %v7128 = vperm.slane %v6923, %v3048
        %v7129 = vsel %vm3050, %v7128, %v7127
        %v7130 = vperm.slane %v6928, %v3052
        %v7131 = vsel %vm3054, %v7130, %v7129
        %v7132 = vperm.slane %v6933, %v3056
        %v7133 = vsel %vm3058, %v7132, %v7131
        %v7134 = vsel %vm1569, %v7043, %v7028
        %v7135 = vsel %vm1565, %v7058, %v7134
        %v7136 = vsel %vm1571, %v7073, %v7135
        %v7137 = vsel %vm1577, %v7088, %v7136
        %v7138 = vsel %vm1583, %v7103, %v7137
        %v7139 = vsel %vm1589, %v7118, %v7138
        %v7140 = vsel %vm3171, %v7133, %v7139
        %v7141 = vsel %vm3173, %v7140, 0
        %7143 = vmatpush.msra.mxu0 0.0
        %7144 = vmatpush.msra.mxu0 0.0
        %7145 = vmatpush.msra.mxu0 0.0
        %7146 = vmatpush.msra.mxu0 0.0
        %7147 = vmatpush.msra.mxu0 0.0
        %7148 = vmatpush.msra.mxu0 0.0
        %7149 = vmatpush.msra.mxu0 0.0
        %7150 = vmatpush.msra.mxu0 0.0
        %7151 = vmatpush.msra.mxu0 %v6948
        %7152 = vmatpush.msra.mxu0 %v6946
        %7153 = vmatpush.msra.mxu0 %v6944
        %7154 = vmatpush.msra.mxu0 %v6942
        %7155 = vmatpush.msra.mxu0 %v6940
        %7156 = vmatpush.msra.mxu0 %v6938
        %7157 = vmatpush.msra.mxu0 %v6936
        %7158 = vmatpush.msra.mxu0 %v6934
        %7159 = vmatmul.f32.gmra.mxu0 %v7141
        %v7160 = vpop.f32.mrf.mxu0
        %v7161 = vadd.f32 0.0, %v7160
        %7162 = vdwg.mxu0
        %7163 = vmatpush.msra.mxu0 0.0
        %7164 = vmatpush.msra.mxu0 0.0
        %7165 = vmatpush.msra.mxu0 0.0
        %7166 = vmatpush.msra.mxu0 0.0
        %7167 = vmatpush.msra.mxu0 0.0
        %7168 = vmatpush.msra.mxu0 0.0
        %7169 = vmatpush.msra.mxu0 0.0
        %7170 = vmatpush.msra.mxu0 0.0
        %7171 = vmatpush.msra.mxu0 %v6949
        %7172 = vmatpush.msra.mxu0 %v6947
        %7173 = vmatpush.msra.mxu0 %v6945
        %7174 = vmatpush.msra.mxu0 %v6943
        %7175 = vmatpush.msra.mxu0 %v6941
        %7176 = vmatpush.msra.mxu0 %v6939
        %7177 = vmatpush.msra.mxu0 %v6937
        %7178 = vmatpush.msra.mxu0 %v6935
        %7179 = vmatmul.f32.gmra.mxu0 %v7141
        %v7180 = vpop.f32.mrf.mxu0
        %v7181 = vadd.f32 0.0, %v7180
        %7182 = vdwg.mxu0
        %v7183 = vadd.f32 %v6249, %v7161
        %v7184 = vadd.f32 %v6250, %v7181
        %s7185 = scalar_lea.vmem %s975, 192
        %v7186 = vld [vmem:[%s7185] sm:$0xff]
        %v7187 = vld [vmem:[%s7185 + $0x8] sm:$0xff]
        %v7188 = vld [vmem:[%s7185 + $0x10] sm:$0xff]
        %v7189 = vld [vmem:[%s7185 + $0x18] sm:$0xff]
        %v7194 = vrot.slane %v7187, 7
        %v7195 = vrot.slane %v7188, 6
        %v7196 = vrot.slane %v7189, 5
        %v7197 = vsel %vm1563, %v7186, %v7194
        %v7198 = vsel %vm1565, %v7195, %v7196
        %v7199 = vsel %vm1567, %v7197, %v7198
        %v7200 = vsel %vm1569, %v7186, %v7194
        %v7201 = vsel %vm1571, %v7195, %v7196
        %v7202 = vsel %vm1573, %v7200, %v7201
        %v7203 = vrot.slane %v7202, 1
        %v7204 = vsel %vm1565, %v7186, %v7194
        %v7205 = vsel %vm1577, %v7195, %v7196
        %v7206 = vsel %vm1579, %v7204, %v7205
        %v7207 = vrot.slane %v7206, 2
        %v7208 = vsel %vm1571, %v7186, %v7194
        %v7209 = vsel %vm1583, %v7195, %v7196
        %v7210 = vsel %vm1585, %v7208, %v7209
        %v7211 = vrot.slane %v7210, 3
        %v7212 = vsel %vm1577, %v7186, %v7194
        %v7213 = vsel %vm1589, %v7195, %v7196
        %v7214 = vsel %vm1591, %v7212, %v7213
        %v7215 = vrot.slane %v7214, 4
        %v7216 = vsel %vm1583, %v7186, %v7194
        %v7217 = vsel %vm1595, %v7196, %v7195
        %v7218 = vsel %vm1597, %v7216, %v7217
        %v7219 = vrot.slane %v7218, 5
        %v7220 = vsel %vm1589, %v7186, %v7194
        %v7221 = vsel %vm1563, %v7195, %v7196
        %v7222 = vsel %vm1602, %v7221, %v7220
        %v7223 = vrot.slane %v7222, 6
        %v7224 = vsel %vm1595, %v7194, %v7186
        %v7225 = vsel %vm1569, %v7195, %v7196
        %v7226 = vsel %vm1607, %v7225, %v7224
        %v7227 = vrot.slane %v7226, 7
        %v7228 = vperm.slane %v7199, 0
        %v7229 = vperm.slane %v7199, 1
        %v7230 = vperm.slane %v7199, 2
        %v7231 = vperm.slane %v7199, 3
        %v7232 = vperm.slane %v7203, 0
        %v7233 = vperm.slane %v7203, 1
        %v7234 = vperm.slane %v7203, 2
        %v7235 = vperm.slane %v7203, 3
        %v7236 = vperm.slane %v7207, 0
        %v7237 = vperm.slane %v7207, 1
        %v7238 = vperm.slane %v7207, 2
        %v7239 = vperm.slane %v7207, 3
        %v7240 = vperm.slane %v7211, 0
        %v7241 = vperm.slane %v7211, 1
        %v7242 = vperm.slane %v7211, 2
        %v7243 = vperm.slane %v7211, 3
        %v7244 = vperm.slane %v7215, 0
        %v7245 = vperm.slane %v7215, 1
        %v7246 = vperm.slane %v7215, 2
        %v7247 = vperm.slane %v7215, 3
        %v7248 = vperm.slane %v7219, 0
        %v7249 = vperm.slane %v7219, 1
        %v7250 = vperm.slane %v7219, 2
        %v7251 = vperm.slane %v7219, 3
        %v7252 = vperm.slane %v7223, 0
        %v7253 = vperm.slane %v7223, 1
        %v7254 = vperm.slane %v7223, 2
        %v7255 = vperm.slane %v7223, 3
        %v7256 = vperm.slane %v7227, 0
        %v7257 = vperm.slane %v7227, 1
        %v7258 = vperm.slane %v7227, 2
        %v7259 = vperm.slane %v7227, 3
        %v7292 = vadd.f32 %v1520, %v7228
        %v7293 = vadd.f32 %v1521, %v7229
        %v7294 = vadd.f32 %v1522, %v7230
        %v7295 = vadd.f32 %v1523, %v7231
        %v7296 = vadd.f32 %v1524, %v7228
        %v7297 = vadd.f32 %v1525, %v7229
        %v7298 = vadd.f32 %v1526, %v7230
        %v7299 = vadd.f32 %v1527, %v7231
        %v7300 = vadd.f32 %v1528, %v7228
        %v7301 = vadd.f32 %v1529, %v7229
        %v7302 = vadd.f32 %v1530, %v7230
        %v7303 = vadd.f32 %v1531, %v7231
        %v7304 = vadd.f32 %v1532, %v7228
        %v7305 = vadd.f32 %v1533, %v7229
        %v7306 = vadd.f32 %v1534, %v7230
        %v7307 = vadd.f32 %v1535, %v7231
        %v7308 = vadd.f32 %v1536, %v7228
        %v7309 = vadd.f32 %v1537, %v7229
        %v7310 = vadd.f32 %v1538, %v7230
        %v7311 = vadd.f32 %v1539, %v7231
        %v7312 = vadd.f32 %v1540, %v7228
        %v7313 = vadd.f32 %v1541, %v7229
        %v7314 = vadd.f32 %v1542, %v7230
        %v7315 = vadd.f32 %v1543, %v7231
        %v7316 = vadd.f32 %v1544, %v7228
        %v7317 = vadd.f32 %v1545, %v7229
        %v7318 = vadd.f32 %v1546, %v7230
        %v7319 = vadd.f32 %v1547, %v7231
        %v7320 = vadd.f32 %v1548, %v7228
        %v7321 = vadd.f32 %v1549, %v7229
        %v7322 = vadd.f32 %v1550, %v7230
        %v7323 = vadd.f32 %v1551, %v7231
        %v7324 = vadd.f32 %v1520, %v7232
        %v7325 = vadd.f32 %v1521, %v7233
        %v7326 = vadd.f32 %v1522, %v7234
        %v7327 = vadd.f32 %v1523, %v7235
        %v7328 = vadd.f32 %v1524, %v7232
        %v7329 = vadd.f32 %v1525, %v7233
        %v7330 = vadd.f32 %v1526, %v7234
        %v7331 = vadd.f32 %v1527, %v7235
        %v7332 = vadd.f32 %v1528, %v7232
        %v7333 = vadd.f32 %v1529, %v7233
        %v7334 = vadd.f32 %v1530, %v7234
        %v7335 = vadd.f32 %v1531, %v7235
        %v7336 = vadd.f32 %v1532, %v7232
        %v7337 = vadd.f32 %v1533, %v7233
        %v7338 = vadd.f32 %v1534, %v7234
        %v7339 = vadd.f32 %v1535, %v7235
        %v7340 = vadd.f32 %v1536, %v7232
        %v7341 = vadd.f32 %v1537, %v7233
        %v7342 = vadd.f32 %v1538, %v7234
        %v7343 = vadd.f32 %v1539, %v7235
        %v7344 = vadd.f32 %v1540, %v7232
        %v7345 = vadd.f32 %v1541, %v7233
        %v7346 = vadd.f32 %v1542, %v7234
        %v7347 = vadd.f32 %v1543, %v7235
        %v7348 = vadd.f32 %v1544, %v7232
        %v7349 = vadd.f32 %v1545, %v7233
        %v7350 = vadd.f32 %v1546, %v7234
        %v7351 = vadd.f32 %v1547, %v7235
        %v7352 = vadd.f32 %v1548, %v7232
        %v7353 = vadd.f32 %v1549, %v7233
        %v7354 = vadd.f32 %v1550, %v7234
        %v7355 = vadd.f32 %v1551, %v7235
        %v7356 = vadd.f32 %v1520, %v7236
        %v7357 = vadd.f32 %v1521, %v7237
        %v7358 = vadd.f32 %v1522, %v7238
        %v7359 = vadd.f32 %v1523, %v7239
        %v7360 = vadd.f32 %v1524, %v7236
        %v7361 = vadd.f32 %v1525, %v7237
        %v7362 = vadd.f32 %v1526, %v7238
        %v7363 = vadd.f32 %v1527, %v7239
        %v7364 = vadd.f32 %v1528, %v7236
        %v7365 = vadd.f32 %v1529, %v7237
        %v7366 = vadd.f32 %v1530, %v7238
        %v7367 = vadd.f32 %v1531, %v7239
        %v7368 = vadd.f32 %v1532, %v7236
        %v7369 = vadd.f32 %v1533, %v7237
        %v7370 = vadd.f32 %v1534, %v7238
        %v7371 = vadd.f32 %v1535, %v7239
        %v7372 = vadd.f32 %v1536, %v7236
        %v7373 = vadd.f32 %v1537, %v7237
        %v7374 = vadd.f32 %v1538, %v7238
        %v7375 = vadd.f32 %v1539, %v7239
        %v7376 = vadd.f32 %v1540, %v7236
        %v7377 = vadd.f32 %v1541, %v7237
        %v7378 = vadd.f32 %v1542, %v7238
        %v7379 = vadd.f32 %v1543, %v7239
        %v7380 = vadd.f32 %v1544, %v7236
        %v7381 = vadd.f32 %v1545, %v7237
        %v7382 = vadd.f32 %v1546, %v7238
        %v7383 = vadd.f32 %v1547, %v7239
        %v7384 = vadd.f32 %v1548, %v7236
        %v7385 = vadd.f32 %v1549, %v7237
        %v7386 = vadd.f32 %v1550, %v7238
        %v7387 = vadd.f32 %v1551, %v7239
        %v7388 = vadd.f32 %v1520, %v7240
        %v7389 = vadd.f32 %v1521, %v7241
        %v7390 = vadd.f32 %v1522, %v7242
        %v7391 = vadd.f32 %v1523, %v7243
        %v7392 = vadd.f32 %v1524, %v7240
        %v7393 = vadd.f32 %v1525, %v7241
        %v7394 = vadd.f32 %v1526, %v7242
        %v7395 = vadd.f32 %v1527, %v7243
        %v7396 = vadd.f32 %v1528, %v7240
        %v7397 = vadd.f32 %v1529, %v7241
        %v7398 = vadd.f32 %v1530, %v7242
        %v7399 = vadd.f32 %v1531, %v7243
        %v7400 = vadd.f32 %v1532, %v7240
        %v7401 = vadd.f32 %v1533, %v7241
        %v7402 = vadd.f32 %v1534, %v7242
        %v7403 = vadd.f32 %v1535, %v7243
        %v7404 = vadd.f32 %v1536, %v7240
        %v7405 = vadd.f32 %v1537, %v7241
        %v7406 = vadd.f32 %v1538, %v7242
        %v7407 = vadd.f32 %v1539, %v7243
        %v7408 = vadd.f32 %v1540, %v7240
        %v7409 = vadd.f32 %v1541, %v7241
        %v7410 = vadd.f32 %v1542, %v7242
        %v7411 = vadd.f32 %v1543, %v7243
        %v7412 = vadd.f32 %v1544, %v7240
        %v7413 = vadd.f32 %v1545, %v7241
        %v7414 = vadd.f32 %v1546, %v7242
        %v7415 = vadd.f32 %v1547, %v7243
        %v7416 = vadd.f32 %v1548, %v7240
        %v7417 = vadd.f32 %v1549, %v7241
        %v7418 = vadd.f32 %v1550, %v7242
        %v7419 = vadd.f32 %v1551, %v7243
        %v7420 = vadd.f32 %v1520, %v7244
        %v7421 = vadd.f32 %v1521, %v7245
        %v7422 = vadd.f32 %v1522, %v7246
        %v7423 = vadd.f32 %v1523, %v7247
        %v7424 = vadd.f32 %v1524, %v7244
        %v7425 = vadd.f32 %v1525, %v7245
        %v7426 = vadd.f32 %v1526, %v7246
        %v7427 = vadd.f32 %v1527, %v7247
        %v7428 = vadd.f32 %v1528, %v7244
        %v7429 = vadd.f32 %v1529, %v7245
        %v7430 = vadd.f32 %v1530, %v7246
        %v7431 = vadd.f32 %v1531, %v7247
        %v7432 = vadd.f32 %v1532, %v7244
        %v7433 = vadd.f32 %v1533, %v7245
        %v7434 = vadd.f32 %v1534, %v7246
        %v7435 = vadd.f32 %v1535, %v7247
        %v7436 = vadd.f32 %v1536, %v7244
        %v7437 = vadd.f32 %v1537, %v7245
        %v7438 = vadd.f32 %v1538, %v7246
        %v7439 = vadd.f32 %v1539, %v7247
        %v7440 = vadd.f32 %v1540, %v7244
        %v7441 = vadd.f32 %v1541, %v7245
        %v7442 = vadd.f32 %v1542, %v7246
        %v7443 = vadd.f32 %v1543, %v7247
        %v7444 = vadd.f32 %v1544, %v7244
        %v7445 = vadd.f32 %v1545, %v7245
        %v7446 = vadd.f32 %v1546, %v7246
        %v7447 = vadd.f32 %v1547, %v7247
        %v7448 = vadd.f32 %v1548, %v7244
        %v7449 = vadd.f32 %v1549, %v7245
        %v7450 = vadd.f32 %v1550, %v7246
        %v7451 = vadd.f32 %v1551, %v7247
        %v7452 = vadd.f32 %v1520, %v7248
        %v7453 = vadd.f32 %v1521, %v7249
        %v7454 = vadd.f32 %v1522, %v7250
        %v7455 = vadd.f32 %v1523, %v7251
        %v7456 = vadd.f32 %v1524, %v7248
        %v7457 = vadd.f32 %v1525, %v7249
        %v7458 = vadd.f32 %v1526, %v7250
        %v7459 = vadd.f32 %v1527, %v7251
        %v7460 = vadd.f32 %v1528, %v7248
        %v7461 = vadd.f32 %v1529, %v7249
        %v7462 = vadd.f32 %v1530, %v7250
        %v7463 = vadd.f32 %v1531, %v7251
        %v7464 = vadd.f32 %v1532, %v7248
        %v7465 = vadd.f32 %v1533, %v7249
        %v7466 = vadd.f32 %v1534, %v7250
        %v7467 = vadd.f32 %v1535, %v7251
        %v7468 = vadd.f32 %v1536, %v7248
        %v7469 = vadd.f32 %v1537, %v7249
        %v7470 = vadd.f32 %v1538, %v7250
        %v7471 = vadd.f32 %v1539, %v7251
        %v7472 = vadd.f32 %v1540, %v7248
        %v7473 = vadd.f32 %v1541, %v7249
        %v7474 = vadd.f32 %v1542, %v7250
        %v7475 = vadd.f32 %v1543, %v7251
        %v7476 = vadd.f32 %v1544, %v7248
        %v7477 = vadd.f32 %v1545, %v7249
        %v7478 = vadd.f32 %v1546, %v7250
        %v7479 = vadd.f32 %v1547, %v7251
        %v7480 = vadd.f32 %v1548, %v7248
        %v7481 = vadd.f32 %v1549, %v7249
        %v7482 = vadd.f32 %v1550, %v7250
        %v7483 = vadd.f32 %v1551, %v7251
        %v7484 = vadd.f32 %v1520, %v7252
        %v7485 = vadd.f32 %v1521, %v7253
        %v7486 = vadd.f32 %v1522, %v7254
        %v7487 = vadd.f32 %v1523, %v7255
        %v7488 = vadd.f32 %v1524, %v7252
        %v7489 = vadd.f32 %v1525, %v7253
        %v7490 = vadd.f32 %v1526, %v7254
        %v7491 = vadd.f32 %v1527, %v7255
        %v7492 = vadd.f32 %v1528, %v7252
        %v7493 = vadd.f32 %v1529, %v7253
        %v7494 = vadd.f32 %v1530, %v7254
        %v7495 = vadd.f32 %v1531, %v7255
        %v7496 = vadd.f32 %v1532, %v7252
        %v7497 = vadd.f32 %v1533, %v7253
        %v7498 = vadd.f32 %v1534, %v7254
        %v7499 = vadd.f32 %v1535, %v7255
        %v7500 = vadd.f32 %v1536, %v7252
        %v7501 = vadd.f32 %v1537, %v7253
        %v7502 = vadd.f32 %v1538, %v7254
        %v7503 = vadd.f32 %v1539, %v7255
        %v7504 = vadd.f32 %v1540, %v7252
        %v7505 = vadd.f32 %v1541, %v7253
        %v7506 = vadd.f32 %v1542, %v7254
        %v7507 = vadd.f32 %v1543, %v7255
        %v7508 = vadd.f32 %v1544, %v7252
        %v7509 = vadd.f32 %v1545, %v7253
        %v7510 = vadd.f32 %v1546, %v7254
        %v7511 = vadd.f32 %v1547, %v7255
        %v7512 = vadd.f32 %v1548, %v7252
        %v7513 = vadd.f32 %v1549, %v7253
        %v7514 = vadd.f32 %v1550, %v7254
        %v7515 = vadd.f32 %v1551, %v7255
        %v7516 = vadd.f32 %v1520, %v7256
        %v7517 = vadd.f32 %v1521, %v7257
        %v7518 = vadd.f32 %v1522, %v7258
        %v7519 = vadd.f32 %v1523, %v7259
        %v7520 = vadd.f32 %v1524, %v7256
        %v7521 = vadd.f32 %v1525, %v7257
        %v7522 = vadd.f32 %v1526, %v7258
        %v7523 = vadd.f32 %v1527, %v7259
        %v7524 = vadd.f32 %v1528, %v7256
        %v7525 = vadd.f32 %v1529, %v7257
        %v7526 = vadd.f32 %v1530, %v7258
        %v7527 = vadd.f32 %v1531, %v7259
        %v7528 = vadd.f32 %v1532, %v7256
        %v7529 = vadd.f32 %v1533, %v7257
        %v7530 = vadd.f32 %v1534, %v7258
        %v7531 = vadd.f32 %v1535, %v7259
        %v7532 = vadd.f32 %v1536, %v7256
        %v7533 = vadd.f32 %v1537, %v7257
        %v7534 = vadd.f32 %v1538, %v7258
        %v7535 = vadd.f32 %v1539, %v7259
        %v7536 = vadd.f32 %v1540, %v7256
        %v7537 = vadd.f32 %v1541, %v7257
        %v7538 = vadd.f32 %v1542, %v7258
        %v7539 = vadd.f32 %v1543, %v7259
        %v7540 = vadd.f32 %v1544, %v7256
        %v7541 = vadd.f32 %v1545, %v7257
        %v7542 = vadd.f32 %v1546, %v7258
        %v7543 = vadd.f32 %v1547, %v7259
        %v7544 = vadd.f32 %v1548, %v7256
        %v7545 = vadd.f32 %v1549, %v7257
        %v7546 = vadd.f32 %v1550, %v7258
        %v7547 = vadd.f32 %v1551, %v7259
        %v7548 = vmax.f32 %v7292, %v7293
        %v7549 = vmax.f32 %v7548, %v7294
        %v7550 = vmax.f32 %v7549, %v7295
        %7551 = vmax.xlane.f32.xlu0 %v7550
        %v7552 = vpop.xlane.xlu0 %7551
        %v7553 = vmax.f32 %v7296, %v7297
        %v7554 = vmax.f32 %v7553, %v7298
        %v7555 = vmax.f32 %v7554, %v7299
        %7556 = vmax.xlane.f32.xlu0 %v7555
        %v7557 = vpop.xlane.xlu0 %7556
        %v7558 = vmax.f32 %v7300, %v7301
        %v7559 = vmax.f32 %v7558, %v7302
        %v7560 = vmax.f32 %v7559, %v7303
        %7561 = vmax.xlane.f32.xlu0 %v7560
        %v7562 = vpop.xlane.xlu0 %7561
        %v7563 = vmax.f32 %v7304, %v7305
        %v7564 = vmax.f32 %v7563, %v7306
        %v7565 = vmax.f32 %v7564, %v7307
        %7566 = vmax.xlane.f32.xlu0 %v7565
        %v7567 = vpop.xlane.xlu0 %7566
        %v7568 = vmax.f32 %v7308, %v7309
        %v7569 = vmax.f32 %v7568, %v7310
        %v7570 = vmax.f32 %v7569, %v7311
        %7571 = vmax.xlane.f32.xlu0 %v7570
        %v7572 = vpop.xlane.xlu0 %7571
        %v7573 = vmax.f32 %v7312, %v7313
        %v7574 = vmax.f32 %v7573, %v7314
        %v7575 = vmax.f32 %v7574, %v7315
        %7576 = vmax.xlane.f32.xlu0 %v7575
        %v7577 = vpop.xlane.xlu0 %7576
        %v7578 = vmax.f32 %v7316, %v7317
        %v7579 = vmax.f32 %v7578, %v7318
        %v7580 = vmax.f32 %v7579, %v7319
        %7581 = vmax.xlane.f32.xlu0 %v7580
        %v7582 = vpop.xlane.xlu0 %7581
        %v7583 = vmax.f32 %v7320, %v7321
        %v7584 = vmax.f32 %v7583, %v7322
        %v7585 = vmax.f32 %v7584, %v7323
        %7586 = vmax.xlane.f32.xlu0 %v7585
        %v7587 = vpop.xlane.xlu0 %7586
        %v7588 = vmax.f32 %v7324, %v7325
        %v7589 = vmax.f32 %v7588, %v7326
        %v7590 = vmax.f32 %v7589, %v7327
        %7591 = vmax.xlane.f32.xlu0 %v7590
        %v7592 = vpop.xlane.xlu0 %7591
        %v7593 = vmax.f32 %v7328, %v7329
        %v7594 = vmax.f32 %v7593, %v7330
        %v7595 = vmax.f32 %v7594, %v7331
        %7596 = vmax.xlane.f32.xlu0 %v7595
        %v7597 = vpop.xlane.xlu0 %7596
        %v7598 = vmax.f32 %v7332, %v7333
        %v7599 = vmax.f32 %v7598, %v7334
        %v7600 = vmax.f32 %v7599, %v7335
        %7601 = vmax.xlane.f32.xlu0 %v7600
        %v7602 = vpop.xlane.xlu0 %7601
        %v7603 = vmax.f32 %v7336, %v7337
        %v7604 = vmax.f32 %v7603, %v7338
        %v7605 = vmax.f32 %v7604, %v7339
        %7606 = vmax.xlane.f32.xlu0 %v7605
        %v7607 = vpop.xlane.xlu0 %7606
        %v7608 = vmax.f32 %v7340, %v7341
        %v7609 = vmax.f32 %v7608, %v7342
        %v7610 = vmax.f32 %v7609, %v7343
        %7611 = vmax.xlane.f32.xlu0 %v7610
        %v7612 = vpop.xlane.xlu0 %7611
        %v7613 = vmax.f32 %v7344, %v7345
        %v7614 = vmax.f32 %v7613, %v7346
        %v7615 = vmax.f32 %v7614, %v7347
        %7616 = vmax.xlane.f32.xlu0 %v7615
        %v7617 = vpop.xlane.xlu0 %7616
        %v7618 = vmax.f32 %v7348, %v7349
        %v7619 = vmax.f32 %v7618, %v7350
        %v7620 = vmax.f32 %v7619, %v7351
        %7621 = vmax.xlane.f32.xlu0 %v7620
        %v7622 = vpop.xlane.xlu0 %7621
        %v7623 = vmax.f32 %v7352, %v7353
        %v7624 = vmax.f32 %v7623, %v7354
        %v7625 = vmax.f32 %v7624, %v7355
        %7626 = vmax.xlane.f32.xlu0 %v7625
        %v7627 = vpop.xlane.xlu0 %7626
        %v7628 = vmax.f32 %v7356, %v7357
        %v7629 = vmax.f32 %v7628, %v7358
        %v7630 = vmax.f32 %v7629, %v7359
        %7631 = vmax.xlane.f32.xlu0 %v7630
        %v7632 = vpop.xlane.xlu0 %7631
        %v7633 = vmax.f32 %v7360, %v7361
        %v7634 = vmax.f32 %v7633, %v7362
        %v7635 = vmax.f32 %v7634, %v7363
        %7636 = vmax.xlane.f32.xlu0 %v7635
        %v7637 = vpop.xlane.xlu0 %7636
        %v7638 = vmax.f32 %v7364, %v7365
        %v7639 = vmax.f32 %v7638, %v7366
        %v7640 = vmax.f32 %v7639, %v7367
        %7641 = vmax.xlane.f32.xlu0 %v7640
        %v7642 = vpop.xlane.xlu0 %7641
        %v7643 = vmax.f32 %v7368, %v7369
        %v7644 = vmax.f32 %v7643, %v7370
        %v7645 = vmax.f32 %v7644, %v7371
        %7646 = vmax.xlane.f32.xlu0 %v7645
        %v7647 = vpop.xlane.xlu0 %7646
        %v7648 = vmax.f32 %v7372, %v7373
        %v7649 = vmax.f32 %v7648, %v7374
        %v7650 = vmax.f32 %v7649, %v7375
        %7651 = vmax.xlane.f32.xlu0 %v7650
        %v7652 = vpop.xlane.xlu0 %7651
        %v7653 = vmax.f32 %v7376, %v7377
        %v7654 = vmax.f32 %v7653, %v7378
        %v7655 = vmax.f32 %v7654, %v7379
        %7656 = vmax.xlane.f32.xlu0 %v7655
        %v7657 = vpop.xlane.xlu0 %7656
        %v7658 = vmax.f32 %v7380, %v7381
        %v7659 = vmax.f32 %v7658, %v7382
        %v7660 = vmax.f32 %v7659, %v7383
        %7661 = vmax.xlane.f32.xlu0 %v7660
        %v7662 = vpop.xlane.xlu0 %7661
        %v7663 = vmax.f32 %v7384, %v7385
        %v7664 = vmax.f32 %v7663, %v7386
        %v7665 = vmax.f32 %v7664, %v7387
        %7666 = vmax.xlane.f32.xlu0 %v7665
        %v7667 = vpop.xlane.xlu0 %7666
        %v7668 = vmax.f32 %v7388, %v7389
        %v7669 = vmax.f32 %v7668, %v7390
        %v7670 = vmax.f32 %v7669, %v7391
        %7671 = vmax.xlane.f32.xlu0 %v7670
        %v7672 = vpop.xlane.xlu0 %7671
        %v7673 = vmax.f32 %v7392, %v7393
        %v7674 = vmax.f32 %v7673, %v7394
        %v7675 = vmax.f32 %v7674, %v7395
        %7676 = vmax.xlane.f32.xlu0 %v7675
        %v7677 = vpop.xlane.xlu0 %7676
        %v7678 = vmax.f32 %v7396, %v7397
        %v7679 = vmax.f32 %v7678, %v7398
        %v7680 = vmax.f32 %v7679, %v7399
        %7681 = vmax.xlane.f32.xlu0 %v7680
        %v7682 = vpop.xlane.xlu0 %7681
        %v7683 = vmax.f32 %v7400, %v7401
        %v7684 = vmax.f32 %v7683, %v7402
        %v7685 = vmax.f32 %v7684, %v7403
        %7686 = vmax.xlane.f32.xlu0 %v7685
        %v7687 = vpop.xlane.xlu0 %7686
        %v7688 = vmax.f32 %v7404, %v7405
        %v7689 = vmax.f32 %v7688, %v7406
        %v7690 = vmax.f32 %v7689, %v7407
        %7691 = vmax.xlane.f32.xlu0 %v7690
        %v7692 = vpop.xlane.xlu0 %7691
        %v7693 = vmax.f32 %v7408, %v7409
        %v7694 = vmax.f32 %v7693, %v7410
        %v7695 = vmax.f32 %v7694, %v7411
        %7696 = vmax.xlane.f32.xlu0 %v7695
        %v7697 = vpop.xlane.xlu0 %7696
        %v7698 = vmax.f32 %v7412, %v7413
        %v7699 = vmax.f32 %v7698, %v7414
        %v7700 = vmax.f32 %v7699, %v7415
        %7701 = vmax.xlane.f32.xlu0 %v7700
        %v7702 = vpop.xlane.xlu0 %7701
        %v7703 = vmax.f32 %v7416, %v7417
        %v7704 = vmax.f32 %v7703, %v7418
        %v7705 = vmax.f32 %v7704, %v7419
        %7706 = vmax.xlane.f32.xlu0 %v7705
        %v7707 = vpop.xlane.xlu0 %7706
        %v7708 = vmax.f32 %v7420, %v7421
        %v7709 = vmax.f32 %v7708, %v7422
        %v7710 = vmax.f32 %v7709, %v7423
        %7711 = vmax.xlane.f32.xlu0 %v7710
        %v7712 = vpop.xlane.xlu0 %7711
        %v7713 = vmax.f32 %v7424, %v7425
        %v7714 = vmax.f32 %v7713, %v7426
        %v7715 = vmax.f32 %v7714, %v7427
        %7716 = vmax.xlane.f32.xlu0 %v7715
        %v7717 = vpop.xlane.xlu0 %7716
        %v7718 = vmax.f32 %v7428, %v7429
        %v7719 = vmax.f32 %v7718, %v7430
        %v7720 = vmax.f32 %v7719, %v7431
        %7721 = vmax.xlane.f32.xlu0 %v7720
        %v7722 = vpop.xlane.xlu0 %7721
        %v7723 = vmax.f32 %v7432, %v7433
        %v7724 = vmax.f32 %v7723, %v7434
        %v7725 = vmax.f32 %v7724, %v7435
        %7726 = vmax.xlane.f32.xlu0 %v7725
        %v7727 = vpop.xlane.xlu0 %7726
        %v7728 = vmax.f32 %v7436, %v7437
        %v7729 = vmax.f32 %v7728, %v7438
        %v7730 = vmax.f32 %v7729, %v7439
        %7731 = vmax.xlane.f32.xlu0 %v7730
        %v7732 = vpop.xlane.xlu0 %7731
        %v7733 = vmax.f32 %v7440, %v7441
        %v7734 = vmax.f32 %v7733, %v7442
        %v7735 = vmax.f32 %v7734, %v7443
        %7736 = vmax.xlane.f32.xlu0 %v7735
        %v7737 = vpop.xlane.xlu0 %7736
        %v7738 = vmax.f32 %v7444, %v7445
        %v7739 = vmax.f32 %v7738, %v7446
        %v7740 = vmax.f32 %v7739, %v7447
        %7741 = vmax.xlane.f32.xlu0 %v7740
        %v7742 = vpop.xlane.xlu0 %7741
        %v7743 = vmax.f32 %v7448, %v7449
        %v7744 = vmax.f32 %v7743, %v7450
        %v7745 = vmax.f32 %v7744, %v7451
        %7746 = vmax.xlane.f32.xlu0 %v7745
        %v7747 = vpop.xlane.xlu0 %7746
        %v7748 = vmax.f32 %v7452, %v7453
        %v7749 = vmax.f32 %v7748, %v7454
        %v7750 = vmax.f32 %v7749, %v7455
        %7751 = vmax.xlane.f32.xlu0 %v7750
        %v7752 = vpop.xlane.xlu0 %7751
        %v7753 = vmax.f32 %v7456, %v7457
        %v7754 = vmax.f32 %v7753, %v7458
        %v7755 = vmax.f32 %v7754, %v7459
        %7756 = vmax.xlane.f32.xlu0 %v7755
        %v7757 = vpop.xlane.xlu0 %7756
        %v7758 = vmax.f32 %v7460, %v7461
        %v7759 = vmax.f32 %v7758, %v7462
        %v7760 = vmax.f32 %v7759, %v7463
        %7761 = vmax.xlane.f32.xlu0 %v7760
        %v7762 = vpop.xlane.xlu0 %7761
        %v7763 = vmax.f32 %v7464, %v7465
        %v7764 = vmax.f32 %v7763, %v7466
        %v7765 = vmax.f32 %v7764, %v7467
        %7766 = vmax.xlane.f32.xlu0 %v7765
        %v7767 = vpop.xlane.xlu0 %7766
        %v7768 = vmax.f32 %v7468, %v7469
        %v7769 = vmax.f32 %v7768, %v7470
        %v7770 = vmax.f32 %v7769, %v7471
        %7771 = vmax.xlane.f32.xlu0 %v7770
        %v7772 = vpop.xlane.xlu0 %7771
        %v7773 = vmax.f32 %v7472, %v7473
        %v7774 = vmax.f32 %v7773, %v7474
        %v7775 = vmax.f32 %v7774, %v7475
        %7776 = vmax.xlane.f32.xlu0 %v7775
        %v7777 = vpop.xlane.xlu0 %7776
        %v7778 = vmax.f32 %v7476, %v7477
        %v7779 = vmax.f32 %v7778, %v7478
        %v7780 = vmax.f32 %v7779, %v7479
        %7781 = vmax.xlane.f32.xlu0 %v7780
        %v7782 = vpop.xlane.xlu0 %7781
        %v7783 = vmax.f32 %v7480, %v7481
        %v7784 = vmax.f32 %v7783, %v7482
        %v7785 = vmax.f32 %v7784, %v7483
        %7786 = vmax.xlane.f32.xlu0 %v7785
        %v7787 = vpop.xlane.xlu0 %7786
        %v7788 = vmax.f32 %v7484, %v7485
        %v7789 = vmax.f32 %v7788, %v7486
        %v7790 = vmax.f32 %v7789, %v7487
        %7791 = vmax.xlane.f32.xlu0 %v7790
        %v7792 = vpop.xlane.xlu0 %7791
        %v7793 = vmax.f32 %v7488, %v7489
        %v7794 = vmax.f32 %v7793, %v7490
        %v7795 = vmax.f32 %v7794, %v7491
        %7796 = vmax.xlane.f32.xlu0 %v7795
        %v7797 = vpop.xlane.xlu0 %7796
        %v7798 = vmax.f32 %v7492, %v7493
        %v7799 = vmax.f32 %v7798, %v7494
        %v7800 = vmax.f32 %v7799, %v7495
        %7801 = vmax.xlane.f32.xlu0 %v7800
        %v7802 = vpop.xlane.xlu0 %7801
        %v7803 = vmax.f32 %v7496, %v7497
        %v7804 = vmax.f32 %v7803, %v7498
        %v7805 = vmax.f32 %v7804, %v7499
        %7806 = vmax.xlane.f32.xlu0 %v7805
        %v7807 = vpop.xlane.xlu0 %7806
        %v7808 = vmax.f32 %v7500, %v7501
        %v7809 = vmax.f32 %v7808, %v7502
        %v7810 = vmax.f32 %v7809, %v7503
        %7811 = vmax.xlane.f32.xlu0 %v7810
        %v7812 = vpop.xlane.xlu0 %7811
        %v7813 = vmax.f32 %v7504, %v7505
        %v7814 = vmax.f32 %v7813, %v7506
        %v7815 = vmax.f32 %v7814, %v7507
        %7816 = vmax.xlane.f32.xlu0 %v7815
        %v7817 = vpop.xlane.xlu0 %7816
        %v7818 = vmax.f32 %v7508, %v7509
        %v7819 = vmax.f32 %v7818, %v7510
        %v7820 = vmax.f32 %v7819, %v7511
        %7821 = vmax.xlane.f32.xlu0 %v7820
        %v7822 = vpop.xlane.xlu0 %7821
        %v7823 = vmax.f32 %v7512, %v7513
        %v7824 = vmax.f32 %v7823, %v7514
        %v7825 = vmax.f32 %v7824, %v7515
        %7826 = vmax.xlane.f32.xlu0 %v7825
        %v7827 = vpop.xlane.xlu0 %7826
        %v7828 = vmax.f32 %v7516, %v7517
        %v7829 = vmax.f32 %v7828, %v7518
        %v7830 = vmax.f32 %v7829, %v7519
        %7831 = vmax.xlane.f32.xlu0 %v7830
        %v7832 = vpop.xlane.xlu0 %7831
        %v7833 = vmax.f32 %v7520, %v7521
        %v7834 = vmax.f32 %v7833, %v7522
        %v7835 = vmax.f32 %v7834, %v7523
        %7836 = vmax.xlane.f32.xlu0 %v7835
        %v7837 = vpop.xlane.xlu0 %7836
        %v7838 = vmax.f32 %v7524, %v7525
        %v7839 = vmax.f32 %v7838, %v7526
        %v7840 = vmax.f32 %v7839, %v7527
        %7841 = vmax.xlane.f32.xlu0 %v7840
        %v7842 = vpop.xlane.xlu0 %7841
        %v7843 = vmax.f32 %v7528, %v7529
        %v7844 = vmax.f32 %v7843, %v7530
        %v7845 = vmax.f32 %v7844, %v7531
        %7846 = vmax.xlane.f32.xlu0 %v7845
        %v7847 = vpop.xlane.xlu0 %7846
        %v7848 = vmax.f32 %v7532, %v7533
        %v7849 = vmax.f32 %v7848, %v7534
        %v7850 = vmax.f32 %v7849, %v7535
        %7851 = vmax.xlane.f32.xlu0 %v7850
        %v7852 = vpop.xlane.xlu0 %7851
        %v7853 = vmax.f32 %v7536, %v7537
        %v7854 = vmax.f32 %v7853, %v7538
        %v7855 = vmax.f32 %v7854, %v7539
        %7856 = vmax.xlane.f32.xlu0 %v7855
        %v7857 = vpop.xlane.xlu0 %7856
        %v7858 = vmax.f32 %v7540, %v7541
        %v7859 = vmax.f32 %v7858, %v7542
        %v7860 = vmax.f32 %v7859, %v7543
        %7861 = vmax.xlane.f32.xlu0 %v7860
        %v7862 = vpop.xlane.xlu0 %7861
        %v7863 = vmax.f32 %v7544, %v7545
        %v7864 = vmax.f32 %v7863, %v7546
        %v7865 = vmax.f32 %v7864, %v7547
        %7866 = vmax.xlane.f32.xlu0 %v7865
        %v7867 = vpop.xlane.xlu0 %7866
        %v7868 = vld [vmem:[%s17 + $0x300] sm:$0xff]
        %v7869 = vld [vmem:[%s17 + $0x308] sm:$0xff]
        %v7870 = vld [vmem:[%s17 + $0x310] sm:$0xff]
        %v7871 = vld [vmem:[%s17 + $0x318] sm:$0xff]
        %v7872 = vld [vmem:[%s17 + $0x320] sm:$0xff]
        %v7873 = vld [vmem:[%s17 + $0x328] sm:$0xff]
        %v7874 = vld [vmem:[%s17 + $0x330] sm:$0xff]
        %v7875 = vld [vmem:[%s17 + $0x338] sm:$0xff]
        %v7876 = vld [vmem:[%s17 + $0x340] sm:$0xff]
        %v7877 = vld [vmem:[%s17 + $0x348] sm:$0xff]
        %v7878 = vld [vmem:[%s17 + $0x350] sm:$0xff]
        %v7879 = vld [vmem:[%s17 + $0x358] sm:$0xff]
        %v7880 = vld [vmem:[%s17 + $0x360] sm:$0xff]
        %v7881 = vld [vmem:[%s17 + $0x368] sm:$0xff]
        %v7882 = vld [vmem:[%s17 + $0x370] sm:$0xff]
        %v7883 = vld [vmem:[%s17 + $0x378] sm:$0xff]
        %v7948 = vperm.slane %v7552, %v3030
        %v7949 = vperm.slane %v7557, %v3032
        %v7950 = vsel %vm3034, %v7949, %v7948
        %v7951 = vperm.slane %v7562, %v3036
        %v7952 = vsel %vm3038, %v7951, %v7950
        %v7953 = vperm.slane %v7567, %v3040
        %v7954 = vsel %vm3042, %v7953, %v7952
        %v7955 = vperm.slane %v7572, %v3044
        %v7956 = vsel %vm3046, %v7955, %v7954
        %v7957 = vperm.slane %v7577, %v3048
        %v7958 = vsel %vm3050, %v7957, %v7956
        %v7959 = vperm.slane %v7582, %v3052
        %v7960 = vsel %vm3054, %v7959, %v7958
        %v7961 = vperm.slane %v7587, %v3056
        %v7962 = vsel %vm3058, %v7961, %v7960
        %v7963 = vperm.slane %v7592, %v3030
        %v7964 = vperm.slane %v7597, %v3032
        %v7965 = vsel %vm3034, %v7964, %v7963
        %v7966 = vperm.slane %v7602, %v3036
        %v7967 = vsel %vm3038, %v7966, %v7965
        %v7968 = vperm.slane %v7607, %v3040
        %v7969 = vsel %vm3042, %v7968, %v7967
        %v7970 = vperm.slane %v7612, %v3044
        %v7971 = vsel %vm3046, %v7970, %v7969
        %v7972 = vperm.slane %v7617, %v3048
        %v7973 = vsel %vm3050, %v7972, %v7971
        %v7974 = vperm.slane %v7622, %v3052
        %v7975 = vsel %vm3054, %v7974, %v7973
        %v7976 = vperm.slane %v7627, %v3056
        %v7977 = vsel %vm3058, %v7976, %v7975
        %v7978 = vperm.slane %v7632, %v3030
        %v7979 = vperm.slane %v7637, %v3032
        %v7980 = vsel %vm3034, %v7979, %v7978
        %v7981 = vperm.slane %v7642, %v3036
        %v7982 = vsel %vm3038, %v7981, %v7980
        %v7983 = vperm.slane %v7647, %v3040
        %v7984 = vsel %vm3042, %v7983, %v7982
        %v7985 = vperm.slane %v7652, %v3044
        %v7986 = vsel %vm3046, %v7985, %v7984
        %v7987 = vperm.slane %v7657, %v3048
        %v7988 = vsel %vm3050, %v7987, %v7986
        %v7989 = vperm.slane %v7662, %v3052
        %v7990 = vsel %vm3054, %v7989, %v7988
        %v7991 = vperm.slane %v7667, %v3056
        %v7992 = vsel %vm3058, %v7991, %v7990
        %v7993 = vperm.slane %v7672, %v3030
        %v7994 = vperm.slane %v7677, %v3032
        %v7995 = vsel %vm3034, %v7994, %v7993
        %v7996 = vperm.slane %v7682, %v3036
        %v7997 = vsel %vm3038, %v7996, %v7995
        %v7998 = vperm.slane %v7687, %v3040
        %v7999 = vsel %vm3042, %v7998, %v7997
        %v8000 = vperm.slane %v7692, %v3044
        %v8001 = vsel %vm3046, %v8000, %v7999
        %v8002 = vperm.slane %v7697, %v3048
        %v8003 = vsel %vm3050, %v8002, %v8001
        %v8004 = vperm.slane %v7702, %v3052
        %v8005 = vsel %vm3054, %v8004, %v8003
        %v8006 = vperm.slane %v7707, %v3056
        %v8007 = vsel %vm3058, %v8006, %v8005
        %v8008 = vperm.slane %v7712, %v3030
        %v8009 = vperm.slane %v7717, %v3032
        %v8010 = vsel %vm3034, %v8009, %v8008
        %v8011 = vperm.slane %v7722, %v3036
        %v8012 = vsel %vm3038, %v8011, %v8010
        %v8013 = vperm.slane %v7727, %v3040
        %v8014 = vsel %vm3042, %v8013, %v8012
        %v8015 = vperm.slane %v7732, %v3044
        %v8016 = vsel %vm3046, %v8015, %v8014
        %v8017 = vperm.slane %v7737, %v3048
        %v8018 = vsel %vm3050, %v8017, %v8016
        %v8019 = vperm.slane %v7742, %v3052
        %v8020 = vsel %vm3054, %v8019, %v8018
        %v8021 = vperm.slane %v7747, %v3056
        %v8022 = vsel %vm3058, %v8021, %v8020
        %v8023 = vperm.slane %v7752, %v3030
        %v8024 = vperm.slane %v7757, %v3032
        %v8025 = vsel %vm3034, %v8024, %v8023
        %v8026 = vperm.slane %v7762, %v3036
        %v8027 = vsel %vm3038, %v8026, %v8025
        %v8028 = vperm.slane %v7767, %v3040
        %v8029 = vsel %vm3042, %v8028, %v8027
        %v8030 = vperm.slane %v7772, %v3044
        %v8031 = vsel %vm3046, %v8030, %v8029
        %v8032 = vperm.slane %v7777, %v3048
        %v8033 = vsel %vm3050, %v8032, %v8031
        %v8034 = vperm.slane %v7782, %v3052
        %v8035 = vsel %vm3054, %v8034, %v8033
        %v8036 = vperm.slane %v7787, %v3056
        %v8037 = vsel %vm3058, %v8036, %v8035
        %v8038 = vperm.slane %v7792, %v3030
        %v8039 = vperm.slane %v7797, %v3032
        %v8040 = vsel %vm3034, %v8039, %v8038
        %v8041 = vperm.slane %v7802, %v3036
        %v8042 = vsel %vm3038, %v8041, %v8040
        %v8043 = vperm.slane %v7807, %v3040
        %v8044 = vsel %vm3042, %v8043, %v8042
        %v8045 = vperm.slane %v7812, %v3044
        %v8046 = vsel %vm3046, %v8045, %v8044
        %v8047 = vperm.slane %v7817, %v3048
        %v8048 = vsel %vm3050, %v8047, %v8046
        %v8049 = vperm.slane %v7822, %v3052
        %v8050 = vsel %vm3054, %v8049, %v8048
        %v8051 = vperm.slane %v7827, %v3056
        %v8052 = vsel %vm3058, %v8051, %v8050
        %v8053 = vperm.slane %v7832, %v3030
        %v8054 = vperm.slane %v7837, %v3032
        %v8055 = vsel %vm3034, %v8054, %v8053
        %v8056 = vperm.slane %v7842, %v3036
        %v8057 = vsel %vm3038, %v8056, %v8055
        %v8058 = vperm.slane %v7847, %v3040
        %v8059 = vsel %vm3042, %v8058, %v8057
        %v8060 = vperm.slane %v7852, %v3044
        %v8061 = vsel %vm3046, %v8060, %v8059
        %v8062 = vperm.slane %v7857, %v3048
        %v8063 = vsel %vm3050, %v8062, %v8061
        %v8064 = vperm.slane %v7862, %v3052
        %v8065 = vsel %vm3054, %v8064, %v8063
        %v8066 = vperm.slane %v7867, %v3056
        %v8067 = vsel %vm3058, %v8066, %v8065
        %v8068 = vsel %vm1569, %v7977, %v7962
        %v8069 = vsel %vm1565, %v7992, %v8068
        %v8070 = vsel %vm1571, %v8007, %v8069
        %v8071 = vsel %vm1577, %v8022, %v8070
        %v8072 = vsel %vm1583, %v8037, %v8071
        %v8073 = vsel %vm1589, %v8052, %v8072
        %v8074 = vsel %vm3171, %v8067, %v8073
        %v8075 = vsel %vm3173, %v8074, 0
        %8077 = vmatpush.msra.mxu0 0.0
        %8078 = vmatpush.msra.mxu0 0.0
        %8079 = vmatpush.msra.mxu0 0.0
        %8080 = vmatpush.msra.mxu0 0.0
        %8081 = vmatpush.msra.mxu0 0.0
        %8082 = vmatpush.msra.mxu0 0.0
        %8083 = vmatpush.msra.mxu0 0.0
        %8084 = vmatpush.msra.mxu0 0.0
        %8085 = vmatpush.msra.mxu0 %v7882
        %8086 = vmatpush.msra.mxu0 %v7880
        %8087 = vmatpush.msra.mxu0 %v7878
        %8088 = vmatpush.msra.mxu0 %v7876
        %8089 = vmatpush.msra.mxu0 %v7874
        %8090 = vmatpush.msra.mxu0 %v7872
        %8091 = vmatpush.msra.mxu0 %v7870
        %8092 = vmatpush.msra.mxu0 %v7868
        %8093 = vmatmul.f32.gmra.mxu0 %v8075
        %v8094 = vpop.f32.mrf.mxu0
        %v8095 = vadd.f32 0.0, %v8094
        %8096 = vdwg.mxu0
        %8097 = vmatpush.msra.mxu0 0.0
        %8098 = vmatpush.msra.mxu0 0.0
        %8099 = vmatpush.msra.mxu0 0.0
        %8100 = vmatpush.msra.mxu0 0.0
        %8101 = vmatpush.msra.mxu0 0.0
        %8102 = vmatpush.msra.mxu0 0.0
        %8103 = vmatpush.msra.mxu0 0.0
        %8104 = vmatpush.msra.mxu0 0.0
        %8105 = vmatpush.msra.mxu0 %v7883
        %8106 = vmatpush.msra.mxu0 %v7881
        %8107 = vmatpush.msra.mxu0 %v7879
        %8108 = vmatpush.msra.mxu0 %v7877
        %8109 = vmatpush.msra.mxu0 %v7875
        %8110 = vmatpush.msra.mxu0 %v7873
        %8111 = vmatpush.msra.mxu0 %v7871
        %8112 = vmatpush.msra.mxu0 %v7869
        %8113 = vmatmul.f32.gmra.mxu0 %v8075
        %v8114 = vpop.f32.mrf.mxu0
        %v8115 = vadd.f32 0.0, %v8114
        %8116 = vdwg.mxu0
        %v8117 = vadd.f32 %v7183, %v8095
        %v8118 = vadd.f32 %v7184, %v8115
        %s8119 = scalar_lea.vmem %s975, 224
        %v8120 = vld [vmem:[%s8119] sm:$0xff]
        %v8121 = vld [vmem:[%s8119 + $0x8] sm:$0xff]
        %v8122 = vld [vmem:[%s8119 + $0x10] sm:$0xff]
        %v8123 = vld [vmem:[%s8119 + $0x18] sm:$0xff]
        %v8128 = vrot.slane %v8121, 7
        %v8129 = vrot.slane %v8122, 6
        %v8130 = vrot.slane %v8123, 5
        %v8131 = vsel %vm1563, %v8120, %v8128
        %v8132 = vsel %vm1565, %v8129, %v8130
        %v8133 = vsel %vm1567, %v8131, %v8132
        %v8134 = vsel %vm1569, %v8120, %v8128
        %v8135 = vsel %vm1571, %v8129, %v8130
        %v8136 = vsel %vm1573, %v8134, %v8135
        %v8137 = vrot.slane %v8136, 1
        %v8138 = vsel %vm1565, %v8120, %v8128
        %v8139 = vsel %vm1577, %v8129, %v8130
        %v8140 = vsel %vm1579, %v8138, %v8139
        %v8141 = vrot.slane %v8140, 2
        %v8142 = vsel %vm1571, %v8120, %v8128
        %v8143 = vsel %vm1583, %v8129, %v8130
        %v8144 = vsel %vm1585, %v8142, %v8143
        %v8145 = vrot.slane %v8144, 3
        %v8146 = vsel %vm1577, %v8120, %v8128
        %v8147 = vsel %vm1589, %v8129, %v8130
        %v8148 = vsel %vm1591, %v8146, %v8147
        %v8149 = vrot.slane %v8148, 4
        %v8150 = vsel %vm1583, %v8120, %v8128
        %v8151 = vsel %vm1595, %v8130, %v8129
        %v8152 = vsel %vm1597, %v8150, %v8151
        %v8153 = vrot.slane %v8152, 5
        %v8154 = vsel %vm1589, %v8120, %v8128
        %v8155 = vsel %vm1563, %v8129, %v8130
        %v8156 = vsel %vm1602, %v8155, %v8154
        %v8157 = vrot.slane %v8156, 6
        %v8158 = vsel %vm1595, %v8128, %v8120
        %v8159 = vsel %vm1569, %v8129, %v8130
        %v8160 = vsel %vm1607, %v8159, %v8158
        %v8161 = vrot.slane %v8160, 7
        %v8162 = vperm.slane %v8133, 0
        %v8163 = vperm.slane %v8133, 1
        %v8164 = vperm.slane %v8133, 2
        %v8165 = vperm.slane %v8133, 3
        %v8166 = vperm.slane %v8137, 0
        %v8167 = vperm.slane %v8137, 1
        %v8168 = vperm.slane %v8137, 2
        %v8169 = vperm.slane %v8137, 3
        %v8170 = vperm.slane %v8141, 0
        %v8171 = vperm.slane %v8141, 1
        %v8172 = vperm.slane %v8141, 2
        %v8173 = vperm.slane %v8141, 3
        %v8174 = vperm.slane %v8145, 0
        %v8175 = vperm.slane %v8145, 1
        %v8176 = vperm.slane %v8145, 2
        %v8177 = vperm.slane %v8145, 3
        %v8178 = vperm.slane %v8149, 0
        %v8179 = vperm.slane %v8149, 1
        %v8180 = vperm.slane %v8149, 2
        %v8181 = vperm.slane %v8149, 3
        %v8182 = vperm.slane %v8153, 0
        %v8183 = vperm.slane %v8153, 1
        %v8184 = vperm.slane %v8153, 2
        %v8185 = vperm.slane %v8153, 3
        %v8186 = vperm.slane %v8157, 0
        %v8187 = vperm.slane %v8157, 1
        %v8188 = vperm.slane %v8157, 2
        %v8189 = vperm.slane %v8157, 3
        %v8190 = vperm.slane %v8161, 0
        %v8191 = vperm.slane %v8161, 1
        %v8192 = vperm.slane %v8161, 2
        %v8193 = vperm.slane %v8161, 3
        %v8226 = vadd.f32 %v1520, %v8162
        %v8227 = vadd.f32 %v1521, %v8163
        %v8228 = vadd.f32 %v1522, %v8164
        %v8229 = vadd.f32 %v1523, %v8165
        %v8230 = vadd.f32 %v1524, %v8162
        %v8231 = vadd.f32 %v1525, %v8163
        %v8232 = vadd.f32 %v1526, %v8164
        %v8233 = vadd.f32 %v1527, %v8165
        %v8234 = vadd.f32 %v1528, %v8162
        %v8235 = vadd.f32 %v1529, %v8163
        %v8236 = vadd.f32 %v1530, %v8164
        %v8237 = vadd.f32 %v1531, %v8165
        %v8238 = vadd.f32 %v1532, %v8162
        %v8239 = vadd.f32 %v1533, %v8163
        %v8240 = vadd.f32 %v1534, %v8164
        %v8241 = vadd.f32 %v1535, %v8165
        %v8242 = vadd.f32 %v1536, %v8162
        %v8243 = vadd.f32 %v1537, %v8163
        %v8244 = vadd.f32 %v1538, %v8164
        %v8245 = vadd.f32 %v1539, %v8165
        %v8246 = vadd.f32 %v1540, %v8162
        %v8247 = vadd.f32 %v1541, %v8163
        %v8248 = vadd.f32 %v1542, %v8164
        %v8249 = vadd.f32 %v1543, %v8165
        %v8250 = vadd.f32 %v1544, %v8162
        %v8251 = vadd.f32 %v1545, %v8163
        %v8252 = vadd.f32 %v1546, %v8164
        %v8253 = vadd.f32 %v1547, %v8165
        %v8254 = vadd.f32 %v1548, %v8162
        %v8255 = vadd.f32 %v1549, %v8163
        %v8256 = vadd.f32 %v1550, %v8164
        %v8257 = vadd.f32 %v1551, %v8165
        %v8258 = vadd.f32 %v1520, %v8166
        %v8259 = vadd.f32 %v1521, %v8167
        %v8260 = vadd.f32 %v1522, %v8168
        %v8261 = vadd.f32 %v1523, %v8169
        %v8262 = vadd.f32 %v1524, %v8166
        %v8263 = vadd.f32 %v1525, %v8167
        %v8264 = vadd.f32 %v1526, %v8168
        %v8265 = vadd.f32 %v1527, %v8169
        %v8266 = vadd.f32 %v1528, %v8166
        %v8267 = vadd.f32 %v1529, %v8167
        %v8268 = vadd.f32 %v1530, %v8168
        %v8269 = vadd.f32 %v1531, %v8169
        %v8270 = vadd.f32 %v1532, %v8166
        %v8271 = vadd.f32 %v1533, %v8167
        %v8272 = vadd.f32 %v1534, %v8168
        %v8273 = vadd.f32 %v1535, %v8169
        %v8274 = vadd.f32 %v1536, %v8166
        %v8275 = vadd.f32 %v1537, %v8167
        %v8276 = vadd.f32 %v1538, %v8168
        %v8277 = vadd.f32 %v1539, %v8169
        %v8278 = vadd.f32 %v1540, %v8166
        %v8279 = vadd.f32 %v1541, %v8167
        %v8280 = vadd.f32 %v1542, %v8168
        %v8281 = vadd.f32 %v1543, %v8169
        %v8282 = vadd.f32 %v1544, %v8166
        %v8283 = vadd.f32 %v1545, %v8167
        %v8284 = vadd.f32 %v1546, %v8168
        %v8285 = vadd.f32 %v1547, %v8169
        %v8286 = vadd.f32 %v1548, %v8166
        %v8287 = vadd.f32 %v1549, %v8167
        %v8288 = vadd.f32 %v1550, %v8168
        %v8289 = vadd.f32 %v1551, %v8169
        %v8290 = vadd.f32 %v1520, %v8170
        %v8291 = vadd.f32 %v1521, %v8171
        %v8292 = vadd.f32 %v1522, %v8172
        %v8293 = vadd.f32 %v1523, %v8173
        %v8294 = vadd.f32 %v1524, %v8170
        %v8295 = vadd.f32 %v1525, %v8171
        %v8296 = vadd.f32 %v1526, %v8172
        %v8297 = vadd.f32 %v1527, %v8173
        %v8298 = vadd.f32 %v1528, %v8170
        %v8299 = vadd.f32 %v1529, %v8171
        %v8300 = vadd.f32 %v1530, %v8172
        %v8301 = vadd.f32 %v1531, %v8173
        %v8302 = vadd.f32 %v1532, %v8170
        %v8303 = vadd.f32 %v1533, %v8171
        %v8304 = vadd.f32 %v1534, %v8172
        %v8305 = vadd.f32 %v1535, %v8173
        %v8306 = vadd.f32 %v1536, %v8170
        %v8307 = vadd.f32 %v1537, %v8171
        %v8308 = vadd.f32 %v1538, %v8172
        %v8309 = vadd.f32 %v1539, %v8173
        %v8310 = vadd.f32 %v1540, %v8170
        %v8311 = vadd.f32 %v1541, %v8171
        %v8312 = vadd.f32 %v1542, %v8172
        %v8313 = vadd.f32 %v1543, %v8173
        %v8314 = vadd.f32 %v1544, %v8170
        %v8315 = vadd.f32 %v1545, %v8171
        %v8316 = vadd.f32 %v1546, %v8172
        %v8317 = vadd.f32 %v1547, %v8173
        %v8318 = vadd.f32 %v1548, %v8170
        %v8319 = vadd.f32 %v1549, %v8171
        %v8320 = vadd.f32 %v1550, %v8172
        %v8321 = vadd.f32 %v1551, %v8173
        %v8322 = vadd.f32 %v1520, %v8174
        %v8323 = vadd.f32 %v1521, %v8175
        %v8324 = vadd.f32 %v1522, %v8176
        %v8325 = vadd.f32 %v1523, %v8177
        %v8326 = vadd.f32 %v1524, %v8174
        %v8327 = vadd.f32 %v1525, %v8175
        %v8328 = vadd.f32 %v1526, %v8176
        %v8329 = vadd.f32 %v1527, %v8177
        %v8330 = vadd.f32 %v1528, %v8174
        %v8331 = vadd.f32 %v1529, %v8175
        %v8332 = vadd.f32 %v1530, %v8176
        %v8333 = vadd.f32 %v1531, %v8177
        %v8334 = vadd.f32 %v1532, %v8174
        %v8335 = vadd.f32 %v1533, %v8175
        %v8336 = vadd.f32 %v1534, %v8176
        %v8337 = vadd.f32 %v1535, %v8177
        %v8338 = vadd.f32 %v1536, %v8174
        %v8339 = vadd.f32 %v1537, %v8175
        %v8340 = vadd.f32 %v1538, %v8176
        %v8341 = vadd.f32 %v1539, %v8177
        %v8342 = vadd.f32 %v1540, %v8174
        %v8343 = vadd.f32 %v1541, %v8175
        %v8344 = vadd.f32 %v1542, %v8176
        %v8345 = vadd.f32 %v1543, %v8177
        %v8346 = vadd.f32 %v1544, %v8174
        %v8347 = vadd.f32 %v1545, %v8175
        %v8348 = vadd.f32 %v1546, %v8176
        %v8349 = vadd.f32 %v1547, %v8177
        %v8350 = vadd.f32 %v1548, %v8174
        %v8351 = vadd.f32 %v1549, %v8175
        %v8352 = vadd.f32 %v1550, %v8176
        %v8353 = vadd.f32 %v1551, %v8177
        %v8354 = vadd.f32 %v1520, %v8178
        %v8355 = vadd.f32 %v1521, %v8179
        %v8356 = vadd.f32 %v1522, %v8180
        %v8357 = vadd.f32 %v1523, %v8181
        %v8358 = vadd.f32 %v1524, %v8178
        %v8359 = vadd.f32 %v1525, %v8179
        %v8360 = vadd.f32 %v1526, %v8180
        %v8361 = vadd.f32 %v1527, %v8181
        %v8362 = vadd.f32 %v1528, %v8178
        %v8363 = vadd.f32 %v1529, %v8179
        %v8364 = vadd.f32 %v1530, %v8180
        %v8365 = vadd.f32 %v1531, %v8181
        %v8366 = vadd.f32 %v1532, %v8178
        %v8367 = vadd.f32 %v1533, %v8179
        %v8368 = vadd.f32 %v1534, %v8180
        %v8369 = vadd.f32 %v1535, %v8181
        %v8370 = vadd.f32 %v1536, %v8178
        %v8371 = vadd.f32 %v1537, %v8179
        %v8372 = vadd.f32 %v1538, %v8180
        %v8373 = vadd.f32 %v1539, %v8181
        %v8374 = vadd.f32 %v1540, %v8178
        %v8375 = vadd.f32 %v1541, %v8179
        %v8376 = vadd.f32 %v1542, %v8180
        %v8377 = vadd.f32 %v1543, %v8181
        %v8378 = vadd.f32 %v1544, %v8178
        %v8379 = vadd.f32 %v1545, %v8179
        %v8380 = vadd.f32 %v1546, %v8180
        %v8381 = vadd.f32 %v1547, %v8181
        %v8382 = vadd.f32 %v1548, %v8178
        %v8383 = vadd.f32 %v1549, %v8179
        %v8384 = vadd.f32 %v1550, %v8180
        %v8385 = vadd.f32 %v1551, %v8181
        %v8386 = vadd.f32 %v1520, %v8182
        %v8387 = vadd.f32 %v1521, %v8183
        %v8388 = vadd.f32 %v1522, %v8184
        %v8389 = vadd.f32 %v1523, %v8185
        %v8390 = vadd.f32 %v1524, %v8182
        %v8391 = vadd.f32 %v1525, %v8183
        %v8392 = vadd.f32 %v1526, %v8184
        %v8393 = vadd.f32 %v1527, %v8185
        %v8394 = vadd.f32 %v1528, %v8182
        %v8395 = vadd.f32 %v1529, %v8183
        %v8396 = vadd.f32 %v1530, %v8184
        %v8397 = vadd.f32 %v1531, %v8185
        %v8398 = vadd.f32 %v1532, %v8182
        %v8399 = vadd.f32 %v1533, %v8183
        %v8400 = vadd.f32 %v1534, %v8184
        %v8401 = vadd.f32 %v1535, %v8185
        %v8402 = vadd.f32 %v1536, %v8182
        %v8403 = vadd.f32 %v1537, %v8183
        %v8404 = vadd.f32 %v1538, %v8184
        %v8405 = vadd.f32 %v1539, %v8185
        %v8406 = vadd.f32 %v1540, %v8182
        %v8407 = vadd.f32 %v1541, %v8183
        %v8408 = vadd.f32 %v1542, %v8184
        %v8409 = vadd.f32 %v1543, %v8185
        %v8410 = vadd.f32 %v1544, %v8182
        %v8411 = vadd.f32 %v1545, %v8183
        %v8412 = vadd.f32 %v1546, %v8184
        %v8413 = vadd.f32 %v1547, %v8185
        %v8414 = vadd.f32 %v1548, %v8182
        %v8415 = vadd.f32 %v1549, %v8183
        %v8416 = vadd.f32 %v1550, %v8184
        %v8417 = vadd.f32 %v1551, %v8185
        %v8418 = vadd.f32 %v1520, %v8186
        %v8419 = vadd.f32 %v1521, %v8187
        %v8420 = vadd.f32 %v1522, %v8188
        %v8421 = vadd.f32 %v1523, %v8189
        %v8422 = vadd.f32 %v1524, %v8186
        %v8423 = vadd.f32 %v1525, %v8187
        %v8424 = vadd.f32 %v1526, %v8188
        %v8425 = vadd.f32 %v1527, %v8189
        %v8426 = vadd.f32 %v1528, %v8186
        %v8427 = vadd.f32 %v1529, %v8187
        %v8428 = vadd.f32 %v1530, %v8188
        %v8429 = vadd.f32 %v1531, %v8189
        %v8430 = vadd.f32 %v1532, %v8186
        %v8431 = vadd.f32 %v1533, %v8187
        %v8432 = vadd.f32 %v1534, %v8188
        %v8433 = vadd.f32 %v1535, %v8189
        %v8434 = vadd.f32 %v1536, %v8186
        %v8435 = vadd.f32 %v1537, %v8187
        %v8436 = vadd.f32 %v1538, %v8188
        %v8437 = vadd.f32 %v1539, %v8189
        %v8438 = vadd.f32 %v1540, %v8186
        %v8439 = vadd.f32 %v1541, %v8187
        %v8440 = vadd.f32 %v1542, %v8188
        %v8441 = vadd.f32 %v1543, %v8189
        %v8442 = vadd.f32 %v1544, %v8186
        %v8443 = vadd.f32 %v1545, %v8187
        %v8444 = vadd.f32 %v1546, %v8188
        %v8445 = vadd.f32 %v1547, %v8189
        %v8446 = vadd.f32 %v1548, %v8186
        %v8447 = vadd.f32 %v1549, %v8187
        %v8448 = vadd.f32 %v1550, %v8188
        %v8449 = vadd.f32 %v1551, %v8189
        %v8450 = vadd.f32 %v1520, %v8190
        %v8451 = vadd.f32 %v1521, %v8191
        %v8452 = vadd.f32 %v1522, %v8192
        %v8453 = vadd.f32 %v1523, %v8193
        %v8454 = vadd.f32 %v1524, %v8190
        %v8455 = vadd.f32 %v1525, %v8191
        %v8456 = vadd.f32 %v1526, %v8192
        %v8457 = vadd.f32 %v1527, %v8193
        %v8458 = vadd.f32 %v1528, %v8190
        %v8459 = vadd.f32 %v1529, %v8191
        %v8460 = vadd.f32 %v1530, %v8192
        %v8461 = vadd.f32 %v1531, %v8193
        %v8462 = vadd.f32 %v1532, %v8190
        %v8463 = vadd.f32 %v1533, %v8191
        %v8464 = vadd.f32 %v1534, %v8192
        %v8465 = vadd.f32 %v1535, %v8193
        %v8466 = vadd.f32 %v1536, %v8190
        %v8467 = vadd.f32 %v1537, %v8191
        %v8468 = vadd.f32 %v1538, %v8192
        %v8469 = vadd.f32 %v1539, %v8193
        %v8470 = vadd.f32 %v1540, %v8190
        %v8471 = vadd.f32 %v1541, %v8191
        %v8472 = vadd.f32 %v1542, %v8192
        %v8473 = vadd.f32 %v1543, %v8193
        %v8474 = vadd.f32 %v1544, %v8190
        %v8475 = vadd.f32 %v1545, %v8191
        %v8476 = vadd.f32 %v1546, %v8192
        %v8477 = vadd.f32 %v1547, %v8193
        %v8478 = vadd.f32 %v1548, %v8190
        %v8479 = vadd.f32 %v1549, %v8191
        %v8480 = vadd.f32 %v1550, %v8192
        %v8481 = vadd.f32 %v1551, %v8193
        %v8482 = vmax.f32 %v8226, %v8227
        %v8483 = vmax.f32 %v8482, %v8228
        %v8484 = vmax.f32 %v8483, %v8229
        %8485 = vmax.xlane.f32.xlu0 %v8484
        %v8486 = vpop.xlane.xlu0 %8485
        %v8487 = vmax.f32 %v8230, %v8231
        %v8488 = vmax.f32 %v8487, %v8232
        %v8489 = vmax.f32 %v8488, %v8233
        %8490 = vmax.xlane.f32.xlu0 %v8489
        %v8491 = vpop.xlane.xlu0 %8490
        %v8492 = vmax.f32 %v8234, %v8235
        %v8493 = vmax.f32 %v8492, %v8236
        %v8494 = vmax.f32 %v8493, %v8237
        %8495 = vmax.xlane.f32.xlu0 %v8494
        %v8496 = vpop.xlane.xlu0 %8495
        %v8497 = vmax.f32 %v8238, %v8239
        %v8498 = vmax.f32 %v8497, %v8240
        %v8499 = vmax.f32 %v8498, %v8241
        %8500 = vmax.xlane.f32.xlu0 %v8499
        %v8501 = vpop.xlane.xlu0 %8500
        %v8502 = vmax.f32 %v8242, %v8243
        %v8503 = vmax.f32 %v8502, %v8244
        %v8504 = vmax.f32 %v8503, %v8245
        %8505 = vmax.xlane.f32.xlu0 %v8504
        %v8506 = vpop.xlane.xlu0 %8505
        %v8507 = vmax.f32 %v8246, %v8247
        %v8508 = vmax.f32 %v8507, %v8248
        %v8509 = vmax.f32 %v8508, %v8249
        %8510 = vmax.xlane.f32.xlu0 %v8509
        %v8511 = vpop.xlane.xlu0 %8510
        %v8512 = vmax.f32 %v8250, %v8251
        %v8513 = vmax.f32 %v8512, %v8252
        %v8514 = vmax.f32 %v8513, %v8253
        %8515 = vmax.xlane.f32.xlu0 %v8514
        %v8516 = vpop.xlane.xlu0 %8515
        %v8517 = vmax.f32 %v8254, %v8255
        %v8518 = vmax.f32 %v8517, %v8256
        %v8519 = vmax.f32 %v8518, %v8257
        %8520 = vmax.xlane.f32.xlu0 %v8519
        %v8521 = vpop.xlane.xlu0 %8520
        %v8522 = vmax.f32 %v8258, %v8259
        %v8523 = vmax.f32 %v8522, %v8260
        %v8524 = vmax.f32 %v8523, %v8261
        %8525 = vmax.xlane.f32.xlu0 %v8524
        %v8526 = vpop.xlane.xlu0 %8525
        %v8527 = vmax.f32 %v8262, %v8263
        %v8528 = vmax.f32 %v8527, %v8264
        %v8529 = vmax.f32 %v8528, %v8265
        %8530 = vmax.xlane.f32.xlu0 %v8529
        %v8531 = vpop.xlane.xlu0 %8530
        %v8532 = vmax.f32 %v8266, %v8267
        %v8533 = vmax.f32 %v8532, %v8268
        %v8534 = vmax.f32 %v8533, %v8269
        %8535 = vmax.xlane.f32.xlu0 %v8534
        %v8536 = vpop.xlane.xlu0 %8535
        %v8537 = vmax.f32 %v8270, %v8271
        %v8538 = vmax.f32 %v8537, %v8272
        %v8539 = vmax.f32 %v8538, %v8273
        %8540 = vmax.xlane.f32.xlu0 %v8539
        %v8541 = vpop.xlane.xlu0 %8540
        %v8542 = vmax.f32 %v8274, %v8275
        %v8543 = vmax.f32 %v8542, %v8276
        %v8544 = vmax.f32 %v8543, %v8277
        %8545 = vmax.xlane.f32.xlu0 %v8544
        %v8546 = vpop.xlane.xlu0 %8545
        %v8547 = vmax.f32 %v8278, %v8279
        %v8548 = vmax.f32 %v8547, %v8280
        %v8549 = vmax.f32 %v8548, %v8281
        %8550 = vmax.xlane.f32.xlu0 %v8549
        %v8551 = vpop.xlane.xlu0 %8550
        %v8552 = vmax.f32 %v8282, %v8283
        %v8553 = vmax.f32 %v8552, %v8284
        %v8554 = vmax.f32 %v8553, %v8285
        %8555 = vmax.xlane.f32.xlu0 %v8554
        %v8556 = vpop.xlane.xlu0 %8555
        %v8557 = vmax.f32 %v8286, %v8287
        %v8558 = vmax.f32 %v8557, %v8288
        %v8559 = vmax.f32 %v8558, %v8289
        %8560 = vmax.xlane.f32.xlu0 %v8559
        %v8561 = vpop.xlane.xlu0 %8560
        %v8562 = vmax.f32 %v8290, %v8291
        %v8563 = vmax.f32 %v8562, %v8292
        %v8564 = vmax.f32 %v8563, %v8293
        %8565 = vmax.xlane.f32.xlu0 %v8564
        %v8566 = vpop.xlane.xlu0 %8565
        %v8567 = vmax.f32 %v8294, %v8295
        %v8568 = vmax.f32 %v8567, %v8296
        %v8569 = vmax.f32 %v8568, %v8297
        %8570 = vmax.xlane.f32.xlu0 %v8569
        %v8571 = vpop.xlane.xlu0 %8570
        %v8572 = vmax.f32 %v8298, %v8299
        %v8573 = vmax.f32 %v8572, %v8300
        %v8574 = vmax.f32 %v8573, %v8301
        %8575 = vmax.xlane.f32.xlu0 %v8574
        %v8576 = vpop.xlane.xlu0 %8575
        %v8577 = vmax.f32 %v8302, %v8303
        %v8578 = vmax.f32 %v8577, %v8304
        %v8579 = vmax.f32 %v8578, %v8305
        %8580 = vmax.xlane.f32.xlu0 %v8579
        %v8581 = vpop.xlane.xlu0 %8580
        %v8582 = vmax.f32 %v8306, %v8307
        %v8583 = vmax.f32 %v8582, %v8308
        %v8584 = vmax.f32 %v8583, %v8309
        %8585 = vmax.xlane.f32.xlu0 %v8584
        %v8586 = vpop.xlane.xlu0 %8585
        %v8587 = vmax.f32 %v8310, %v8311
        %v8588 = vmax.f32 %v8587, %v8312
        %v8589 = vmax.f32 %v8588, %v8313
        %8590 = vmax.xlane.f32.xlu0 %v8589
        %v8591 = vpop.xlane.xlu0 %8590
        %v8592 = vmax.f32 %v8314, %v8315
        %v8593 = vmax.f32 %v8592, %v8316
        %v8594 = vmax.f32 %v8593, %v8317
        %8595 = vmax.xlane.f32.xlu0 %v8594
        %v8596 = vpop.xlane.xlu0 %8595
        %v8597 = vmax.f32 %v8318, %v8319
        %v8598 = vmax.f32 %v8597, %v8320
        %v8599 = vmax.f32 %v8598, %v8321
        %8600 = vmax.xlane.f32.xlu0 %v8599
        %v8601 = vpop.xlane.xlu0 %8600
        %v8602 = vmax.f32 %v8322, %v8323
        %v8603 = vmax.f32 %v8602, %v8324
        %v8604 = vmax.f32 %v8603, %v8325
        %8605 = vmax.xlane.f32.xlu0 %v8604
        %v8606 = vpop.xlane.xlu0 %8605
        %v8607 = vmax.f32 %v8326, %v8327
        %v8608 = vmax.f32 %v8607, %v8328
        %v8609 = vmax.f32 %v8608, %v8329
        %8610 = vmax.xlane.f32.xlu0 %v8609
        %v8611 = vpop.xlane.xlu0 %8610
        %v8612 = vmax.f32 %v8330, %v8331
        %v8613 = vmax.f32 %v8612, %v8332
        %v8614 = vmax.f32 %v8613, %v8333
        %8615 = vmax.xlane.f32.xlu0 %v8614
        %v8616 = vpop.xlane.xlu0 %8615
        %v8617 = vmax.f32 %v8334, %v8335
        %v8618 = vmax.f32 %v8617, %v8336
        %v8619 = vmax.f32 %v8618, %v8337
        %8620 = vmax.xlane.f32.xlu0 %v8619
        %v8621 = vpop.xlane.xlu0 %8620
        %v8622 = vmax.f32 %v8338, %v8339
        %v8623 = vmax.f32 %v8622, %v8340
        %v8624 = vmax.f32 %v8623, %v8341
        %8625 = vmax.xlane.f32.xlu0 %v8624
        %v8626 = vpop.xlane.xlu0 %8625
        %v8627 = vmax.f32 %v8342, %v8343
        %v8628 = vmax.f32 %v8627, %v8344
        %v8629 = vmax.f32 %v8628, %v8345
        %8630 = vmax.xlane.f32.xlu0 %v8629
        %v8631 = vpop.xlane.xlu0 %8630
        %v8632 = vmax.f32 %v8346, %v8347
        %v8633 = vmax.f32 %v8632, %v8348
        %v8634 = vmax.f32 %v8633, %v8349
        %8635 = vmax.xlane.f32.xlu0 %v8634
        %v8636 = vpop.xlane.xlu0 %8635
        %v8637 = vmax.f32 %v8350, %v8351
        %v8638 = vmax.f32 %v8637, %v8352
        %v8639 = vmax.f32 %v8638, %v8353
        %8640 = vmax.xlane.f32.xlu0 %v8639
        %v8641 = vpop.xlane.xlu0 %8640
        %v8642 = vmax.f32 %v8354, %v8355
        %v8643 = vmax.f32 %v8642, %v8356
        %v8644 = vmax.f32 %v8643, %v8357
        %8645 = vmax.xlane.f32.xlu0 %v8644
        %v8646 = vpop.xlane.xlu0 %8645
        %v8647 = vmax.f32 %v8358, %v8359
        %v8648 = vmax.f32 %v8647, %v8360
        %v8649 = vmax.f32 %v8648, %v8361
        %8650 = vmax.xlane.f32.xlu0 %v8649
        %v8651 = vpop.xlane.xlu0 %8650
        %v8652 = vmax.f32 %v8362, %v8363
        %v8653 = vmax.f32 %v8652, %v8364
        %v8654 = vmax.f32 %v8653, %v8365
        %8655 = vmax.xlane.f32.xlu0 %v8654
        %v8656 = vpop.xlane.xlu0 %8655
        %v8657 = vmax.f32 %v8366, %v8367
        %v8658 = vmax.f32 %v8657, %v8368
        %v8659 = vmax.f32 %v8658, %v8369
        %8660 = vmax.xlane.f32.xlu0 %v8659
        %v8661 = vpop.xlane.xlu0 %8660
        %v8662 = vmax.f32 %v8370, %v8371
        %v8663 = vmax.f32 %v8662, %v8372
        %v8664 = vmax.f32 %v8663, %v8373
        %8665 = vmax.xlane.f32.xlu0 %v8664
        %v8666 = vpop.xlane.xlu0 %8665
        %v8667 = vmax.f32 %v8374, %v8375
        %v8668 = vmax.f32 %v8667, %v8376
        %v8669 = vmax.f32 %v8668, %v8377
        %8670 = vmax.xlane.f32.xlu0 %v8669
        %v8671 = vpop.xlane.xlu0 %8670
        %v8672 = vmax.f32 %v8378, %v8379
        %v8673 = vmax.f32 %v8672, %v8380
        %v8674 = vmax.f32 %v8673, %v8381
        %8675 = vmax.xlane.f32.xlu0 %v8674
        %v8676 = vpop.xlane.xlu0 %8675
        %v8677 = vmax.f32 %v8382, %v8383
        %v8678 = vmax.f32 %v8677, %v8384
        %v8679 = vmax.f32 %v8678, %v8385
        %8680 = vmax.xlane.f32.xlu0 %v8679
        %v8681 = vpop.xlane.xlu0 %8680
        %v8682 = vmax.f32 %v8386, %v8387
        %v8683 = vmax.f32 %v8682, %v8388
        %v8684 = vmax.f32 %v8683, %v8389
        %8685 = vmax.xlane.f32.xlu0 %v8684
        %v8686 = vpop.xlane.xlu0 %8685
        %v8687 = vmax.f32 %v8390, %v8391
        %v8688 = vmax.f32 %v8687, %v8392
        %v8689 = vmax.f32 %v8688, %v8393
        %8690 = vmax.xlane.f32.xlu0 %v8689
        %v8691 = vpop.xlane.xlu0 %8690
        %v8692 = vmax.f32 %v8394, %v8395
        %v8693 = vmax.f32 %v8692, %v8396
        %v8694 = vmax.f32 %v8693, %v8397
        %8695 = vmax.xlane.f32.xlu0 %v8694
        %v8696 = vpop.xlane.xlu0 %8695
        %v8697 = vmax.f32 %v8398, %v8399
        %v8698 = vmax.f32 %v8697, %v8400
        %v8699 = vmax.f32 %v8698, %v8401
        %8700 = vmax.xlane.f32.xlu0 %v8699
        %v8701 = vpop.xlane.xlu0 %8700
        %v8702 = vmax.f32 %v8402, %v8403
        %v8703 = vmax.f32 %v8702, %v8404
        %v8704 = vmax.f32 %v8703, %v8405
        %8705 = vmax.xlane.f32.xlu0 %v8704
        %v8706 = vpop.xlane.xlu0 %8705
        %v8707 = vmax.f32 %v8406, %v8407
        %v8708 = vmax.f32 %v8707, %v8408
        %v8709 = vmax.f32 %v8708, %v8409
        %8710 = vmax.xlane.f32.xlu0 %v8709
        %v8711 = vpop.xlane.xlu0 %8710
        %v8712 = vmax.f32 %v8410, %v8411
        %v8713 = vmax.f32 %v8712, %v8412
        %v8714 = vmax.f32 %v8713, %v8413
        %8715 = vmax.xlane.f32.xlu0 %v8714
        %v8716 = vpop.xlane.xlu0 %8715
        %v8717 = vmax.f32 %v8414, %v8415
        %v8718 = vmax.f32 %v8717, %v8416
        %v8719 = vmax.f32 %v8718, %v8417
        %8720 = vmax.xlane.f32.xlu0 %v8719
        %v8721 = vpop.xlane.xlu0 %8720
        %v8722 = vmax.f32 %v8418, %v8419
        %v8723 = vmax.f32 %v8722, %v8420
        %v8724 = vmax.f32 %v8723, %v8421
        %8725 = vmax.xlane.f32.xlu0 %v8724
        %v8726 = vpop.xlane.xlu0 %8725
        %v8727 = vmax.f32 %v8422, %v8423
        %v8728 = vmax.f32 %v8727, %v8424
        %v8729 = vmax.f32 %v8728, %v8425
        %8730 = vmax.xlane.f32.xlu0 %v8729
        %v8731 = vpop.xlane.xlu0 %8730
        %v8732 = vmax.f32 %v8426, %v8427
        %v8733 = vmax.f32 %v8732, %v8428
        %v8734 = vmax.f32 %v8733, %v8429
        %8735 = vmax.xlane.f32.xlu0 %v8734
        %v8736 = vpop.xlane.xlu0 %8735
        %v8737 = vmax.f32 %v8430, %v8431
        %v8738 = vmax.f32 %v8737, %v8432
        %v8739 = vmax.f32 %v8738, %v8433
        %8740 = vmax.xlane.f32.xlu0 %v8739
        %v8741 = vpop.xlane.xlu0 %8740
        %v8742 = vmax.f32 %v8434, %v8435
        %v8743 = vmax.f32 %v8742, %v8436
        %v8744 = vmax.f32 %v8743, %v8437
        %8745 = vmax.xlane.f32.xlu0 %v8744
        %v8746 = vpop.xlane.xlu0 %8745
        %v8747 = vmax.f32 %v8438, %v8439
        %v8748 = vmax.f32 %v8747, %v8440
        %v8749 = vmax.f32 %v8748, %v8441
        %8750 = vmax.xlane.f32.xlu0 %v8749
        %v8751 = vpop.xlane.xlu0 %8750
        %v8752 = vmax.f32 %v8442, %v8443
        %v8753 = vmax.f32 %v8752, %v8444
        %v8754 = vmax.f32 %v8753, %v8445
        %8755 = vmax.xlane.f32.xlu0 %v8754
        %v8756 = vpop.xlane.xlu0 %8755
        %v8757 = vmax.f32 %v8446, %v8447
        %v8758 = vmax.f32 %v8757, %v8448
        %v8759 = vmax.f32 %v8758, %v8449
        %8760 = vmax.xlane.f32.xlu0 %v8759
        %v8761 = vpop.xlane.xlu0 %8760
        %v8762 = vmax.f32 %v8450, %v8451
        %v8763 = vmax.f32 %v8762, %v8452
        %v8764 = vmax.f32 %v8763, %v8453
        %8765 = vmax.xlane.f32.xlu0 %v8764
        %v8766 = vpop.xlane.xlu0 %8765
        %v8767 = vmax.f32 %v8454, %v8455
        %v8768 = vmax.f32 %v8767, %v8456
        %v8769 = vmax.f32 %v8768, %v8457
        %8770 = vmax.xlane.f32.xlu0 %v8769
        %v8771 = vpop.xlane.xlu0 %8770
        %v8772 = vmax.f32 %v8458, %v8459
        %v8773 = vmax.f32 %v8772, %v8460
        %v8774 = vmax.f32 %v8773, %v8461
        %8775 = vmax.xlane.f32.xlu0 %v8774
        %v8776 = vpop.xlane.xlu0 %8775
        %v8777 = vmax.f32 %v8462, %v8463
        %v8778 = vmax.f32 %v8777, %v8464
        %v8779 = vmax.f32 %v8778, %v8465
        %8780 = vmax.xlane.f32.xlu0 %v8779
        %v8781 = vpop.xlane.xlu0 %8780
        %v8782 = vmax.f32 %v8466, %v8467
        %v8783 = vmax.f32 %v8782, %v8468
        %v8784 = vmax.f32 %v8783, %v8469
        %8785 = vmax.xlane.f32.xlu0 %v8784
        %v8786 = vpop.xlane.xlu0 %8785
        %v8787 = vmax.f32 %v8470, %v8471
        %v8788 = vmax.f32 %v8787, %v8472
        %v8789 = vmax.f32 %v8788, %v8473
        %8790 = vmax.xlane.f32.xlu0 %v8789
        %v8791 = vpop.xlane.xlu0 %8790
        %v8792 = vmax.f32 %v8474, %v8475
        %v8793 = vmax.f32 %v8792, %v8476
        %v8794 = vmax.f32 %v8793, %v8477
        %8795 = vmax.xlane.f32.xlu0 %v8794
        %v8796 = vpop.xlane.xlu0 %8795
        %v8797 = vmax.f32 %v8478, %v8479
        %v8798 = vmax.f32 %v8797, %v8480
        %v8799 = vmax.f32 %v8798, %v8481
        %8800 = vmax.xlane.f32.xlu0 %v8799
        %v8801 = vpop.xlane.xlu0 %8800
        %v8802 = vld [vmem:[%s17 + $0x380] sm:$0xff]
        %v8803 = vld [vmem:[%s17 + $0x388] sm:$0xff]
        %v8804 = vld [vmem:[%s17 + $0x390] sm:$0xff]
        %v8805 = vld [vmem:[%s17 + $0x398] sm:$0xff]
        %v8806 = vld [vmem:[%s17 + $0x3a0] sm:$0xff]
        %v8807 = vld [vmem:[%s17 + $0x3a8] sm:$0xff]
        %v8808 = vld [vmem:[%s17 + $0x3b0] sm:$0xff]
        %v8809 = vld [vmem:[%s17 + $0x3b8] sm:$0xff]
        %v8810 = vld [vmem:[%s17 + $0x3c0] sm:$0xff]
        %v8811 = vld [vmem:[%s17 + $0x3c8] sm:$0xff]
        %v8812 = vld [vmem:[%s17 + $0x3d0] sm:$0xff]
        %v8813 = vld [vmem:[%s17 + $0x3d8] sm:$0xff]
        %v8814 = vld [vmem:[%s17 + $0x3e0] sm:$0xff]
        %v8815 = vld [vmem:[%s17 + $0x3e8] sm:$0xff]
        %v8816 = vld [vmem:[%s17 + $0x3f0] sm:$0xff]
        %v8817 = vld [vmem:[%s17 + $0x3f8] sm:$0xff]
        %v8882 = vperm.slane %v8486, %v3030
        %v8883 = vperm.slane %v8491, %v3032
        %v8884 = vsel %vm3034, %v8883, %v8882
        %v8885 = vperm.slane %v8496, %v3036
        %v8886 = vsel %vm3038, %v8885, %v8884
        %v8887 = vperm.slane %v8501, %v3040
        %v8888 = vsel %vm3042, %v8887, %v8886
        %v8889 = vperm.slane %v8506, %v3044
        %v8890 = vsel %vm3046, %v8889, %v8888
        %v8891 = vperm.slane %v8511, %v3048
        %v8892 = vsel %vm3050, %v8891, %v8890
        %v8893 = vperm.slane %v8516, %v3052
        %v8894 = vsel %vm3054, %v8893, %v8892
        %v8895 = vperm.slane %v8521, %v3056
        %v8896 = vsel %vm3058, %v8895, %v8894
        %v8897 = vperm.slane %v8526, %v3030
        %v8898 = vperm.slane %v8531, %v3032
        %v8899 = vsel %vm3034, %v8898, %v8897
        %v8900 = vperm.slane %v8536, %v3036
        %v8901 = vsel %vm3038, %v8900, %v8899
        %v8902 = vperm.slane %v8541, %v3040
        %v8903 = vsel %vm3042, %v8902, %v8901
        %v8904 = vperm.slane %v8546, %v3044
        %v8905 = vsel %vm3046, %v8904, %v8903
        %v8906 = vperm.slane %v8551, %v3048
        %v8907 = vsel %vm3050, %v8906, %v8905
        %v8908 = vperm.slane %v8556, %v3052
        %v8909 = vsel %vm3054, %v8908, %v8907
        %v8910 = vperm.slane %v8561, %v3056
        %v8911 = vsel %vm3058, %v8910, %v8909
        %v8912 = vperm.slane %v8566, %v3030
        %v8913 = vperm.slane %v8571, %v3032
        %v8914 = vsel %vm3034, %v8913, %v8912
        %v8915 = vperm.slane %v8576, %v3036
        %v8916 = vsel %vm3038, %v8915, %v8914
        %v8917 = vperm.slane %v8581, %v3040
        %v8918 = vsel %vm3042, %v8917, %v8916
        %v8919 = vperm.slane %v8586, %v3044
        %v8920 = vsel %vm3046, %v8919, %v8918
        %v8921 = vperm.slane %v8591, %v3048
        %v8922 = vsel %vm3050, %v8921, %v8920
        %v8923 = vperm.slane %v8596, %v3052
        %v8924 = vsel %vm3054, %v8923, %v8922
        %v8925 = vperm.slane %v8601, %v3056
        %v8926 = vsel %vm3058, %v8925, %v8924
        %v8927 = vperm.slane %v8606, %v3030
        %v8928 = vperm.slane %v8611, %v3032
        %v8929 = vsel %vm3034, %v8928, %v8927
        %v8930 = vperm.slane %v8616, %v3036
        %v8931 = vsel %vm3038, %v8930, %v8929
        %v8932 = vperm.slane %v8621, %v3040
        %v8933 = vsel %vm3042, %v8932, %v8931
        %v8934 = vperm.slane %v8626, %v3044
        %v8935 = vsel %vm3046, %v8934, %v8933
        %v8936 = vperm.slane %v8631, %v3048
        %v8937 = vsel %vm3050, %v8936, %v8935
        %v8938 = vperm.slane %v8636, %v3052
        %v8939 = vsel %vm3054, %v8938, %v8937
        %v8940 = vperm.slane %v8641, %v3056
        %v8941 = vsel %vm3058, %v8940, %v8939
        %v8942 = vperm.slane %v8646, %v3030
        %v8943 = vperm.slane %v8651, %v3032
        %v8944 = vsel %vm3034, %v8943, %v8942
        %v8945 = vperm.slane %v8656, %v3036
        %v8946 = vsel %vm3038, %v8945, %v8944
        %v8947 = vperm.slane %v8661, %v3040
        %v8948 = vsel %vm3042, %v8947, %v8946
        %v8949 = vperm.slane %v8666, %v3044
        %v8950 = vsel %vm3046, %v8949, %v8948
        %v8951 = vperm.slane %v8671, %v3048
        %v8952 = vsel %vm3050, %v8951, %v8950
        %v8953 = vperm.slane %v8676, %v3052
        %v8954 = vsel %vm3054, %v8953, %v8952
        %v8955 = vperm.slane %v8681, %v3056
        %v8956 = vsel %vm3058, %v8955, %v8954
        %v8957 = vperm.slane %v8686, %v3030
        %v8958 = vperm.slane %v8691, %v3032
        %v8959 = vsel %vm3034, %v8958, %v8957
        %v8960 = vperm.slane %v8696, %v3036
        %v8961 = vsel %vm3038, %v8960, %v8959
        %v8962 = vperm.slane %v8701, %v3040
        %v8963 = vsel %vm3042, %v8962, %v8961
        %v8964 = vperm.slane %v8706, %v3044
        %v8965 = vsel %vm3046, %v8964, %v8963
        %v8966 = vperm.slane %v8711, %v3048
        %v8967 = vsel %vm3050, %v8966, %v8965
        %v8968 = vperm.slane %v8716, %v3052
        %v8969 = vsel %vm3054, %v8968, %v8967
        %v8970 = vperm.slane %v8721, %v3056
        %v8971 = vsel %vm3058, %v8970, %v8969
        %v8972 = vperm.slane %v8726, %v3030
        %v8973 = vperm.slane %v8731, %v3032
        %v8974 = vsel %vm3034, %v8973, %v8972
        %v8975 = vperm.slane %v8736, %v3036
        %v8976 = vsel %vm3038, %v8975, %v8974
        %v8977 = vperm.slane %v8741, %v3040
        %v8978 = vsel %vm3042, %v8977, %v8976
        %v8979 = vperm.slane %v8746, %v3044
        %v8980 = vsel %vm3046, %v8979, %v8978
        %v8981 = vperm.slane %v8751, %v3048
        %v8982 = vsel %vm3050, %v8981, %v8980
        %v8983 = vperm.slane %v8756, %v3052
        %v8984 = vsel %vm3054, %v8983, %v8982
        %v8985 = vperm.slane %v8761, %v3056
        %v8986 = vsel %vm3058, %v8985, %v8984
        %v8987 = vperm.slane %v8766, %v3030
        %v8988 = vperm.slane %v8771, %v3032
        %v8989 = vsel %vm3034, %v8988, %v8987
        %v8990 = vperm.slane %v8776, %v3036
        %v8991 = vsel %vm3038, %v8990, %v8989
        %v8992 = vperm.slane %v8781, %v3040
        %v8993 = vsel %vm3042, %v8992, %v8991
        %v8994 = vperm.slane %v8786, %v3044
        %v8995 = vsel %vm3046, %v8994, %v8993
        %v8996 = vperm.slane %v8791, %v3048
        %v8997 = vsel %vm3050, %v8996, %v8995
        %v8998 = vperm.slane %v8796, %v3052
        %v8999 = vsel %vm3054, %v8998, %v8997
        %v9000 = vperm.slane %v8801, %v3056
        %v9001 = vsel %vm3058, %v9000, %v8999
        %v9002 = vsel %vm1569, %v8911, %v8896
        %v9003 = vsel %vm1565, %v8926, %v9002
        %v9004 = vsel %vm1571, %v8941, %v9003
        %v9005 = vsel %vm1577, %v8956, %v9004
        %v9006 = vsel %vm1583, %v8971, %v9005
        %v9007 = vsel %vm1589, %v8986, %v9006
        %v9008 = vsel %vm3171, %v9001, %v9007
        %v9009 = vsel %vm3173, %v9008, 0
        %9011 = vmatpush.msra.mxu0 0.0
        %9012 = vmatpush.msra.mxu0 0.0
        %9013 = vmatpush.msra.mxu0 0.0
        %9014 = vmatpush.msra.mxu0 0.0
        %9015 = vmatpush.msra.mxu0 0.0
        %9016 = vmatpush.msra.mxu0 0.0
        %9017 = vmatpush.msra.mxu0 0.0
        %9018 = vmatpush.msra.mxu0 0.0
        %9019 = vmatpush.msra.mxu0 %v8816
        %9020 = vmatpush.msra.mxu0 %v8814
        %9021 = vmatpush.msra.mxu0 %v8812
        %9022 = vmatpush.msra.mxu0 %v8810
        %9023 = vmatpush.msra.mxu0 %v8808
        %9024 = vmatpush.msra.mxu0 %v8806
        %9025 = vmatpush.msra.mxu0 %v8804
        %9026 = vmatpush.msra.mxu0 %v8802
        %9027 = vmatmul.f32.gmra.mxu0 %v9009
        %v9028 = vpop.f32.mrf.mxu0
        %v9029 = vadd.f32 0.0, %v9028
        %9030 = vdwg.mxu0
        %9031 = vmatpush.msra.mxu0 0.0
        %9032 = vmatpush.msra.mxu0 0.0
        %9033 = vmatpush.msra.mxu0 0.0
        %9034 = vmatpush.msra.mxu0 0.0
        %9035 = vmatpush.msra.mxu0 0.0
        %9036 = vmatpush.msra.mxu0 0.0
        %9037 = vmatpush.msra.mxu0 0.0
        %9038 = vmatpush.msra.mxu0 0.0
        %9039 = vmatpush.msra.mxu0 %v8817
        %9040 = vmatpush.msra.mxu0 %v8815
        %9041 = vmatpush.msra.mxu0 %v8813
        %9042 = vmatpush.msra.mxu0 %v8811
        %9043 = vmatpush.msra.mxu0 %v8809
        %9044 = vmatpush.msra.mxu0 %v8807
        %9045 = vmatpush.msra.mxu0 %v8805
        %9046 = vmatpush.msra.mxu0 %v8803
        %9047 = vmatmul.f32.gmra.mxu0 %v9009
        %v9048 = vpop.f32.mrf.mxu0
        %v9049 = vadd.f32 0.0, %v9048
        %9050 = vdwg.mxu0
        %v9051 = vadd.f32 %v8117, %v9029
        %v9052 = vadd.f32 %v8118, %v9049
        %v9053 = vld [vmem:[%s19] sm:$0xff]
        %v9054 = vld [vmem:[%s19 + $0x8] sm:$0xff]
        %v9055 = vld [vmem:[%s19 + $0x10] sm:$0xff]
        %v9056 = vld [vmem:[%s19 + $0x18] sm:$0xff]
        %v9057 = vld [vmem:[%s19 + $0x20] sm:$0xff]
        %v9058 = vld [vmem:[%s19 + $0x28] sm:$0xff]
        %v9059 = vld [vmem:[%s19 + $0x30] sm:$0xff]
        %v9060 = vld [vmem:[%s19 + $0x38] sm:$0xff]
        %v9061 = vld [vmem:[%s19 + $0x40] sm:$0xff]
        %v9062 = vld [vmem:[%s19 + $0x48] sm:$0xff]
        %v9063 = vld [vmem:[%s19 + $0x50] sm:$0xff]
        %v9064 = vld [vmem:[%s19 + $0x58] sm:$0xff]
        %v9065 = vld [vmem:[%s19 + $0x60] sm:$0xff]
        %v9066 = vld [vmem:[%s19 + $0x68] sm:$0xff]
        %v9067 = vld [vmem:[%s19 + $0x70] sm:$0xff]
        %v9068 = vld [vmem:[%s19 + $0x78] sm:$0xff]
        %v9069 = vld [vmem:[%s19 + $0x80] sm:$0xff]
        %v9070 = vld [vmem:[%s19 + $0x88] sm:$0xff]
        %v9071 = vld [vmem:[%s19 + $0x90] sm:$0xff]
        %v9072 = vld [vmem:[%s19 + $0x98] sm:$0xff]
        %v9073 = vld [vmem:[%s19 + $0xa0] sm:$0xff]
        %v9074 = vld [vmem:[%s19 + $0xa8] sm:$0xff]
        %v9075 = vld [vmem:[%s19 + $0xb0] sm:$0xff]
        %v9076 = vld [vmem:[%s19 + $0xb8] sm:$0xff]
        %v9077 = vld [vmem:[%s19 + $0xc0] sm:$0xff]
        %v9078 = vld [vmem:[%s19 + $0xc8] sm:$0xff]
        %v9079 = vld [vmem:[%s19 + $0xd0] sm:$0xff]
        %v9080 = vld [vmem:[%s19 + $0xd8] sm:$0xff]
        %v9081 = vld [vmem:[%s19 + $0xe0] sm:$0xff]
        %v9082 = vld [vmem:[%s19 + $0xe8] sm:$0xff]
        %v9083 = vld [vmem:[%s19 + $0xf0] sm:$0xff]
        %v9084 = vld [vmem:[%s19 + $0xf8] sm:$0xff]
        %v9085 = vld [vmem:[%s21] sm:$0xff]
        %v9086 = vld [vmem:[%s21 + $0x8] sm:$0xff]
        %v9087 = vld [vmem:[%s21 + $0x10] sm:$0xff]
        %v9088 = vld [vmem:[%s21 + $0x18] sm:$0xff]
        %v9089 = vld [vmem:[%s21 + $0x20] sm:$0xff]
        %v9090 = vld [vmem:[%s21 + $0x28] sm:$0xff]
        %v9091 = vld [vmem:[%s21 + $0x30] sm:$0xff]
        %v9092 = vld [vmem:[%s21 + $0x38] sm:$0xff]
        %v9093 = vld [vmem:[%s21 + $0x40] sm:$0xff]
        %v9094 = vld [vmem:[%s21 + $0x48] sm:$0xff]
        %v9095 = vld [vmem:[%s21 + $0x50] sm:$0xff]
        %v9096 = vld [vmem:[%s21 + $0x58] sm:$0xff]
        %v9097 = vld [vmem:[%s21 + $0x60] sm:$0xff]
        %v9098 = vld [vmem:[%s21 + $0x68] sm:$0xff]
        %v9099 = vld [vmem:[%s21 + $0x70] sm:$0xff]
        %v9100 = vld [vmem:[%s21 + $0x78] sm:$0xff]
        %v9101 = vld [vmem:[%s21 + $0x80] sm:$0xff]
        %v9102 = vld [vmem:[%s21 + $0x88] sm:$0xff]
        %v9103 = vld [vmem:[%s21 + $0x90] sm:$0xff]
        %v9104 = vld [vmem:[%s21 + $0x98] sm:$0xff]
        %v9105 = vld [vmem:[%s21 + $0xa0] sm:$0xff]
        %v9106 = vld [vmem:[%s21 + $0xa8] sm:$0xff]
        %v9107 = vld [vmem:[%s21 + $0xb0] sm:$0xff]
        %v9108 = vld [vmem:[%s21 + $0xb8] sm:$0xff]
        %v9109 = vld [vmem:[%s21 + $0xc0] sm:$0xff]
        %v9110 = vld [vmem:[%s21 + $0xc8] sm:$0xff]
        %v9111 = vld [vmem:[%s21 + $0xd0] sm:$0xff]
        %v9112 = vld [vmem:[%s21 + $0xd8] sm:$0xff]
        %v9113 = vld [vmem:[%s21 + $0xe0] sm:$0xff]
        %v9114 = vld [vmem:[%s21 + $0xe8] sm:$0xff]
        %v9115 = vld [vmem:[%s21 + $0xf0] sm:$0xff]
        %v9116 = vld [vmem:[%s21 + $0xf8] sm:$0xff]
        %v9117 = vld [vmem:[%s23] sm:$0x3]
        %9118 = vmatpush.msra.mxu0 %v9068
        %9119 = vmatpush.msra.mxu0 %v9067
        %9120 = vmatpush.msra.mxu0 %v9066
        %9121 = vmatpush.msra.mxu0 %v9065
        %9122 = vmatpush.msra.mxu0 %v9064
        %9123 = vmatpush.msra.mxu0 %v9063
        %9124 = vmatpush.msra.mxu0 %v9062
        %9125 = vmatpush.msra.mxu0 %v9061
        %9126 = vmatpush.msra.mxu0 %v9060
        %9127 = vmatpush.msra.mxu0 %v9059
        %9128 = vmatpush.msra.mxu0 %v9058
        %9129 = vmatpush.msra.mxu0 %v9057
        %9130 = vmatpush.msra.mxu0 %v9056
        %9131 = vmatpush.msra.mxu0 %v9055
        %9132 = vmatpush.msra.mxu0 %v9054
        %9133 = vmatpush.msra.mxu0 %v9053
        %9134 = vmatmul.f32.gmra.mxu0 %v9051
        %v9135 = vpop.f32.mrf.mxu0
        %v9136 = vadd.f32 0.0, %v9135
        %9137 = vdwg.mxu0
        %9138 = vmatpush.msra.mxu0 %v9084
        %9139 = vmatpush.msra.mxu0 %v9083
        %9140 = vmatpush.msra.mxu0 %v9082
        %9141 = vmatpush.msra.mxu0 %v9081
        %9142 = vmatpush.msra.mxu0 %v9080
        %9143 = vmatpush.msra.mxu0 %v9079
        %9144 = vmatpush.msra.mxu0 %v9078
        %9145 = vmatpush.msra.mxu0 %v9077
        %9146 = vmatpush.msra.mxu0 %v9076
        %9147 = vmatpush.msra.mxu0 %v9075
        %9148 = vmatpush.msra.mxu0 %v9074
        %9149 = vmatpush.msra.mxu0 %v9073
        %9150 = vmatpush.msra.mxu0 %v9072
        %9151 = vmatpush.msra.mxu0 %v9071
        %9152 = vmatpush.msra.mxu0 %v9070
        %9153 = vmatpush.msra.mxu0 %v9069
        %9154 = vmatmul.f32.gmra.mxu0 %v9052
        %v9155 = vpop.f32.mrf.mxu0
        %v9156 = vadd.f32 %v9136, %v9155
        %9157 = vdwg.mxu0
        %9158 = vmatpush.msra.mxu0 %v9100
        %9159 = vmatpush.msra.mxu0 %v9099
        %9160 = vmatpush.msra.mxu0 %v9098
        %9161 = vmatpush.msra.mxu0 %v9097
        %9162 = vmatpush.msra.mxu0 %v9096
        %9163 = vmatpush.msra.mxu0 %v9095
        %9164 = vmatpush.msra.mxu0 %v9094
        %9165 = vmatpush.msra.mxu0 %v9093
        %9166 = vmatpush.msra.mxu0 %v9092
        %9167 = vmatpush.msra.mxu0 %v9091
        %9168 = vmatpush.msra.mxu0 %v9090
        %9169 = vmatpush.msra.mxu0 %v9089
        %9170 = vmatpush.msra.mxu0 %v9088
        %9171 = vmatpush.msra.mxu0 %v9087
        %9172 = vmatpush.msra.mxu0 %v9086
        %9173 = vmatpush.msra.mxu0 %v9085
        %9174 = vmatmul.f32.gmra.mxu0 %v9051
        %v9175 = vpop.f32.mrf.mxu0
        %v9176 = vadd.f32 0.0, %v9175
        %9177 = vdwg.mxu0
        %9178 = vmatpush.msra.mxu0 %v9116
        %9179 = vmatpush.msra.mxu0 %v9115
        %9180 = vmatpush.msra.mxu0 %v9114
        %9181 = vmatpush.msra.mxu0 %v9113
        %9182 = vmatpush.msra.mxu0 %v9112
        %9183 = vmatpush.msra.mxu0 %v9111
        %9184 = vmatpush.msra.mxu0 %v9110
        %9185 = vmatpush.msra.mxu0 %v9109
        %9186 = vmatpush.msra.mxu0 %v9108
        %9187 = vmatpush.msra.mxu0 %v9107
        %9188 = vmatpush.msra.mxu0 %v9106
        %9189 = vmatpush.msra.mxu0 %v9105
        %9190 = vmatpush.msra.mxu0 %v9104
        %9191 = vmatpush.msra.mxu0 %v9103
        %9192 = vmatpush.msra.mxu0 %v9102
        %9193 = vmatpush.msra.mxu0 %v9101
        %9194 = vmatmul.f32.gmra.mxu0 %v9052
        %v9195 = vpop.f32.mrf.mxu0
        %v9196 = vadd.f32 %v9176, %v9195
        %9197 = vdwg.mxu0
        %9198 = vxpose.xlu0.b32.start [1/16] %v9156, 128
        %9199 = vxpose.xlu0.b32.cont [2/16] 0.0, 128
        %9200 = vxpose.xlu0.b32.cont [3/16] 0.0, 128
        %9201 = vxpose.xlu0.b32.cont [4/16] 0.0, 128
        %9202 = vxpose.xlu0.b32.cont [5/16] 0.0, 128
        %9203 = vxpose.xlu0.b32.cont [6/16] 0.0, 128
        %9204 = vxpose.xlu0.b32.cont [7/16] 0.0, 128
        %9205 = vxpose.xlu0.b32.cont [8/16] 0.0, 128
        %9206 = vxpose.xlu0.b32.cont [9/16] 0.0, 128
        %9207 = vxpose.xlu0.b32.cont [10/16] 0.0, 128
        %9208 = vxpose.xlu0.b32.cont [11/16] 0.0, 128
        %9209 = vxpose.xlu0.b32.cont [12/16] 0.0, 128
        %9210 = vxpose.xlu0.b32.cont [13/16] 0.0, 128
        %9211 = vxpose.xlu0.b32.cont [14/16] 0.0, 128
        %9212 = vxpose.xlu0.b32.cont [15/16] 0.0, 128
        %9213 = vxpose.xlu0.b32.end [16/16] 0.0, 128
        %v9214 = vpop.trf.xlu0
        %v9215 = vpop.trf.xlu0
        %v9216 = vpop.trf.xlu0
        %v9217 = vpop.trf.xlu0
        %v9218 = vpop.trf.xlu0
        %v9219 = vpop.trf.xlu0
        %v9220 = vpop.trf.xlu0
        %v9221 = vpop.trf.xlu0
        %v9222 = vpop.trf.xlu0
        %v9223 = vpop.trf.xlu0
        %v9224 = vpop.trf.xlu0
        %v9225 = vpop.trf.xlu0
        %v9226 = vpop.trf.xlu0
        %v9227 = vpop.trf.xlu0
        %v9228 = vpop.trf.xlu0
        %v9229 = vpop.trf.xlu0
        %9231 = vset.pattern.permute.xlu0 0
        %9232 = vperm.xlu0 %9231, %v9196
        %v9233 = vpop.permute.xlu0 %9232
        %v9235 = vperm.slane %v9214, 0
        %v9236 = vadd.f32 %v9233, %v9235
        %vm9237 = vcmp.gt.f32.partialorder %v9236, 0.0
        %v9238 = vmul.f32 %v9236, 0.2
        %v9239 = vsel %vm9237, %v9236, %v9238
        %vm9240 = vcmask 64512
        %v9241 = vsel %vm9240, %v9239, -inf
        %9242 = vmax.xlane.f32.xlu0 %v9241
        %v9243 = vpop.xlane.xlu0 %9242
        %v9244 = vsub.f32 %v9239, %v9243
        %v9245 = vmul.f32 %v9244, 1.442695
        %v9246 = vpow.pop %v9245
        %v9247 = vsel %vm9240, %v9246, 0.0
        %9248 = vadd.xlane.f32.xlu0 %v9247
        %v9249 = vpop.xlane.xlu0 %9248
        %v9250 = vrcp.pop %v9249
        %v9251 = vmul.f32 %v9246, %v9250
        %v9253 = vperm.slane %v9117, 0
        %v9254 = vperm.slane %v9117, 1
        %v9258 = vsel %vm9240, %v9251, 0
        %9260 = vmatpush.msra.mxu0 0.0
        %9261 = vmatpush.msra.mxu0 0.0
        %9262 = vmatpush.msra.mxu0 0.0
        %9263 = vmatpush.msra.mxu0 0.0
        %9264 = vmatpush.msra.mxu0 0.0
        %9265 = vmatpush.msra.mxu0 0.0
        %9266 = vmatpush.msra.mxu0 0.0
        %9267 = vmatpush.msra.mxu0 0.0
        %9268 = vmatpush.msra.mxu0 0.0
        %9269 = vmatpush.msra.mxu0 0.0
        %9270 = vmatpush.msra.mxu0 0.0
        %9271 = vmatpush.msra.mxu0 0.0
        %9272 = vmatpush.msra.mxu0 0.0
        %9273 = vmatpush.msra.mxu0 0.0
        %9274 = vmatpush.msra.mxu0 0.0
        %9275 = vmatpush.msra.mxu0 %v9051
        %9276 = vmatmul.f32.gmra.mxu0 %v9258
        %v9277 = vpop.f32.mrf.mxu0
        %v9278 = vadd.f32 %v9253, %v9277
        %9279 = vdwg.mxu0
        %9280 = vmatpush.msra.mxu0 0.0
        %9281 = vmatpush.msra.mxu0 0.0
        %9282 = vmatpush.msra.mxu0 0.0
        %9283 = vmatpush.msra.mxu0 0.0
        %9284 = vmatpush.msra.mxu0 0.0
        %9285 = vmatpush.msra.mxu0 0.0
        %9286 = vmatpush.msra.mxu0 0.0
        %9287 = vmatpush.msra.mxu0 0.0
        %9288 = vmatpush.msra.mxu0 0.0
        %9289 = vmatpush.msra.mxu0 0.0
        %9290 = vmatpush.msra.mxu0 0.0
        %9291 = vmatpush.msra.mxu0 0.0
        %9292 = vmatpush.msra.mxu0 0.0
        %9293 = vmatpush.msra.mxu0 0.0
        %9294 = vmatpush.msra.mxu0 0.0
        %9295 = vmatpush.msra.mxu0 %v9052
        %9296 = vmatmul.f32.gmra.mxu0 %v9258
        %v9297 = vpop.f32.mrf.mxu0
        %v9298 = vadd.f32 %v9254, %v9297
        %9299 = vdwg.mxu0
        %v9300 = vld [vmem:[%s25] sm:$0xff]
        %v9301 = vld [vmem:[%s25 + $0x8] sm:$0xff]
        %v9302 = vld [vmem:[%s25 + $0x10] sm:$0xff]
        %v9303 = vld [vmem:[%s25 + $0x18] sm:$0xff]
        %v9304 = vld [vmem:[%s25 + $0x20] sm:$0xff]
        %v9305 = vld [vmem:[%s25 + $0x28] sm:$0xff]
        %v9306 = vld [vmem:[%s25 + $0x30] sm:$0xff]
        %v9307 = vld [vmem:[%s25 + $0x38] sm:$0xff]
        %v9308 = vld [vmem:[%s25 + $0x40] sm:$0xff]
        %v9309 = vld [vmem:[%s25 + $0x48] sm:$0xff]
        %v9310 = vld [vmem:[%s25 + $0x50] sm:$0xff]
        %v9311 = vld [vmem:[%s25 + $0x58] sm:$0xff]
        %v9312 = vld [vmem:[%s25 + $0x60] sm:$0xff]
        %v9313 = vld [vmem:[%s25 + $0x68] sm:$0xff]
        %v9314 = vld [vmem:[%s25 + $0x70] sm:$0xff]
        %v9315 = vld [vmem:[%s25 + $0x78] sm:$0xff]
        %v9316 = vld [vmem:[%s25 + $0x80] sm:$0xff]
        %v9317 = vld [vmem:[%s25 + $0x88] sm:$0xff]
        %v9318 = vld [vmem:[%s25 + $0x90] sm:$0xff]
        %v9319 = vld [vmem:[%s25 + $0x98] sm:$0xff]
        %v9320 = vld [vmem:[%s25 + $0xa0] sm:$0xff]
        %v9321 = vld [vmem:[%s25 + $0xa8] sm:$0xff]
        %v9322 = vld [vmem:[%s25 + $0xb0] sm:$0xff]
        %v9323 = vld [vmem:[%s25 + $0xb8] sm:$0xff]
        %v9324 = vld [vmem:[%s25 + $0xc0] sm:$0xff]
        %v9325 = vld [vmem:[%s25 + $0xc8] sm:$0xff]
        %v9326 = vld [vmem:[%s25 + $0xd0] sm:$0xff]
        %v9327 = vld [vmem:[%s25 + $0xd8] sm:$0xff]
        %v9328 = vld [vmem:[%s25 + $0xe0] sm:$0xff]
        %v9329 = vld [vmem:[%s25 + $0xe8] sm:$0xff]
        %v9330 = vld [vmem:[%s25 + $0xf0] sm:$0xff]
        %v9331 = vld [vmem:[%s25 + $0xf8] sm:$0xff]
        %9332 = vmatpush.msra.mxu0 %v9315
        %9333 = vmatpush.msra.mxu0 %v9314
        %9334 = vmatpush.msra.mxu0 %v9313
        %9335 = vmatpush.msra.mxu0 %v9312
        %9336 = vmatpush.msra.mxu0 %v9311
        %9337 = vmatpush.msra.mxu0 %v9310
        %9338 = vmatpush.msra.mxu0 %v9309
        %9339 = vmatpush.msra.mxu0 %v9308
        %9340 = vmatpush.msra.mxu0 %v9307
        %9341 = vmatpush.msra.mxu0 %v9306
        %9342 = vmatpush.msra.mxu0 %v9305
        %9343 = vmatpush.msra.mxu0 %v9304
        %9344 = vmatpush.msra.mxu0 %v9303
        %9345 = vmatpush.msra.mxu0 %v9302
        %9346 = vmatpush.msra.mxu0 %v9301
        %9347 = vmatpush.msra.mxu0 %v9300
        %9348 = vmatmul.f32.gmra.mxu0 %v9278
        %v9349 = vpop.f32.mrf.mxu0
        %v9350 = vadd.f32 0.0, %v9349
        %9351 = vdwg.mxu0
        %9352 = vmatpush.msra.mxu0 %v9331
        %9353 = vmatpush.msra.mxu0 %v9330
        %9354 = vmatpush.msra.mxu0 %v9329
        %9355 = vmatpush.msra.mxu0 %v9328
        %9356 = vmatpush.msra.mxu0 %v9327
        %9357 = vmatpush.msra.mxu0 %v9326
        %9358 = vmatpush.msra.mxu0 %v9325
        %9359 = vmatpush.msra.mxu0 %v9324
        %9360 = vmatpush.msra.mxu0 %v9323
        %9361 = vmatpush.msra.mxu0 %v9322
        %9362 = vmatpush.msra.mxu0 %v9321
        %9363 = vmatpush.msra.mxu0 %v9320
        %9364 = vmatpush.msra.mxu0 %v9319
        %9365 = vmatpush.msra.mxu0 %v9318
        %9366 = vmatpush.msra.mxu0 %v9317
        %9367 = vmatpush.msra.mxu0 %v9316
        %9368 = vmatmul.f32.gmra.mxu0 %v9298
        %v9369 = vpop.f32.mrf.mxu0
        %v9370 = vadd.f32 %v9350, %v9369
        %9371 = vdwg.mxu0
        %v9372 = vld [vmem:[%s27] sm:$0xff]
        %v9373 = vld [vmem:[%s27 + $0x8] sm:$0xff]
        %v9374 = vld [vmem:[%s27 + $0x10] sm:$0xff]
        %v9375 = vld [vmem:[%s27 + $0x18] sm:$0xff]
        %v9376 = vld [vmem:[%s27 + $0x20] sm:$0xff]
        %v9377 = vld [vmem:[%s27 + $0x28] sm:$0xff]
        %v9378 = vld [vmem:[%s27 + $0x30] sm:$0xff]
        %v9379 = vld [vmem:[%s27 + $0x38] sm:$0xff]
        %v9380 = vld [vmem:[%s27 + $0x40] sm:$0xff]
        %v9381 = vld [vmem:[%s27 + $0x48] sm:$0xff]
        %v9382 = vld [vmem:[%s27 + $0x50] sm:$0xff]
        %v9383 = vld [vmem:[%s27 + $0x58] sm:$0xff]
        %v9384 = vld [vmem:[%s27 + $0x60] sm:$0xff]
        %v9385 = vld [vmem:[%s27 + $0x68] sm:$0xff]
        %v9386 = vld [vmem:[%s27 + $0x70] sm:$0xff]
        %v9387 = vld [vmem:[%s27 + $0x78] sm:$0xff]
        %v9388 = vld [vmem:[%s29] sm:$0xff]
        %v9389 = vld [vmem:[%s29 + $0x8] sm:$0xff]
        %v9390 = vld [vmem:[%s29 + $0x10] sm:$0xff]
        %v9391 = vld [vmem:[%s29 + $0x18] sm:$0xff]
        %v9392 = vld [vmem:[%s29 + $0x20] sm:$0xff]
        %v9393 = vld [vmem:[%s29 + $0x28] sm:$0xff]
        %v9394 = vld [vmem:[%s29 + $0x30] sm:$0xff]
        %v9395 = vld [vmem:[%s29 + $0x38] sm:$0xff]
        %v9396 = vld [vmem:[%s29 + $0x40] sm:$0xff]
        %v9397 = vld [vmem:[%s29 + $0x48] sm:$0xff]
        %v9398 = vld [vmem:[%s29 + $0x50] sm:$0xff]
        %v9399 = vld [vmem:[%s29 + $0x58] sm:$0xff]
        %v9400 = vld [vmem:[%s29 + $0x60] sm:$0xff]
        %v9401 = vld [vmem:[%s29 + $0x68] sm:$0xff]
        %v9402 = vld [vmem:[%s29 + $0x70] sm:$0xff]
        %v9403 = vld [vmem:[%s29 + $0x78] sm:$0xff]
        %v9404 = vld [vmem:[%s31] sm:$0x1]
        %9405 = vmatpush.msra.mxu0 %v9387
        %9406 = vmatpush.msra.mxu0 %v9386
        %9407 = vmatpush.msra.mxu0 %v9385
        %9408 = vmatpush.msra.mxu0 %v9384
        %9409 = vmatpush.msra.mxu0 %v9383
        %9410 = vmatpush.msra.mxu0 %v9382
        %9411 = vmatpush.msra.mxu0 %v9381
        %9412 = vmatpush.msra.mxu0 %v9380
        %9413 = vmatpush.msra.mxu0 %v9379
        %9414 = vmatpush.msra.mxu0 %v9378
        %9415 = vmatpush.msra.mxu0 %v9377
        %9416 = vmatpush.msra.mxu0 %v9376
        %9417 = vmatpush.msra.mxu0 %v9375
        %9418 = vmatpush.msra.mxu0 %v9374
        %9419 = vmatpush.msra.mxu0 %v9373
        %9420 = vmatpush.msra.mxu0 %v9372
        %9421 = vmatmul.f32.gmra.mxu0 %v9370
        %v9422 = vpop.f32.mrf.mxu0
        %v9423 = vadd.f32 0.0, %v9422
        %9424 = vdwg.mxu0
        %9425 = vmatpush.msra.mxu0 %v9403
        %9426 = vmatpush.msra.mxu0 %v9402
        %9427 = vmatpush.msra.mxu0 %v9401
        %9428 = vmatpush.msra.mxu0 %v9400
        %9429 = vmatpush.msra.mxu0 %v9399
        %9430 = vmatpush.msra.mxu0 %v9398
        %9431 = vmatpush.msra.mxu0 %v9397
        %9432 = vmatpush.msra.mxu0 %v9396
        %9433 = vmatpush.msra.mxu0 %v9395
        %9434 = vmatpush.msra.mxu0 %v9394
        %9435 = vmatpush.msra.mxu0 %v9393
        %9436 = vmatpush.msra.mxu0 %v9392
        %9437 = vmatpush.msra.mxu0 %v9391
        %9438 = vmatpush.msra.mxu0 %v9390
        %9439 = vmatpush.msra.mxu0 %v9389
        %9440 = vmatpush.msra.mxu0 %v9388
        %9441 = vmatmul.f32.gmra.mxu0 %v9370
        %v9442 = vpop.f32.mrf.mxu0
        %v9443 = vadd.f32 0.0, %v9442
        %9444 = vdwg.mxu0
        %9445 = vxpose.xlu0.b32.start [1/16] %v9423, 128
        %9446 = vxpose.xlu0.b32.cont [2/16] 0.0, 128
        %9447 = vxpose.xlu0.b32.cont [3/16] 0.0, 128
        %9448 = vxpose.xlu0.b32.cont [4/16] 0.0, 128
        %9449 = vxpose.xlu0.b32.cont [5/16] 0.0, 128
        %9450 = vxpose.xlu0.b32.cont [6/16] 0.0, 128
        %9451 = vxpose.xlu0.b32.cont [7/16] 0.0, 128
        %9452 = vxpose.xlu0.b32.cont [8/16] 0.0, 128
        %9453 = vxpose.xlu0.b32.cont [9/16] 0.0, 128
        %9454 = vxpose.xlu0.b32.cont [10/16] 0.0, 128
        %9455 = vxpose.xlu0.b32.cont [11/16] 0.0, 128
        %9456 = vxpose.xlu0.b32.cont [12/16] 0.0, 128
        %9457 = vxpose.xlu0.b32.cont [13/16] 0.0, 128
        %9458 = vxpose.xlu0.b32.cont [14/16] 0.0, 128
        %9459 = vxpose.xlu0.b32.cont [15/16] 0.0, 128
        %9460 = vxpose.xlu0.b32.end [16/16] 0.0, 128
        %v9461 = vpop.trf.xlu0
        %v9462 = vpop.trf.xlu0
        %v9463 = vpop.trf.xlu0
        %v9464 = vpop.trf.xlu0
        %v9465 = vpop.trf.xlu0
        %v9466 = vpop.trf.xlu0
        %v9467 = vpop.trf.xlu0
        %v9468 = vpop.trf.xlu0
        %v9469 = vpop.trf.xlu0
        %v9470 = vpop.trf.xlu0
        %v9471 = vpop.trf.xlu0
        %v9472 = vpop.trf.xlu0
        %v9473 = vpop.trf.xlu0
        %v9474 = vpop.trf.xlu0
        %v9475 = vpop.trf.xlu0
        %v9476 = vpop.trf.xlu0
        %9478 = vset.pattern.permute.xlu0 0
        %9479 = vperm.xlu0 %9478, %v9443
        %v9480 = vpop.permute.xlu0 %9479
        %v9482 = vperm.slane %v9461, 0
        %v9483 = vadd.f32 %v9480, %v9482
        %vm9484 = vcmp.gt.f32.partialorder %v9483, 0.0
        %v9485 = vmul.f32 %v9483, 0.2
        %v9486 = vsel %vm9484, %v9483, %v9485
        %v9487 = vsel %vm9240, %v9486, -inf
        %9488 = vmax.xlane.f32.xlu0 %v9487
        %v9489 = vpop.xlane.xlu0 %9488
        %v9490 = vsub.f32 %v9486, %v9489
        %v9491 = vmul.f32 %v9490, 1.442695
        %v9492 = vpow.pop %v9491
        %v9493 = vsel %vm9240, %v9492, 0.0
        %9494 = vadd.xlane.f32.xlu0 %v9493
        %v9495 = vpop.xlane.xlu0 %9494
        %v9496 = vrcp.pop %v9495
        %v9497 = vmul.f32 %v9492, %v9496
        %v9499 = vperm.slane %v9404, 0
        %v9502 = vsel %vm9240, %v9497, 0
        %9504 = vmatpush.msra.mxu0 0.0
        %9505 = vmatpush.msra.mxu0 0.0
        %9506 = vmatpush.msra.mxu0 0.0
        %9507 = vmatpush.msra.mxu0 0.0
        %9508 = vmatpush.msra.mxu0 0.0
        %9509 = vmatpush.msra.mxu0 0.0
        %9510 = vmatpush.msra.mxu0 0.0
        %9511 = vmatpush.msra.mxu0 0.0
        %9512 = vmatpush.msra.mxu0 0.0
        %9513 = vmatpush.msra.mxu0 0.0
        %9514 = vmatpush.msra.mxu0 0.0
        %9515 = vmatpush.msra.mxu0 0.0
        %9516 = vmatpush.msra.mxu0 0.0
        %9517 = vmatpush.msra.mxu0 0.0
        %9518 = vmatpush.msra.mxu0 0.0
        %9519 = vmatpush.msra.mxu0 %v9370
        %9520 = vmatmul.f32.gmra.mxu0 %v9502
        %v9521 = vpop.f32.mrf.mxu0
        %v9522 = vadd.f32 %v9499, %v9521
        %9523 = vdwg.mxu0
        %v9524 = vld [vmem:[%s33] sm:$0xff]
        %v9525 = vld [vmem:[%s33 + $0x8] sm:$0xff]
        %v9526 = vld [vmem:[%s33 + $0x10] sm:$0xff]
        %v9527 = vld [vmem:[%s33 + $0x18] sm:$0xff]
        %v9528 = vld [vmem:[%s33 + $0x20] sm:$0xff]
        %v9529 = vld [vmem:[%s33 + $0x28] sm:$0xff]
        %v9530 = vld [vmem:[%s33 + $0x30] sm:$0xff]
        %v9531 = vld [vmem:[%s33 + $0x38] sm:$0xff]
        %v9532 = vld [vmem:[%s33 + $0x40] sm:$0xff]
        %v9533 = vld [vmem:[%s33 + $0x48] sm:$0xff]
        %v9534 = vld [vmem:[%s33 + $0x50] sm:$0xff]
        %v9535 = vld [vmem:[%s33 + $0x58] sm:$0xff]
        %v9536 = vld [vmem:[%s33 + $0x60] sm:$0xff]
        %v9537 = vld [vmem:[%s33 + $0x68] sm:$0xff]
        %v9538 = vld [vmem:[%s33 + $0x70] sm:$0xff]
        %v9539 = vld [vmem:[%s33 + $0x78] sm:$0xff]
        %9540 = vmatpush.msra.mxu0 %v9539
        %9541 = vmatpush.msra.mxu0 %v9538
        %9542 = vmatpush.msra.mxu0 %v9537
        %9543 = vmatpush.msra.mxu0 %v9536
        %9544 = vmatpush.msra.mxu0 %v9535
        %9545 = vmatpush.msra.mxu0 %v9534
        %9546 = vmatpush.msra.mxu0 %v9533
        %9547 = vmatpush.msra.mxu0 %v9532
        %9548 = vmatpush.msra.mxu0 %v9531
        %9549 = vmatpush.msra.mxu0 %v9530
        %9550 = vmatpush.msra.mxu0 %v9529
        %9551 = vmatpush.msra.mxu0 %v9528
        %9552 = vmatpush.msra.mxu0 %v9527
        %9553 = vmatpush.msra.mxu0 %v9526
        %9554 = vmatpush.msra.mxu0 %v9525
        %9555 = vmatpush.msra.mxu0 %v9524
        %9556 = vmatmul.f32.gmra.mxu0 %v9522
        %v9557 = vpop.f32.mrf.mxu0
        %v9558 = vadd.f32 0.0, %v9557
        %9559 = vdwg.mxu0
        %v9560 = vld [vmem:[%s35] sm:$0xff]
        %v9561 = vld [vmem:[%s35 + $0x8] sm:$0xff]
        %v9562 = vld [vmem:[%s35 + $0x10] sm:$0xff]
        %v9563 = vld [vmem:[%s35 + $0x18] sm:$0xff]
        %v9564 = vld [vmem:[%s35 + $0x20] sm:$0xff]
        %v9565 = vld [vmem:[%s35 + $0x28] sm:$0xff]
        %v9566 = vld [vmem:[%s35 + $0x30] sm:$0xff]
        %v9567 = vld [vmem:[%s35 + $0x38] sm:$0xff]
        %v9568 = vld [vmem:[%s37] sm:$0xff]
        %v9569 = vld [vmem:[%s37 + $0x8] sm:$0xff]
        %v9570 = vld [vmem:[%s37 + $0x10] sm:$0xff]
        %v9571 = vld [vmem:[%s37 + $0x18] sm:$0xff]
        %v9572 = vld [vmem:[%s37 + $0x20] sm:$0xff]
        %v9573 = vld [vmem:[%s37 + $0x28] sm:$0xff]
        %v9574 = vld [vmem:[%s37 + $0x30] sm:$0xff]
        %v9575 = vld [vmem:[%s37 + $0x38] sm:$0xff]
        %v9576 = vld [vmem:[%s39] sm:$0x1]
        %v9578 = vsel %vm3173, %v9558, 0
        %9580 = vmatpush.msra.mxu0 0.0
        %9581 = vmatpush.msra.mxu0 0.0
        %9582 = vmatpush.msra.mxu0 0.0
        %9583 = vmatpush.msra.mxu0 0.0
        %9584 = vmatpush.msra.mxu0 0.0
        %9585 = vmatpush.msra.mxu0 0.0
        %9586 = vmatpush.msra.mxu0 0.0
        %9587 = vmatpush.msra.mxu0 0.0
        %9588 = vmatpush.msra.mxu0 %v9567
        %9589 = vmatpush.msra.mxu0 %v9566
        %9590 = vmatpush.msra.mxu0 %v9565
        %9591 = vmatpush.msra.mxu0 %v9564
        %9592 = vmatpush.msra.mxu0 %v9563
        %9593 = vmatpush.msra.mxu0 %v9562
        %9594 = vmatpush.msra.mxu0 %v9561
        %9595 = vmatpush.msra.mxu0 %v9560
        %9596 = vmatmul.f32.gmra.mxu0 %v9578
        %v9597 = vpop.f32.mrf.mxu0
        %v9598 = vadd.f32 0.0, %v9597
        %9599 = vdwg.mxu0
        %9600 = vmatpush.msra.mxu0 0.0
        %9601 = vmatpush.msra.mxu0 0.0
        %9602 = vmatpush.msra.mxu0 0.0
        %9603 = vmatpush.msra.mxu0 0.0
        %9604 = vmatpush.msra.mxu0 0.0
        %9605 = vmatpush.msra.mxu0 0.0
        %9606 = vmatpush.msra.mxu0 0.0
        %9607 = vmatpush.msra.mxu0 0.0
        %9608 = vmatpush.msra.mxu0 %v9575
        %9609 = vmatpush.msra.mxu0 %v9574
        %9610 = vmatpush.msra.mxu0 %v9573
        %9611 = vmatpush.msra.mxu0 %v9572
        %9612 = vmatpush.msra.mxu0 %v9571
        %9613 = vmatpush.msra.mxu0 %v9570
        %9614 = vmatpush.msra.mxu0 %v9569
        %9615 = vmatpush.msra.mxu0 %v9568
        %9616 = vmatmul.f32.gmra.mxu0 %v9578
        %v9617 = vpop.f32.mrf.mxu0
        %v9618 = vadd.f32 0.0, %v9617
        %9619 = vdwg.mxu0
        %9620 = vxpose.xlu0.b32.start [1/16] %v9598, 128
        %9621 = vxpose.xlu0.b32.cont [2/16] 0.0, 128
        %9622 = vxpose.xlu0.b32.cont [3/16] 0.0, 128
        %9623 = vxpose.xlu0.b32.cont [4/16] 0.0, 128
        %9624 = vxpose.xlu0.b32.cont [5/16] 0.0, 128
        %9625 = vxpose.xlu0.b32.cont [6/16] 0.0, 128
        %9626 = vxpose.xlu0.b32.cont [7/16] 0.0, 128
        %9627 = vxpose.xlu0.b32.cont [8/16] 0.0, 128
        %9628 = vxpose.xlu0.b32.cont [9/16] 0.0, 128
        %9629 = vxpose.xlu0.b32.cont [10/16] 0.0, 128
        %9630 = vxpose.xlu0.b32.cont [11/16] 0.0, 128
        %9631 = vxpose.xlu0.b32.cont [12/16] 0.0, 128
        %9632 = vxpose.xlu0.b32.cont [13/16] 0.0, 128
        %9633 = vxpose.xlu0.b32.cont [14/16] 0.0, 128
        %9634 = vxpose.xlu0.b32.cont [15/16] 0.0, 128
        %9635 = vxpose.xlu0.b32.end [16/16] 0.0, 128
        %v9636 = vpop.trf.xlu0
        %v9637 = vpop.trf.xlu0
        %v9638 = vpop.trf.xlu0
        %v9639 = vpop.trf.xlu0
        %v9640 = vpop.trf.xlu0
        %v9641 = vpop.trf.xlu0
        %v9642 = vpop.trf.xlu0
        %v9643 = vpop.trf.xlu0
        %v9644 = vpop.trf.xlu0
        %v9645 = vpop.trf.xlu0
        %v9646 = vpop.trf.xlu0
        %v9647 = vpop.trf.xlu0
        %v9648 = vpop.trf.xlu0
        %v9649 = vpop.trf.xlu0
        %v9650 = vpop.trf.xlu0
        %v9651 = vpop.trf.xlu0
        %9653 = vset.pattern.permute.xlu0 0
        %9654 = vperm.xlu0 %9653, %v9618
        %v9655 = vpop.permute.xlu0 %9654
        %v9657 = vperm.slane %v9636, 0
        %v9658 = vadd.f32 %v9655, %v9657
        %vm9659 = vcmp.gt.f32.partialorder %v9658, 0.0
        %v9660 = vmul.f32 %v9658, 0.2
        %v9661 = vsel %vm9659, %v9658, %v9660
        %v9662 = vsel %vm9240, %v9661, -inf
        %9663 = vmax.xlane.f32.xlu0 %v9662
        %v9664 = vpop.xlane.xlu0 %9663
        %v9665 = vsub.f32 %v9661, %v9664
        %v9666 = vmul.f32 %v9665, 1.442695
        %v9667 = vpow.pop %v9666
        %v9668 = vsel %vm9240, %v9667, 0.0
        %9669 = vadd.xlane.f32.xlu0 %v9668
        %v9670 = vpop.xlane.xlu0 %9669
        %v9671 = vrcp.pop %v9670
        %v9672 = vmul.f32 %v9667, %v9671
        %v9674 = vperm.slane %v9576, 0
        %v9677 = vsel %vm9240, %v9672, 0
        %9679 = vmatpush.msra.mxu0 0.0
        %9680 = vmatpush.msra.mxu0 0.0
        %9681 = vmatpush.msra.mxu0 0.0
        %9682 = vmatpush.msra.mxu0 0.0
        %9683 = vmatpush.msra.mxu0 0.0
        %9684 = vmatpush.msra.mxu0 0.0
        %9685 = vmatpush.msra.mxu0 0.0
        %9686 = vmatpush.msra.mxu0 0.0
        %9687 = vmatpush.msra.mxu0 0.0
        %9688 = vmatpush.msra.mxu0 0.0
        %9689 = vmatpush.msra.mxu0 0.0
        %9690 = vmatpush.msra.mxu0 0.0
        %9691 = vmatpush.msra.mxu0 0.0
        %9692 = vmatpush.msra.mxu0 0.0
        %9693 = vmatpush.msra.mxu0 0.0
        %9694 = vmatpush.msra.mxu0 %v9558
        %9695 = vmatmul.f32.gmra.mxu0 %v9677
        %v9696 = vpop.f32.mrf.mxu0
        %v9697 = vadd.f32 %v9674, %v9696
        %9698 = vdwg.mxu0
        %v9699 = vld [vmem:[%s41] sm:$0xff]
        %v9700 = vld [vmem:[%s41 + $0x8] sm:$0xff]
        %v9701 = vld [vmem:[%s41 + $0x10] sm:$0xff]
        %v9702 = vld [vmem:[%s41 + $0x18] sm:$0xff]
        %v9703 = vld [vmem:[%s41 + $0x20] sm:$0xff]
        %v9704 = vld [vmem:[%s41 + $0x28] sm:$0xff]
        %v9705 = vld [vmem:[%s41 + $0x30] sm:$0xff]
        %v9706 = vld [vmem:[%s41 + $0x38] sm:$0xff]
        %v9708 = vsel %vm3173, %v9697, 0
        %9710 = vmatpush.msra.mxu0 0.0
        %9711 = vmatpush.msra.mxu0 0.0
        %9712 = vmatpush.msra.mxu0 0.0
        %9713 = vmatpush.msra.mxu0 0.0
        %9714 = vmatpush.msra.mxu0 0.0
        %9715 = vmatpush.msra.mxu0 0.0
        %9716 = vmatpush.msra.mxu0 0.0
        %9717 = vmatpush.msra.mxu0 0.0
        %9718 = vmatpush.msra.mxu0 %v9706
        %9719 = vmatpush.msra.mxu0 %v9705
        %9720 = vmatpush.msra.mxu0 %v9704
        %9721 = vmatpush.msra.mxu0 %v9703
        %9722 = vmatpush.msra.mxu0 %v9702
        %9723 = vmatpush.msra.mxu0 %v9701
        %9724 = vmatpush.msra.mxu0 %v9700
        %9725 = vmatpush.msra.mxu0 %v9699
        %9726 = vmatmul.f32.gmra.mxu0 %v9708
        %v9727 = vpop.f32.mrf.mxu0
        %v9728 = vadd.f32 0.0, %v9727
        %9729 = vdwg.mxu0
        %v9730 = vld [vmem:[%s43] sm:$0xff]
        %v9731 = vld [vmem:[%s43 + $0x8] sm:$0xff]
        %v9732 = vld [vmem:[%s45] sm:$0xff]
        %v9733 = vld [vmem:[%s45 + $0x8] sm:$0xff]
        %v9734 = vld [vmem:[%s47] sm:$0x1]
        %vm9735 = vcmask 130048
        %v9737 = vsel %vm9735, %v9728, 0
        %9739 = vmatpush.msra.mxu0 0.0
        %9740 = vmatpush.msra.mxu0 0.0
        %9741 = vmatpush.msra.mxu0 0.0
        %9742 = vmatpush.msra.mxu0 0.0
        %9743 = vmatpush.msra.mxu0 0.0
        %9744 = vmatpush.msra.mxu0 0.0
        %9745 = vmatpush.msra.mxu0 0.0
        %9746 = vmatpush.msra.mxu0 0.0
        %9747 = vmatpush.msra.mxu0 0.0
        %9748 = vmatpush.msra.mxu0 0.0
        %9749 = vmatpush.msra.mxu0 0.0
        %9750 = vmatpush.msra.mxu0 0.0
        %9751 = vmatpush.msra.mxu0 0.0
        %9752 = vmatpush.msra.mxu0 0.0
        %9753 = vmatpush.msra.mxu0 %v9731
        %9754 = vmatpush.msra.mxu0 %v9730
        %9755 = vmatmul.f32.gmra.mxu0 %v9737
        %v9756 = vpop.f32.mrf.mxu0
        %v9757 = vadd.f32 0.0, %v9756
        %9758 = vdwg.mxu0
        %9759 = vmatpush.msra.mxu0 0.0
        %9760 = vmatpush.msra.mxu0 0.0
        %9761 = vmatpush.msra.mxu0 0.0
        %9762 = vmatpush.msra.mxu0 0.0
        %9763 = vmatpush.msra.mxu0 0.0
        %9764 = vmatpush.msra.mxu0 0.0
        %9765 = vmatpush.msra.mxu0 0.0
        %9766 = vmatpush.msra.mxu0 0.0
        %9767 = vmatpush.msra.mxu0 0.0
        %9768 = vmatpush.msra.mxu0 0.0
        %9769 = vmatpush.msra.mxu0 0.0
        %9770 = vmatpush.msra.mxu0 0.0
        %9771 = vmatpush.msra.mxu0 0.0
        %9772 = vmatpush.msra.mxu0 0.0
        %9773 = vmatpush.msra.mxu0 %v9733
        %9774 = vmatpush.msra.mxu0 %v9732
        %9775 = vmatmul.f32.gmra.mxu0 %v9737
        %v9776 = vpop.f32.mrf.mxu0
        %v9777 = vadd.f32 0.0, %v9776
        %9778 = vdwg.mxu0
        %9779 = vxpose.xlu0.b32.start [1/16] %v9757, 128
        %9780 = vxpose.xlu0.b32.cont [2/16] 0.0, 128
        %9781 = vxpose.xlu0.b32.cont [3/16] 0.0, 128
        %9782 = vxpose.xlu0.b32.cont [4/16] 0.0, 128
        %9783 = vxpose.xlu0.b32.cont [5/16] 0.0, 128
        %9784 = vxpose.xlu0.b32.cont [6/16] 0.0, 128
        %9785 = vxpose.xlu0.b32.cont [7/16] 0.0, 128
        %9786 = vxpose.xlu0.b32.cont [8/16] 0.0, 128
        %9787 = vxpose.xlu0.b32.cont [9/16] 0.0, 128
        %9788 = vxpose.xlu0.b32.cont [10/16] 0.0, 128
        %9789 = vxpose.xlu0.b32.cont [11/16] 0.0, 128
        %9790 = vxpose.xlu0.b32.cont [12/16] 0.0, 128
        %9791 = vxpose.xlu0.b32.cont [13/16] 0.0, 128
        %9792 = vxpose.xlu0.b32.cont [14/16] 0.0, 128
        %9793 = vxpose.xlu0.b32.cont [15/16] 0.0, 128
        %9794 = vxpose.xlu0.b32.end [16/16] 0.0, 128
        %v9795 = vpop.trf.xlu0
        %v9796 = vpop.trf.xlu0
        %v9797 = vpop.trf.xlu0
        %v9798 = vpop.trf.xlu0
        %v9799 = vpop.trf.xlu0
        %v9800 = vpop.trf.xlu0
        %v9801 = vpop.trf.xlu0
        %v9802 = vpop.trf.xlu0
        %v9803 = vpop.trf.xlu0
        %v9804 = vpop.trf.xlu0
        %v9805 = vpop.trf.xlu0
        %v9806 = vpop.trf.xlu0
        %v9807 = vpop.trf.xlu0
        %v9808 = vpop.trf.xlu0
        %v9809 = vpop.trf.xlu0
        %v9810 = vpop.trf.xlu0
        %9812 = vset.pattern.permute.xlu0 0
        %9813 = vperm.xlu0 %9812, %v9777
        %v9814 = vpop.permute.xlu0 %9813
        %v9816 = vperm.slane %v9795, 0
        %v9817 = vadd.f32 %v9814, %v9816
        %vm9818 = vcmp.gt.f32.partialorder %v9817, 0.0
        %v9819 = vmul.f32 %v9817, 0.2
        %v9820 = vsel %vm9818, %v9817, %v9819
        %v9821 = vsel %vm9240, %v9820, -inf
        %9822 = vmax.xlane.f32.xlu0 %v9821
        %v9823 = vpop.xlane.xlu0 %9822
        %v9824 = vsub.f32 %v9820, %v9823
        %v9825 = vmul.f32 %v9824, 1.442695
        %v9826 = vpow.pop %v9825
        %v9827 = vsel %vm9240, %v9826, 0.0
        %9828 = vadd.xlane.f32.xlu0 %v9827
        %v9829 = vpop.xlane.xlu0 %9828
        %v9830 = vrcp.pop %v9829
        %v9831 = vmul.f32 %v9826, %v9830
        %v9833 = vperm.slane %v9734, 0
        %v9836 = vsel %vm9240, %v9831, 0
        %9838 = vmatpush.msra.mxu0 0.0
        %9839 = vmatpush.msra.mxu0 0.0
        %9840 = vmatpush.msra.mxu0 0.0
        %9841 = vmatpush.msra.mxu0 0.0
        %9842 = vmatpush.msra.mxu0 0.0
        %9843 = vmatpush.msra.mxu0 0.0
        %9844 = vmatpush.msra.mxu0 0.0
        %9845 = vmatpush.msra.mxu0 0.0
        %9846 = vmatpush.msra.mxu0 0.0
        %9847 = vmatpush.msra.mxu0 0.0
        %9848 = vmatpush.msra.mxu0 0.0
        %9849 = vmatpush.msra.mxu0 0.0
        %9850 = vmatpush.msra.mxu0 0.0
        %9851 = vmatpush.msra.mxu0 0.0
        %9852 = vmatpush.msra.mxu0 0.0
        %9853 = vmatpush.msra.mxu0 %v9728
        %9854 = vmatmul.f32.gmra.mxu0 %v9836
        %v9855 = vpop.f32.mrf.mxu0
        %v9856 = vadd.f32 %v9833, %v9855
        %9857 = vdwg.mxu0
        %v9858 = vld [vmem:[%s49] sm:$0xff]
        %v9859 = vld [vmem:[%s49 + $0x8] sm:$0xff]
        %v9861 = vsel %vm9735, %v9856, 0
        %9863 = vmatpush.msra.mxu0 0.0
        %9864 = vmatpush.msra.mxu0 0.0
        %9865 = vmatpush.msra.mxu0 0.0
        %9866 = vmatpush.msra.mxu0 0.0
        %9867 = vmatpush.msra.mxu0 0.0
        %9868 = vmatpush.msra.mxu0 0.0
        %9869 = vmatpush.msra.mxu0 0.0
        %9870 = vmatpush.msra.mxu0 0.0
        %9871 = vmatpush.msra.mxu0 0.0
        %9872 = vmatpush.msra.mxu0 0.0
        %9873 = vmatpush.msra.mxu0 0.0
        %9874 = vmatpush.msra.mxu0 0.0
        %9875 = vmatpush.msra.mxu0 0.0
        %9876 = vmatpush.msra.mxu0 0.0
        %9877 = vmatpush.msra.mxu0 %v9859
        %9878 = vmatpush.msra.mxu0 %v9858
        %9879 = vmatmul.f32.gmra.mxu0 %v9861
        %v9880 = vpop.f32.mrf.mxu0
        %v9881 = vadd.f32 0.0, %v9880
        %9882 = vdwg.mxu0
        %v9883 = vld [vmem:[%s51] sm:$0xff]
        %v9884 = vld [vmem:[%s53] sm:$0xff]
        %v9885 = vld [vmem:[%s55] sm:$0x1]
        %v9887 = vsel %vm9240, %v9881, 0
        %9889 = vmatpush.msra.mxu0 0.0
        %9890 = vmatpush.msra.mxu0 0.0
        %9891 = vmatpush.msra.mxu0 0.0
        %9892 = vmatpush.msra.mxu0 0.0
        %9893 = vmatpush.msra.mxu0 0.0
        %9894 = vmatpush.msra.mxu0 0.0
        %9895 = vmatpush.msra.mxu0 0.0
        %9896 = vmatpush.msra.mxu0 0.0
        %9897 = vmatpush.msra.mxu0 0.0
        %9898 = vmatpush.msra.mxu0 0.0
        %9899 = vmatpush.msra.mxu0 0.0
        %9900 = vmatpush.msra.mxu0 0.0
        %9901 = vmatpush.msra.mxu0 0.0
        %9902 = vmatpush.msra.mxu0 0.0
        %9903 = vmatpush.msra.mxu0 0.0
        %9904 = vmatpush.msra.mxu0 %v9883
        %9905 = vmatmul.f32.gmra.mxu0 %v9887
        %v9906 = vpop.f32.mrf.mxu0
        %v9907 = vadd.f32 0.0, %v9906
        %9908 = vdwg.mxu0
        %9909 = vmatpush.msra.mxu0 0.0
        %9910 = vmatpush.msra.mxu0 0.0
        %9911 = vmatpush.msra.mxu0 0.0
        %9912 = vmatpush.msra.mxu0 0.0
        %9913 = vmatpush.msra.mxu0 0.0
        %9914 = vmatpush.msra.mxu0 0.0
        %9915 = vmatpush.msra.mxu0 0.0
        %9916 = vmatpush.msra.mxu0 0.0
        %9917 = vmatpush.msra.mxu0 0.0
        %9918 = vmatpush.msra.mxu0 0.0
        %9919 = vmatpush.msra.mxu0 0.0
        %9920 = vmatpush.msra.mxu0 0.0
        %9921 = vmatpush.msra.mxu0 0.0
        %9922 = vmatpush.msra.mxu0 0.0
        %9923 = vmatpush.msra.mxu0 0.0
        %9924 = vmatpush.msra.mxu0 %v9884
        %9925 = vmatmul.f32.gmra.mxu0 %v9887
        %v9926 = vpop.f32.mrf.mxu0
        %v9927 = vadd.f32 0.0, %v9926
        %9928 = vdwg.mxu0
        %9929 = vxpose.xlu0.b32.start [1/16] %v9907, 128
        %9930 = vxpose.xlu0.b32.cont [2/16] 0.0, 128
        %9931 = vxpose.xlu0.b32.cont [3/16] 0.0, 128
        %9932 = vxpose.xlu0.b32.cont [4/16] 0.0, 128
        %9933 = vxpose.xlu0.b32.cont [5/16] 0.0, 128
        %9934 = vxpose.xlu0.b32.cont [6/16] 0.0, 128
        %9935 = vxpose.xlu0.b32.cont [7/16] 0.0, 128
        %9936 = vxpose.xlu0.b32.cont [8/16] 0.0, 128
        %9937 = vxpose.xlu0.b32.cont [9/16] 0.0, 128
        %9938 = vxpose.xlu0.b32.cont [10/16] 0.0, 128
        %9939 = vxpose.xlu0.b32.cont [11/16] 0.0, 128
        %9940 = vxpose.xlu0.b32.cont [12/16] 0.0, 128
        %9941 = vxpose.xlu0.b32.cont [13/16] 0.0, 128
        %9942 = vxpose.xlu0.b32.cont [14/16] 0.0, 128
        %9943 = vxpose.xlu0.b32.cont [15/16] 0.0, 128
        %9944 = vxpose.xlu0.b32.end [16/16] 0.0, 128
        %v9945 = vpop.trf.xlu0
        %v9946 = vpop.trf.xlu0
        %v9947 = vpop.trf.xlu0
        %v9948 = vpop.trf.xlu0
        %v9949 = vpop.trf.xlu0
        %v9950 = vpop.trf.xlu0
        %v9951 = vpop.trf.xlu0
        %v9952 = vpop.trf.xlu0
        %v9953 = vpop.trf.xlu0
        %v9954 = vpop.trf.xlu0
        %v9955 = vpop.trf.xlu0
        %v9956 = vpop.trf.xlu0
        %v9957 = vpop.trf.xlu0
        %v9958 = vpop.trf.xlu0
        %v9959 = vpop.trf.xlu0
        %v9960 = vpop.trf.xlu0
        %9962 = vset.pattern.permute.xlu0 0
        %9963 = vperm.xlu0 %9962, %v9927
        %v9964 = vpop.permute.xlu0 %9963
        %v9966 = vperm.slane %v9945, 0
        %v9967 = vadd.f32 %v9964, %v9966
        %vm9968 = vcmp.gt.f32.partialorder %v9967, 0.0
        %v9969 = vmul.f32 %v9967, 0.2
        %v9970 = vsel %vm9968, %v9967, %v9969
        %v9971 = vsel %vm9240, %v9970, -inf
        %9972 = vmax.xlane.f32.xlu0 %v9971
        %v9973 = vpop.xlane.xlu0 %9972
        %v9974 = vsub.f32 %v9970, %v9973
        %v9975 = vmul.f32 %v9974, 1.442695
        %v9976 = vpow.pop %v9975
        %v9977 = vsel %vm9240, %v9976, 0.0
        %9978 = vadd.xlane.f32.xlu0 %v9977
        %v9979 = vpop.xlane.xlu0 %9978
        %v9980 = vrcp.pop %v9979
        %v9981 = vmul.f32 %v9976, %v9980
        %v9983 = vperm.slane %v9885, 0
        %v9986 = vsel %vm9240, %v9981, 0
        %9988 = vmatpush.msra.mxu0 0.0
        %9989 = vmatpush.msra.mxu0 0.0
        %9990 = vmatpush.msra.mxu0 0.0
        %9991 = vmatpush.msra.mxu0 0.0
        %9992 = vmatpush.msra.mxu0 0.0
        %9993 = vmatpush.msra.mxu0 0.0
        %9994 = vmatpush.msra.mxu0 0.0
        %9995 = vmatpush.msra.mxu0 0.0
        %9996 = vmatpush.msra.mxu0 0.0
        %9997 = vmatpush.msra.mxu0 0.0
        %9998 = vmatpush.msra.mxu0 0.0
        %9999 = vmatpush.msra.mxu0 0.0
        %10000 = vmatpush.msra.mxu0 0.0
        %10001 = vmatpush.msra.mxu0 0.0
        %10002 = vmatpush.msra.mxu0 0.0
        %10003 = vmatpush.msra.mxu0 %v9881
        %10004 = vmatmul.f32.gmra.mxu0 %v9986
        %v10005 = vpop.f32.mrf.mxu0
        %v10006 = vadd.f32 %v9983, %v10005
        %10007 = vdwg.mxu0
        %v10008 = vld [vmem:[%s57] sm:$0xff]
        %v10009 = vld [vmem:[%s57 + $0x8] sm:$0xff]
        %v10010 = vld [vmem:[%s57 + $0x10] sm:$0xff]
        %v10011 = vld [vmem:[%s57 + $0x18] sm:$0xff]
        %v10012 = vld [vmem:[%s57 + $0x20] sm:$0xff]
        %v10013 = vld [vmem:[%s57 + $0x28] sm:$0xff]
        %v10014 = vld [vmem:[%s57 + $0x30] sm:$0xff]
        %v10015 = vld [vmem:[%s57 + $0x38] sm:$0xff]
        %v10016 = vld [vmem:[%s61] sm:$0x1]
        %v10018 = vsel %vm3173, %v1259, 0
        %10020 = vmatpush.msra.mxu0 0.0
        %10021 = vmatpush.msra.mxu0 0.0
        %10022 = vmatpush.msra.mxu0 0.0
        %10023 = vmatpush.msra.mxu0 0.0
        %10024 = vmatpush.msra.mxu0 0.0
        %10025 = vmatpush.msra.mxu0 0.0
        %10026 = vmatpush.msra.mxu0 0.0
        %10027 = vmatpush.msra.mxu0 0.0
        %10028 = vmatpush.msra.mxu0 %v10015
        %10029 = vmatpush.msra.mxu0 %v10014
        %10030 = vmatpush.msra.mxu0 %v10013
        %10031 = vmatpush.msra.mxu0 %v10012
        %10032 = vmatpush.msra.mxu0 %v10011
        %10033 = vmatpush.msra.mxu0 %v10010
        %10034 = vmatpush.msra.mxu0 %v10009
        %10035 = vmatpush.msra.mxu0 %v10008
        %10036 = vmatmul.f32.gmra.mxu0 %v10018
        %v10037 = vpop.f32.mrf.mxu0
        %v10038 = vadd.f32 %v10016, %v10037
        %10039 = vdwg.mxu0
        %v10040 = vld [vmem:[%s59] sm:$0xff]
        %v10042 = vsel %vm9240, %v10006, 0
        %10044 = vmatpush.msra.mxu0 0.0
        %10045 = vmatpush.msra.mxu0 0.0
        %10046 = vmatpush.msra.mxu0 0.0
        %10047 = vmatpush.msra.mxu0 0.0
        %10048 = vmatpush.msra.mxu0 0.0
        %10049 = vmatpush.msra.mxu0 0.0
        %10050 = vmatpush.msra.mxu0 0.0
        %10051 = vmatpush.msra.mxu0 0.0
        %10052 = vmatpush.msra.mxu0 0.0
        %10053 = vmatpush.msra.mxu0 0.0
        %10054 = vmatpush.msra.mxu0 0.0
        %10055 = vmatpush.msra.mxu0 0.0
        %10056 = vmatpush.msra.mxu0 0.0
        %10057 = vmatpush.msra.mxu0 0.0
        %10058 = vmatpush.msra.mxu0 0.0
        %10059 = vmatpush.msra.mxu0 %v10040
        %10060 = vmatmul.f32.gmra.mxu0 %v10042
        %v10061 = vpop.f32.mrf.mxu0
        %v10062 = vadd.f32 0.0, %v10061
        %10063 = vdwg.mxu0
        %v10064 = vadd.f32 %v10038, %v10062
        %v10065 = vld [vmem:[%s59 + $0x8] sm:$0xff]
        %v10066 = vrot.slane %v10006, 1
        %v10067 = vsel %vm9240, %v10066, 0
        %10069 = vmatpush.msra.mxu0 0.0
        %10070 = vmatpush.msra.mxu0 0.0
        %10071 = vmatpush.msra.mxu0 0.0
        %10072 = vmatpush.msra.mxu0 0.0
        %10073 = vmatpush.msra.mxu0 0.0
        %10074 = vmatpush.msra.mxu0 0.0
        %10075 = vmatpush.msra.mxu0 0.0
        %10076 = vmatpush.msra.mxu0 0.0
        %10077 = vmatpush.msra.mxu0 0.0
        %10078 = vmatpush.msra.mxu0 0.0
        %10079 = vmatpush.msra.mxu0 0.0
        %10080 = vmatpush.msra.mxu0 0.0
        %10081 = vmatpush.msra.mxu0 0.0
        %10082 = vmatpush.msra.mxu0 0.0
        %10083 = vmatpush.msra.mxu0 0.0
        %10084 = vmatpush.msra.mxu0 %v10065
        %10085 = vmatmul.f32.gmra.mxu0 %v10067
        %v10086 = vpop.f32.mrf.mxu0
        %v10087 = vadd.f32 0.0, %v10086
        %10088 = vdwg.mxu0
        %v10089 = vadd.f32 %v10064, %v10087
        %v10090 = vld [vmem:[%s59 + $0x10] sm:$0xff]
        %v10091 = vrot.slane %v10006, 2
        %v10092 = vsel %vm9240, %v10091, 0
        %10094 = vmatpush.msra.mxu0 0.0
        %10095 = vmatpush.msra.mxu0 0.0
        %10096 = vmatpush.msra.mxu0 0.0
        %10097 = vmatpush.msra.mxu0 0.0
        %10098 = vmatpush.msra.mxu0 0.0
        %10099 = vmatpush.msra.mxu0 0.0
        %10100 = vmatpush.msra.mxu0 0.0
        %10101 = vmatpush.msra.mxu0 0.0
        %10102 = vmatpush.msra.mxu0 0.0
        %10103 = vmatpush.msra.mxu0 0.0
        %10104 = vmatpush.msra.mxu0 0.0
        %10105 = vmatpush.msra.mxu0 0.0
        %10106 = vmatpush.msra.mxu0 0.0
        %10107 = vmatpush.msra.mxu0 0.0
        %10108 = vmatpush.msra.mxu0 0.0
        %10109 = vmatpush.msra.mxu0 %v10090
        %10110 = vmatmul.f32.gmra.mxu0 %v10092
        %v10111 = vpop.f32.mrf.mxu0
        %v10112 = vadd.f32 0.0, %v10111
        %10113 = vdwg.mxu0
        %v10114 = vadd.f32 %v10089, %v10112
        %v10115 = vld [vmem:[%s59 + $0x18] sm:$0xff]
        %v10116 = vrot.slane %v10006, 3
        %v10117 = vsel %vm9240, %v10116, 0
        %10119 = vmatpush.msra.mxu0 0.0
        %10120 = vmatpush.msra.mxu0 0.0
        %10121 = vmatpush.msra.mxu0 0.0
        %10122 = vmatpush.msra.mxu0 0.0
        %10123 = vmatpush.msra.mxu0 0.0
        %10124 = vmatpush.msra.mxu0 0.0
        %10125 = vmatpush.msra.mxu0 0.0
        %10126 = vmatpush.msra.mxu0 0.0
        %10127 = vmatpush.msra.mxu0 0.0
        %10128 = vmatpush.msra.mxu0 0.0
        %10129 = vmatpush.msra.mxu0 0.0
        %10130 = vmatpush.msra.mxu0 0.0
        %10131 = vmatpush.msra.mxu0 0.0
        %10132 = vmatpush.msra.mxu0 0.0
        %10133 = vmatpush.msra.mxu0 0.0
        %10134 = vmatpush.msra.mxu0 %v10115
        %10135 = vmatmul.f32.gmra.mxu0 %v10117
        %v10136 = vpop.f32.mrf.mxu0
        %v10137 = vadd.f32 0.0, %v10136
        %10138 = vdwg.mxu0
        %v10139 = vadd.f32 %v10114, %v10137
        %v10140 = vld [vmem:[%s59 + $0x20] sm:$0xff]
        %v10141 = vrot.slane %v10006, 4
        %v10142 = vsel %vm9240, %v10141, 0
        %10144 = vmatpush.msra.mxu0 0.0
        %10145 = vmatpush.msra.mxu0 0.0
        %10146 = vmatpush.msra.mxu0 0.0
        %10147 = vmatpush.msra.mxu0 0.0
        %10148 = vmatpush.msra.mxu0 0.0
        %10149 = vmatpush.msra.mxu0 0.0
        %10150 = vmatpush.msra.mxu0 0.0
        %10151 = vmatpush.msra.mxu0 0.0
        %10152 = vmatpush.msra.mxu0 0.0
        %10153 = vmatpush.msra.mxu0 0.0
        %10154 = vmatpush.msra.mxu0 0.0
        %10155 = vmatpush.msra.mxu0 0.0
        %10156 = vmatpush.msra.mxu0 0.0
        %10157 = vmatpush.msra.mxu0 0.0
        %10158 = vmatpush.msra.mxu0 0.0
        %10159 = vmatpush.msra.mxu0 %v10140
        %10160 = vmatmul.f32.gmra.mxu0 %v10142
        %v10161 = vpop.f32.mrf.mxu0
        %v10162 = vadd.f32 0.0, %v10161
        %10163 = vdwg.mxu0
        %v10164 = vadd.f32 %v10139, %v10162
        %v10165 = vld [vmem:[%s59 + $0x28] sm:$0xff]
        %v10166 = vrot.slane %v10006, 5
        %v10167 = vsel %vm9240, %v10166, 0
        %10169 = vmatpush.msra.mxu0 0.0
        %10170 = vmatpush.msra.mxu0 0.0
        %10171 = vmatpush.msra.mxu0 0.0
        %10172 = vmatpush.msra.mxu0 0.0
        %10173 = vmatpush.msra.mxu0 0.0
        %10174 = vmatpush.msra.mxu0 0.0
        %10175 = vmatpush.msra.mxu0 0.0
        %10176 = vmatpush.msra.mxu0 0.0
        %10177 = vmatpush.msra.mxu0 0.0
        %10178 = vmatpush.msra.mxu0 0.0
        %10179 = vmatpush.msra.mxu0 0.0
        %10180 = vmatpush.msra.mxu0 0.0
        %10181 = vmatpush.msra.mxu0 0.0
        %10182 = vmatpush.msra.mxu0 0.0
        %10183 = vmatpush.msra.mxu0 0.0
        %10184 = vmatpush.msra.mxu0 %v10165
        %10185 = vmatmul.f32.gmra.mxu0 %v10167
        %v10186 = vpop.f32.mrf.mxu0
        %v10187 = vadd.f32 0.0, %v10186
        %10188 = vdwg.mxu0
        %v10189 = vadd.f32 %v10164, %v10187
        %v10190 = vld [vmem:[%s59 + $0x30] sm:$0xff]
        %v10191 = vrot.slane %v10006, 6
        %v10192 = vsel %vm9240, %v10191, 0
        %10194 = vmatpush.msra.mxu0 0.0
        %10195 = vmatpush.msra.mxu0 0.0
        %10196 = vmatpush.msra.mxu0 0.0
        %10197 = vmatpush.msra.mxu0 0.0
        %10198 = vmatpush.msra.mxu0 0.0
        %10199 = vmatpush.msra.mxu0 0.0
        %10200 = vmatpush.msra.mxu0 0.0
        %10201 = vmatpush.msra.mxu0 0.0
        %10202 = vmatpush.msra.mxu0 0.0
        %10203 = vmatpush.msra.mxu0 0.0
        %10204 = vmatpush.msra.mxu0 0.0
        %10205 = vmatpush.msra.mxu0 0.0
        %10206 = vmatpush.msra.mxu0 0.0
        %10207 = vmatpush.msra.mxu0 0.0
        %10208 = vmatpush.msra.mxu0 0.0
        %10209 = vmatpush.msra.mxu0 %v10190
        %10210 = vmatmul.f32.gmra.mxu0 %v10192
        %v10211 = vpop.f32.mrf.mxu0
        %v10212 = vadd.f32 0.0, %v10211
        %10213 = vdwg.mxu0
        %v10214 = vadd.f32 %v10189, %v10212
        %v10215 = vld [vmem:[%s59 + $0x38] sm:$0xff]
        %v10216 = vrot.slane %v10006, 7
        %v10217 = vsel %vm9240, %v10216, 0
        %10219 = vmatpush.msra.mxu0 0.0
        %10220 = vmatpush.msra.mxu0 0.0
        %10221 = vmatpush.msra.mxu0 0.0
        %10222 = vmatpush.msra.mxu0 0.0
        %10223 = vmatpush.msra.mxu0 0.0
        %10224 = vmatpush.msra.mxu0 0.0
        %10225 = vmatpush.msra.mxu0 0.0
        %10226 = vmatpush.msra.mxu0 0.0
        %10227 = vmatpush.msra.mxu0 0.0
        %10228 = vmatpush.msra.mxu0 0.0
        %10229 = vmatpush.msra.mxu0 0.0
        %10230 = vmatpush.msra.mxu0 0.0
        %10231 = vmatpush.msra.mxu0 0.0
        %10232 = vmatpush.msra.mxu0 0.0
        %10233 = vmatpush.msra.mxu0 0.0
        %10234 = vmatpush.msra.mxu0 %v10215
        %10235 = vmatmul.f32.gmra.mxu0 %v10217
        %v10236 = vpop.f32.mrf.mxu0
        %v10237 = vadd.f32 0.0, %v10236
        %10238 = vdwg.mxu0
        %v10239 = vadd.f32 %v10214, %v10237
        %v10240 = vmul.f32 %v10239, %v10239
        %vm10241 = vcmask 516096
        %v10242 = vsel %vm10241, %v10240, 0.0
        %10243 = vadd.xlane.f32.xlu0 %v10242
        %v10244 = vpop.xlane.xlu0 %10243
        %v10245 = vmax.f32 %v10244, 1e-24
        %v10246 = vrsqrt.pop %v10245
        %v10247 = vmul.f32 %v10246, %v10245
        %v10248 = vmul.f32 %v10247, %v10246
        %v10249 = vmul.f32 0.5, %v10248
        %v10250 = vsub.f32 1.5, %v10249
        %v10251 = vmul.f32 %v10246, %v10250
        %vm10252 = vweird.f32 %v10245
        %vm10253 = vweird.f32 %v10246
        %vm10254 = vmor %vm10252, %vm10253
        %v10255 = vsel %vm10254, %v10246, %v10251
        %v10256 = vmul.f32 %v10239, %v10255
        %10257 = vst.msk [vmem:[%s965] sm:$0x1] %vm10241, %v10256
        %s10258 = sand.u32 %s746, 1
        %s10259 = scalar_lea.sflag [#allocation3], %s10258
        %s10260 = sand.u32 %s746, 1
        %s10261 = scalar_lea.vmem [#allocation2], %s10260
        // Predicated region
        $region145: #{scene_graph_forward.1} parent=143 // pred_check
          %p10262 = pneg %p756
        $region146: #{scene_graph_forward.1} parent=143 // pred_check_branch
          %10264 = sbr.rel (%p10262) target = $region148
        $region147: #{scene_graph_forward.1} parent=143 // pred_region
          %10266 = vsyncadd %s10259, 0
          %s10267 = scalar_lea.hbm %s63, %s77
          %s10269 = sshll.u32 %s10261, 4
          %s10270 = int_to_ptr.vmem [resolvable:$true] %s10269
          %s10271 = sshll.u32 %s10267, 4
          %s10272 = int_to_ptr.hbm [resolvable:$true] %s10271
          %10274 = dma.vmem_to_hbm [thread:$0]  %s10270, 16, %s10272, %s10259
        $region148: #{scene_graph_forward.1} parent=143 // pred_fallthru
          _
      $region144: #{scene_graph_forward.1} parent=5 // pred_fallthru
        _
      %p10275 = scmp.le.s32.totalorder 2, %s72
      // Predicated region
      $region149: #{scene_graph_forward.1} parent=5 // pred_check
        %p10276 = pneg %p10275
      $region150: #{scene_graph_forward.1} parent=5 // pred_check_branch
        %10278 = sbr.rel (%p10276) target = $region152
      $region151: #{scene_graph_forward.1} parent=5 // pred_region
        %s10279 = ssub.s32 %s72, 2
        // Predicated region
        $region153: #{scene_graph_forward.1} parent=151 // pred_check
          %p10280 = pneg %p762
        $region154: #{scene_graph_forward.1} parent=151 // pred_check_branch
          %10282 = sbr.rel (%p10280) target = $region156
        $region155: #{scene_graph_forward.1} parent=151 // pred_region
          %s10283 = sand.u32 %s747, 1
          %s10284 = scalar_lea.sflag [#allocation3], %s10283
          %s10285 = sand.u32 %s747, 1
          %s10286 = scalar_lea.vmem [#allocation2], %s10285
          %10288 = dma.done %s10284, 16
        $region156: #{scene_graph_forward.1} parent=151 // pred_fallthru
          _
      $region152: #{scene_graph_forward.1} parent=5 // pred_fallthru
        _
    $region6: #{scene_graph_forward.1} parent=1 // loop_footer
      %s76 = sadd.s32 1, %s72
    $region7: #{scene_graph_forward.1} parent=1 // loop_footer_branch
      %71 = sbr.rel target = $region3
    $region8: #{scene_graph_forward.1} parent=1 // loop_exit
      _
    %10289 = vsyncpa [#allocation3], 1
    %s10290 = scalar_lea.sflag [#allocation3], 1
    %10291 = vsyncpa %s10290, 1

</llo_original>
